<compile_context>
chip_gen: v5e
topology: v5e:2x2
jax: 0.10.0
libtpu: 0.0.40
codegen_flags: <defaults>
</compile_context>

<pallas_src>
import functools

import jax
import jax.numpy as jnp
from jax.experimental import pallas as pl
from jax.experimental.pallas import tpu as pltpu


# --------------------------------------------------------------------------- #
# Helpers                                                                      #
# --------------------------------------------------------------------------- #
def _round_up(v, m):
    return (v + m - 1) // m * m


def _silu(x):
    return x * jax.nn.sigmoid(x)


def _fold_bn(w, gamma, beta, mean, var, eps):
    """Fold eval-mode BatchNorm into the conv: returns (w_folded, bias_folded)."""
    scale = gamma / jnp.sqrt(var + eps)
    return w * scale[:, None, None, None], beta - mean * scale


def _pad2d(a, rows, cols):
    return jnp.pad(a, ((0, rows - a.shape[0]), (0, cols - a.shape[1])))


# --------------------------------------------------------------------------- #
# Wrapper: BN folding, weight packing, pallas_call, un-padding.                #
# --------------------------------------------------------------------------- #
@functools.partial(jax.jit, static_argnames=("mxu_dtype",))
def ghost_bottleneck_forward(x, params, *, mxu_dtype=jnp.bfloat16):
    """GhostBottleneck forward (s=1, eval-mode BN). x is NCHW, like PyTorch."""
    eps = 1e-5
    f32 = jnp.float32
    N, C1, H, W = x.shape

    # ---- fold BatchNorm into each of the four convs (inference semantics) ----
    w1, b1 = _fold_bn(params["pw1_w"], params["bn1_g"], params["bn1_b"],
                      params["bn1_m"], params["bn1_v"], eps)
    wd1, bd1 = _fold_bn(params["dw1_w"], params["bn2_g"], params["bn2_b"],
                        params["bn2_m"], params["bn2_v"], eps)
    w2, b2 = _fold_bn(params["pw2_w"], params["bn3_g"], params["bn3_b"],
                      params["bn3_m"], params["bn3_v"], eps)
    wd2, bd2 = _fold_bn(params["dw2_w"], params["bn4_g"], params["bn4_b"],
                        params["bn4_m"], params["bn4_v"], eps)

    cg1 = w1.shape[0]              # GhostConv1 half-width (c_/2)
    cg2 = w2.shape[0]              # GhostConv2 half-width (c2/2)
    assert 2 * cg2 == C1, "s == 1 GhostBottleneck needs c2 == c1 for the identity shortcut"
    assert W % 8 == 0, "TODO(synk): W not a multiple of 8 needs a wrapper-side pad"

    CP = _round_up(max(C1, cg1, cg2, 1), 128)      # lane-dense channel slab width
    C1p = _round_up(C1, 8)                         # compact (sublane-friendly) input width
    HW = H * W
    Hc, Wc = H + 4, _round_up(W + 4, 8)            # in-kernel canvas: 2-px zero ring
    assert 2 * cg2 <= CP

    # ---- compact channels-last input: (N, H*W, C1p) ----
    x_nhwc = jnp.transpose(x, (0, 2, 3, 1))
    x_flat = jnp.pad(x_nhwc.reshape(N, HW, C1), ((0, 0), (0, 0), (0, C1p - C1)))

    # ---- pack weights into lane-dense matmul / tap operands ----
    # pw1: (C1p, CP); real block (C1, cg1).
    w1_p = _pad2d(w1[:, :, 0, 0].T, C1p, CP).astype(mxu_dtype)
    b1_p = _pad2d(b1[None, :], 1, CP).astype(f32)
    # dw1 taps, tap-major (kh*5+kw): (25, CP), channels in lanes [0, cg1).
    wd1_p = _pad2d(wd1[:, 0].reshape(cg1, 25).T, 25, CP).astype(f32)
    bd1_p = _pad2d(bd1[None, :], 1, CP).astype(f32)
    # pw2: channel concat folded into two matmuls; output columns DUPLICATED into
    # [cg2, 2*cg2) so the second depthwise can emit z2 directly in concat position.
    w2_mat = w2[:, :, 0, 0].T                      # (2*cg1, cg2)

    def _dup_cols(m):                              # (r, cg2) -> (CP, CP)
        return _pad2d(jnp.concatenate([m, m], axis=1), CP, CP)

    w2a_p = _dup_cols(w2_mat[:cg1]).astype(mxu_dtype)      # rows hitting the y1 slab
    w2b_p = _dup_cols(w2_mat[cg1:]).astype(mxu_dtype)      # rows hitting the y2 slab
    b2_p = _pad2d(jnp.concatenate([b2, b2])[None, :], 1, CP).astype(f32)
    # dw2 taps live in lanes [cg2, 2*cg2): they read the z1 duplicate and write z2
    # straight into its concat position.
    wd2_p = jnp.pad(wd2[:, 0].reshape(cg2, 25).T,
                    ((0, 0), (cg2, CP - 2 * cg2))).astype(f32)
    bd2_p = jnp.pad(bd2[None, :], ((0, 0), (cg2, CP - 2 * cg2))).astype(f32)

    # ------------------------------------------------------------------ kernel
    def kernel(x_ref, w1_ref, b1_ref, wd1_ref, bd1_ref,
               w2a_ref, w2b_ref, b2_ref, wd2_ref, bd2_ref,
               o_ref, canvas_ref):

        def dw5x5(taps_ref):
            # kw (sublane) shifts hoisted: one shifted column load per kw, then the kh
            # loop is pure FMAs; 5 independent accumulators -> VALU-friendly ILP.
            parts = []
            for kw in range(5):
                col = canvas_ref[:, kw:kw + W, :]                 # (Hc, W, CP)
                acc = taps_ref[kw, :].reshape(1, 1, CP) * col[0:H]
                for kh in range(1, 5):
                    acc = acc + taps_ref[kh * 5 + kw, :].reshape(1, 1, CP) * col[kh:kh + H]
                parts.append(acc)
            return ((parts[0] + parts[1]) + (parts[2] + parts[3])) + parts[4]

        x2 = x_ref[0]                                             # (HW, C1p) f32

        # ---- GhostConv1.cv1: 1x1 conv (+BN folded) + SiLU, interior rows only ----
        y1 = jnp.dot(x2.astype(w1_ref.dtype), w1_ref[...],
                     preferred_element_type=jnp.float32) + b1_ref[...]
        y1 = _silu(y1)                                            # lanes >= cg1 stay 0

        # ---- build the shared VMEM canvas: zero 2-px ring + y1 interior ----
        # (ring re-zeroed every step: scratch is per-core under the parallel grid)
        canvas_ref[0:2, :, :] = jnp.zeros((2, Wc, CP), jnp.float32)
        canvas_ref[2 + H:Hc, :, :] = jnp.zeros((Hc - H - 2, Wc, CP), jnp.float32)
        canvas_ref[:, 0:2, :] = jnp.zeros((Hc, 2, CP), jnp.float32)
        canvas_ref[:, 2 + W:Wc, :] = jnp.zeros((Hc, Wc - W - 2, CP), jnp.float32)
        canvas_ref[2:2 + H, 2:2 + W, :] = y1.reshape(H, W, CP)

        # ---- GhostConv1.cv2: 5x5 depthwise (+BN) + SiLU ----
        y2 = _silu(dw5x5(wd1_ref) + bd1_ref[...].reshape(1, 1, CP))

        # ---- GhostConv2.cv1: 1x1 conv (+BN) over cat[y1, y2] (concat folded) ----
        z1 = (jnp.dot(y1.astype(w2a_ref.dtype), w2a_ref[...],
                      preferred_element_type=jnp.float32)
              + jnp.dot(y2.reshape(HW, CP).astype(w2b_ref.dtype), w2b_ref[...],
                        preferred_element_type=jnp.float32)
              + b2_ref[...])                # real z1 at lanes [0,cg2) AND [cg2,2cg2)

        # ---- GhostConv2.cv2: 5x5 depthwise (+BN), no activation ----
        canvas_ref[2:2 + H, 2:2 + W, :] = z1.reshape(H, W, CP)    # ring still zero
        z2 = dw5x5(wd2_ref) + bd2_ref[...].reshape(1, 1, CP)      # lands at [cg2,2cg2)

        # ---- fused epilogue: channel concat + identity shortcut, one dense store ----
        lane = jax.lax.broadcasted_iota(jnp.int32, (HW, CP), 1)
        z1_half = jnp.where(lane < cg2, z1, 0.0)                  # drop the duplicate
        if CP > C1p:
            xp = jnp.concatenate(
                [x2, jnp.zeros((HW, CP - C1p), jnp.float32)], axis=-1)
        else:
            xp = x2
        o_ref[0] = (z1_half + z2.reshape(HW, CP) + xp).astype(o_ref.dtype)

    # ---------------------------------------------------------------- specs
    inputs = (x_flat, w1_p, b1_p, wd1_p, bd1_p, w2a_p, w2b_p, b2_p, wd2_p, bd2_p)
    resident = lambda n: (0, 0)
    in_specs = [
        pl.BlockSpec((1, HW, C1p), lambda n: (n, 0, 0)),
        pl.BlockSpec((C1p, CP), resident),
        pl.BlockSpec((1, CP), resident),
        pl.BlockSpec((25, CP), resident),
        pl.BlockSpec((1, CP), resident),
        pl.BlockSpec((CP, CP), resident),
        pl.BlockSpec((CP, CP), resident),
        pl.BlockSpec((1, CP), resident),
        pl.BlockSpec((25, CP), resident),
        pl.BlockSpec((1, CP), resident),
    ]
    out_specs = pl.BlockSpec((1, HW, CP), lambda n: (n, 0, 0))
    out_shape = jax.ShapeDtypeStruct((N, HW, CP), x.dtype)

    flops = 2 * N * HW * (C1p * CP + 2 * CP * CP + 2 * 25 * CP)
    transcendentals = 2 * N * HW * CP
    bytes_accessed = (sum(int(a.size) * a.dtype.itemsize for a in inputs)
                      + N * HW * CP * x.dtype.itemsize)
    vmem_est = 4 * (16 * HW * CP + 4 * Hc * Wc * CP) + 8 * N * HW * C1p
    vmem_limit = int(min(100 * 2 ** 20, max(32 * 2 ** 20, vmem_est)))

    out_flat = pl.pallas_call(
        kernel,
        out_shape=out_shape,
        grid_spec=pltpu.PrefetchScalarGridSpec(
            num_scalar_prefetch=0,
            grid=(N,),
            in_specs=in_specs,
            out_specs=out_specs,
            scratch_shapes=[pltpu.VMEM((Hc, Wc, CP), jnp.float32)],
        ),
        compiler_params=pltpu.CompilerParams(
            dimension_semantics=("parallel",),
            vmem_limit_bytes=vmem_limit,
        ),
        cost_estimate=pl.CostEstimate(
            flops=int(flops),
            transcendentals=int(transcendentals),
            bytes_accessed=int(bytes_accessed),
        ),
    )(*inputs)

    # Slice the real channels, back to NCHW (shortcut + concat already done in-kernel).
    y = out_flat[:, :, :C1].reshape(N, H, W, C1)
    return jnp.transpose(y, (0, 3, 1, 2))


# --------------------------------------------------------------------------- #
# Pure-JAX (XLA) reference for the correctness check.                          #
# --------------------------------------------------------------------------- #
def _conv_bn_ref(x, w, gamma, beta, mean, var, eps, groups, k, act):
    pad = k // 2
    y = jax.lax.conv_general_dilated(
        x, w, window_strides=(1, 1), padding=[(pad, pad), (pad, pad)],
        dimension_numbers=("NCHW", "OIHW", "NCHW"), feature_group_count=groups)
    scale = gamma / jnp.sqrt(var + eps)
    y = y * scale[None, :, None, None] + (beta - mean * scale)[None, :, None, None]
    return y * jax.nn.sigmoid(y) if act else y


def ghost_bottleneck_ref(x, p, eps=1e-5):
    y1 = _conv_bn_ref(x, p["pw1_w"], p["bn1_g"], p["bn1_b"], p["bn1_m"],
                      p["bn1_v"], eps, 1, 1, True)
    y2 = _conv_bn_ref(y1, p["dw1_w"], p["bn2_g"], p["bn2_b"], p["bn2_m"],
                      p["bn2_v"], eps, y1.shape[1], 5, True)
    g1 = jnp.concatenate([y1, y2], axis=1)
    z1 = _conv_bn_ref(g1, p["pw2_w"], p["bn3_g"], p["bn3_b"], p["bn3_m"],
                      p["bn3_v"], eps, 1, 1, False)
    z2 = _conv_bn_ref(z1, p["dw2_w"], p["bn4_g"], p["bn4_b"], p["bn4_m"],
                      p["bn4_v"], eps, z1.shape[1], 5, False)
    return jnp.concatenate([z1, z2], axis=1) + x


# --------------------------------------------------------------------------- #
# Main                                                                         #
# --------------------------------------------------------------------------- #
if __name__ == "__main__":
    # GhostBottleneck(c1=4, c2=4, k=3, s=1) on a (2, 4, 16, 16) input.
    N, C, H, W = 2, 4, 16, 16
    c_ = C // 2          # hidden width of the bottleneck
    cg1 = c_ // 2        # GhostConv1 half-width
    cg2 = C // 2         # GhostConv2 half-width

    key = jax.random.PRNGKey(0)
    ks = jax.random.split(key, 22)

    def uni(k, shape, bound):
        return jax.random.uniform(k, shape, jnp.float32, -bound, bound)

    def bn_params(k1, k2, k3, k4, c):
        return (jax.random.uniform(k1, (c,), jnp.float32, 0.5, 1.5),   # gamma
                0.1 * jax.random.normal(k2, (c,), jnp.float32),        # beta
                0.1 * jax.random.normal(k3, (c,), jnp.float32),        # running mean
                jax.random.uniform(k4, (c,), jnp.float32, 0.5, 1.5))   # running var

    g1g, g1b, g1m, g1v = bn_params(ks[1], ks[2], ks[3], ks[4], cg1)
    g2g, g2b, g2m, g2v = bn_params(ks[6], ks[7], ks[8], ks[9], cg1)
    g3g, g3b, g3m, g3v = bn_params(ks[11], ks[12], ks[13], ks[14], cg2)
    g4g, g4b, g4m, g4v = bn_params(ks[16], ks[17], ks[18], ks[19], cg2)

    params = {
        "pw1_w": uni(ks[0], (cg1, C, 1, 1), 1.0 / C ** 0.5),
        "bn1_g": g1g, "bn1_b": g1b, "bn1_m": g1m, "bn1_v": g1v,
        "dw1_w": uni(ks[5], (cg1, 1, 5, 5), 0.2),
        "bn2_g": g2g, "bn2_b": g2b, "bn2_m": g2m, "bn2_v": g2v,
        "pw2_w": uni(ks[10], (cg2, c_, 1, 1), 1.0 / c_ ** 0.5),
        "bn3_g": g3g, "bn3_b": g3b, "bn3_m": g3m, "bn3_v": g3v,
        "dw2_w": uni(ks[15], (cg2, 1, 5, 5), 0.2),
        "bn4_g": g4g, "bn4_b": g4b, "bn4_m": g4m, "bn4_v": g4v,
    }

    x = jax.random.normal(ks[20], (N, C, H, W), jnp.float32)

    ref = ghost_bottleneck_ref(x, params)

    # Strict structural check: same kernel, f32 MXU operands.
    out_f32 = jax.block_until_ready(
        ghost_bottleneck_forward(x, params, mxu_dtype=jnp.float32))
    assert out_f32.shape == ref.shape == (N, C, H, W)
    err_f32 = float(jnp.max(jnp.abs(out_f32 - ref)))
    assert err_f32 < 2e-3, "f32 path max abs err = %g" % err_f32

    # Default performance path: bf16 MXU operands, f32 accumulation / VPU math.
    out_bf16 = jax.block_until_ready(ghost_bottleneck_forward(x, params))
    err_bf16 = float(jnp.max(jnp.abs(out_bf16 - ref)))
    assert err_bf16 < 0.25, "bf16 path max abs err = %g" % err_bf16

    print("KERNEL_OK")
</pallas_src>

<mosaic_0001>
module attributes {stable_mosaic.version = 11 : i64} {
  func.func @kernel(%arg0: i32, %arg1: memref<1x256x8xf32, #tpu.memory_space<vmem>>, %arg2: memref<8x128xf32, #tpu.memory_space<vmem>>, %arg3: memref<1x128xf32, #tpu.memory_space<vmem>>, %arg4: memref<25x128xf32, #tpu.memory_space<vmem>>, %arg5: memref<1x128xf32, #tpu.memory_space<vmem>>, %arg6: memref<128x128xf32, #tpu.memory_space<vmem>>, %arg7: memref<128x128xf32, #tpu.memory_space<vmem>>, %arg8: memref<1x128xf32, #tpu.memory_space<vmem>>, %arg9: memref<25x128xf32, #tpu.memory_space<vmem>>, %arg10: memref<1x128xf32, #tpu.memory_space<vmem>>, %arg11: memref<1x256x128xf32, #tpu.memory_space<vmem>>, %arg12: memref<20x24x128xf32, #tpu.memory_space<vmem>>) attributes {dimension_semantics = [#tpu.dimension_semantics<parallel>], iteration_bounds = array<i64: 2>, scalar_prefetch = 0 : i64, scratch_operands = 1 : i64, tpu.core_type = #tpu.core_type<tc>, window_params = [{transform_indices = @transform_0, window_bounds = array<i64: 1, 256, 8>}, {pipeline_mode = #tpu.pipeline_mode<synchronous>, transform_indices = @transform_1, window_bounds = array<i64: 8, 128>}, {pipeline_mode = #tpu.pipeline_mode<synchronous>, transform_indices = @transform_2, window_bounds = array<i64: 1, 128>}, {pipeline_mode = #tpu.pipeline_mode<synchronous>, transform_indices = @transform_3, window_bounds = array<i64: 25, 128>}, {pipeline_mode = #tpu.pipeline_mode<synchronous>, transform_indices = @transform_4, window_bounds = array<i64: 1, 128>}, {pipeline_mode = #tpu.pipeline_mode<synchronous>, transform_indices = @transform_5, window_bounds = array<i64: 128, 128>}, {pipeline_mode = #tpu.pipeline_mode<synchronous>, transform_indices = @transform_6, window_bounds = array<i64: 128, 128>}, {pipeline_mode = #tpu.pipeline_mode<synchronous>, transform_indices = @transform_7, window_bounds = array<i64: 1, 128>}, {pipeline_mode = #tpu.pipeline_mode<synchronous>, transform_indices = @transform_8, window_bounds = array<i64: 25, 128>}, {pipeline_mode = #tpu.pipeline_mode<synchronous>, transform_indices = @transform_9, window_bounds = array<i64: 1, 128>}, {transform_indices = @transform_10, window_bounds = array<i64: 1, 256, 128>}]} {
    %c0 = arith.constant 0 : index
    %c0_0 = arith.constant 0 : index
    %c0_1 = arith.constant 0 : index
    %0 = vector.load %arg1[%c0, %c0_0, %c0_1] : memref<1x256x8xf32, #tpu.memory_space<vmem>>, vector<1x256x8xf32>
    %1 = vector.shape_cast %0 : vector<1x256x8xf32> to vector<256x8xf32>
    %c0_2 = arith.constant 0 : index
    %c0_3 = arith.constant 0 : index
    %2 = vector.load %arg2[%c0_2, %c0_3] : memref<8x128xf32, #tpu.memory_space<vmem>>, vector<8x128xf32>
    %cst = arith.constant dense<0.000000e+00> : vector<256x128xf32>
    %3 = tpu.matmul %1, %2, %cst {dimension_numbers = #tpu.dot_dimension_numbers<[1], [0], [0], [1], [0, 0, 1, 1], [], []>} : vector<256x8xf32>, vector<8x128xf32>, vector<256x128xf32> -> vector<256x128xf32>
    %c0_4 = arith.constant 0 : index
    %c0_5 = arith.constant 0 : index
    %4 = vector.load %arg3[%c0_4, %c0_5] : memref<1x128xf32, #tpu.memory_space<vmem>>, vector<1x128xf32>
    %5 = vector.broadcast %4 : vector<1x128xf32> to vector<256x128xf32>
    %6 = arith.addf %3, %5 : vector<256x128xf32>
    %7 = arith.negf %6 : vector<256x128xf32>
    %8 = math.exp %7 : vector<256x128xf32>
    %cst_6 = arith.constant 1.000000e+00 : f32
    %9 = vector.broadcast %cst_6 : f32 to vector<256x128xf32>
    %10 = arith.addf %9, %8 : vector<256x128xf32>
    %11 = arith.divf %9, %10 : vector<256x128xf32>
    %12 = arith.mulf %6, %11 : vector<256x128xf32>
    %cst_7 = arith.constant 0.000000e+00 : f32
    %13 = vector.broadcast %cst_7 : f32 to vector<2x24x128xf32>
    %c0_8 = arith.constant 0 : index
    %c0_9 = arith.constant 0 : index
    %c0_10 = arith.constant 0 : index
    %14 = vector.load %arg12[%c0_8, %c0_9, %c0_10] : memref<20x24x128xf32, #tpu.memory_space<vmem>>, vector<2x24x128xf32>
    tpu.vector_store %arg12[%c0_8, %c0_9, %c0_10], %13 {strides = array<i32>} : memref<20x24x128xf32, #tpu.memory_space<vmem>>, vector<2x24x128xf32>,
    %cst_11 = arith.constant 0.000000e+00 : f32
    %15 = vector.broadcast %cst_11 : f32 to vector<2x24x128xf32>
    %c18 = arith.constant 18 : index
    %c0_12 = arith.constant 0 : index
    %c0_13 = arith.constant 0 : index
    %16 = vector.load %arg12[%c18, %c0_12, %c0_13] : memref<20x24x128xf32, #tpu.memory_space<vmem>>, vector<2x24x128xf32>
    tpu.vector_store %arg12[%c18, %c0_12, %c0_13], %15 {strides = array<i32>} : memref<20x24x128xf32, #tpu.memory_space<vmem>>, vector<2x24x128xf32>,
    %cst_14 = arith.constant 0.000000e+00 : f32
    %17 = vector.broadcast %cst_14 : f32 to vector<20x2x128xf32>
    %c0_15 = arith.constant 0 : index
    %c0_16 = arith.constant 0 : index
    %c0_17 = arith.constant 0 : index
    %18 = vector.load %arg12[%c0_15, %c0_16, %c0_17] : memref<20x24x128xf32, #tpu.memory_space<vmem>>, vector<20x2x128xf32>
    tpu.vector_store %arg12[%c0_15, %c0_16, %c0_17], %17 {strides = array<i32>} : memref<20x24x128xf32, #tpu.memory_space<vmem>>, vector<20x2x128xf32>,
    %cst_18 = arith.constant 0.000000e+00 : f32
    %19 = vector.broadcast %cst_18 : f32 to vector<20x6x128xf32>
    %c0_19 = arith.constant 0 : index
    %c18_20 = arith.constant 18 : index
    %c0_21 = arith.constant 0 : index
    %20 = vector.load %arg12[%c0_19, %c18_20, %c0_21] : memref<20x24x128xf32, #tpu.memory_space<vmem>>, vector<20x6x128xf32>
    tpu.vector_store %arg12[%c0_19, %c18_20, %c0_21], %19 {strides = array<i32>} : memref<20x24x128xf32, #tpu.memory_space<vmem>>, vector<20x6x128xf32>,
    %21 = vector.shape_cast %12 : vector<256x128xf32> to vector<16x16x128xf32>
    %c2 = arith.constant 2 : index
    %c2_22 = arith.constant 2 : index
    %c0_23 = arith.constant 0 : index
    %22 = vector.load %arg12[%c2, %c2_22, %c0_23] : memref<20x24x128xf32, #tpu.memory_space<vmem>>, vector<16x16x128xf32>
    tpu.vector_store %arg12[%c2, %c2_22, %c0_23], %21 {strides = array<i32>} : memref<20x24x128xf32, #tpu.memory_space<vmem>>, vector<16x16x128xf32>,
    %c0_24 = arith.constant 0 : index
    %c0_25 = arith.constant 0 : index
    %c0_26 = arith.constant 0 : index
    %23 = vector.load %arg12[%c0_24, %c0_25, %c0_26] : memref<20x24x128xf32, #tpu.memory_space<vmem>>, vector<20x16x128xf32>
    %c0_27 = arith.constant 0 : index
    %c0_28 = arith.constant 0 : index
    %24 = vector.load %arg4[%c0_27, %c0_28] : memref<25x128xf32, #tpu.memory_space<vmem>>, vector<1x128xf32>
    %25 = vector.shape_cast %24 : vector<1x128xf32> to vector<128xf32>
    %26 = vector.shape_cast %25 : vector<128xf32> to vector<1x1x128xf32>
    %27 = vector.extract_strided_slice %23 {offsets = [0, 0, 0], sizes = [16, 16, 128], strides = [1, 1, 1]} : vector<20x16x128xf32> to vector<16x16x128xf32>
    %28 = vector.broadcast %26 : vector<1x1x128xf32> to vector<16x16x128xf32>
    %29 = arith.mulf %28, %27 : vector<16x16x128xf32>
    %c5 = arith.constant 5 : index
    %c0_29 = arith.constant 0 : index
    %30 = vector.load %arg4[%c5, %c0_29] : memref<25x128xf32, #tpu.memory_space<vmem>>, vector<1x128xf32>
    %31 = vector.shape_cast %30 : vector<1x128xf32> to vector<128xf32>
    %32 = vector.shape_cast %31 : vector<128xf32> to vector<1x1x128xf32>
    %33 = vector.extract_strided_slice %23 {offsets = [1, 0, 0], sizes = [16, 16, 128], strides = [1, 1, 1]} : vector<20x16x128xf32> to vector<16x16x128xf32>
    %34 = vector.broadcast %32 : vector<1x1x128xf32> to vector<16x16x128xf32>
    %35 = arith.mulf %34, %33 : vector<16x16x128xf32>
    %36 = arith.addf %29, %35 : vector<16x16x128xf32>
    %c10 = arith.constant 10 : index
    %c0_30 = arith.constant 0 : index
    %37 = vector.load %arg4[%c10, %c0_30] : memref<25x128xf32, #tpu.memory_space<vmem>>, vector<1x128xf32>
    %38 = vector.shape_cast %37 : vector<1x128xf32> to vector<128xf32>
    %39 = vector.shape_cast %38 : vector<128xf32> to vector<1x1x128xf32>
    %40 = vector.extract_strided_slice %23 {offsets = [2, 0, 0], sizes = [16, 16, 128], strides = [1, 1, 1]} : vector<20x16x128xf32> to vector<16x16x128xf32>
    %41 = vector.broadcast %39 : vector<1x1x128xf32> to vector<16x16x128xf32>
    %42 = arith.mulf %41, %40 : vector<16x16x128xf32>
    %43 = arith.addf %36, %42 : vector<16x16x128xf32>
    %c15 = arith.constant 15 : index
    %c0_31 = arith.constant 0 : index
    %44 = vector.load %arg4[%c15, %c0_31] : memref<25x128xf32, #tpu.memory_space<vmem>>, vector<1x128xf32>
    %45 = vector.shape_cast %44 : vector<1x128xf32> to vector<128xf32>
    %46 = vector.shape_cast %45 : vector<128xf32> to vector<1x1x128xf32>
    %47 = vector.extract_strided_slice %23 {offsets = [3, 0, 0], sizes = [16, 16, 128], strides = [1, 1, 1]} : vector<20x16x128xf32> to vector<16x16x128xf32>
    %48 = vector.broadcast %46 : vector<1x1x128xf32> to vector<16x16x128xf32>
    %49 = arith.mulf %48, %47 : vector<16x16x128xf32>
    %50 = arith.addf %43, %49 : vector<16x16x128xf32>
    %c20 = arith.constant 20 : index
    %c0_32 = arith.constant 0 : index
    %51 = vector.load %arg4[%c20, %c0_32] : memref<25x128xf32, #tpu.memory_space<vmem>>, vector<1x128xf32>
    %52 = vector.shape_cast %51 : vector<1x128xf32> to vector<128xf32>
    %53 = vector.shape_cast %52 : vector<128xf32> to vector<1x1x128xf32>
    %54 = vector.extract_strided_slice %23 {offsets = [4, 0, 0], sizes = [16, 16, 128], strides = [1, 1, 1]} : vector<20x16x128xf32> to vector<16x16x128xf32>
    %55 = vector.broadcast %53 : vector<1x1x128xf32> to vector<16x16x128xf32>
    %56 = arith.mulf %55, %54 : vector<16x16x128xf32>
    %57 = arith.addf %50, %56 : vector<16x16x128xf32>
    %c0_33 = arith.constant 0 : index
    %c1 = arith.constant 1 : index
    %c0_34 = arith.constant 0 : index
    %58 = vector.load %arg12[%c0_33, %c1, %c0_34] : memref<20x24x128xf32, #tpu.memory_space<vmem>>, vector<20x16x128xf32>
    %c1_35 = arith.constant 1 : index
    %c0_36 = arith.constant 0 : index
    %59 = vector.load %arg4[%c1_35, %c0_36] : memref<25x128xf32, #tpu.memory_space<vmem>>, vector<1x128xf32>
    %60 = vector.shape_cast %59 : vector<1x128xf32> to vector<128xf32>
    %61 = vector.shape_cast %60 : vector<128xf32> to vector<1x1x128xf32>
    %62 = vector.extract_strided_slice %58 {offsets = [0, 0, 0], sizes = [16, 16, 128], strides = [1, 1, 1]} : vector<20x16x128xf32> to vector<16x16x128xf32>
    %63 = vector.broadcast %61 : vector<1x1x128xf32> to vector<16x16x128xf32>
    %64 = arith.mulf %63, %62 : vector<16x16x128xf32>
    %c6 = arith.constant 6 : index
    %c0_37 = arith.constant 0 : index
    %65 = vector.load %arg4[%c6, %c0_37] : memref<25x128xf32, #tpu.memory_space<vmem>>, vector<1x128xf32>
    %66 = vector.shape_cast %65 : vector<1x128xf32> to vector<128xf32>
    %67 = vector.shape_cast %66 : vector<128xf32> to vector<1x1x128xf32>
    %68 = vector.extract_strided_slice %58 {offsets = [1, 0, 0], sizes = [16, 16, 128], strides = [1, 1, 1]} : vector<20x16x128xf32> to vector<16x16x128xf32>
    %69 = vector.broadcast %67 : vector<1x1x128xf32> to vector<16x16x128xf32>
    %70 = arith.mulf %69, %68 : vector<16x16x128xf32>
    %71 = arith.addf %64, %70 : vector<16x16x128xf32>
    %c11 = arith.constant 11 : index
    %c0_38 = arith.constant 0 : index
    %72 = vector.load %arg4[%c11, %c0_38] : memref<25x128xf32, #tpu.memory_space<vmem>>, vector<1x128xf32>
    %73 = vector.shape_cast %72 : vector<1x128xf32> to vector<128xf32>
    %74 = vector.shape_cast %73 : vector<128xf32> to vector<1x1x128xf32>
    %75 = vector.extract_strided_slice %58 {offsets = [2, 0, 0], sizes = [16, 16, 128], strides = [1, 1, 1]} : vector<20x16x128xf32> to vector<16x16x128xf32>
    %76 = vector.broadcast %74 : vector<1x1x128xf32> to vector<16x16x128xf32>
    %77 = arith.mulf %76, %75 : vector<16x16x128xf32>
    %78 = arith.addf %71, %77 : vector<16x16x128xf32>
    %c16 = arith.constant 16 : index
    %c0_39 = arith.constant 0 : index
    %79 = vector.load %arg4[%c16, %c0_39] : memref<25x128xf32, #tpu.memory_space<vmem>>, vector<1x128xf32>
    %80 = vector.shape_cast %79 : vector<1x128xf32> to vector<128xf32>
    %81 = vector.shape_cast %80 : vector<128xf32> to vector<1x1x128xf32>
    %82 = vector.extract_strided_slice %58 {offsets = [3, 0, 0], sizes = [16, 16, 128], strides = [1, 1, 1]} : vector<20x16x128xf32> to vector<16x16x128xf32>
    %83 = vector.broadcast %81 : vector<1x1x128xf32> to vector<16x16x128xf32>
    %84 = arith.mulf %83, %82 : vector<16x16x128xf32>
    %85 = arith.addf %78, %84 : vector<16x16x128xf32>
    %c21 = arith.constant 21 : index
    %c0_40 = arith.constant 0 : index
    %86 = vector.load %arg4[%c21, %c0_40] : memref<25x128xf32, #tpu.memory_space<vmem>>, vector<1x128xf32>
    %87 = vector.shape_cast %86 : vector<1x128xf32> to vector<128xf32>
    %88 = vector.shape_cast %87 : vector<128xf32> to vector<1x1x128xf32>
    %89 = vector.extract_strided_slice %58 {offsets = [4, 0, 0], sizes = [16, 16, 128], strides = [1, 1, 1]} : vector<20x16x128xf32> to vector<16x16x128xf32>
    %90 = vector.broadcast %88 : vector<1x1x128xf32> to vector<16x16x128xf32>
    %91 = arith.mulf %90, %89 : vector<16x16x128xf32>
    %92 = arith.addf %85, %91 : vector<16x16x128xf32>
    %c0_41 = arith.constant 0 : index
    %c2_42 = arith.constant 2 : index
    %c0_43 = arith.constant 0 : index
    %93 = vector.load %arg12[%c0_41, %c2_42, %c0_43] : memref<20x24x128xf32, #tpu.memory_space<vmem>>, vector<20x16x128xf32>
    %c2_44 = arith.constant 2 : index
    %c0_45 = arith.constant 0 : index
    %94 = vector.load %arg4[%c2_44, %c0_45] : memref<25x128xf32, #tpu.memory_space<vmem>>, vector<1x128xf32>
    %95 = vector.shape_cast %94 : vector<1x128xf32> to vector<128xf32>
    %96 = vector.shape_cast %95 : vector<128xf32> to vector<1x1x128xf32>
    %97 = vector.extract_strided_slice %93 {offsets = [0, 0, 0], sizes = [16, 16, 128], strides = [1, 1, 1]} : vector<20x16x128xf32> to vector<16x16x128xf32>
    %98 = vector.broadcast %96 : vector<1x1x128xf32> to vector<16x16x128xf32>
    %99 = arith.mulf %98, %97 : vector<16x16x128xf32>
    %c7 = arith.constant 7 : index
    %c0_46 = arith.constant 0 : index
    %100 = vector.load %arg4[%c7, %c0_46] : memref<25x128xf32, #tpu.memory_space<vmem>>, vector<1x128xf32>
    %101 = vector.shape_cast %100 : vector<1x128xf32> to vector<128xf32>
    %102 = vector.shape_cast %101 : vector<128xf32> to vector<1x1x128xf32>
    %103 = vector.extract_strided_slice %93 {offsets = [1, 0, 0], sizes = [16, 16, 128], strides = [1, 1, 1]} : vector<20x16x128xf32> to vector<16x16x128xf32>
    %104 = vector.broadcast %102 : vector<1x1x128xf32> to vector<16x16x128xf32>
    %105 = arith.mulf %104, %103 : vector<16x16x128xf32>
    %106 = arith.addf %99, %105 : vector<16x16x128xf32>
    %c12 = arith.constant 12 : index
    %c0_47 = arith.constant 0 : index
    %107 = vector.load %arg4[%c12, %c0_47] : memref<25x128xf32, #tpu.memory_space<vmem>>, vector<1x128xf32>
    %108 = vector.shape_cast %107 : vector<1x128xf32> to vector<128xf32>
    %109 = vector.shape_cast %108 : vector<128xf32> to vector<1x1x128xf32>
    %110 = vector.extract_strided_slice %93 {offsets = [2, 0, 0], sizes = [16, 16, 128], strides = [1, 1, 1]} : vector<20x16x128xf32> to vector<16x16x128xf32>
    %111 = vector.broadcast %109 : vector<1x1x128xf32> to vector<16x16x128xf32>
    %112 = arith.mulf %111, %110 : vector<16x16x128xf32>
    %113 = arith.addf %106, %112 : vector<16x16x128xf32>
    %c17 = arith.constant 17 : index
    %c0_48 = arith.constant 0 : index
    %114 = vector.load %arg4[%c17, %c0_48] : memref<25x128xf32, #tpu.memory_space<vmem>>, vector<1x128xf32>
    %115 = vector.shape_cast %114 : vector<1x128xf32> to vector<128xf32>
    %116 = vector.shape_cast %115 : vector<128xf32> to vector<1x1x128xf32>
    %117 = vector.extract_strided_slice %93 {offsets = [3, 0, 0], sizes = [16, 16, 128], strides = [1, 1, 1]} : vector<20x16x128xf32> to vector<16x16x128xf32>
    %118 = vector.broadcast %116 : vector<1x1x128xf32> to vector<16x16x128xf32>
    %119 = arith.mulf %118, %117 : vector<16x16x128xf32>
    %120 = arith.addf %113, %119 : vector<16x16x128xf32>
    %c22 = arith.constant 22 : index
    %c0_49 = arith.constant 0 : index
    %121 = vector.load %arg4[%c22, %c0_49] : memref<25x128xf32, #tpu.memory_space<vmem>>, vector<1x128xf32>
    %122 = vector.shape_cast %121 : vector<1x128xf32> to vector<128xf32>
    %123 = vector.shape_cast %122 : vector<128xf32> to vector<1x1x128xf32>
    %124 = vector.extract_strided_slice %93 {offsets = [4, 0, 0], sizes = [16, 16, 128], strides = [1, 1, 1]} : vector<20x16x128xf32> to vector<16x16x128xf32>
    %125 = vector.broadcast %123 : vector<1x1x128xf32> to vector<16x16x128xf32>
    %126 = arith.mulf %125, %124 : vector<16x16x128xf32>
    %127 = arith.addf %120, %126 : vector<16x16x128xf32>
    %c0_50 = arith.constant 0 : index
    %c3 = arith.constant 3 : index
    %c0_51 = arith.constant 0 : index
    %128 = vector.load %arg12[%c0_50, %c3, %c0_51] : memref<20x24x128xf32, #tpu.memory_space<vmem>>, vector<20x16x128xf32>
    %c3_52 = arith.constant 3 : index
    %c0_53 = arith.constant 0 : index
    %129 = vector.load %arg4[%c3_52, %c0_53] : memref<25x128xf32, #tpu.memory_space<vmem>>, vector<1x128xf32>
    %130 = vector.shape_cast %129 : vector<1x128xf32> to vector<128xf32>
    %131 = vector.shape_cast %130 : vector<128xf32> to vector<1x1x128xf32>
    %132 = vector.extract_strided_slice %128 {offsets = [0, 0, 0], sizes = [16, 16, 128], strides = [1, 1, 1]} : vector<20x16x128xf32> to vector<16x16x128xf32>
    %133 = vector.broadcast %131 : vector<1x1x128xf32> to vector<16x16x128xf32>
    %134 = arith.mulf %133, %132 : vector<16x16x128xf32>
    %c8 = arith.constant 8 : index
    %c0_54 = arith.constant 0 : index
    %135 = vector.load %arg4[%c8, %c0_54] : memref<25x128xf32, #tpu.memory_space<vmem>>, vector<1x128xf32>
    %136 = vector.shape_cast %135 : vector<1x128xf32> to vector<128xf32>
    %137 = vector.shape_cast %136 : vector<128xf32> to vector<1x1x128xf32>
    %138 = vector.extract_strided_slice %128 {offsets = [1, 0, 0], sizes = [16, 16, 128], strides = [1, 1, 1]} : vector<20x16x128xf32> to vector<16x16x128xf32>
    %139 = vector.broadcast %137 : vector<1x1x128xf32> to vector<16x16x128xf32>
    %140 = arith.mulf %139, %138 : vector<16x16x128xf32>
    %141 = arith.addf %134, %140 : vector<16x16x128xf32>
    %c13 = arith.constant 13 : index
    %c0_55 = arith.constant 0 : index
    %142 = vector.load %arg4[%c13, %c0_55] : memref<25x128xf32, #tpu.memory_space<vmem>>, vector<1x128xf32>
    %143 = vector.shape_cast %142 : vector<1x128xf32> to vector<128xf32>
    %144 = vector.shape_cast %143 : vector<128xf32> to vector<1x1x128xf32>
    %145 = vector.extract_strided_slice %128 {offsets = [2, 0, 0], sizes = [16, 16, 128], strides = [1, 1, 1]} : vector<20x16x128xf32> to vector<16x16x128xf32>
    %146 = vector.broadcast %144 : vector<1x1x128xf32> to vector<16x16x128xf32>
    %147 = arith.mulf %146, %145 : vector<16x16x128xf32>
    %148 = arith.addf %141, %147 : vector<16x16x128xf32>
    %c18_56 = arith.constant 18 : index
    %c0_57 = arith.constant 0 : index
    %149 = vector.load %arg4[%c18_56, %c0_57] : memref<25x128xf32, #tpu.memory_space<vmem>>, vector<1x128xf32>
    %150 = vector.shape_cast %149 : vector<1x128xf32> to vector<128xf32>
    %151 = vector.shape_cast %150 : vector<128xf32> to vector<1x1x128xf32>
    %152 = vector.extract_strided_slice %128 {offsets = [3, 0, 0], sizes = [16, 16, 128], strides = [1, 1, 1]} : vector<20x16x128xf32> to vector<16x16x128xf32>
    %153 = vector.broadcast %151 : vector<1x1x128xf32> to vector<16x16x128xf32>
    %154 = arith.mulf %153, %152 : vector<16x16x128xf32>
    %155 = arith.addf %148, %154 : vector<16x16x128xf32>
    %c23 = arith.constant 23 : index
    %c0_58 = arith.constant 0 : index
    %156 = vector.load %arg4[%c23, %c0_58] : memref<25x128xf32, #tpu.memory_space<vmem>>, vector<1x128xf32>
    %157 = vector.shape_cast %156 : vector<1x128xf32> to vector<128xf32>
    %158 = vector.shape_cast %157 : vector<128xf32> to vector<1x1x128xf32>
    %159 = vector.extract_strided_slice %128 {offsets = [4, 0, 0], sizes = [16, 16, 128], strides = [1, 1, 1]} : vector<20x16x128xf32> to vector<16x16x128xf32>
    %160 = vector.broadcast %158 : vector<1x1x128xf32> to vector<16x16x128xf32>
    %161 = arith.mulf %160, %159 : vector<16x16x128xf32>
    %162 = arith.addf %155, %161 : vector<16x16x128xf32>
    %c0_59 = arith.constant 0 : index
    %c4 = arith.constant 4 : index
    %c0_60 = arith.constant 0 : index
    %163 = vector.load %arg12[%c0_59, %c4, %c0_60] : memref<20x24x128xf32, #tpu.memory_space<vmem>>, vector<20x16x128xf32>
    %c4_61 = arith.constant 4 : index
    %c0_62 = arith.constant 0 : index
    %164 = vector.load %arg4[%c4_61, %c0_62] : memref<25x128xf32, #tpu.memory_space<vmem>>, vector<1x128xf32>
    %165 = vector.shape_cast %164 : vector<1x128xf32> to vector<128xf32>
    %166 = vector.shape_cast %165 : vector<128xf32> to vector<1x1x128xf32>
    %167 = vector.extract_strided_slice %163 {offsets = [0, 0, 0], sizes = [16, 16, 128], strides = [1, 1, 1]} : vector<20x16x128xf32> to vector<16x16x128xf32>
    %168 = vector.broadcast %166 : vector<1x1x128xf32> to vector<16x16x128xf32>
    %169 = arith.mulf %168, %167 : vector<16x16x128xf32>
    %c9 = arith.constant 9 : index
    %c0_63 = arith.constant 0 : index
    %170 = vector.load %arg4[%c9, %c0_63] : memref<25x128xf32, #tpu.memory_space<vmem>>, vector<1x128xf32>
    %171 = vector.shape_cast %170 : vector<1x128xf32> to vector<128xf32>
    %172 = vector.shape_cast %171 : vector<128xf32> to vector<1x1x128xf32>
    %173 = vector.extract_strided_slice %163 {offsets = [1, 0, 0], sizes = [16, 16, 128], strides = [1, 1, 1]} : vector<20x16x128xf32> to vector<16x16x128xf32>
    %174 = vector.broadcast %172 : vector<1x1x128xf32> to vector<16x16x128xf32>
    %175 = arith.mulf %174, %173 : vector<16x16x128xf32>
    %176 = arith.addf %169, %175 : vector<16x16x128xf32>
    %c14 = arith.constant 14 : index
    %c0_64 = arith.constant 0 : index
    %177 = vector.load %arg4[%c14, %c0_64] : memref<25x128xf32, #tpu.memory_space<vmem>>, vector<1x128xf32>
    %178 = vector.shape_cast %177 : vector<1x128xf32> to vector<128xf32>
    %179 = vector.shape_cast %178 : vector<128xf32> to vector<1x1x128xf32>
    %180 = vector.extract_strided_slice %163 {offsets = [2, 0, 0], sizes = [16, 16, 128], strides = [1, 1, 1]} : vector<20x16x128xf32> to vector<16x16x128xf32>
    %181 = vector.broadcast %179 : vector<1x1x128xf32> to vector<16x16x128xf32>
    %182 = arith.mulf %181, %180 : vector<16x16x128xf32>
    %183 = arith.addf %176, %182 : vector<16x16x128xf32>
    %c19 = arith.constant 19 : index
    %c0_65 = arith.constant 0 : index
    %184 = vector.load %arg4[%c19, %c0_65] : memref<25x128xf32, #tpu.memory_space<vmem>>, vector<1x128xf32>
    %185 = vector.shape_cast %184 : vector<1x128xf32> to vector<128xf32>
    %186 = vector.shape_cast %185 : vector<128xf32> to vector<1x1x128xf32>
    %187 = vector.extract_strided_slice %163 {offsets = [3, 0, 0], sizes = [16, 16, 128], strides = [1, 1, 1]} : vector<20x16x128xf32> to vector<16x16x128xf32>
    %188 = vector.broadcast %186 : vector<1x1x128xf32> to vector<16x16x128xf32>
    %189 = arith.mulf %188, %187 : vector<16x16x128xf32>
    %190 = arith.addf %183, %189 : vector<16x16x128xf32>
    %c24 = arith.constant 24 : index
    %c0_66 = arith.constant 0 : index
    %191 = vector.load %arg4[%c24, %c0_66] : memref<25x128xf32, #tpu.memory_space<vmem>>, vector<1x128xf32>
    %192 = vector.shape_cast %191 : vector<1x128xf32> to vector<128xf32>
    %193 = vector.shape_cast %192 : vector<128xf32> to vector<1x1x128xf32>
    %194 = vector.extract_strided_slice %163 {offsets = [4, 0, 0], sizes = [16, 16, 128], strides = [1, 1, 1]} : vector<20x16x128xf32> to vector<16x16x128xf32>
    %195 = vector.broadcast %193 : vector<1x1x128xf32> to vector<16x16x128xf32>
    %196 = arith.mulf %195, %194 : vector<16x16x128xf32>
    %197 = arith.addf %190, %196 : vector<16x16x128xf32>
    %198 = arith.addf %57, %92 : vector<16x16x128xf32>
    %199 = arith.addf %127, %162 : vector<16x16x128xf32>
    %200 = arith.addf %198, %199 : vector<16x16x128xf32>
    %201 = arith.addf %200, %197 : vector<16x16x128xf32>
    %c0_67 = arith.constant 0 : index
    %c0_68 = arith.constant 0 : index
    %202 = vector.load %arg5[%c0_67, %c0_68] : memref<1x128xf32, #tpu.memory_space<vmem>>, vector<1x128xf32>
    %203 = vector.shape_cast %202 : vector<1x128xf32> to vector<1x1x128xf32>
    %204 = vector.broadcast %203 : vector<1x1x128xf32> to vector<16x16x128xf32>
    %205 = arith.addf %201, %204 : vector<16x16x128xf32>
    %206 = arith.negf %205 : vector<16x16x128xf32>
    %207 = math.exp %206 : vector<16x16x128xf32>
    %cst_69 = arith.constant 1.000000e+00 : f32
    %208 = vector.broadcast %cst_69 : f32 to vector<16x16x128xf32>
    %209 = arith.addf %208, %207 : vector<16x16x128xf32>
    %210 = arith.divf %208, %209 : vector<16x16x128xf32>
    %211 = arith.mulf %205, %210 : vector<16x16x128xf32>
    %c0_70 = arith.constant 0 : index
    %c0_71 = arith.constant 0 : index
    %212 = vector.load %arg6[%c0_70, %c0_71] : memref<128x128xf32, #tpu.memory_space<vmem>>, vector<128x128xf32>
    %cst_72 = arith.constant dense<0.000000e+00> : vector<256x128xf32>
    %213 = tpu.matmul %12, %212, %cst_72 {dimension_numbers = #tpu.dot_dimension_numbers<[1], [0], [0], [1], [0, 0, 1, 1], [], []>} : vector<256x128xf32>, vector<128x128xf32>, vector<256x128xf32> -> vector<256x128xf32>
    %214 = vector.shape_cast %211 : vector<16x16x128xf32> to vector<256x128xf32>
    %c0_73 = arith.constant 0 : index
    %c0_74 = arith.constant 0 : index
    %215 = vector.load %arg7[%c0_73, %c0_74] : memref<128x128xf32, #tpu.memory_space<vmem>>, vector<128x128xf32>
    %cst_75 = arith.constant dense<0.000000e+00> : vector<256x128xf32>
    %216 = tpu.matmul %214, %215, %cst_75 {dimension_numbers = #tpu.dot_dimension_numbers<[1], [0], [0], [1], [0, 0, 1, 1], [], []>} : vector<256x128xf32>, vector<128x128xf32>, vector<256x128xf32> -> vector<256x128xf32>
    %217 = arith.addf %213, %216 : vector<256x128xf32>
    %c0_76 = arith.constant 0 : index
    %c0_77 = arith.constant 0 : index
    %218 = vector.load %arg8[%c0_76, %c0_77] : memref<1x128xf32, #tpu.memory_space<vmem>>, vector<1x128xf32>
    %219 = vector.broadcast %218 : vector<1x128xf32> to vector<256x128xf32>
    %220 = arith.addf %217, %219 : vector<256x128xf32>
    %221 = vector.shape_cast %220 : vector<256x128xf32> to vector<16x16x128xf32>
    %c2_78 = arith.constant 2 : index
    %c2_79 = arith.constant 2 : index
    %c0_80 = arith.constant 0 : index
    %222 = vector.load %arg12[%c2_78, %c2_79, %c0_80] : memref<20x24x128xf32, #tpu.memory_space<vmem>>, vector<16x16x128xf32>
    tpu.vector_store %arg12[%c2_78, %c2_79, %c0_80], %221 {strides = array<i32>} : memref<20x24x128xf32, #tpu.memory_space<vmem>>, vector<16x16x128xf32>,
    %c0_81 = arith.constant 0 : index
    %c0_82 = arith.constant 0 : index
    %c0_83 = arith.constant 0 : index
    %223 = vector.load %arg12[%c0_81, %c0_82, %c0_83] : memref<20x24x128xf32, #tpu.memory_space<vmem>>, vector<20x16x128xf32>
    %c0_84 = arith.constant 0 : index
    %c0_85 = arith.constant 0 : index
    %224 = vector.load %arg9[%c0_84, %c0_85] : memref<25x128xf32, #tpu.memory_space<vmem>>, vector<1x128xf32>
    %225 = vector.shape_cast %224 : vector<1x128xf32> to vector<128xf32>
    %226 = vector.shape_cast %225 : vector<128xf32> to vector<1x1x128xf32>
    %227 = vector.extract_strided_slice %223 {offsets = [0, 0, 0], sizes = [16, 16, 128], strides = [1, 1, 1]} : vector<20x16x128xf32> to vector<16x16x128xf32>
    %228 = vector.broadcast %226 : vector<1x1x128xf32> to vector<16x16x128xf32>
    %229 = arith.mulf %228, %227 : vector<16x16x128xf32>
    %c5_86 = arith.constant 5 : index
    %c0_87 = arith.constant 0 : index
    %230 = vector.load %arg9[%c5_86, %c0_87] : memref<25x128xf32, #tpu.memory_space<vmem>>, vector<1x128xf32>
    %231 = vector.shape_cast %230 : vector<1x128xf32> to vector<128xf32>
    %232 = vector.shape_cast %231 : vector<128xf32> to vector<1x1x128xf32>
    %233 = vector.extract_strided_slice %223 {offsets = [1, 0, 0], sizes = [16, 16, 128], strides = [1, 1, 1]} : vector<20x16x128xf32> to vector<16x16x128xf32>
    %234 = vector.broadcast %232 : vector<1x1x128xf32> to vector<16x16x128xf32>
    %235 = arith.mulf %234, %233 : vector<16x16x128xf32>
    %236 = arith.addf %229, %235 : vector<16x16x128xf32>
    %c10_88 = arith.constant 10 : index
    %c0_89 = arith.constant 0 : index
    %237 = vector.load %arg9[%c10_88, %c0_89] : memref<25x128xf32, #tpu.memory_space<vmem>>, vector<1x128xf32>
    %238 = vector.shape_cast %237 : vector<1x128xf32> to vector<128xf32>
    %239 = vector.shape_cast %238 : vector<128xf32> to vector<1x1x128xf32>
    %240 = vector.extract_strided_slice %223 {offsets = [2, 0, 0], sizes = [16, 16, 128], strides = [1, 1, 1]} : vector<20x16x128xf32> to vector<16x16x128xf32>
    %241 = vector.broadcast %239 : vector<1x1x128xf32> to vector<16x16x128xf32>
    %242 = arith.mulf %241, %240 : vector<16x16x128xf32>
    %243 = arith.addf %236, %242 : vector<16x16x128xf32>
    %c15_90 = arith.constant 15 : index
    %c0_91 = arith.constant 0 : index
    %244 = vector.load %arg9[%c15_90, %c0_91] : memref<25x128xf32, #tpu.memory_space<vmem>>, vector<1x128xf32>
    %245 = vector.shape_cast %244 : vector<1x128xf32> to vector<128xf32>
    %246 = vector.shape_cast %245 : vector<128xf32> to vector<1x1x128xf32>
    %247 = vector.extract_strided_slice %223 {offsets = [3, 0, 0], sizes = [16, 16, 128], strides = [1, 1, 1]} : vector<20x16x128xf32> to vector<16x16x128xf32>
    %248 = vector.broadcast %246 : vector<1x1x128xf32> to vector<16x16x128xf32>
    %249 = arith.mulf %248, %247 : vector<16x16x128xf32>
    %250 = arith.addf %243, %249 : vector<16x16x128xf32>
    %c20_92 = arith.constant 20 : index
    %c0_93 = arith.constant 0 : index
    %251 = vector.load %arg9[%c20_92, %c0_93] : memref<25x128xf32, #tpu.memory_space<vmem>>, vector<1x128xf32>
    %252 = vector.shape_cast %251 : vector<1x128xf32> to vector<128xf32>
    %253 = vector.shape_cast %252 : vector<128xf32> to vector<1x1x128xf32>
    %254 = vector.extract_strided_slice %223 {offsets = [4, 0, 0], sizes = [16, 16, 128], strides = [1, 1, 1]} : vector<20x16x128xf32> to vector<16x16x128xf32>
    %255 = vector.broadcast %253 : vector<1x1x128xf32> to vector<16x16x128xf32>
    %256 = arith.mulf %255, %254 : vector<16x16x128xf32>
    %257 = arith.addf %250, %256 : vector<16x16x128xf32>
    %c0_94 = arith.constant 0 : index
    %c1_95 = arith.constant 1 : index
    %c0_96 = arith.constant 0 : index
    %258 = vector.load %arg12[%c0_94, %c1_95, %c0_96] : memref<20x24x128xf32, #tpu.memory_space<vmem>>, vector<20x16x128xf32>
    %c1_97 = arith.constant 1 : index
    %c0_98 = arith.constant 0 : index
    %259 = vector.load %arg9[%c1_97, %c0_98] : memref<25x128xf32, #tpu.memory_space<vmem>>, vector<1x128xf32>
    %260 = vector.shape_cast %259 : vector<1x128xf32> to vector<128xf32>
    %261 = vector.shape_cast %260 : vector<128xf32> to vector<1x1x128xf32>
    %262 = vector.extract_strided_slice %258 {offsets = [0, 0, 0], sizes = [16, 16, 128], strides = [1, 1, 1]} : vector<20x16x128xf32> to vector<16x16x128xf32>
    %263 = vector.broadcast %261 : vector<1x1x128xf32> to vector<16x16x128xf32>
    %264 = arith.mulf %263, %262 : vector<16x16x128xf32>
    %c6_99 = arith.constant 6 : index
    %c0_100 = arith.constant 0 : index
    %265 = vector.load %arg9[%c6_99, %c0_100] : memref<25x128xf32, #tpu.memory_space<vmem>>, vector<1x128xf32>
    %266 = vector.shape_cast %265 : vector<1x128xf32> to vector<128xf32>
    %267 = vector.shape_cast %266 : vector<128xf32> to vector<1x1x128xf32>
    %268 = vector.extract_strided_slice %258 {offsets = [1, 0, 0], sizes = [16, 16, 128], strides = [1, 1, 1]} : vector<20x16x128xf32> to vector<16x16x128xf32>
    %269 = vector.broadcast %267 : vector<1x1x128xf32> to vector<16x16x128xf32>
    %270 = arith.mulf %269, %268 : vector<16x16x128xf32>
    %271 = arith.addf %264, %270 : vector<16x16x128xf32>
    %c11_101 = arith.constant 11 : index
    %c0_102 = arith.constant 0 : index
    %272 = vector.load %arg9[%c11_101, %c0_102] : memref<25x128xf32, #tpu.memory_space<vmem>>, vector<1x128xf32>
    %273 = vector.shape_cast %272 : vector<1x128xf32> to vector<128xf32>
    %274 = vector.shape_cast %273 : vector<128xf32> to vector<1x1x128xf32>
    %275 = vector.extract_strided_slice %258 {offsets = [2, 0, 0], sizes = [16, 16, 128], strides = [1, 1, 1]} : vector<20x16x128xf32> to vector<16x16x128xf32>
    %276 = vector.broadcast %274 : vector<1x1x128xf32> to vector<16x16x128xf32>
    %277 = arith.mulf %276, %275 : vector<16x16x128xf32>
    %278 = arith.addf %271, %277 : vector<16x16x128xf32>
    %c16_103 = arith.constant 16 : index
    %c0_104 = arith.constant 0 : index
    %279 = vector.load %arg9[%c16_103, %c0_104] : memref<25x128xf32, #tpu.memory_space<vmem>>, vector<1x128xf32>
    %280 = vector.shape_cast %279 : vector<1x128xf32> to vector<128xf32>
    %281 = vector.shape_cast %280 : vector<128xf32> to vector<1x1x128xf32>
    %282 = vector.extract_strided_slice %258 {offsets = [3, 0, 0], sizes = [16, 16, 128], strides = [1, 1, 1]} : vector<20x16x128xf32> to vector<16x16x128xf32>
    %283 = vector.broadcast %281 : vector<1x1x128xf32> to vector<16x16x128xf32>
    %284 = arith.mulf %283, %282 : vector<16x16x128xf32>
    %285 = arith.addf %278, %284 : vector<16x16x128xf32>
    %c21_105 = arith.constant 21 : index
    %c0_106 = arith.constant 0 : index
    %286 = vector.load %arg9[%c21_105, %c0_106] : memref<25x128xf32, #tpu.memory_space<vmem>>, vector<1x128xf32>
    %287 = vector.shape_cast %286 : vector<1x128xf32> to vector<128xf32>
    %288 = vector.shape_cast %287 : vector<128xf32> to vector<1x1x128xf32>
    %289 = vector.extract_strided_slice %258 {offsets = [4, 0, 0], sizes = [16, 16, 128], strides = [1, 1, 1]} : vector<20x16x128xf32> to vector<16x16x128xf32>
    %290 = vector.broadcast %288 : vector<1x1x128xf32> to vector<16x16x128xf32>
    %291 = arith.mulf %290, %289 : vector<16x16x128xf32>
    %292 = arith.addf %285, %291 : vector<16x16x128xf32>
    %c0_107 = arith.constant 0 : index
    %c2_108 = arith.constant 2 : index
    %c0_109 = arith.constant 0 : index
    %293 = vector.load %arg12[%c0_107, %c2_108, %c0_109] : memref<20x24x128xf32, #tpu.memory_space<vmem>>, vector<20x16x128xf32>
    %c2_110 = arith.constant 2 : index
    %c0_111 = arith.constant 0 : index
    %294 = vector.load %arg9[%c2_110, %c0_111] : memref<25x128xf32, #tpu.memory_space<vmem>>, vector<1x128xf32>
    %295 = vector.shape_cast %294 : vector<1x128xf32> to vector<128xf32>
    %296 = vector.shape_cast %295 : vector<128xf32> to vector<1x1x128xf32>
    %297 = vector.extract_strided_slice %293 {offsets = [0, 0, 0], sizes = [16, 16, 128], strides = [1, 1, 1]} : vector<20x16x128xf32> to vector<16x16x128xf32>
    %298 = vector.broadcast %296 : vector<1x1x128xf32> to vector<16x16x128xf32>
    %299 = arith.mulf %298, %297 : vector<16x16x128xf32>
    %c7_112 = arith.constant 7 : index
    %c0_113 = arith.constant 0 : index
    %300 = vector.load %arg9[%c7_112, %c0_113] : memref<25x128xf32, #tpu.memory_space<vmem>>, vector<1x128xf32>
    %301 = vector.shape_cast %300 : vector<1x128xf32> to vector<128xf32>
    %302 = vector.shape_cast %301 : vector<128xf32> to vector<1x1x128xf32>
    %303 = vector.extract_strided_slice %293 {offsets = [1, 0, 0], sizes = [16, 16, 128], strides = [1, 1, 1]} : vector<20x16x128xf32> to vector<16x16x128xf32>
    %304 = vector.broadcast %302 : vector<1x1x128xf32> to vector<16x16x128xf32>
    %305 = arith.mulf %304, %303 : vector<16x16x128xf32>
    %306 = arith.addf %299, %305 : vector<16x16x128xf32>
    %c12_114 = arith.constant 12 : index
    %c0_115 = arith.constant 0 : index
    %307 = vector.load %arg9[%c12_114, %c0_115] : memref<25x128xf32, #tpu.memory_space<vmem>>, vector<1x128xf32>
    %308 = vector.shape_cast %307 : vector<1x128xf32> to vector<128xf32>
    %309 = vector.shape_cast %308 : vector<128xf32> to vector<1x1x128xf32>
    %310 = vector.extract_strided_slice %293 {offsets = [2, 0, 0], sizes = [16, 16, 128], strides = [1, 1, 1]} : vector<20x16x128xf32> to vector<16x16x128xf32>
    %311 = vector.broadcast %309 : vector<1x1x128xf32> to vector<16x16x128xf32>
    %312 = arith.mulf %311, %310 : vector<16x16x128xf32>
    %313 = arith.addf %306, %312 : vector<16x16x128xf32>
    %c17_116 = arith.constant 17 : index
    %c0_117 = arith.constant 0 : index
    %314 = vector.load %arg9[%c17_116, %c0_117] : memref<25x128xf32, #tpu.memory_space<vmem>>, vector<1x128xf32>
    %315 = vector.shape_cast %314 : vector<1x128xf32> to vector<128xf32>
    %316 = vector.shape_cast %315 : vector<128xf32> to vector<1x1x128xf32>
    %317 = vector.extract_strided_slice %293 {offsets = [3, 0, 0], sizes = [16, 16, 128], strides = [1, 1, 1]} : vector<20x16x128xf32> to vector<16x16x128xf32>
    %318 = vector.broadcast %316 : vector<1x1x128xf32> to vector<16x16x128xf32>
    %319 = arith.mulf %318, %317 : vector<16x16x128xf32>
    %320 = arith.addf %313, %319 : vector<16x16x128xf32>
    %c22_118 = arith.constant 22 : index
    %c0_119 = arith.constant 0 : index
    %321 = vector.load %arg9[%c22_118, %c0_119] : memref<25x128xf32, #tpu.memory_space<vmem>>, vector<1x128xf32>
    %322 = vector.shape_cast %321 : vector<1x128xf32> to vector<128xf32>
    %323 = vector.shape_cast %322 : vector<128xf32> to vector<1x1x128xf32>
    %324 = vector.extract_strided_slice %293 {offsets = [4, 0, 0], sizes = [16, 16, 128], strides = [1, 1, 1]} : vector<20x16x128xf32> to vector<16x16x128xf32>
    %325 = vector.broadcast %323 : vector<1x1x128xf32> to vector<16x16x128xf32>
    %326 = arith.mulf %325, %324 : vector<16x16x128xf32>
    %327 = arith.addf %320, %326 : vector<16x16x128xf32>
    %c0_120 = arith.constant 0 : index
    %c3_121 = arith.constant 3 : index
    %c0_122 = arith.constant 0 : index
    %328 = vector.load %arg12[%c0_120, %c3_121, %c0_122] : memref<20x24x128xf32, #tpu.memory_space<vmem>>, vector<20x16x128xf32>
    %c3_123 = arith.constant 3 : index
    %c0_124 = arith.constant 0 : index
    %329 = vector.load %arg9[%c3_123, %c0_124] : memref<25x128xf32, #tpu.memory_space<vmem>>, vector<1x128xf32>
    %330 = vector.shape_cast %329 : vector<1x128xf32> to vector<128xf32>
    %331 = vector.shape_cast %330 : vector<128xf32> to vector<1x1x128xf32>
    %332 = vector.extract_strided_slice %328 {offsets = [0, 0, 0], sizes = [16, 16, 128], strides = [1, 1, 1]} : vector<20x16x128xf32> to vector<16x16x128xf32>
    %333 = vector.broadcast %331 : vector<1x1x128xf32> to vector<16x16x128xf32>
    %334 = arith.mulf %333, %332 : vector<16x16x128xf32>
    %c8_125 = arith.constant 8 : index
    %c0_126 = arith.constant 0 : index
    %335 = vector.load %arg9[%c8_125, %c0_126] : memref<25x128xf32, #tpu.memory_space<vmem>>, vector<1x128xf32>
    %336 = vector.shape_cast %335 : vector<1x128xf32> to vector<128xf32>
    %337 = vector.shape_cast %336 : vector<128xf32> to vector<1x1x128xf32>
    %338 = vector.extract_strided_slice %328 {offsets = [1, 0, 0], sizes = [16, 16, 128], strides = [1, 1, 1]} : vector<20x16x128xf32> to vector<16x16x128xf32>
    %339 = vector.broadcast %337 : vector<1x1x128xf32> to vector<16x16x128xf32>
    %340 = arith.mulf %339, %338 : vector<16x16x128xf32>
    %341 = arith.addf %334, %340 : vector<16x16x128xf32>
    %c13_127 = arith.constant 13 : index
    %c0_128 = arith.constant 0 : index
    %342 = vector.load %arg9[%c13_127, %c0_128] : memref<25x128xf32, #tpu.memory_space<vmem>>, vector<1x128xf32>
    %343 = vector.shape_cast %342 : vector<1x128xf32> to vector<128xf32>
    %344 = vector.shape_cast %343 : vector<128xf32> to vector<1x1x128xf32>
    %345 = vector.extract_strided_slice %328 {offsets = [2, 0, 0], sizes = [16, 16, 128], strides = [1, 1, 1]} : vector<20x16x128xf32> to vector<16x16x128xf32>
    %346 = vector.broadcast %344 : vector<1x1x128xf32> to vector<16x16x128xf32>
    %347 = arith.mulf %346, %345 : vector<16x16x128xf32>
    %348 = arith.addf %341, %347 : vector<16x16x128xf32>
    %c18_129 = arith.constant 18 : index
    %c0_130 = arith.constant 0 : index
    %349 = vector.load %arg9[%c18_129, %c0_130] : memref<25x128xf32, #tpu.memory_space<vmem>>, vector<1x128xf32>
    %350 = vector.shape_cast %349 : vector<1x128xf32> to vector<128xf32>
    %351 = vector.shape_cast %350 : vector<128xf32> to vector<1x1x128xf32>
    %352 = vector.extract_strided_slice %328 {offsets = [3, 0, 0], sizes = [16, 16, 128], strides = [1, 1, 1]} : vector<20x16x128xf32> to vector<16x16x128xf32>
    %353 = vector.broadcast %351 : vector<1x1x128xf32> to vector<16x16x128xf32>
    %354 = arith.mulf %353, %352 : vector<16x16x128xf32>
    %355 = arith.addf %348, %354 : vector<16x16x128xf32>
    %c23_131 = arith.constant 23 : index
    %c0_132 = arith.constant 0 : index
    %356 = vector.load %arg9[%c23_131, %c0_132] : memref<25x128xf32, #tpu.memory_space<vmem>>, vector<1x128xf32>
    %357 = vector.shape_cast %356 : vector<1x128xf32> to vector<128xf32>
    %358 = vector.shape_cast %357 : vector<128xf32> to vector<1x1x128xf32>
    %359 = vector.extract_strided_slice %328 {offsets = [4, 0, 0], sizes = [16, 16, 128], strides = [1, 1, 1]} : vector<20x16x128xf32> to vector<16x16x128xf32>
    %360 = vector.broadcast %358 : vector<1x1x128xf32> to vector<16x16x128xf32>
    %361 = arith.mulf %360, %359 : vector<16x16x128xf32>
    %362 = arith.addf %355, %361 : vector<16x16x128xf32>
    %c0_133 = arith.constant 0 : index
    %c4_134 = arith.constant 4 : index
    %c0_135 = arith.constant 0 : index
    %363 = vector.load %arg12[%c0_133, %c4_134, %c0_135] : memref<20x24x128xf32, #tpu.memory_space<vmem>>, vector<20x16x128xf32>
    %c4_136 = arith.constant 4 : index
    %c0_137 = arith.constant 0 : index
    %364 = vector.load %arg9[%c4_136, %c0_137] : memref<25x128xf32, #tpu.memory_space<vmem>>, vector<1x128xf32>
    %365 = vector.shape_cast %364 : vector<1x128xf32> to vector<128xf32>
    %366 = vector.shape_cast %365 : vector<128xf32> to vector<1x1x128xf32>
    %367 = vector.extract_strided_slice %363 {offsets = [0, 0, 0], sizes = [16, 16, 128], strides = [1, 1, 1]} : vector<20x16x128xf32> to vector<16x16x128xf32>
    %368 = vector.broadcast %366 : vector<1x1x128xf32> to vector<16x16x128xf32>
    %369 = arith.mulf %368, %367 : vector<16x16x128xf32>
    %c9_138 = arith.constant 9 : index
    %c0_139 = arith.constant 0 : index
    %370 = vector.load %arg9[%c9_138, %c0_139] : memref<25x128xf32, #tpu.memory_space<vmem>>, vector<1x128xf32>
    %371 = vector.shape_cast %370 : vector<1x128xf32> to vector<128xf32>
    %372 = vector.shape_cast %371 : vector<128xf32> to vector<1x1x128xf32>
    %373 = vector.extract_strided_slice %363 {offsets = [1, 0, 0], sizes = [16, 16, 128], strides = [1, 1, 1]} : vector<20x16x128xf32> to vector<16x16x128xf32>
    %374 = vector.broadcast %372 : vector<1x1x128xf32> to vector<16x16x128xf32>
    %375 = arith.mulf %374, %373 : vector<16x16x128xf32>
    %376 = arith.addf %369, %375 : vector<16x16x128xf32>
    %c14_140 = arith.constant 14 : index
    %c0_141 = arith.constant 0 : index
    %377 = vector.load %arg9[%c14_140, %c0_141] : memref<25x128xf32, #tpu.memory_space<vmem>>, vector<1x128xf32>
    %378 = vector.shape_cast %377 : vector<1x128xf32> to vector<128xf32>
    %379 = vector.shape_cast %378 : vector<128xf32> to vector<1x1x128xf32>
    %380 = vector.extract_strided_slice %363 {offsets = [2, 0, 0], sizes = [16, 16, 128], strides = [1, 1, 1]} : vector<20x16x128xf32> to vector<16x16x128xf32>
    %381 = vector.broadcast %379 : vector<1x1x128xf32> to vector<16x16x128xf32>
    %382 = arith.mulf %381, %380 : vector<16x16x128xf32>
    %383 = arith.addf %376, %382 : vector<16x16x128xf32>
    %c19_142 = arith.constant 19 : index
    %c0_143 = arith.constant 0 : index
    %384 = vector.load %arg9[%c19_142, %c0_143] : memref<25x128xf32, #tpu.memory_space<vmem>>, vector<1x128xf32>
    %385 = vector.shape_cast %384 : vector<1x128xf32> to vector<128xf32>
    %386 = vector.shape_cast %385 : vector<128xf32> to vector<1x1x128xf32>
    %387 = vector.extract_strided_slice %363 {offsets = [3, 0, 0], sizes = [16, 16, 128], strides = [1, 1, 1]} : vector<20x16x128xf32> to vector<16x16x128xf32>
    %388 = vector.broadcast %386 : vector<1x1x128xf32> to vector<16x16x128xf32>
    %389 = arith.mulf %388, %387 : vector<16x16x128xf32>
    %390 = arith.addf %383, %389 : vector<16x16x128xf32>
    %c24_144 = arith.constant 24 : index
    %c0_145 = arith.constant 0 : index
    %391 = vector.load %arg9[%c24_144, %c0_145] : memref<25x128xf32, #tpu.memory_space<vmem>>, vector<1x128xf32>
    %392 = vector.shape_cast %391 : vector<1x128xf32> to vector<128xf32>
    %393 = vector.shape_cast %392 : vector<128xf32> to vector<1x1x128xf32>
    %394 = vector.extract_strided_slice %363 {offsets = [4, 0, 0], sizes = [16, 16, 128], strides = [1, 1, 1]} : vector<20x16x128xf32> to vector<16x16x128xf32>
    %395 = vector.broadcast %393 : vector<1x1x128xf32> to vector<16x16x128xf32>
    %396 = arith.mulf %395, %394 : vector<16x16x128xf32>
    %397 = arith.addf %390, %396 : vector<16x16x128xf32>
    %398 = arith.addf %257, %292 : vector<16x16x128xf32>
    %399 = arith.addf %327, %362 : vector<16x16x128xf32>
    %400 = arith.addf %398, %399 : vector<16x16x128xf32>
    %401 = arith.addf %400, %397 : vector<16x16x128xf32>
    %c0_146 = arith.constant 0 : index
    %c0_147 = arith.constant 0 : index
    %402 = vector.load %arg10[%c0_146, %c0_147] : memref<1x128xf32, #tpu.memory_space<vmem>>, vector<1x128xf32>
    %403 = vector.shape_cast %402 : vector<1x128xf32> to vector<1x1x128xf32>
    %404 = vector.broadcast %403 : vector<1x1x128xf32> to vector<16x16x128xf32>
    %405 = arith.addf %401, %404 : vector<16x16x128xf32>
    %406 = tpu.iota {dimensions = array<i32: 1>} : vector<256x128xi32>
    %c2_i32 = arith.constant 2 : i32
    %407 = vector.broadcast %c2_i32 : i32 to vector<256x128xi32>
    %408 = arith.cmpi slt, %406, %407 : vector<256x128xi32>
    %cst_148 = arith.constant 0.000000e+00 : f32
    %409 = vector.broadcast %cst_148 : f32 to vector<256x128xf32>
    %410 = arith.select %408, %220, %409 : vector<256x128xi1>, vector<256x128xf32>
    %cst_149 = arith.constant 0.000000e+00 : f32
    %411 = vector.broadcast %cst_149 : f32 to vector<256x120xf32>
    %412 = tpu.concatenate %1, %411 in 1 : vector<256x8xf32>, vector<256x120xf32> -> vector<256x128xf32>
    %413 = vector.shape_cast %405 : vector<16x16x128xf32> to vector<256x128xf32>
    %414 = arith.addf %410, %413 : vector<256x128xf32>
    %415 = arith.addf %414, %412 : vector<256x128xf32>
    %c0_150 = arith.constant 0 : index
    %c0_151 = arith.constant 0 : index
    %c0_152 = arith.constant 0 : index
    %416 = vector.load %arg11[%c0_150, %c0_151, %c0_152] : memref<1x256x128xf32, #tpu.memory_space<vmem>>, vector<1x256x128xf32>
    %417 = vector.shape_cast %416 : vector<1x256x128xf32> to vector<256x128xf32>
    %418 = vector.shape_cast %415 : vector<256x128xf32> to vector<1x256x128xf32>
    tpu.vector_store %arg11[%c0_150, %c0_151, %c0_152], %418 {strides = array<i32>} : memref<1x256x128xf32, #tpu.memory_space<vmem>>, vector<1x256x128xf32>,
    return
  }
  func.func @transform_0(%arg0: i32) -> (i32, i32, i32) {
    %c0_i32 = arith.constant 0 : i32
    %c0_i32_0 = arith.constant 0 : i32
    %c0_i32_1 = arith.constant 0 : i32
    return %arg0, %c0_i32, %c0_i32_0 : i32, i32, i32
  }
  func.func @transform_1(%arg0: i32) -> (i32, i32) {
    %c0_i32 = arith.constant 0 : i32
    %c0_i32_0 = arith.constant 0 : i32
    %c0_i32_1 = arith.constant 0 : i32
    return %c0_i32, %c0_i32_0 : i32, i32
  }
  func.func @transform_2(%arg0: i32) -> (i32, i32) {
    %c0_i32 = arith.constant 0 : i32
    %c0_i32_0 = arith.constant 0 : i32
    %c0_i32_1 = arith.constant 0 : i32
    return %c0_i32, %c0_i32_0 : i32, i32
  }
  func.func @transform_3(%arg0: i32) -> (i32, i32) {
    %c0_i32 = arith.constant 0 : i32
    %c0_i32_0 = arith.constant 0 : i32
    %c0_i32_1 = arith.constant 0 : i32
    return %c0_i32, %c0_i32_0 : i32, i32
  }
  func.func @transform_4(%arg0: i32) -> (i32, i32) {
    %c0_i32 = arith.constant 0 : i32
    %c0_i32_0 = arith.constant 0 : i32
    %c0_i32_1 = arith.constant 0 : i32
    return %c0_i32, %c0_i32_0 : i32, i32
  }
  func.func @transform_5(%arg0: i32) -> (i32, i32) {
    %c0_i32 = arith.constant 0 : i32
    %c0_i32_0 = arith.constant 0 : i32
    %c0_i32_1 = arith.constant 0 : i32
    return %c0_i32, %c0_i32_0 : i32, i32
  }
  func.func @transform_6(%arg0: i32) -> (i32, i32) {
    %c0_i32 = arith.constant 0 : i32
    %c0_i32_0 = arith.constant 0 : i32
    %c0_i32_1 = arith.constant 0 : i32
    return %c0_i32, %c0_i32_0 : i32, i32
  }
  func.func @transform_7(%arg0: i32) -> (i32, i32) {
    %c0_i32 = arith.constant 0 : i32
    %c0_i32_0 = arith.constant 0 : i32
    %c0_i32_1 = arith.constant 0 : i32
    return %c0_i32, %c0_i32_0 : i32, i32
  }
  func.func @transform_8(%arg0: i32) -> (i32, i32) {
    %c0_i32 = arith.constant 0 : i32
    %c0_i32_0 = arith.constant 0 : i32
    %c0_i32_1 = arith.constant 0 : i32
    return %c0_i32, %c0_i32_0 : i32, i32
  }
  func.func @transform_9(%arg0: i32) -> (i32, i32) {
    %c0_i32 = arith.constant 0 : i32
    %c0_i32_0 = arith.constant 0 : i32
    %c0_i32_1 = arith.constant 0 : i32
    return %c0_i32, %c0_i32_0 : i32, i32
  }
  func.func @transform_10(%arg0: i32) -> (i32, i32, i32) {
    %c0_i32 = arith.constant 0 : i32
    %c0_i32_0 = arith.constant 0 : i32
    %c0_i32_1 = arith.constant 0 : i32
    return %arg0, %c0_i32, %c0_i32_0 : i32, i32, i32
  }
}

</mosaic_0001>

<llo_original>
// kernel: squeeze.7
$region0: #{squeeze.7}
  %s0 = inlined_call_operand.vmem [shape: f32[2,5,5], index: 0, kind: input, shape index: {}]
  %s1 = inlined_call_operand.vmem [shape: f32[2,25], index: 1, kind: output, shape index: {}]
  $region1: #{squeeze.7} parent=0
    #allocation0 [shape = 'u8[4096]{0}', space=vmem, size = 0x1000, scoped, tag = 'scoped mem for output reshape']
    %s2 = smov 3
    %v3 = vld [vmem:[%s0] ss:$8 sm:%s2]
    %vm4 = vcmask 39936
    %5 = vst.msk [vmem:[#allocation0] sm:$0x3] %vm4, %v3
    %s6 = scalar_lea.vmem %s0, 4
    %s7 = smov 3
    %v8 = vld [vmem:[%s6] ss:$8 sm:%s7]
    %9 = vrot.lane.b32.xlu0 %v8, 20
    %v10 = vpop.permute.xlu0 %9
    %vm11 = vcmask 203936
    %12 = vst.msk [vmem:[#allocation0] sm:$0x3] %vm11, %v10
    %s13 = scalar_lea.vmem %s0, 3
    %s14 = smov 3
    %v15 = vld [vmem:[%s13] ss:$8 sm:%s14]
    %16 = vrot.lane.b32.xlu0 %v15, 15
    %v17 = vpop.permute.xlu0 %16
    %vm18 = vcmask 162936
    %19 = vst.msk [vmem:[#allocation0] sm:$0x3] %vm18, %v17
    %s20 = scalar_lea.vmem %s0, 2
    %s21 = smov 3
    %v22 = vld [vmem:[%s20] ss:$8 sm:%s21]
    %23 = vrot.lane.b32.xlu0 %v22, 10
    %v24 = vpop.permute.xlu0 %23
    %vm25 = vcmask 121936
    %26 = vst.msk [vmem:[#allocation0] sm:$0x3] %vm25, %v24
    %s27 = scalar_lea.vmem %s0, 1
    %s28 = smov 3
    %v29 = vld [vmem:[%s27] ss:$8 sm:%s28]
    %30 = vrot.lane.b32.xlu0 %v29, 5
    %v31 = vpop.permute.xlu0 %30
    %vm32 = vcmask 80936
    %33 = vst.msk [vmem:[#allocation0] sm:$0x3] %vm32, %v31
    %s35 = ssub.s32 4, 1
    %v36 = vld [vmem:[#allocation0] sm:%s35]
    %s38 = ssub.s32 4, 1
    %39 = vst [vmem:[%s1] sm:%s38] %v36

// kernel: squeeze.0
$region0: #{squeeze.0}
  %s0 = inlined_call_operand.vmem [shape: f32[5,5], index: 0, kind: input, shape index: {}]
  %s1 = inlined_call_operand.vmem [shape: f32[25,1], index: 1, kind: output, shape index: {}]
  %v2 = vld [vmem:[%s0] sm:$0x1f]
  %vm3 = vcmask 7168
  %4 = vst.msk [vmem:[%s1] ss:$5 sm:$0x1f] %vm3, %v2
  %v5 = vld [vmem:[%s0] sm:$0x1f]
  %6 = vrot.lane.b32.xlu0 %v5, 127
  %v7 = vpop.permute.xlu0 %6
  %vm8 = vcmask 7168
  %s9 = scalar_lea.vmem %s1, 1
  %10 = vst.msk [vmem:[%s9] ss:$5 sm:$0x1f] %vm8, %v7
  %v11 = vld [vmem:[%s0] sm:$0x1f]
  %12 = vrot.lane.b32.xlu0 %v11, 126
  %v13 = vpop.permute.xlu0 %12
  %vm14 = vcmask 7168
  %s15 = scalar_lea.vmem %s1, 2
  %16 = vst.msk [vmem:[%s15] ss:$5 sm:$0x1f] %vm14, %v13
  %v17 = vld [vmem:[%s0] sm:$0x1f]
  %18 = vrot.lane.b32.xlu0 %v17, 125
  %v19 = vpop.permute.xlu0 %18
  %vm20 = vcmask 7168
  %s21 = scalar_lea.vmem %s1, 3
  %22 = vst.msk [vmem:[%s21] ss:$5 sm:$0x1f] %vm20, %v19
  %v23 = vld [vmem:[%s0] sm:$0x1f]
  %24 = vrot.lane.b32.xlu0 %v23, 124
  %v25 = vpop.permute.xlu0 %24
  %vm26 = vcmask 7168
  %s27 = scalar_lea.vmem %s1, 4
  %28 = vst.msk [vmem:[%s27] ss:$5 sm:$0x1f] %vm26, %v25

// kernel: ghost_bottleneck_forward.1
$region0: #{ghost_bottleneck_forward.1}
  #allocation0 [shape = 'u32[]', space=smem, size = 0x4, offset = 0x4, fixed_abs, tag = 'smem constant byte address 0x4 - core index']
  #allocation1 [shape = 'u32[72,128]{1,0:T(1,128)}', space=vmem, size = 0x9000, scoped, tag = 'internal scratch']
  #allocation2 [shape = 'f32[20,24,128]{2,1,0:T(8,128)}', space=vmem, size = 0x3c000, scoped, tag = 'scratch operand']
  %s0 = inlined_call_operand.vmem [shape: f32[2,256,8], index: 0, kind: input, shape index: {}]
  %s1 = inlined_call_operand.vmem [shape: f32[8,128], index: 1, kind: input, shape index: {}]
  %s2 = inlined_call_operand.vmem [shape: f32[1,128], index: 2, kind: input, shape index: {}]
  %s3 = inlined_call_operand.vmem [shape: f32[25,128], index: 3, kind: input, shape index: {}]
  %s4 = inlined_call_operand.vmem [shape: f32[1,128], index: 4, kind: input, shape index: {}]
  %s5 = inlined_call_operand.vmem [shape: f32[128,128], index: 5, kind: input, shape index: {}]
  %s6 = inlined_call_operand.vmem [shape: f32[128,128], index: 6, kind: input, shape index: {}]
  %s7 = inlined_call_operand.vmem [shape: f32[1,128], index: 7, kind: input, shape index: {}]
  %s8 = inlined_call_operand.vmem [shape: f32[25,128], index: 8, kind: input, shape index: {}]
  %s9 = inlined_call_operand.vmem [shape: f32[1,128], index: 9, kind: input, shape index: {}]
  %s10 = inlined_call_operand.vmem [shape: f32[2,256,128], index: 10, kind: output, shape index: {}]
  %s11 = sld [smem:[#allocation0]]
  $region73: #{ghost_bottleneck_forward.1} parent=0
    _
  %s13 = ssub.s32 1, %s11
  %s14 = scalar_select 0, %s13, %s11
  loop: start=0, step=1, limit=4
  $region2: #{ghost_bottleneck_forward.1} parent=0 // loop_pre_header
    _
  $region3: #{ghost_bottleneck_forward.1} parent=0 // loop_header
    %s16 = sphi 0, %s20
    %p17 = scmp.ge.s32.totalorder %s16, 4
    %s26 = sphi 0, %s28
    %s29 = sphi 0, %s26
    %s30 = sphi 0, %s29
    %s46 = sphi 0, %s30
    %s50 = sphi 0, %s50
    %s52 = sphi 0, %s50
    %s53 = sphi 0, %s52
    %s67 = sphi 0, %s53
    %s71 = sphi 0, %s71
    %s73 = sphi 0, %s71
    %s74 = sphi 0, %s73
    %s88 = sphi 0, %s74
    %s92 = sphi 0, %s92
    %s94 = sphi 0, %s92
    %s95 = sphi 0, %s94
    %s109 = sphi 0, %s95
    %s113 = sphi 0, %s113
    %s115 = sphi 0, %s113
    %s116 = sphi 0, %s115
    %s130 = sphi 0, %s116
    %s134 = sphi 0, %s134
    %s136 = sphi 0, %s134
    %s137 = sphi 0, %s136
    %s151 = sphi 0, %s137
    %s155 = sphi 0, %s155
    %s157 = sphi 0, %s155
    %s158 = sphi 0, %s157
    %s172 = sphi 0, %s158
    %s176 = sphi 0, %s176
    %s178 = sphi 0, %s176
    %s179 = sphi 0, %s178
    %s193 = sphi 0, %s179
    %s197 = sphi 0, %s197
    %s199 = sphi 0, %s197
    %s200 = sphi 0, %s199
    %s214 = sphi 0, %s200
    %s218 = sphi 0, %s218
    %s220 = sphi 0, %s218
    %s221 = sphi 0, %s220
    %s235 = sphi 0, %s221
    %s241 = sphi 0, %s243
    %s244 = sphi 0, %s241
    %s245 = sphi 0, %s244
    %s261 = sphi 0, %s245
  $region4: #{ghost_bottleneck_forward.1} parent=0 // loop_header_branch
    %19 = sbr.rel (%p17) target = $region8
  $region5: #{ghost_bottleneck_forward.1} parent=0 // loop_body
    %s21 = ssub.s32 %s16, 1
    %s22 = ssub.s32 %s16, 2
    %s23 = sadd.s32 %s16, 1
    %s24 = ssub.s32 %s16, %s23
    %p25 = scmp.eq.s32.totalorder %s24, 0
    %s27 = sadd.s32 %s26, 1
    %s28 = scalar_select %p25, %s26, %s27
    %p31 = pneg %p25
    %p32 = scmp.eq.s32.totalorder %s16, 1
    %p33 = por %p31, %p32
    %p34 = scmp.ne.s32.totalorder %s26, %s29
    %p35 = scmp.eq.s32.totalorder %s16, 0
    %p36 = por %p34, %p35
    %p37 = scmp.ne.s32.totalorder %s26, %s29
    %p38 = scmp.eq.s32.totalorder %s21, 1
    %p39 = por %p37, %p38
    %p40 = scmp.ne.s32.totalorder %s29, %s30
    %p41 = scmp.eq.s32.totalorder %s21, 0
    %p42 = por %p40, %p41
    %p43 = scmp.ne.s32.totalorder %s29, %s30
    %p44 = scmp.eq.s32.totalorder %s22, 1
    %p45 = por %p43, %p44
    %p47 = scmp.ne.s32.totalorder %s30, %s46
    %p48 = scmp.eq.s32.totalorder %s22, 0
    %p49 = por %p47, %p48
    %s51 = sadd.s32 %s50, 1
    %p54 = scmp.eq.s32.totalorder %s16, 1
    %p55 = scmp.ne.s32.totalorder %s50, %s52
    %p56 = scmp.eq.s32.totalorder %s16, 0
    %p57 = por %p55, %p56
    %p58 = scmp.ne.s32.totalorder %s50, %s52
    %p59 = scmp.eq.s32.totalorder %s21, 1
    %p60 = por %p58, %p59
    %p61 = scmp.ne.s32.totalorder %s52, %s53
    %p62 = scmp.eq.s32.totalorder %s21, 0
    %p63 = por %p61, %p62
    %p64 = scmp.ne.s32.totalorder %s52, %s53
    %p65 = scmp.eq.s32.totalorder %s22, 1
    %p66 = por %p64, %p65
    %p68 = scmp.ne.s32.totalorder %s53, %s67
    %p69 = scmp.eq.s32.totalorder %s22, 0
    %p70 = por %p68, %p69
    %s72 = sadd.s32 %s71, 1
    %p75 = scmp.eq.s32.totalorder %s16, 1
    %p76 = scmp.ne.s32.totalorder %s71, %s73
    %p77 = scmp.eq.s32.totalorder %s16, 0
    %p78 = por %p76, %p77
    %p79 = scmp.ne.s32.totalorder %s71, %s73
    %p80 = scmp.eq.s32.totalorder %s21, 1
    %p81 = por %p79, %p80
    %p82 = scmp.ne.s32.totalorder %s73, %s74
    %p83 = scmp.eq.s32.totalorder %s21, 0
    %p84 = por %p82, %p83
    %p85 = scmp.ne.s32.totalorder %s73, %s74
    %p86 = scmp.eq.s32.totalorder %s22, 1
    %p87 = por %p85, %p86
    %p89 = scmp.ne.s32.totalorder %s74, %s88
    %p90 = scmp.eq.s32.totalorder %s22, 0
    %p91 = por %p89, %p90
    %s93 = sadd.s32 %s92, 1
    %p96 = scmp.eq.s32.totalorder %s16, 1
    %p97 = scmp.ne.s32.totalorder %s92, %s94
    %p98 = scmp.eq.s32.totalorder %s16, 0
    %p99 = por %p97, %p98
    %p100 = scmp.ne.s32.totalorder %s92, %s94
    %p101 = scmp.eq.s32.totalorder %s21, 1
    %p102 = por %p100, %p101
    %p103 = scmp.ne.s32.totalorder %s94, %s95
    %p104 = scmp.eq.s32.totalorder %s21, 0
    %p105 = por %p103, %p104
    %p106 = scmp.ne.s32.totalorder %s94, %s95
    %p107 = scmp.eq.s32.totalorder %s22, 1
    %p108 = por %p106, %p107
    %p110 = scmp.ne.s32.totalorder %s95, %s109
    %p111 = scmp.eq.s32.totalorder %s22, 0
    %p112 = por %p110, %p111
    %s114 = sadd.s32 %s113, 1
    %p117 = scmp.eq.s32.totalorder %s16, 1
    %p118 = scmp.ne.s32.totalorder %s113, %s115
    %p119 = scmp.eq.s32.totalorder %s16, 0
    %p120 = por %p118, %p119
    %p121 = scmp.ne.s32.totalorder %s113, %s115
    %p122 = scmp.eq.s32.totalorder %s21, 1
    %p123 = por %p121, %p122
    %p124 = scmp.ne.s32.totalorder %s115, %s116
    %p125 = scmp.eq.s32.totalorder %s21, 0
    %p126 = por %p124, %p125
    %p127 = scmp.ne.s32.totalorder %s115, %s116
    %p128 = scmp.eq.s32.totalorder %s22, 1
    %p129 = por %p127, %p128
    %p131 = scmp.ne.s32.totalorder %s116, %s130
    %p132 = scmp.eq.s32.totalorder %s22, 0
    %p133 = por %p131, %p132
    %s135 = sadd.s32 %s134, 1
    %p138 = scmp.eq.s32.totalorder %s16, 1
    %p139 = scmp.ne.s32.totalorder %s134, %s136
    %p140 = scmp.eq.s32.totalorder %s16, 0
    %p141 = por %p139, %p140
    %p142 = scmp.ne.s32.totalorder %s134, %s136
    %p143 = scmp.eq.s32.totalorder %s21, 1
    %p144 = por %p142, %p143
    %p145 = scmp.ne.s32.totalorder %s136, %s137
    %p146 = scmp.eq.s32.totalorder %s21, 0
    %p147 = por %p145, %p146
    %p148 = scmp.ne.s32.totalorder %s136, %s137
    %p149 = scmp.eq.s32.totalorder %s22, 1
    %p150 = por %p148, %p149
    %p152 = scmp.ne.s32.totalorder %s137, %s151
    %p153 = scmp.eq.s32.totalorder %s22, 0
    %p154 = por %p152, %p153
    %s156 = sadd.s32 %s155, 1
    %p159 = scmp.eq.s32.totalorder %s16, 1
    %p160 = scmp.ne.s32.totalorder %s155, %s157
    %p161 = scmp.eq.s32.totalorder %s16, 0
    %p162 = por %p160, %p161
    %p163 = scmp.ne.s32.totalorder %s155, %s157
    %p164 = scmp.eq.s32.totalorder %s21, 1
    %p165 = por %p163, %p164
    %p166 = scmp.ne.s32.totalorder %s157, %s158
    %p167 = scmp.eq.s32.totalorder %s21, 0
    %p168 = por %p166, %p167
    %p169 = scmp.ne.s32.totalorder %s157, %s158
    %p170 = scmp.eq.s32.totalorder %s22, 1
    %p171 = por %p169, %p170
    %p173 = scmp.ne.s32.totalorder %s158, %s172
    %p174 = scmp.eq.s32.totalorder %s22, 0
    %p175 = por %p173, %p174
    %s177 = sadd.s32 %s176, 1
    %p180 = scmp.eq.s32.totalorder %s16, 1
    %p181 = scmp.ne.s32.totalorder %s176, %s178
    %p182 = scmp.eq.s32.totalorder %s16, 0
    %p183 = por %p181, %p182
    %p184 = scmp.ne.s32.totalorder %s176, %s178
    %p185 = scmp.eq.s32.totalorder %s21, 1
    %p186 = por %p184, %p185
    %p187 = scmp.ne.s32.totalorder %s178, %s179
    %p188 = scmp.eq.s32.totalorder %s21, 0
    %p189 = por %p187, %p188
    %p190 = scmp.ne.s32.totalorder %s178, %s179
    %p191 = scmp.eq.s32.totalorder %s22, 1
    %p192 = por %p190, %p191
    %p194 = scmp.ne.s32.totalorder %s179, %s193
    %p195 = scmp.eq.s32.totalorder %s22, 0
    %p196 = por %p194, %p195
    %s198 = sadd.s32 %s197, 1
    %p201 = scmp.eq.s32.totalorder %s16, 1
    %p202 = scmp.ne.s32.totalorder %s197, %s199
    %p203 = scmp.eq.s32.totalorder %s16, 0
    %p204 = por %p202, %p203
    %p205 = scmp.ne.s32.totalorder %s197, %s199
    %p206 = scmp.eq.s32.totalorder %s21, 1
    %p207 = por %p205, %p206
    %p208 = scmp.ne.s32.totalorder %s199, %s200
    %p209 = scmp.eq.s32.totalorder %s21, 0
    %p210 = por %p208, %p209
    %p211 = scmp.ne.s32.totalorder %s199, %s200
    %p212 = scmp.eq.s32.totalorder %s22, 1
    %p213 = por %p211, %p212
    %p215 = scmp.ne.s32.totalorder %s200, %s214
    %p216 = scmp.eq.s32.totalorder %s22, 0
    %p217 = por %p215, %p216
    %s219 = sadd.s32 %s218, 1
    %p222 = scmp.eq.s32.totalorder %s16, 1
    %p223 = scmp.ne.s32.totalorder %s218, %s220
    %p224 = scmp.eq.s32.totalorder %s16, 0
    %p225 = por %p223, %p224
    %p226 = scmp.ne.s32.totalorder %s218, %s220
    %p227 = scmp.eq.s32.totalorder %s21, 1
    %p228 = por %p226, %p227
    %p229 = scmp.ne.s32.totalorder %s220, %s221
    %p230 = scmp.eq.s32.totalorder %s21, 0
    %p231 = por %p229, %p230
    %p232 = scmp.ne.s32.totalorder %s220, %s221
    %p233 = scmp.eq.s32.totalorder %s22, 1
    %p234 = por %p232, %p233
    %p236 = scmp.ne.s32.totalorder %s221, %s235
    %p237 = scmp.eq.s32.totalorder %s22, 0
    %p238 = por %p236, %p237
    %s239 = ssub.s32 %s16, %s23
    %p240 = scmp.eq.s32.totalorder %s239, 0
    %s242 = sadd.s32 %s241, 1
    %s243 = scalar_select %p240, %s241, %s242
    %p246 = pneg %p240
    %p247 = scmp.eq.s32.totalorder %s16, 1
    %p248 = por %p246, %p247
    %p249 = scmp.ne.s32.totalorder %s241, %s244
    %p250 = scmp.eq.s32.totalorder %s16, 0
    %p251 = por %p249, %p250
    %p252 = scmp.ne.s32.totalorder %s241, %s244
    %p253 = scmp.eq.s32.totalorder %s21, 1
    %p254 = por %p252, %p253
    %p255 = scmp.ne.s32.totalorder %s244, %s245
    %p256 = scmp.eq.s32.totalorder %s21, 0
    %p257 = por %p255, %p256
    %p258 = scmp.ne.s32.totalorder %s244, %s245
    %p259 = scmp.eq.s32.totalorder %s22, 1
    %p260 = por %p258, %p259
    %p262 = scmp.ne.s32.totalorder %s245, %s261
    %p263 = scmp.eq.s32.totalorder %s22, 0
    %p264 = por %p262, %p263
    %p265 = scmp.le.s32.totalorder 1, %s16
    %p266 = scmp.lt.s32.totalorder %s16, 3
    %p267 = pnand %p265, %p266
    %p268 = pneg %p267
    // Predicated region
    $region9: #{ghost_bottleneck_forward.1} parent=5 // pred_check
      _
    $region10: #{ghost_bottleneck_forward.1} parent=5 // pred_check_branch
      %270 = sbr.rel (%p267) target = $region12
    $region11: #{ghost_bottleneck_forward.1} parent=5 // pred_region
      %s271 = ssub.s32 %s16, 1
      // Predicated region
      $region13: #{ghost_bottleneck_forward.1} parent=11 // pred_check
        %p272 = pneg %p63
      $region14: #{ghost_bottleneck_forward.1} parent=11 // pred_check_branch
        %274 = sbr.rel (%p272) target = $region16
      $region15: #{ghost_bottleneck_forward.1} parent=11 // pred_region
        _
      $region16: #{ghost_bottleneck_forward.1} parent=11 // pred_fallthru
        _
      // Predicated region
      $region17: #{ghost_bottleneck_forward.1} parent=11 // pred_check
        %p275 = pneg %p84
      $region18: #{ghost_bottleneck_forward.1} parent=11 // pred_check_branch
        %277 = sbr.rel (%p275) target = $region20
      $region19: #{ghost_bottleneck_forward.1} parent=11 // pred_region
        _
      $region20: #{ghost_bottleneck_forward.1} parent=11 // pred_fallthru
        _
      // Predicated region
      $region21: #{ghost_bottleneck_forward.1} parent=11 // pred_check
        %p278 = pneg %p105
      $region22: #{ghost_bottleneck_forward.1} parent=11 // pred_check_branch
        %280 = sbr.rel (%p278) target = $region24
      $region23: #{ghost_bottleneck_forward.1} parent=11 // pred_region
        _
      $region24: #{ghost_bottleneck_forward.1} parent=11 // pred_fallthru
        _
      // Predicated region
      $region25: #{ghost_bottleneck_forward.1} parent=11 // pred_check
        %p281 = pneg %p126
      $region26: #{ghost_bottleneck_forward.1} parent=11 // pred_check_branch
        %283 = sbr.rel (%p281) target = $region28
      $region27: #{ghost_bottleneck_forward.1} parent=11 // pred_region
        _
      $region28: #{ghost_bottleneck_forward.1} parent=11 // pred_fallthru
        _
      // Predicated region
      $region29: #{ghost_bottleneck_forward.1} parent=11 // pred_check
        %p284 = pneg %p147
      $region30: #{ghost_bottleneck_forward.1} parent=11 // pred_check_branch
        %286 = sbr.rel (%p284) target = $region32
      $region31: #{ghost_bottleneck_forward.1} parent=11 // pred_region
        _
      $region32: #{ghost_bottleneck_forward.1} parent=11 // pred_fallthru
        _
      // Predicated region
      $region33: #{ghost_bottleneck_forward.1} parent=11 // pred_check
        %p287 = pneg %p168
      $region34: #{ghost_bottleneck_forward.1} parent=11 // pred_check_branch
        %289 = sbr.rel (%p287) target = $region36
      $region35: #{ghost_bottleneck_forward.1} parent=11 // pred_region
        _
      $region36: #{ghost_bottleneck_forward.1} parent=11 // pred_fallthru
        _
      // Predicated region
      $region37: #{ghost_bottleneck_forward.1} parent=11 // pred_check
        %p290 = pneg %p189
      $region38: #{ghost_bottleneck_forward.1} parent=11 // pred_check_branch
        %292 = sbr.rel (%p290) target = $region40
      $region39: #{ghost_bottleneck_forward.1} parent=11 // pred_region
        _
      $region40: #{ghost_bottleneck_forward.1} parent=11 // pred_fallthru
        _
      // Predicated region
      $region41: #{ghost_bottleneck_forward.1} parent=11 // pred_check
        %p293 = pneg %p210
      $region42: #{ghost_bottleneck_forward.1} parent=11 // pred_check_branch
        %295 = sbr.rel (%p293) target = $region44
      $region43: #{ghost_bottleneck_forward.1} parent=11 // pred_region
        _
      $region44: #{ghost_bottleneck_forward.1} parent=11 // pred_fallthru
        _
      // Predicated region
      $region45: #{ghost_bottleneck_forward.1} parent=11 // pred_check
        %p296 = pneg %p231
      $region46: #{ghost_bottleneck_forward.1} parent=11 // pred_check_branch
        %298 = sbr.rel (%p296) target = $region48
      $region47: #{ghost_bottleneck_forward.1} parent=11 // pred_region
        _
      $region48: #{ghost_bottleneck_forward.1} parent=11 // pred_fallthru
        _
    $region12: #{ghost_bottleneck_forward.1} parent=5 // pred_fallthru
      _
    %p299 = scmp.lt.s32.totalorder %s16, 2
    // Predicated region
    $region49: #{ghost_bottleneck_forward.1} parent=5 // pred_check
      %p300 = pneg %p299
    $region50: #{ghost_bottleneck_forward.1} parent=5 // pred_check_branch
      %302 = sbr.rel (%p300) target = $region52
    $region51: #{ghost_bottleneck_forward.1} parent=5 // pred_region
      // Predicated region
      $region53: #{ghost_bottleneck_forward.1} parent=51 // pred_check
        %p303 = pneg %p36
      $region54: #{ghost_bottleneck_forward.1} parent=51 // pred_check_branch
        %305 = sbr.rel (%p303) target = $region56
      $region55: #{ghost_bottleneck_forward.1} parent=51 // pred_region
        %p306 = scmp.lt.s32.totalorder %s16, 1
        %s307 = scalar_select %p306, %s16, 1
        %s308 = smul.addr %s307, 32
        %s309 = smul.addr %s308, 8
        %s310 = scalar_lea.vmem %s0, %s309
      $region56: #{ghost_bottleneck_forward.1} parent=51 // pred_fallthru
        _
    $region52: #{ghost_bottleneck_forward.1} parent=5 // pred_fallthru
      _
    %p311 = scmp.le.s32.totalorder 1, %s16
    %p312 = scmp.lt.s32.totalorder %s16, 3
    %p313 = pnand %p311, %p312
    %p314 = pneg %p313
    // Predicated region
    $region57: #{ghost_bottleneck_forward.1} parent=5 // pred_check
      _
    $region58: #{ghost_bottleneck_forward.1} parent=5 // pred_check_branch
      %316 = sbr.rel (%p313) target = $region60
    $region59: #{ghost_bottleneck_forward.1} parent=5 // pred_region
      %s317 = ssub.s32 %s16, 1
      %p318 = scmp.lt.s32.totalorder %s21, 1
      %s319 = scalar_select %p318, %s21, 1
      %s320 = smul.addr %s319, 32
      %s321 = smul.addr %s320, 8
      %s322 = scalar_lea.vmem %s0, %s321
      %p323 = pneg %p42
      %p324 = pneg %p39
      %p325 = pneg %p63
      %p326 = pneg %p60
      %p327 = pneg %p84
      %p328 = pneg %p81
      %p329 = pneg %p105
      %p330 = pneg %p102
      %p331 = pneg %p126
      %p332 = pneg %p123
      %p333 = pneg %p147
      %p334 = pneg %p144
      %p335 = pneg %p168
      %p336 = pneg %p165
      %p337 = pneg %p189
      %p338 = pneg %p186
      %p339 = pneg %p210
      %p340 = pneg %p207
      %p341 = pneg %p231
      %p342 = pneg %p228
      %p343 = pneg %p257
      %p344 = pneg %p254
      %p345 = scmp.lt.s32.totalorder %s21, 1
      %s346 = scalar_select %p345, %s21, 1
      %s347 = smul.addr %s346, 32
      %s348 = smul.addr %s347, 8
      %s349 = scalar_lea.vmem %s10, %s348
      %p350 = scmp.lt.s32.totalorder %s21, 1
      %s351 = scalar_select %p350, %s21, 1
      %s352 = smul.addr %s351, 32
      %s353 = smul.addr %s352, 8
      %s354 = scalar_lea.vmem %s0, %s353
      %p355 = scmp.lt.s32.totalorder %s21, 1
      %s356 = scalar_select %p355, %s21, 1
      %s357 = smul.addr %s356, 32
      %s358 = smul.addr %s357, 8
      %s359 = scalar_lea.vmem %s10, %s358
      %v360 = vld [vmem:[%s354] sm:$0xff]
      %v361 = vld [vmem:[%s354 + $0x8] sm:$0xff]
      %v362 = vld [vmem:[%s354 + $0x10] sm:$0xff]
      %v363 = vld [vmem:[%s354 + $0x18] sm:$0xff]
      %v364 = vld [vmem:[%s354 + $0x20] sm:$0xff]
      %v365 = vld [vmem:[%s354 + $0x28] sm:$0xff]
      %v366 = vld [vmem:[%s354 + $0x30] sm:$0xff]
      %v367 = vld [vmem:[%s354 + $0x38] sm:$0xff]
      %v368 = vld [vmem:[%s354 + $0x40] sm:$0xff]
      %v369 = vld [vmem:[%s354 + $0x48] sm:$0xff]
      %v370 = vld [vmem:[%s354 + $0x50] sm:$0xff]
      %v371 = vld [vmem:[%s354 + $0x58] sm:$0xff]
      %v372 = vld [vmem:[%s354 + $0x60] sm:$0xff]
      %v373 = vld [vmem:[%s354 + $0x68] sm:$0xff]
      %v374 = vld [vmem:[%s354 + $0x70] sm:$0xff]
      %v375 = vld [vmem:[%s354 + $0x78] sm:$0xff]
      %v376 = vld [vmem:[%s354 + $0x80] sm:$0xff]
      %v377 = vld [vmem:[%s354 + $0x88] sm:$0xff]
      %v378 = vld [vmem:[%s354 + $0x90] sm:$0xff]
      %v379 = vld [vmem:[%s354 + $0x98] sm:$0xff]
      %v380 = vld [vmem:[%s354 + $0xa0] sm:$0xff]
      %v381 = vld [vmem:[%s354 + $0xa8] sm:$0xff]
      %v382 = vld [vmem:[%s354 + $0xb0] sm:$0xff]
      %v383 = vld [vmem:[%s354 + $0xb8] sm:$0xff]
      %v384 = vld [vmem:[%s354 + $0xc0] sm:$0xff]
      %v385 = vld [vmem:[%s354 + $0xc8] sm:$0xff]
      %v386 = vld [vmem:[%s354 + $0xd0] sm:$0xff]
      %v387 = vld [vmem:[%s354 + $0xd8] sm:$0xff]
      %v388 = vld [vmem:[%s354 + $0xe0] sm:$0xff]
      %v389 = vld [vmem:[%s354 + $0xe8] sm:$0xff]
      %v390 = vld [vmem:[%s354 + $0xf0] sm:$0xff]
      %v391 = vld [vmem:[%s354 + $0xf8] sm:$0xff]
      %v392 = vld [vmem:[%s1] sm:$0xff]
      %v393 = vld [vmem:[%s2] sm:$0x1]
      %v395 = vperm.slane %v393, 0
      %vm397 = vcmask 64512
      %v399 = vsel %vm397, %v360, 0
      %v402 = vsel %vm397, %v361, 0
      %v405 = vsel %vm397, %v362, 0
      %v408 = vsel %vm397, %v363, 0
      %v411 = vsel %vm397, %v364, 0
      %v414 = vsel %vm397, %v365, 0
      %v417 = vsel %vm397, %v366, 0
      %v420 = vsel %vm397, %v367, 0
      %v423 = vsel %vm397, %v368, 0
      %v426 = vsel %vm397, %v369, 0
      %v429 = vsel %vm397, %v370, 0
      %v432 = vsel %vm397, %v371, 0
      %v435 = vsel %vm397, %v372, 0
      %v438 = vsel %vm397, %v373, 0
      %v441 = vsel %vm397, %v374, 0
      %v444 = vsel %vm397, %v375, 0
      %v447 = vsel %vm397, %v376, 0
      %v450 = vsel %vm397, %v377, 0
      %v453 = vsel %vm397, %v378, 0
      %v456 = vsel %vm397, %v379, 0
      %v459 = vsel %vm397, %v380, 0
      %v462 = vsel %vm397, %v381, 0
      %v465 = vsel %vm397, %v382, 0
      %v468 = vsel %vm397, %v383, 0
      %v471 = vsel %vm397, %v384, 0
      %v474 = vsel %vm397, %v385, 0
      %v477 = vsel %vm397, %v386, 0
      %v480 = vsel %vm397, %v387, 0
      %v483 = vsel %vm397, %v388, 0
      %v486 = vsel %vm397, %v389, 0
      %v489 = vsel %vm397, %v390, 0
      %v492 = vsel %vm397, %v391, 0
      %494 = vmatpush.msra.mxu0 0.0
      %495 = vmatpush.msra.mxu0 0.0
      %496 = vmatpush.msra.mxu0 0.0
      %497 = vmatpush.msra.mxu0 0.0
      %498 = vmatpush.msra.mxu0 0.0
      %499 = vmatpush.msra.mxu0 0.0
      %500 = vmatpush.msra.mxu0 0.0
      %501 = vmatpush.msra.mxu0 0.0
      %502 = vmatpush.msra.mxu0 0.0
      %503 = vmatpush.msra.mxu0 0.0
      %504 = vmatpush.msra.mxu0 0.0
      %505 = vmatpush.msra.mxu0 0.0
      %506 = vmatpush.msra.mxu0 0.0
      %507 = vmatpush.msra.mxu0 0.0
      %508 = vmatpush.msra.mxu0 0.0
      %509 = vmatpush.msra.mxu0 %v392
      %510 = vmatmul.f32.gmra.mxu0 %v399
      %v511 = vpop.f32.mrf.mxu0
      %v512 = vadd.f32 %v395, %v511
      %513 = vmatmul.f32.gmra.mxu0 %v402
      %v514 = vpop.f32.mrf.mxu0
      %v515 = vadd.f32 %v395, %v514
      %516 = vmatmul.f32.gmra.mxu0 %v405
      %v517 = vpop.f32.mrf.mxu0
      %v518 = vadd.f32 %v395, %v517
      %519 = vmatmul.f32.gmra.mxu0 %v408
      %v520 = vpop.f32.mrf.mxu0
      %v521 = vadd.f32 %v395, %v520
      %522 = vmatmul.f32.gmra.mxu0 %v411
      %v523 = vpop.f32.mrf.mxu0
      %v524 = vadd.f32 %v395, %v523
      %525 = vmatmul.f32.gmra.mxu0 %v414
      %v526 = vpop.f32.mrf.mxu0
      %v527 = vadd.f32 %v395, %v526
      %528 = vmatmul.f32.gmra.mxu0 %v417
      %v529 = vpop.f32.mrf.mxu0
      %v530 = vadd.f32 %v395, %v529
      %531 = vmatmul.f32.gmra.mxu0 %v420
      %v532 = vpop.f32.mrf.mxu0
      %v533 = vadd.f32 %v395, %v532
      %534 = vmatmul.f32.gmra.mxu0 %v423
      %v535 = vpop.f32.mrf.mxu0
      %v536 = vadd.f32 %v395, %v535
      %537 = vmatmul.f32.gmra.mxu0 %v426
      %v538 = vpop.f32.mrf.mxu0
      %v539 = vadd.f32 %v395, %v538
      %540 = vmatmul.f32.gmra.mxu0 %v429
      %v541 = vpop.f32.mrf.mxu0
      %v542 = vadd.f32 %v395, %v541
      %543 = vmatmul.f32.gmra.mxu0 %v432
      %v544 = vpop.f32.mrf.mxu0
      %v545 = vadd.f32 %v395, %v544
      %546 = vmatmul.f32.gmra.mxu0 %v435
      %v547 = vpop.f32.mrf.mxu0
      %v548 = vadd.f32 %v395, %v547
      %549 = vmatmul.f32.gmra.mxu0 %v438
      %v550 = vpop.f32.mrf.mxu0
      %v551 = vadd.f32 %v395, %v550
      %552 = vmatmul.f32.gmra.mxu0 %v441
      %v553 = vpop.f32.mrf.mxu0
      %v554 = vadd.f32 %v395, %v553
      %555 = vmatmul.f32.gmra.mxu0 %v444
      %v556 = vpop.f32.mrf.mxu0
      %v557 = vadd.f32 %v395, %v556
      %558 = vmatmul.f32.gmra.mxu0 %v447
      %v559 = vpop.f32.mrf.mxu0
      %v560 = vadd.f32 %v395, %v559
      %561 = vmatmul.f32.gmra.mxu0 %v450
      %v562 = vpop.f32.mrf.mxu0
      %v563 = vadd.f32 %v395, %v562
      %564 = vmatmul.f32.gmra.mxu0 %v453
      %v565 = vpop.f32.mrf.mxu0
      %v566 = vadd.f32 %v395, %v565
      %567 = vmatmul.f32.gmra.mxu0 %v456
      %v568 = vpop.f32.mrf.mxu0
      %v569 = vadd.f32 %v395, %v568
      %570 = vmatmul.f32.gmra.mxu0 %v459
      %v571 = vpop.f32.mrf.mxu0
      %v572 = vadd.f32 %v395, %v571
      %573 = vmatmul.f32.gmra.mxu0 %v462
      %v574 = vpop.f32.mrf.mxu0
      %v575 = vadd.f32 %v395, %v574
      %576 = vmatmul.f32.gmra.mxu0 %v465
      %v577 = vpop.f32.mrf.mxu0
      %v578 = vadd.f32 %v395, %v577
      %579 = vmatmul.f32.gmra.mxu0 %v468
      %v580 = vpop.f32.mrf.mxu0
      %v581 = vadd.f32 %v395, %v580
      %582 = vmatmul.f32.gmra.mxu0 %v471
      %v583 = vpop.f32.mrf.mxu0
      %v584 = vadd.f32 %v395, %v583
      %585 = vmatmul.f32.gmra.mxu0 %v474
      %v586 = vpop.f32.mrf.mxu0
      %v587 = vadd.f32 %v395, %v586
      %588 = vmatmul.f32.gmra.mxu0 %v477
      %v589 = vpop.f32.mrf.mxu0
      %v590 = vadd.f32 %v395, %v589
      %591 = vmatmul.f32.gmra.mxu0 %v480
      %v592 = vpop.f32.mrf.mxu0
      %v593 = vadd.f32 %v395, %v592
      %594 = vmatmul.f32.gmra.mxu0 %v483
      %v595 = vpop.f32.mrf.mxu0
      %v596 = vadd.f32 %v395, %v595
      %597 = vmatmul.f32.gmra.mxu0 %v486
      %v598 = vpop.f32.mrf.mxu0
      %v599 = vadd.f32 %v395, %v598
      %600 = vmatmul.f32.gmra.mxu0 %v489
      %v601 = vpop.f32.mrf.mxu0
      %v602 = vadd.f32 %v395, %v601
      %603 = vmatmul.f32.gmra.mxu0 %v492
      %v604 = vpop.f32.mrf.mxu0
      %v605 = vadd.f32 %v395, %v604
      %606 = vdwg.mxu0
      %v607 = vxor.u32 %v512, 2147483648
      %v608 = vxor.u32 %v515, 2147483648
      %v609 = vxor.u32 %v518, 2147483648
      %v610 = vxor.u32 %v521, 2147483648
      %v611 = vxor.u32 %v524, 2147483648
      %v612 = vxor.u32 %v527, 2147483648
      %v613 = vxor.u32 %v530, 2147483648
      %v614 = vxor.u32 %v533, 2147483648
      %v615 = vxor.u32 %v536, 2147483648
      %v616 = vxor.u32 %v539, 2147483648
      %v617 = vxor.u32 %v542, 2147483648
      %v618 = vxor.u32 %v545, 2147483648
      %v619 = vxor.u32 %v548, 2147483648
      %v620 = vxor.u32 %v551, 2147483648
      %v621 = vxor.u32 %v554, 2147483648
      %v622 = vxor.u32 %v557, 2147483648
      %v623 = vxor.u32 %v560, 2147483648
      %v624 = vxor.u32 %v563, 2147483648
      %v625 = vxor.u32 %v566, 2147483648
      %v626 = vxor.u32 %v569, 2147483648
      %v627 = vxor.u32 %v572, 2147483648
      %v628 = vxor.u32 %v575, 2147483648
      %v629 = vxor.u32 %v578, 2147483648
      %v630 = vxor.u32 %v581, 2147483648
      %v631 = vxor.u32 %v584, 2147483648
      %v632 = vxor.u32 %v587, 2147483648
      %v633 = vxor.u32 %v590, 2147483648
      %v634 = vxor.u32 %v593, 2147483648
      %v635 = vxor.u32 %v596, 2147483648
      %v636 = vxor.u32 %v599, 2147483648
      %v637 = vxor.u32 %v602, 2147483648
      %v638 = vxor.u32 %v605, 2147483648
      %v639 = vmul.f32 %v607, 1.442695
      %v640 = vpow.pop %v639
      %v641 = vmul.f32 %v608, 1.442695
      %v642 = vpow.pop %v641
      %v643 = vmul.f32 %v609, 1.442695
      %v644 = vpow.pop %v643
      %v645 = vmul.f32 %v610, 1.442695
      %v646 = vpow.pop %v645
      %v647 = vmul.f32 %v611, 1.442695
      %v648 = vpow.pop %v647
      %v649 = vmul.f32 %v612, 1.442695
      %v650 = vpow.pop %v649
      %v651 = vmul.f32 %v613, 1.442695
      %v652 = vpow.pop %v651
      %v653 = vmul.f32 %v614, 1.442695
      %v654 = vpow.pop %v653
      %v655 = vmul.f32 %v615, 1.442695
      %v656 = vpow.pop %v655
      %v657 = vmul.f32 %v616, 1.442695
      %v658 = vpow.pop %v657
      %v659 = vmul.f32 %v617, 1.442695
      %v660 = vpow.pop %v659
      %v661 = vmul.f32 %v618, 1.442695
      %v662 = vpow.pop %v661
      %v663 = vmul.f32 %v619, 1.442695
      %v664 = vpow.pop %v663
      %v665 = vmul.f32 %v620, 1.442695
      %v666 = vpow.pop %v665
      %v667 = vmul.f32 %v621, 1.442695
      %v668 = vpow.pop %v667
      %v669 = vmul.f32 %v622, 1.442695
      %v670 = vpow.pop %v669
      %v671 = vmul.f32 %v623, 1.442695
      %v672 = vpow.pop %v671
      %v673 = vmul.f32 %v624, 1.442695
      %v674 = vpow.pop %v673
      %v675 = vmul.f32 %v625, 1.442695
      %v676 = vpow.pop %v675
      %v677 = vmul.f32 %v626, 1.442695
      %v678 = vpow.pop %v677
      %v679 = vmul.f32 %v627, 1.442695
      %v680 = vpow.pop %v679
      %v681 = vmul.f32 %v628, 1.442695
      %v682 = vpow.pop %v681
      %v683 = vmul.f32 %v629, 1.442695
      %v684 = vpow.pop %v683
      %v685 = vmul.f32 %v630, 1.442695
      %v686 = vpow.pop %v685
      %v687 = vmul.f32 %v631, 1.442695
      %v688 = vpow.pop %v687
      %v689 = vmul.f32 %v632, 1.442695
      %v690 = vpow.pop %v689
      %v691 = vmul.f32 %v633, 1.442695
      %v692 = vpow.pop %v691
      %v693 = vmul.f32 %v634, 1.442695
      %v694 = vpow.pop %v693
      %v695 = vmul.f32 %v635, 1.442695
      %v696 = vpow.pop %v695
      %v697 = vmul.f32 %v636, 1.442695
      %v698 = vpow.pop %v697
      %v699 = vmul.f32 %v637, 1.442695
      %v700 = vpow.pop %v699
      %v701 = vmul.f32 %v638, 1.442695
      %v702 = vpow.pop %v701
      %v703 = vadd.f32 %v640, 1.0
      %v704 = vadd.f32 %v642, 1.0
      %v705 = vadd.f32 %v644, 1.0
      %v706 = vadd.f32 %v646, 1.0
      %v707 = vadd.f32 %v648, 1.0
      %v708 = vadd.f32 %v650, 1.0
      %v709 = vadd.f32 %v652, 1.0
      %v710 = vadd.f32 %v654, 1.0
      %v711 = vadd.f32 %v656, 1.0
      %v712 = vadd.f32 %v658, 1.0
      %v713 = vadd.f32 %v660, 1.0
      %v714 = vadd.f32 %v662, 1.0
      %v715 = vadd.f32 %v664, 1.0
      %v716 = vadd.f32 %v666, 1.0
      %v717 = vadd.f32 %v668, 1.0
      %v718 = vadd.f32 %v670, 1.0
      %v719 = vadd.f32 %v672, 1.0
      %v720 = vadd.f32 %v674, 1.0
      %v721 = vadd.f32 %v676, 1.0
      %v722 = vadd.f32 %v678, 1.0
      %v723 = vadd.f32 %v680, 1.0
      %v724 = vadd.f32 %v682, 1.0
      %v725 = vadd.f32 %v684, 1.0
      %v726 = vadd.f32 %v686, 1.0
      %v727 = vadd.f32 %v688, 1.0
      %v728 = vadd.f32 %v690, 1.0
      %v729 = vadd.f32 %v692, 1.0
      %v730 = vadd.f32 %v694, 1.0
      %v731 = vadd.f32 %v696, 1.0
      %v732 = vadd.f32 %v698, 1.0
      %v733 = vadd.f32 %v700, 1.0
      %v734 = vadd.f32 %v702, 1.0
      %v735 = vrcp.pop %v703
      %v736 = vmul.f32 %v703, %v735
      %v737 = vsub.f32 1.0, %v736
      %v738 = vmul.f32 %v735, %v737
      %v739 = vadd.f32 %v735, %v738
      %vm740 = vweird.f32 %v703
      %vm741 = vweird.f32 %v735
      %vm742 = vmor %vm740, %vm741
      %v743 = vsel %vm742, %v735, %v739
      %v744 = vand.u32 2147483647, %v703
      %vm745 = vcmp.eq.f32.partialorder %v744, 8.507059e+37
      %v746 = vand.u32 %v703, 2147483648
      %v747 = vor.u32 1.1754944e-38, %v746
      %v748 = vsel %vm745, %v747, %v743
      %v749 = vmul.f32 1.0, %v748
      %v750 = vrcp.pop %v704
      %v751 = vmul.f32 %v704, %v750
      %v752 = vsub.f32 1.0, %v751
      %v753 = vmul.f32 %v750, %v752
      %v754 = vadd.f32 %v750, %v753
      %vm755 = vweird.f32 %v704
      %vm756 = vweird.f32 %v750
      %vm757 = vmor %vm755, %vm756
      %v758 = vsel %vm757, %v750, %v754
      %v759 = vand.u32 2147483647, %v704
      %vm760 = vcmp.eq.f32.partialorder %v759, 8.507059e+37
      %v761 = vand.u32 %v704, 2147483648
      %v762 = vor.u32 1.1754944e-38, %v761
      %v763 = vsel %vm760, %v762, %v758
      %v764 = vmul.f32 1.0, %v763
      %v765 = vrcp.pop %v705
      %v766 = vmul.f32 %v705, %v765
      %v767 = vsub.f32 1.0, %v766
      %v768 = vmul.f32 %v765, %v767
      %v769 = vadd.f32 %v765, %v768
      %vm770 = vweird.f32 %v705
      %vm771 = vweird.f32 %v765
      %vm772 = vmor %vm770, %vm771
      %v773 = vsel %vm772, %v765, %v769
      %v774 = vand.u32 2147483647, %v705
      %vm775 = vcmp.eq.f32.partialorder %v774, 8.507059e+37
      %v776 = vand.u32 %v705, 2147483648
      %v777 = vor.u32 1.1754944e-38, %v776
      %v778 = vsel %vm775, %v777, %v773
      %v779 = vmul.f32 1.0, %v778
      %v780 = vrcp.pop %v706
      %v781 = vmul.f32 %v706, %v780
      %v782 = vsub.f32 1.0, %v781
      %v783 = vmul.f32 %v780, %v782
      %v784 = vadd.f32 %v780, %v783
      %vm785 = vweird.f32 %v706
      %vm786 = vweird.f32 %v780
      %vm787 = vmor %vm785, %vm786
      %v788 = vsel %vm787, %v780, %v784
      %v789 = vand.u32 2147483647, %v706
      %vm790 = vcmp.eq.f32.partialorder %v789, 8.507059e+37
      %v791 = vand.u32 %v706, 2147483648
      %v792 = vor.u32 1.1754944e-38, %v791
      %v793 = vsel %vm790, %v792, %v788
      %v794 = vmul.f32 1.0, %v793
      %v795 = vrcp.pop %v707
      %v796 = vmul.f32 %v707, %v795
      %v797 = vsub.f32 1.0, %v796
      %v798 = vmul.f32 %v795, %v797
      %v799 = vadd.f32 %v795, %v798
      %vm800 = vweird.f32 %v707
      %vm801 = vweird.f32 %v795
      %vm802 = vmor %vm800, %vm801
      %v803 = vsel %vm802, %v795, %v799
      %v804 = vand.u32 2147483647, %v707
      %vm805 = vcmp.eq.f32.partialorder %v804, 8.507059e+37
      %v806 = vand.u32 %v707, 2147483648
      %v807 = vor.u32 1.1754944e-38, %v806
      %v808 = vsel %vm805, %v807, %v803
      %v809 = vmul.f32 1.0, %v808
      %v810 = vrcp.pop %v708
      %v811 = vmul.f32 %v708, %v810
      %v812 = vsub.f32 1.0, %v811
      %v813 = vmul.f32 %v810, %v812
      %v814 = vadd.f32 %v810, %v813
      %vm815 = vweird.f32 %v708
      %vm816 = vweird.f32 %v810
      %vm817 = vmor %vm815, %vm816
      %v818 = vsel %vm817, %v810, %v814
      %v819 = vand.u32 2147483647, %v708
      %vm820 = vcmp.eq.f32.partialorder %v819, 8.507059e+37
      %v821 = vand.u32 %v708, 2147483648
      %v822 = vor.u32 1.1754944e-38, %v821
      %v823 = vsel %vm820, %v822, %v818
      %v824 = vmul.f32 1.0, %v823
      %v825 = vrcp.pop %v709
      %v826 = vmul.f32 %v709, %v825
      %v827 = vsub.f32 1.0, %v826
      %v828 = vmul.f32 %v825, %v827
      %v829 = vadd.f32 %v825, %v828
      %vm830 = vweird.f32 %v709
      %vm831 = vweird.f32 %v825
      %vm832 = vmor %vm830, %vm831
      %v833 = vsel %vm832, %v825, %v829
      %v834 = vand.u32 2147483647, %v709
      %vm835 = vcmp.eq.f32.partialorder %v834, 8.507059e+37
      %v836 = vand.u32 %v709, 2147483648
      %v837 = vor.u32 1.1754944e-38, %v836
      %v838 = vsel %vm835, %v837, %v833
      %v839 = vmul.f32 1.0, %v838
      %v840 = vrcp.pop %v710
      %v841 = vmul.f32 %v710, %v840
      %v842 = vsub.f32 1.0, %v841
      %v843 = vmul.f32 %v840, %v842
      %v844 = vadd.f32 %v840, %v843
      %vm845 = vweird.f32 %v710
      %vm846 = vweird.f32 %v840
      %vm847 = vmor %vm845, %vm846
      %v848 = vsel %vm847, %v840, %v844
      %v849 = vand.u32 2147483647, %v710
      %vm850 = vcmp.eq.f32.partialorder %v849, 8.507059e+37
      %v851 = vand.u32 %v710, 2147483648
      %v852 = vor.u32 1.1754944e-38, %v851
      %v853 = vsel %vm850, %v852, %v848
      %v854 = vmul.f32 1.0, %v853
      %v855 = vrcp.pop %v711
      %v856 = vmul.f32 %v711, %v855
      %v857 = vsub.f32 1.0, %v856
      %v858 = vmul.f32 %v855, %v857
      %v859 = vadd.f32 %v855, %v858
      %vm860 = vweird.f32 %v711
      %vm861 = vweird.f32 %v855
      %vm862 = vmor %vm860, %vm861
      %v863 = vsel %vm862, %v855, %v859
      %v864 = vand.u32 2147483647, %v711
      %vm865 = vcmp.eq.f32.partialorder %v864, 8.507059e+37
      %v866 = vand.u32 %v711, 2147483648
      %v867 = vor.u32 1.1754944e-38, %v866
      %v868 = vsel %vm865, %v867, %v863
      %v869 = vmul.f32 1.0, %v868
      %v870 = vrcp.pop %v712
      %v871 = vmul.f32 %v712, %v870
      %v872 = vsub.f32 1.0, %v871
      %v873 = vmul.f32 %v870, %v872
      %v874 = vadd.f32 %v870, %v873
      %vm875 = vweird.f32 %v712
      %vm876 = vweird.f32 %v870
      %vm877 = vmor %vm875, %vm876
      %v878 = vsel %vm877, %v870, %v874
      %v879 = vand.u32 2147483647, %v712
      %vm880 = vcmp.eq.f32.partialorder %v879, 8.507059e+37
      %v881 = vand.u32 %v712, 2147483648
      %v882 = vor.u32 1.1754944e-38, %v881
      %v883 = vsel %vm880, %v882, %v878
      %v884 = vmul.f32 1.0, %v883
      %v885 = vrcp.pop %v713
      %v886 = vmul.f32 %v713, %v885
      %v887 = vsub.f32 1.0, %v886
      %v888 = vmul.f32 %v885, %v887
      %v889 = vadd.f32 %v885, %v888
      %vm890 = vweird.f32 %v713
      %vm891 = vweird.f32 %v885
      %vm892 = vmor %vm890, %vm891
      %v893 = vsel %vm892, %v885, %v889
      %v894 = vand.u32 2147483647, %v713
      %vm895 = vcmp.eq.f32.partialorder %v894, 8.507059e+37
      %v896 = vand.u32 %v713, 2147483648
      %v897 = vor.u32 1.1754944e-38, %v896
      %v898 = vsel %vm895, %v897, %v893
      %v899 = vmul.f32 1.0, %v898
      %v900 = vrcp.pop %v714
      %v901 = vmul.f32 %v714, %v900
      %v902 = vsub.f32 1.0, %v901
      %v903 = vmul.f32 %v900, %v902
      %v904 = vadd.f32 %v900, %v903
      %vm905 = vweird.f32 %v714
      %vm906 = vweird.f32 %v900
      %vm907 = vmor %vm905, %vm906
      %v908 = vsel %vm907, %v900, %v904
      %v909 = vand.u32 2147483647, %v714
      %vm910 = vcmp.eq.f32.partialorder %v909, 8.507059e+37
      %v911 = vand.u32 %v714, 2147483648
      %v912 = vor.u32 1.1754944e-38, %v911
      %v913 = vsel %vm910, %v912, %v908
      %v914 = vmul.f32 1.0, %v913
      %v915 = vrcp.pop %v715
      %v916 = vmul.f32 %v715, %v915
      %v917 = vsub.f32 1.0, %v916
      %v918 = vmul.f32 %v915, %v917
      %v919 = vadd.f32 %v915, %v918
      %vm920 = vweird.f32 %v715
      %vm921 = vweird.f32 %v915
      %vm922 = vmor %vm920, %vm921
      %v923 = vsel %vm922, %v915, %v919
      %v924 = vand.u32 2147483647, %v715
      %vm925 = vcmp.eq.f32.partialorder %v924, 8.507059e+37
      %v926 = vand.u32 %v715, 2147483648
      %v927 = vor.u32 1.1754944e-38, %v926
      %v928 = vsel %vm925, %v927, %v923
      %v929 = vmul.f32 1.0, %v928
      %v930 = vrcp.pop %v716
      %v931 = vmul.f32 %v716, %v930
      %v932 = vsub.f32 1.0, %v931
      %v933 = vmul.f32 %v930, %v932
      %v934 = vadd.f32 %v930, %v933
      %vm935 = vweird.f32 %v716
      %vm936 = vweird.f32 %v930
      %vm937 = vmor %vm935, %vm936
      %v938 = vsel %vm937, %v930, %v934
      %v939 = vand.u32 2147483647, %v716
      %vm940 = vcmp.eq.f32.partialorder %v939, 8.507059e+37
      %v941 = vand.u32 %v716, 2147483648
      %v942 = vor.u32 1.1754944e-38, %v941
      %v943 = vsel %vm940, %v942, %v938
      %v944 = vmul.f32 1.0, %v943
      %v945 = vrcp.pop %v717
      %v946 = vmul.f32 %v717, %v945
      %v947 = vsub.f32 1.0, %v946
      %v948 = vmul.f32 %v945, %v947
      %v949 = vadd.f32 %v945, %v948
      %vm950 = vweird.f32 %v717
      %vm951 = vweird.f32 %v945
      %vm952 = vmor %vm950, %vm951
      %v953 = vsel %vm952, %v945, %v949
      %v954 = vand.u32 2147483647, %v717
      %vm955 = vcmp.eq.f32.partialorder %v954, 8.507059e+37
      %v956 = vand.u32 %v717, 2147483648
      %v957 = vor.u32 1.1754944e-38, %v956
      %v958 = vsel %vm955, %v957, %v953
      %v959 = vmul.f32 1.0, %v958
      %v960 = vrcp.pop %v718
      %v961 = vmul.f32 %v718, %v960
      %v962 = vsub.f32 1.0, %v961
      %v963 = vmul.f32 %v960, %v962
      %v964 = vadd.f32 %v960, %v963
      %vm965 = vweird.f32 %v718
      %vm966 = vweird.f32 %v960
      %vm967 = vmor %vm965, %vm966
      %v968 = vsel %vm967, %v960, %v964
      %v969 = vand.u32 2147483647, %v718
      %vm970 = vcmp.eq.f32.partialorder %v969, 8.507059e+37
      %v971 = vand.u32 %v718, 2147483648
      %v972 = vor.u32 1.1754944e-38, %v971
      %v973 = vsel %vm970, %v972, %v968
      %v974 = vmul.f32 1.0, %v973
      %v975 = vrcp.pop %v719
      %v976 = vmul.f32 %v719, %v975
      %v977 = vsub.f32 1.0, %v976
      %v978 = vmul.f32 %v975, %v977
      %v979 = vadd.f32 %v975, %v978
      %vm980 = vweird.f32 %v719
      %vm981 = vweird.f32 %v975
      %vm982 = vmor %vm980, %vm981
      %v983 = vsel %vm982, %v975, %v979
      %v984 = vand.u32 2147483647, %v719
      %vm985 = vcmp.eq.f32.partialorder %v984, 8.507059e+37
      %v986 = vand.u32 %v719, 2147483648
      %v987 = vor.u32 1.1754944e-38, %v986
      %v988 = vsel %vm985, %v987, %v983
      %v989 = vmul.f32 1.0, %v988
      %v990 = vrcp.pop %v720
      %v991 = vmul.f32 %v720, %v990
      %v992 = vsub.f32 1.0, %v991
      %v993 = vmul.f32 %v990, %v992
      %v994 = vadd.f32 %v990, %v993
      %vm995 = vweird.f32 %v720
      %vm996 = vweird.f32 %v990
      %vm997 = vmor %vm995, %vm996
      %v998 = vsel %vm997, %v990, %v994
      %v999 = vand.u32 2147483647, %v720
      %vm1000 = vcmp.eq.f32.partialorder %v999, 8.507059e+37
      %v1001 = vand.u32 %v720, 2147483648
      %v1002 = vor.u32 1.1754944e-38, %v1001
      %v1003 = vsel %vm1000, %v1002, %v998
      %v1004 = vmul.f32 1.0, %v1003
      %v1005 = vrcp.pop %v721
      %v1006 = vmul.f32 %v721, %v1005
      %v1007 = vsub.f32 1.0, %v1006
      %v1008 = vmul.f32 %v1005, %v1007
      %v1009 = vadd.f32 %v1005, %v1008
      %vm1010 = vweird.f32 %v721
      %vm1011 = vweird.f32 %v1005
      %vm1012 = vmor %vm1010, %vm1011
      %v1013 = vsel %vm1012, %v1005, %v1009
      %v1014 = vand.u32 2147483647, %v721
      %vm1015 = vcmp.eq.f32.partialorder %v1014, 8.507059e+37
      %v1016 = vand.u32 %v721, 2147483648
      %v1017 = vor.u32 1.1754944e-38, %v1016
      %v1018 = vsel %vm1015, %v1017, %v1013
      %v1019 = vmul.f32 1.0, %v1018
      %v1020 = vrcp.pop %v722
      %v1021 = vmul.f32 %v722, %v1020
      %v1022 = vsub.f32 1.0, %v1021
      %v1023 = vmul.f32 %v1020, %v1022
      %v1024 = vadd.f32 %v1020, %v1023
      %vm1025 = vweird.f32 %v722
      %vm1026 = vweird.f32 %v1020
      %vm1027 = vmor %vm1025, %vm1026
      %v1028 = vsel %vm1027, %v1020, %v1024
      %v1029 = vand.u32 2147483647, %v722
      %vm1030 = vcmp.eq.f32.partialorder %v1029, 8.507059e+37
      %v1031 = vand.u32 %v722, 2147483648
      %v1032 = vor.u32 1.1754944e-38, %v1031
      %v1033 = vsel %vm1030, %v1032, %v1028
      %v1034 = vmul.f32 1.0, %v1033
      %v1035 = vrcp.pop %v723
      %v1036 = vmul.f32 %v723, %v1035
      %v1037 = vsub.f32 1.0, %v1036
      %v1038 = vmul.f32 %v1035, %v1037
      %v1039 = vadd.f32 %v1035, %v1038
      %vm1040 = vweird.f32 %v723
      %vm1041 = vweird.f32 %v1035
      %vm1042 = vmor %vm1040, %vm1041
      %v1043 = vsel %vm1042, %v1035, %v1039
      %v1044 = vand.u32 2147483647, %v723
      %vm1045 = vcmp.eq.f32.partialorder %v1044, 8.507059e+37
      %v1046 = vand.u32 %v723, 2147483648
      %v1047 = vor.u32 1.1754944e-38, %v1046
      %v1048 = vsel %vm1045, %v1047, %v1043
      %v1049 = vmul.f32 1.0, %v1048
      %v1050 = vrcp.pop %v724
      %v1051 = vmul.f32 %v724, %v1050
      %v1052 = vsub.f32 1.0, %v1051
      %v1053 = vmul.f32 %v1050, %v1052
      %v1054 = vadd.f32 %v1050, %v1053
      %vm1055 = vweird.f32 %v724
      %vm1056 = vweird.f32 %v1050
      %vm1057 = vmor %vm1055, %vm1056
      %v1058 = vsel %vm1057, %v1050, %v1054
      %v1059 = vand.u32 2147483647, %v724
      %vm1060 = vcmp.eq.f32.partialorder %v1059, 8.507059e+37
      %v1061 = vand.u32 %v724, 2147483648
      %v1062 = vor.u32 1.1754944e-38, %v1061
      %v1063 = vsel %vm1060, %v1062, %v1058
      %v1064 = vmul.f32 1.0, %v1063
      %v1065 = vrcp.pop %v725
      %v1066 = vmul.f32 %v725, %v1065
      %v1067 = vsub.f32 1.0, %v1066
      %v1068 = vmul.f32 %v1065, %v1067
      %v1069 = vadd.f32 %v1065, %v1068
      %vm1070 = vweird.f32 %v725
      %vm1071 = vweird.f32 %v1065
      %vm1072 = vmor %vm1070, %vm1071
      %v1073 = vsel %vm1072, %v1065, %v1069
      %v1074 = vand.u32 2147483647, %v725
      %vm1075 = vcmp.eq.f32.partialorder %v1074, 8.507059e+37
      %v1076 = vand.u32 %v725, 2147483648
      %v1077 = vor.u32 1.1754944e-38, %v1076
      %v1078 = vsel %vm1075, %v1077, %v1073
      %v1079 = vmul.f32 1.0, %v1078
      %v1080 = vrcp.pop %v726
      %v1081 = vmul.f32 %v726, %v1080
      %v1082 = vsub.f32 1.0, %v1081
      %v1083 = vmul.f32 %v1080, %v1082
      %v1084 = vadd.f32 %v1080, %v1083
      %vm1085 = vweird.f32 %v726
      %vm1086 = vweird.f32 %v1080
      %vm1087 = vmor %vm1085, %vm1086
      %v1088 = vsel %vm1087, %v1080, %v1084
      %v1089 = vand.u32 2147483647, %v726
      %vm1090 = vcmp.eq.f32.partialorder %v1089, 8.507059e+37
      %v1091 = vand.u32 %v726, 2147483648
      %v1092 = vor.u32 1.1754944e-38, %v1091
      %v1093 = vsel %vm1090, %v1092, %v1088
      %v1094 = vmul.f32 1.0, %v1093
      %v1095 = vrcp.pop %v727
      %v1096 = vmul.f32 %v727, %v1095
      %v1097 = vsub.f32 1.0, %v1096
      %v1098 = vmul.f32 %v1095, %v1097
      %v1099 = vadd.f32 %v1095, %v1098
      %vm1100 = vweird.f32 %v727
      %vm1101 = vweird.f32 %v1095
      %vm1102 = vmor %vm1100, %vm1101
      %v1103 = vsel %vm1102, %v1095, %v1099
      %v1104 = vand.u32 2147483647, %v727
      %vm1105 = vcmp.eq.f32.partialorder %v1104, 8.507059e+37
      %v1106 = vand.u32 %v727, 2147483648
      %v1107 = vor.u32 1.1754944e-38, %v1106
      %v1108 = vsel %vm1105, %v1107, %v1103
      %v1109 = vmul.f32 1.0, %v1108
      %v1110 = vrcp.pop %v728
      %v1111 = vmul.f32 %v728, %v1110
      %v1112 = vsub.f32 1.0, %v1111
      %v1113 = vmul.f32 %v1110, %v1112
      %v1114 = vadd.f32 %v1110, %v1113
      %vm1115 = vweird.f32 %v728
      %vm1116 = vweird.f32 %v1110
      %vm1117 = vmor %vm1115, %vm1116
      %v1118 = vsel %vm1117, %v1110, %v1114
      %v1119 = vand.u32 2147483647, %v728
      %vm1120 = vcmp.eq.f32.partialorder %v1119, 8.507059e+37
      %v1121 = vand.u32 %v728, 2147483648
      %v1122 = vor.u32 1.1754944e-38, %v1121
      %v1123 = vsel %vm1120, %v1122, %v1118
      %v1124 = vmul.f32 1.0, %v1123
      %v1125 = vrcp.pop %v729
      %v1126 = vmul.f32 %v729, %v1125
      %v1127 = vsub.f32 1.0, %v1126
      %v1128 = vmul.f32 %v1125, %v1127
      %v1129 = vadd.f32 %v1125, %v1128
      %vm1130 = vweird.f32 %v729
      %vm1131 = vweird.f32 %v1125
      %vm1132 = vmor %vm1130, %vm1131
      %v1133 = vsel %vm1132, %v1125, %v1129
      %v1134 = vand.u32 2147483647, %v729
      %vm1135 = vcmp.eq.f32.partialorder %v1134, 8.507059e+37
      %v1136 = vand.u32 %v729, 2147483648
      %v1137 = vor.u32 1.1754944e-38, %v1136
      %v1138 = vsel %vm1135, %v1137, %v1133
      %v1139 = vmul.f32 1.0, %v1138
      %v1140 = vrcp.pop %v730
      %v1141 = vmul.f32 %v730, %v1140
      %v1142 = vsub.f32 1.0, %v1141
      %v1143 = vmul.f32 %v1140, %v1142
      %v1144 = vadd.f32 %v1140, %v1143
      %vm1145 = vweird.f32 %v730
      %vm1146 = vweird.f32 %v1140
      %vm1147 = vmor %vm1145, %vm1146
      %v1148 = vsel %vm1147, %v1140, %v1144
      %v1149 = vand.u32 2147483647, %v730
      %vm1150 = vcmp.eq.f32.partialorder %v1149, 8.507059e+37
      %v1151 = vand.u32 %v730, 2147483648
      %v1152 = vor.u32 1.1754944e-38, %v1151
      %v1153 = vsel %vm1150, %v1152, %v1148
      %v1154 = vmul.f32 1.0, %v1153
      %v1155 = vrcp.pop %v731
      %v1156 = vmul.f32 %v731, %v1155
      %v1157 = vsub.f32 1.0, %v1156
      %v1158 = vmul.f32 %v1155, %v1157
      %v1159 = vadd.f32 %v1155, %v1158
      %vm1160 = vweird.f32 %v731
      %vm1161 = vweird.f32 %v1155
      %vm1162 = vmor %vm1160, %vm1161
      %v1163 = vsel %vm1162, %v1155, %v1159
      %v1164 = vand.u32 2147483647, %v731
      %vm1165 = vcmp.eq.f32.partialorder %v1164, 8.507059e+37
      %v1166 = vand.u32 %v731, 2147483648
      %v1167 = vor.u32 1.1754944e-38, %v1166
      %v1168 = vsel %vm1165, %v1167, %v1163
      %v1169 = vmul.f32 1.0, %v1168
      %v1170 = vrcp.pop %v732
      %v1171 = vmul.f32 %v732, %v1170
      %v1172 = vsub.f32 1.0, %v1171
      %v1173 = vmul.f32 %v1170, %v1172
      %v1174 = vadd.f32 %v1170, %v1173
      %vm1175 = vweird.f32 %v732
      %vm1176 = vweird.f32 %v1170
      %vm1177 = vmor %vm1175, %vm1176
      %v1178 = vsel %vm1177, %v1170, %v1174
      %v1179 = vand.u32 2147483647, %v732
      %vm1180 = vcmp.eq.f32.partialorder %v1179, 8.507059e+37
      %v1181 = vand.u32 %v732, 2147483648
      %v1182 = vor.u32 1.1754944e-38, %v1181
      %v1183 = vsel %vm1180, %v1182, %v1178
      %v1184 = vmul.f32 1.0, %v1183
      %v1185 = vrcp.pop %v733
      %v1186 = vmul.f32 %v733, %v1185
      %v1187 = vsub.f32 1.0, %v1186
      %v1188 = vmul.f32 %v1185, %v1187
      %v1189 = vadd.f32 %v1185, %v1188
      %vm1190 = vweird.f32 %v733
      %vm1191 = vweird.f32 %v1185
      %vm1192 = vmor %vm1190, %vm1191
      %v1193 = vsel %vm1192, %v1185, %v1189
      %v1194 = vand.u32 2147483647, %v733
      %vm1195 = vcmp.eq.f32.partialorder %v1194, 8.507059e+37
      %v1196 = vand.u32 %v733, 2147483648
      %v1197 = vor.u32 1.1754944e-38, %v1196
      %v1198 = vsel %vm1195, %v1197, %v1193
      %v1199 = vmul.f32 1.0, %v1198
      %v1200 = vrcp.pop %v734
      %v1201 = vmul.f32 %v734, %v1200
      %v1202 = vsub.f32 1.0, %v1201
      %v1203 = vmul.f32 %v1200, %v1202
      %v1204 = vadd.f32 %v1200, %v1203
      %vm1205 = vweird.f32 %v734
      %vm1206 = vweird.f32 %v1200
      %vm1207 = vmor %vm1205, %vm1206
      %v1208 = vsel %vm1207, %v1200, %v1204
      %v1209 = vand.u32 2147483647, %v734
      %vm1210 = vcmp.eq.f32.partialorder %v1209, 8.507059e+37
      %v1211 = vand.u32 %v734, 2147483648
      %v1212 = vor.u32 1.1754944e-38, %v1211
      %v1213 = vsel %vm1210, %v1212, %v1208
      %v1214 = vmul.f32 1.0, %v1213
      %v1215 = vmul.f32 %v512, %v749
      %v1216 = vmul.f32 %v515, %v764
      %v1217 = vmul.f32 %v518, %v779
      %v1218 = vmul.f32 %v521, %v794
      %v1219 = vmul.f32 %v524, %v809
      %v1220 = vmul.f32 %v527, %v824
      %v1221 = vmul.f32 %v530, %v839
      %v1222 = vmul.f32 %v533, %v854
      %v1223 = vmul.f32 %v536, %v869
      %v1224 = vmul.f32 %v539, %v884
      %v1225 = vmul.f32 %v542, %v899
      %v1226 = vmul.f32 %v545, %v914
      %v1227 = vmul.f32 %v548, %v929
      %v1228 = vmul.f32 %v551, %v944
      %v1229 = vmul.f32 %v554, %v959
      %v1230 = vmul.f32 %v557, %v974
      %v1231 = vmul.f32 %v560, %v989
      %v1232 = vmul.f32 %v563, %v1004
      %v1233 = vmul.f32 %v566, %v1019
      %v1234 = vmul.f32 %v569, %v1034
      %v1235 = vmul.f32 %v572, %v1049
      %v1236 = vmul.f32 %v575, %v1064
      %v1237 = vmul.f32 %v578, %v1079
      %v1238 = vmul.f32 %v581, %v1094
      %v1239 = vmul.f32 %v584, %v1109
      %v1240 = vmul.f32 %v587, %v1124
      %v1241 = vmul.f32 %v590, %v1139
      %v1242 = vmul.f32 %v593, %v1154
      %v1243 = vmul.f32 %v596, %v1169
      %v1244 = vmul.f32 %v599, %v1184
      %v1245 = vmul.f32 %v602, %v1199
      %v1246 = vmul.f32 %v605, %v1214
      %1247 = vst [vmem:[#allocation2] sm:$0xff] 0.0
      %1248 = vst [vmem:[#allocation2 + $0x8] sm:$0xff] 0.0
      %1249 = vst [vmem:[#allocation2 + $0x10] sm:$0xff] 0.0
      %1250 = vst [vmem:[#allocation2 + $0x18] sm:$0xff] 0.0
      %1251 = vst [vmem:[#allocation2 + $0x20] sm:$0xff] 0.0
      %1252 = vst [vmem:[#allocation2 + $0x28] sm:$0xff] 0.0
      %s1253 = scalar_lea.vmem [#allocation2], 432
      %1254 = vst [vmem:[%s1253] sm:$0xff] 0.0
      %1255 = vst [vmem:[%s1253 + $0x8] sm:$0xff] 0.0
      %1256 = vst [vmem:[%s1253 + $0x10] sm:$0xff] 0.0
      %1257 = vst [vmem:[%s1253 + $0x18] sm:$0xff] 0.0
      %1258 = vst [vmem:[%s1253 + $0x20] sm:$0xff] 0.0
      %1259 = vst [vmem:[%s1253 + $0x28] sm:$0xff] 0.0
      %1260 = vst [vmem:[#allocation2] sm:$0x3] 0.0
      %1261 = vst [vmem:[#allocation2 + $0x18] sm:$0x3] 0.0
      %1262 = vst [vmem:[#allocation2 + $0x30] sm:$0x3] 0.0
      %1263 = vst [vmem:[#allocation2 + $0x48] sm:$0x3] 0.0
      %1264 = vst [vmem:[#allocation2 + $0x60] sm:$0x3] 0.0
      %1265 = vst [vmem:[#allocation2 + $0x78] sm:$0x3] 0.0
      %1266 = vst [vmem:[#allocation2 + $0x90] sm:$0x3] 0.0
      %1267 = vst [vmem:[#allocation2 + $0xa8] sm:$0x3] 0.0
      %1268 = vst [vmem:[#allocation2 + $0xc0] sm:$0x3] 0.0
      %1269 = vst [vmem:[#allocation2 + $0xd8] sm:$0x3] 0.0
      %1270 = vst [vmem:[#allocation2 + $0xf0] sm:$0x3] 0.0
      %1271 = vst [vmem:[#allocation2 + $0x108] sm:$0x3] 0.0
      %1272 = vst [vmem:[#allocation2 + $0x120] sm:$0x3] 0.0
      %1273 = vst [vmem:[#allocation2 + $0x138] sm:$0x3] 0.0
      %1274 = vst [vmem:[#allocation2 + $0x150] sm:$0x3] 0.0
      %1275 = vst [vmem:[#allocation2 + $0x168] sm:$0x3] 0.0
      %1276 = vst [vmem:[#allocation2 + $0x180] sm:$0x3] 0.0
      %1277 = vst [vmem:[#allocation2 + $0x198] sm:$0x3] 0.0
      %1278 = vst [vmem:[#allocation2 + $0x1b0] sm:$0x3] 0.0
      %1279 = vst [vmem:[#allocation2 + $0x1c8] sm:$0x3] 0.0
      %1280 = vst [vmem:[#allocation2 + $0x12] sm:$0x3f] 0.0
      %1281 = vst [vmem:[#allocation2 + $0x2a] sm:$0x3f] 0.0
      %1282 = vst [vmem:[#allocation2 + $0x42] sm:$0x3f] 0.0
      %1283 = vst [vmem:[#allocation2 + $0x5a] sm:$0x3f] 0.0
      %1284 = vst [vmem:[#allocation2 + $0x72] sm:$0x3f] 0.0
      %1285 = vst [vmem:[#allocation2 + $0x8a] sm:$0x3f] 0.0
      %1286 = vst [vmem:[#allocation2 + $0xa2] sm:$0x3f] 0.0
      %1287 = vst [vmem:[#allocation2 + $0xba] sm:$0x3f] 0.0
      %1288 = vst [vmem:[#allocation2 + $0xd2] sm:$0x3f] 0.0
      %1289 = vst [vmem:[#allocation2 + $0xea] sm:$0x3f] 0.0
      %1290 = vst [vmem:[#allocation2 + $0x102] sm:$0x3f] 0.0
      %1291 = vst [vmem:[#allocation2 + $0x11a] sm:$0x3f] 0.0
      %1292 = vst [vmem:[#allocation2 + $0x132] sm:$0x3f] 0.0
      %1293 = vst [vmem:[#allocation2 + $0x14a] sm:$0x3f] 0.0
      %1294 = vst [vmem:[#allocation2 + $0x162] sm:$0x3f] 0.0
      %1295 = vst [vmem:[#allocation2 + $0x17a] sm:$0x3f] 0.0
      %1296 = vst [vmem:[#allocation2 + $0x192] sm:$0x3f] 0.0
      %1297 = vst [vmem:[#allocation2 + $0x1aa] sm:$0x3f] 0.0
      %1298 = vst [vmem:[#allocation2 + $0x1c2] sm:$0x3f] 0.0
      %1299 = vst [vmem:[#allocation2 + $0x1da] sm:$0x3f] 0.0
      %s1300 = scalar_lea.vmem [#allocation2], 48
      %1301 = vst [vmem:[%s1300 + $0x2] sm:$0xff] %v1215
      %1302 = vst [vmem:[%s1300 + $0xa] sm:$0xff] %v1216
      %1303 = vst [vmem:[%s1300 + $0x1a] sm:$0xff] %v1217
      %1304 = vst [vmem:[%s1300 + $0x22] sm:$0xff] %v1218
      %1305 = vst [vmem:[%s1300 + $0x32] sm:$0xff] %v1219
      %1306 = vst [vmem:[%s1300 + $0x3a] sm:$0xff] %v1220
      %1307 = vst [vmem:[%s1300 + $0x4a] sm:$0xff] %v1221
      %1308 = vst [vmem:[%s1300 + $0x52] sm:$0xff] %v1222
      %1309 = vst [vmem:[%s1300 + $0x62] sm:$0xff] %v1223
      %1310 = vst [vmem:[%s1300 + $0x6a] sm:$0xff] %v1224
      %1311 = vst [vmem:[%s1300 + $0x7a] sm:$0xff] %v1225
      %1312 = vst [vmem:[%s1300 + $0x82] sm:$0xff] %v1226
      %1313 = vst [vmem:[%s1300 + $0x92] sm:$0xff] %v1227
      %1314 = vst [vmem:[%s1300 + $0x9a] sm:$0xff] %v1228
      %1315 = vst [vmem:[%s1300 + $0xaa] sm:$0xff] %v1229
      %1316 = vst [vmem:[%s1300 + $0xb2] sm:$0xff] %v1230
      %1317 = vst [vmem:[%s1300 + $0xc2] sm:$0xff] %v1231
      %1318 = vst [vmem:[%s1300 + $0xca] sm:$0xff] %v1232
      %1319 = vst [vmem:[%s1300 + $0xda] sm:$0xff] %v1233
      %1320 = vst [vmem:[%s1300 + $0xe2] sm:$0xff] %v1234
      %1321 = vst [vmem:[%s1300 + $0xf2] sm:$0xff] %v1235
      %1322 = vst [vmem:[%s1300 + $0xfa] sm:$0xff] %v1236
      %1323 = vst [vmem:[%s1300 + $0x10a] sm:$0xff] %v1237
      %1324 = vst [vmem:[%s1300 + $0x112] sm:$0xff] %v1238
      %1325 = vst [vmem:[%s1300 + $0x122] sm:$0xff] %v1239
      %1326 = vst [vmem:[%s1300 + $0x12a] sm:$0xff] %v1240
      %1327 = vst [vmem:[%s1300 + $0x13a] sm:$0xff] %v1241
      %1328 = vst [vmem:[%s1300 + $0x142] sm:$0xff] %v1242
      %1329 = vst [vmem:[%s1300 + $0x152] sm:$0xff] %v1243
      %1330 = vst [vmem:[%s1300 + $0x15a] sm:$0xff] %v1244
      %1331 = vst [vmem:[%s1300 + $0x16a] sm:$0xff] %v1245
      %1332 = vst [vmem:[%s1300 + $0x172] sm:$0xff] %v1246
      %v1333 = vld [vmem:[#allocation2] sm:$0xff]
      %v1334 = vld [vmem:[#allocation2 + $0x8] sm:$0xff]
      %v1335 = vld [vmem:[#allocation2 + $0x18] sm:$0xff]
      %v1336 = vld [vmem:[#allocation2 + $0x20] sm:$0xff]
      %v1337 = vld [vmem:[#allocation2 + $0x30] sm:$0xff]
      %v1338 = vld [vmem:[#allocation2 + $0x38] sm:$0xff]
      %v1339 = vld [vmem:[#allocation2 + $0x48] sm:$0xff]
      %v1340 = vld [vmem:[#allocation2 + $0x50] sm:$0xff]
      %v1341 = vld [vmem:[#allocation2 + $0x60] sm:$0xff]
      %v1342 = vld [vmem:[#allocation2 + $0x68] sm:$0xff]
      %v1343 = vld [vmem:[#allocation2 + $0x78] sm:$0xff]
      %v1344 = vld [vmem:[#allocation2 + $0x80] sm:$0xff]
      %v1345 = vld [vmem:[#allocation2 + $0x90] sm:$0xff]
      %v1346 = vld [vmem:[#allocation2 + $0x98] sm:$0xff]
      %v1347 = vld [vmem:[#allocation2 + $0xa8] sm:$0xff]
      %v1348 = vld [vmem:[#allocation2 + $0xb0] sm:$0xff]
      %v1349 = vld [vmem:[#allocation2 + $0xc0] sm:$0xff]
      %v1350 = vld [vmem:[#allocation2 + $0xc8] sm:$0xff]
      %v1351 = vld [vmem:[#allocation2 + $0xd8] sm:$0xff]
      %v1352 = vld [vmem:[#allocation2 + $0xe0] sm:$0xff]
      %v1353 = vld [vmem:[#allocation2 + $0xf0] sm:$0xff]
      %v1354 = vld [vmem:[#allocation2 + $0xf8] sm:$0xff]
      %v1355 = vld [vmem:[#allocation2 + $0x108] sm:$0xff]
      %v1356 = vld [vmem:[#allocation2 + $0x110] sm:$0xff]
      %v1357 = vld [vmem:[#allocation2 + $0x120] sm:$0xff]
      %v1358 = vld [vmem:[#allocation2 + $0x128] sm:$0xff]
      %v1359 = vld [vmem:[#allocation2 + $0x138] sm:$0xff]
      %v1360 = vld [vmem:[#allocation2 + $0x140] sm:$0xff]
      %v1361 = vld [vmem:[#allocation2 + $0x150] sm:$0xff]
      %v1362 = vld [vmem:[#allocation2 + $0x158] sm:$0xff]
      %v1363 = vld [vmem:[#allocation2 + $0x168] sm:$0xff]
      %v1364 = vld [vmem:[#allocation2 + $0x170] sm:$0xff]
      %v1365 = vld [vmem:[#allocation2 + $0x180] sm:$0xff]
      %v1366 = vld [vmem:[#allocation2 + $0x188] sm:$0xff]
      %v1367 = vld [vmem:[#allocation2 + $0x198] sm:$0xff]
      %v1368 = vld [vmem:[#allocation2 + $0x1a0] sm:$0xff]
      %v1369 = vld [vmem:[#allocation2 + $0x1b0] sm:$0xff]
      %v1370 = vld [vmem:[#allocation2 + $0x1b8] sm:$0xff]
      %v1371 = vld [vmem:[#allocation2 + $0x1c8] sm:$0xff]
      %v1372 = vld [vmem:[#allocation2 + $0x1d0] sm:$0xff]
      %v1373 = vld [vmem:[%s3] sm:$0x1]
      %v1374 = vperm.slane %v1373, 0
      %v1375 = vmul.f32 %v1374, %v1333
      %v1376 = vmul.f32 %v1374, %v1334
      %v1377 = vmul.f32 %v1374, %v1335
      %v1378 = vmul.f32 %v1374, %v1336
      %v1379 = vmul.f32 %v1374, %v1337
      %v1380 = vmul.f32 %v1374, %v1338
      %v1381 = vmul.f32 %v1374, %v1339
      %v1382 = vmul.f32 %v1374, %v1340
      %v1383 = vmul.f32 %v1374, %v1341
      %v1384 = vmul.f32 %v1374, %v1342
      %v1385 = vmul.f32 %v1374, %v1343
      %v1386 = vmul.f32 %v1374, %v1344
      %v1387 = vmul.f32 %v1374, %v1345
      %v1388 = vmul.f32 %v1374, %v1346
      %v1389 = vmul.f32 %v1374, %v1347
      %v1390 = vmul.f32 %v1374, %v1348
      %v1391 = vmul.f32 %v1374, %v1349
      %v1392 = vmul.f32 %v1374, %v1350
      %v1393 = vmul.f32 %v1374, %v1351
      %v1394 = vmul.f32 %v1374, %v1352
      %v1395 = vmul.f32 %v1374, %v1353
      %v1396 = vmul.f32 %v1374, %v1354
      %v1397 = vmul.f32 %v1374, %v1355
      %v1398 = vmul.f32 %v1374, %v1356
      %v1399 = vmul.f32 %v1374, %v1357
      %v1400 = vmul.f32 %v1374, %v1358
      %v1401 = vmul.f32 %v1374, %v1359
      %v1402 = vmul.f32 %v1374, %v1360
      %v1403 = vmul.f32 %v1374, %v1361
      %v1404 = vmul.f32 %v1374, %v1362
      %v1405 = vmul.f32 %v1374, %v1363
      %v1406 = vmul.f32 %v1374, %v1364
      %v1407 = vld [vmem:[%s3 + $0x5] sm:$0x1]
      %v1408 = vperm.slane %v1407, 0
      %v1409 = vmul.f32 %v1408, %v1335
      %v1410 = vmul.f32 %v1408, %v1336
      %v1411 = vmul.f32 %v1408, %v1337
      %v1412 = vmul.f32 %v1408, %v1338
      %v1413 = vmul.f32 %v1408, %v1339
      %v1414 = vmul.f32 %v1408, %v1340
      %v1415 = vmul.f32 %v1408, %v1341
      %v1416 = vmul.f32 %v1408, %v1342
      %v1417 = vmul.f32 %v1408, %v1343
      %v1418 = vmul.f32 %v1408, %v1344
      %v1419 = vmul.f32 %v1408, %v1345
      %v1420 = vmul.f32 %v1408, %v1346
      %v1421 = vmul.f32 %v1408, %v1347
      %v1422 = vmul.f32 %v1408, %v1348
      %v1423 = vmul.f32 %v1408, %v1349
      %v1424 = vmul.f32 %v1408, %v1350
      %v1425 = vmul.f32 %v1408, %v1351
      %v1426 = vmul.f32 %v1408, %v1352
      %v1427 = vmul.f32 %v1408, %v1353
      %v1428 = vmul.f32 %v1408, %v1354
      %v1429 = vmul.f32 %v1408, %v1355
      %v1430 = vmul.f32 %v1408, %v1356
      %v1431 = vmul.f32 %v1408, %v1357
      %v1432 = vmul.f32 %v1408, %v1358
      %v1433 = vmul.f32 %v1408, %v1359
      %v1434 = vmul.f32 %v1408, %v1360
      %v1435 = vmul.f32 %v1408, %v1361
      %v1436 = vmul.f32 %v1408, %v1362
      %v1437 = vmul.f32 %v1408, %v1363
      %v1438 = vmul.f32 %v1408, %v1364
      %v1439 = vmul.f32 %v1408, %v1365
      %v1440 = vmul.f32 %v1408, %v1366
      %v1441 = vadd.f32 %v1375, %v1409
      %v1442 = vadd.f32 %v1376, %v1410
      %v1443 = vadd.f32 %v1377, %v1411
      %v1444 = vadd.f32 %v1378, %v1412
      %v1445 = vadd.f32 %v1379, %v1413
      %v1446 = vadd.f32 %v1380, %v1414
      %v1447 = vadd.f32 %v1381, %v1415
      %v1448 = vadd.f32 %v1382, %v1416
      %v1449 = vadd.f32 %v1383, %v1417
      %v1450 = vadd.f32 %v1384, %v1418
      %v1451 = vadd.f32 %v1385, %v1419
      %v1452 = vadd.f32 %v1386, %v1420
      %v1453 = vadd.f32 %v1387, %v1421
      %v1454 = vadd.f32 %v1388, %v1422
      %v1455 = vadd.f32 %v1389, %v1423
      %v1456 = vadd.f32 %v1390, %v1424
      %v1457 = vadd.f32 %v1391, %v1425
      %v1458 = vadd.f32 %v1392, %v1426
      %v1459 = vadd.f32 %v1393, %v1427
      %v1460 = vadd.f32 %v1394, %v1428
      %v1461 = vadd.f32 %v1395, %v1429
      %v1462 = vadd.f32 %v1396, %v1430
      %v1463 = vadd.f32 %v1397, %v1431
      %v1464 = vadd.f32 %v1398, %v1432
      %v1465 = vadd.f32 %v1399, %v1433
      %v1466 = vadd.f32 %v1400, %v1434
      %v1467 = vadd.f32 %v1401, %v1435
      %v1468 = vadd.f32 %v1402, %v1436
      %v1469 = vadd.f32 %v1403, %v1437
      %v1470 = vadd.f32 %v1404, %v1438
      %v1471 = vadd.f32 %v1405, %v1439
      %v1472 = vadd.f32 %v1406, %v1440
      %v1473 = vld [vmem:[%s3 + $0xa] sm:$0x1]
      %v1474 = vperm.slane %v1473, 0
      %v1475 = vmul.f32 %v1474, %v1337
      %v1476 = vmul.f32 %v1474, %v1338
      %v1477 = vmul.f32 %v1474, %v1339
      %v1478 = vmul.f32 %v1474, %v1340
      %v1479 = vmul.f32 %v1474, %v1341
      %v1480 = vmul.f32 %v1474, %v1342
      %v1481 = vmul.f32 %v1474, %v1343
      %v1482 = vmul.f32 %v1474, %v1344
      %v1483 = vmul.f32 %v1474, %v1345
      %v1484 = vmul.f32 %v1474, %v1346
      %v1485 = vmul.f32 %v1474, %v1347
      %v1486 = vmul.f32 %v1474, %v1348
      %v1487 = vmul.f32 %v1474, %v1349
      %v1488 = vmul.f32 %v1474, %v1350
      %v1489 = vmul.f32 %v1474, %v1351
      %v1490 = vmul.f32 %v1474, %v1352
      %v1491 = vmul.f32 %v1474, %v1353
      %v1492 = vmul.f32 %v1474, %v1354
      %v1493 = vmul.f32 %v1474, %v1355
      %v1494 = vmul.f32 %v1474, %v1356
      %v1495 = vmul.f32 %v1474, %v1357
      %v1496 = vmul.f32 %v1474, %v1358
      %v1497 = vmul.f32 %v1474, %v1359
      %v1498 = vmul.f32 %v1474, %v1360
      %v1499 = vmul.f32 %v1474, %v1361
      %v1500 = vmul.f32 %v1474, %v1362
      %v1501 = vmul.f32 %v1474, %v1363
      %v1502 = vmul.f32 %v1474, %v1364
      %v1503 = vmul.f32 %v1474, %v1365
      %v1504 = vmul.f32 %v1474, %v1366
      %v1505 = vmul.f32 %v1474, %v1367
      %v1506 = vmul.f32 %v1474, %v1368
      %v1507 = vadd.f32 %v1441, %v1475
      %v1508 = vadd.f32 %v1442, %v1476
      %v1509 = vadd.f32 %v1443, %v1477
      %v1510 = vadd.f32 %v1444, %v1478
      %v1511 = vadd.f32 %v1445, %v1479
      %v1512 = vadd.f32 %v1446, %v1480
      %v1513 = vadd.f32 %v1447, %v1481
      %v1514 = vadd.f32 %v1448, %v1482
      %v1515 = vadd.f32 %v1449, %v1483
      %v1516 = vadd.f32 %v1450, %v1484
      %v1517 = vadd.f32 %v1451, %v1485
      %v1518 = vadd.f32 %v1452, %v1486
      %v1519 = vadd.f32 %v1453, %v1487
      %v1520 = vadd.f32 %v1454, %v1488
      %v1521 = vadd.f32 %v1455, %v1489
      %v1522 = vadd.f32 %v1456, %v1490
      %v1523 = vadd.f32 %v1457, %v1491
      %v1524 = vadd.f32 %v1458, %v1492
      %v1525 = vadd.f32 %v1459, %v1493
      %v1526 = vadd.f32 %v1460, %v1494
      %v1527 = vadd.f32 %v1461, %v1495
      %v1528 = vadd.f32 %v1462, %v1496
      %v1529 = vadd.f32 %v1463, %v1497
      %v1530 = vadd.f32 %v1464, %v1498
      %v1531 = vadd.f32 %v1465, %v1499
      %v1532 = vadd.f32 %v1466, %v1500
      %v1533 = vadd.f32 %v1467, %v1501
      %v1534 = vadd.f32 %v1468, %v1502
      %v1535 = vadd.f32 %v1469, %v1503
      %v1536 = vadd.f32 %v1470, %v1504
      %v1537 = vadd.f32 %v1471, %v1505
      %v1538 = vadd.f32 %v1472, %v1506
      %v1539 = vld [vmem:[%s3 + $0xf] sm:$0x1]
      %v1540 = vperm.slane %v1539, 0
      %v1541 = vmul.f32 %v1540, %v1339
      %v1542 = vmul.f32 %v1540, %v1340
      %v1543 = vmul.f32 %v1540, %v1341
      %v1544 = vmul.f32 %v1540, %v1342
      %v1545 = vmul.f32 %v1540, %v1343
      %v1546 = vmul.f32 %v1540, %v1344
      %v1547 = vmul.f32 %v1540, %v1345
      %v1548 = vmul.f32 %v1540, %v1346
      %v1549 = vmul.f32 %v1540, %v1347
      %v1550 = vmul.f32 %v1540, %v1348
      %v1551 = vmul.f32 %v1540, %v1349
      %v1552 = vmul.f32 %v1540, %v1350
      %v1553 = vmul.f32 %v1540, %v1351
      %v1554 = vmul.f32 %v1540, %v1352
      %v1555 = vmul.f32 %v1540, %v1353
      %v1556 = vmul.f32 %v1540, %v1354
      %v1557 = vmul.f32 %v1540, %v1355
      %v1558 = vmul.f32 %v1540, %v1356
      %v1559 = vmul.f32 %v1540, %v1357
      %v1560 = vmul.f32 %v1540, %v1358
      %v1561 = vmul.f32 %v1540, %v1359
      %v1562 = vmul.f32 %v1540, %v1360
      %v1563 = vmul.f32 %v1540, %v1361
      %v1564 = vmul.f32 %v1540, %v1362
      %v1565 = vmul.f32 %v1540, %v1363
      %v1566 = vmul.f32 %v1540, %v1364
      %v1567 = vmul.f32 %v1540, %v1365
      %v1568 = vmul.f32 %v1540, %v1366
      %v1569 = vmul.f32 %v1540, %v1367
      %v1570 = vmul.f32 %v1540, %v1368
      %v1571 = vmul.f32 %v1540, %v1369
      %v1572 = vmul.f32 %v1540, %v1370
      %v1573 = vadd.f32 %v1507, %v1541
      %v1574 = vadd.f32 %v1508, %v1542
      %v1575 = vadd.f32 %v1509, %v1543
      %v1576 = vadd.f32 %v1510, %v1544
      %v1577 = vadd.f32 %v1511, %v1545
      %v1578 = vadd.f32 %v1512, %v1546
      %v1579 = vadd.f32 %v1513, %v1547
      %v1580 = vadd.f32 %v1514, %v1548
      %v1581 = vadd.f32 %v1515, %v1549
      %v1582 = vadd.f32 %v1516, %v1550
      %v1583 = vadd.f32 %v1517, %v1551
      %v1584 = vadd.f32 %v1518, %v1552
      %v1585 = vadd.f32 %v1519, %v1553
      %v1586 = vadd.f32 %v1520, %v1554
      %v1587 = vadd.f32 %v1521, %v1555
      %v1588 = vadd.f32 %v1522, %v1556
      %v1589 = vadd.f32 %v1523, %v1557
      %v1590 = vadd.f32 %v1524, %v1558
      %v1591 = vadd.f32 %v1525, %v1559
      %v1592 = vadd.f32 %v1526, %v1560
      %v1593 = vadd.f32 %v1527, %v1561
      %v1594 = vadd.f32 %v1528, %v1562
      %v1595 = vadd.f32 %v1529, %v1563
      %v1596 = vadd.f32 %v1530, %v1564
      %v1597 = vadd.f32 %v1531, %v1565
      %v1598 = vadd.f32 %v1532, %v1566
      %v1599 = vadd.f32 %v1533, %v1567
      %v1600 = vadd.f32 %v1534, %v1568
      %v1601 = vadd.f32 %v1535, %v1569
      %v1602 = vadd.f32 %v1536, %v1570
      %v1603 = vadd.f32 %v1537, %v1571
      %v1604 = vadd.f32 %v1538, %v1572
      %v1605 = vld [vmem:[%s3 + $0x14] sm:$0x1]
      %v1606 = vperm.slane %v1605, 0
      %v1607 = vmul.f32 %v1606, %v1341
      %v1608 = vmul.f32 %v1606, %v1342
      %v1609 = vmul.f32 %v1606, %v1343
      %v1610 = vmul.f32 %v1606, %v1344
      %v1611 = vmul.f32 %v1606, %v1345
      %v1612 = vmul.f32 %v1606, %v1346
      %v1613 = vmul.f32 %v1606, %v1347
      %v1614 = vmul.f32 %v1606, %v1348
      %v1615 = vmul.f32 %v1606, %v1349
      %v1616 = vmul.f32 %v1606, %v1350
      %v1617 = vmul.f32 %v1606, %v1351
      %v1618 = vmul.f32 %v1606, %v1352
      %v1619 = vmul.f32 %v1606, %v1353
      %v1620 = vmul.f32 %v1606, %v1354
      %v1621 = vmul.f32 %v1606, %v1355
      %v1622 = vmul.f32 %v1606, %v1356
      %v1623 = vmul.f32 %v1606, %v1357
      %v1624 = vmul.f32 %v1606, %v1358
      %v1625 = vmul.f32 %v1606, %v1359
      %v1626 = vmul.f32 %v1606, %v1360
      %v1627 = vmul.f32 %v1606, %v1361
      %v1628 = vmul.f32 %v1606, %v1362
      %v1629 = vmul.f32 %v1606, %v1363
      %v1630 = vmul.f32 %v1606, %v1364
      %v1631 = vmul.f32 %v1606, %v1365
      %v1632 = vmul.f32 %v1606, %v1366
      %v1633 = vmul.f32 %v1606, %v1367
      %v1634 = vmul.f32 %v1606, %v1368
      %v1635 = vmul.f32 %v1606, %v1369
      %v1636 = vmul.f32 %v1606, %v1370
      %v1637 = vmul.f32 %v1606, %v1371
      %v1638 = vmul.f32 %v1606, %v1372
      %v1639 = vadd.f32 %v1573, %v1607
      %v1640 = vadd.f32 %v1574, %v1608
      %v1641 = vadd.f32 %v1575, %v1609
      %v1642 = vadd.f32 %v1576, %v1610
      %v1643 = vadd.f32 %v1577, %v1611
      %v1644 = vadd.f32 %v1578, %v1612
      %v1645 = vadd.f32 %v1579, %v1613
      %v1646 = vadd.f32 %v1580, %v1614
      %v1647 = vadd.f32 %v1581, %v1615
      %v1648 = vadd.f32 %v1582, %v1616
      %v1649 = vadd.f32 %v1583, %v1617
      %v1650 = vadd.f32 %v1584, %v1618
      %v1651 = vadd.f32 %v1585, %v1619
      %v1652 = vadd.f32 %v1586, %v1620
      %v1653 = vadd.f32 %v1587, %v1621
      %v1654 = vadd.f32 %v1588, %v1622
      %v1655 = vadd.f32 %v1589, %v1623
      %v1656 = vadd.f32 %v1590, %v1624
      %v1657 = vadd.f32 %v1591, %v1625
      %v1658 = vadd.f32 %v1592, %v1626
      %v1659 = vadd.f32 %v1593, %v1627
      %v1660 = vadd.f32 %v1594, %v1628
      %v1661 = vadd.f32 %v1595, %v1629
      %v1662 = vadd.f32 %v1596, %v1630
      %v1663 = vadd.f32 %v1597, %v1631
      %v1664 = vadd.f32 %v1598, %v1632
      %v1665 = vadd.f32 %v1599, %v1633
      %v1666 = vadd.f32 %v1600, %v1634
      %v1667 = vadd.f32 %v1601, %v1635
      %v1668 = vadd.f32 %v1602, %v1636
      %v1669 = vadd.f32 %v1603, %v1637
      %v1670 = vadd.f32 %v1604, %v1638
      %v1671 = vld [vmem:[#allocation2 + $0x1] sm:$0xff]
      %v1672 = vld [vmem:[#allocation2 + $0x9] sm:$0xff]
      %v1673 = vld [vmem:[#allocation2 + $0x19] sm:$0xff]
      %v1674 = vld [vmem:[#allocation2 + $0x21] sm:$0xff]
      %v1675 = vld [vmem:[#allocation2 + $0x31] sm:$0xff]
      %v1676 = vld [vmem:[#allocation2 + $0x39] sm:$0xff]
      %v1677 = vld [vmem:[#allocation2 + $0x49] sm:$0xff]
      %v1678 = vld [vmem:[#allocation2 + $0x51] sm:$0xff]
      %v1679 = vld [vmem:[#allocation2 + $0x61] sm:$0xff]
      %v1680 = vld [vmem:[#allocation2 + $0x69] sm:$0xff]
      %v1681 = vld [vmem:[#allocation2 + $0x79] sm:$0xff]
      %v1682 = vld [vmem:[#allocation2 + $0x81] sm:$0xff]
      %v1683 = vld [vmem:[#allocation2 + $0x91] sm:$0xff]
      %v1684 = vld [vmem:[#allocation2 + $0x99] sm:$0xff]
      %v1685 = vld [vmem:[#allocation2 + $0xa9] sm:$0xff]
      %v1686 = vld [vmem:[#allocation2 + $0xb1] sm:$0xff]
      %v1687 = vld [vmem:[#allocation2 + $0xc1] sm:$0xff]
      %v1688 = vld [vmem:[#allocation2 + $0xc9] sm:$0xff]
      %v1689 = vld [vmem:[#allocation2 + $0xd9] sm:$0xff]
      %v1690 = vld [vmem:[#allocation2 + $0xe1] sm:$0xff]
      %v1691 = vld [vmem:[#allocation2 + $0xf1] sm:$0xff]
      %v1692 = vld [vmem:[#allocation2 + $0xf9] sm:$0xff]
      %v1693 = vld [vmem:[#allocation2 + $0x109] sm:$0xff]
      %v1694 = vld [vmem:[#allocation2 + $0x111] sm:$0xff]
      %v1695 = vld [vmem:[#allocation2 + $0x121] sm:$0xff]
      %v1696 = vld [vmem:[#allocation2 + $0x129] sm:$0xff]
      %v1697 = vld [vmem:[#allocation2 + $0x139] sm:$0xff]
      %v1698 = vld [vmem:[#allocation2 + $0x141] sm:$0xff]
      %v1699 = vld [vmem:[#allocation2 + $0x151] sm:$0xff]
      %v1700 = vld [vmem:[#allocation2 + $0x159] sm:$0xff]
      %v1701 = vld [vmem:[#allocation2 + $0x169] sm:$0xff]
      %v1702 = vld [vmem:[#allocation2 + $0x171] sm:$0xff]
      %v1703 = vld [vmem:[#allocation2 + $0x181] sm:$0xff]
      %v1704 = vld [vmem:[#allocation2 + $0x189] sm:$0xff]
      %v1705 = vld [vmem:[#allocation2 + $0x199] sm:$0xff]
      %v1706 = vld [vmem:[#allocation2 + $0x1a1] sm:$0xff]
      %v1707 = vld [vmem:[#allocation2 + $0x1b1] sm:$0xff]
      %v1708 = vld [vmem:[#allocation2 + $0x1b9] sm:$0xff]
      %v1709 = vld [vmem:[#allocation2 + $0x1c9] sm:$0xff]
      %v1710 = vld [vmem:[#allocation2 + $0x1d1] sm:$0xff]
      %v1711 = vld [vmem:[%s3 + $0x1] sm:$0x1]
      %v1712 = vperm.slane %v1711, 0
      %v1713 = vmul.f32 %v1712, %v1671
      %v1714 = vmul.f32 %v1712, %v1672
      %v1715 = vmul.f32 %v1712, %v1673
      %v1716 = vmul.f32 %v1712, %v1674
      %v1717 = vmul.f32 %v1712, %v1675
      %v1718 = vmul.f32 %v1712, %v1676
      %v1719 = vmul.f32 %v1712, %v1677
      %v1720 = vmul.f32 %v1712, %v1678
      %v1721 = vmul.f32 %v1712, %v1679
      %v1722 = vmul.f32 %v1712, %v1680
      %v1723 = vmul.f32 %v1712, %v1681
      %v1724 = vmul.f32 %v1712, %v1682
      %v1725 = vmul.f32 %v1712, %v1683
      %v1726 = vmul.f32 %v1712, %v1684
      %v1727 = vmul.f32 %v1712, %v1685
      %v1728 = vmul.f32 %v1712, %v1686
      %v1729 = vmul.f32 %v1712, %v1687
      %v1730 = vmul.f32 %v1712, %v1688
      %v1731 = vmul.f32 %v1712, %v1689
      %v1732 = vmul.f32 %v1712, %v1690
      %v1733 = vmul.f32 %v1712, %v1691
      %v1734 = vmul.f32 %v1712, %v1692
      %v1735 = vmul.f32 %v1712, %v1693
      %v1736 = vmul.f32 %v1712, %v1694
      %v1737 = vmul.f32 %v1712, %v1695
      %v1738 = vmul.f32 %v1712, %v1696
      %v1739 = vmul.f32 %v1712, %v1697
      %v1740 = vmul.f32 %v1712, %v1698
      %v1741 = vmul.f32 %v1712, %v1699
      %v1742 = vmul.f32 %v1712, %v1700
      %v1743 = vmul.f32 %v1712, %v1701
      %v1744 = vmul.f32 %v1712, %v1702
      %v1745 = vld [vmem:[%s3 + $0x6] sm:$0x1]
      %v1746 = vperm.slane %v1745, 0
      %v1747 = vmul.f32 %v1746, %v1673
      %v1748 = vmul.f32 %v1746, %v1674
      %v1749 = vmul.f32 %v1746, %v1675
      %v1750 = vmul.f32 %v1746, %v1676
      %v1751 = vmul.f32 %v1746, %v1677
      %v1752 = vmul.f32 %v1746, %v1678
      %v1753 = vmul.f32 %v1746, %v1679
      %v1754 = vmul.f32 %v1746, %v1680
      %v1755 = vmul.f32 %v1746, %v1681
      %v1756 = vmul.f32 %v1746, %v1682
      %v1757 = vmul.f32 %v1746, %v1683
      %v1758 = vmul.f32 %v1746, %v1684
      %v1759 = vmul.f32 %v1746, %v1685
      %v1760 = vmul.f32 %v1746, %v1686
      %v1761 = vmul.f32 %v1746, %v1687
      %v1762 = vmul.f32 %v1746, %v1688
      %v1763 = vmul.f32 %v1746, %v1689
      %v1764 = vmul.f32 %v1746, %v1690
      %v1765 = vmul.f32 %v1746, %v1691
      %v1766 = vmul.f32 %v1746, %v1692
      %v1767 = vmul.f32 %v1746, %v1693
      %v1768 = vmul.f32 %v1746, %v1694
      %v1769 = vmul.f32 %v1746, %v1695
      %v1770 = vmul.f32 %v1746, %v1696
      %v1771 = vmul.f32 %v1746, %v1697
      %v1772 = vmul.f32 %v1746, %v1698
      %v1773 = vmul.f32 %v1746, %v1699
      %v1774 = vmul.f32 %v1746, %v1700
      %v1775 = vmul.f32 %v1746, %v1701
      %v1776 = vmul.f32 %v1746, %v1702
      %v1777 = vmul.f32 %v1746, %v1703
      %v1778 = vmul.f32 %v1746, %v1704
      %v1779 = vadd.f32 %v1713, %v1747
      %v1780 = vadd.f32 %v1714, %v1748
      %v1781 = vadd.f32 %v1715, %v1749
      %v1782 = vadd.f32 %v1716, %v1750
      %v1783 = vadd.f32 %v1717, %v1751
      %v1784 = vadd.f32 %v1718, %v1752
      %v1785 = vadd.f32 %v1719, %v1753
      %v1786 = vadd.f32 %v1720, %v1754
      %v1787 = vadd.f32 %v1721, %v1755
      %v1788 = vadd.f32 %v1722, %v1756
      %v1789 = vadd.f32 %v1723, %v1757
      %v1790 = vadd.f32 %v1724, %v1758
      %v1791 = vadd.f32 %v1725, %v1759
      %v1792 = vadd.f32 %v1726, %v1760
      %v1793 = vadd.f32 %v1727, %v1761
      %v1794 = vadd.f32 %v1728, %v1762
      %v1795 = vadd.f32 %v1729, %v1763
      %v1796 = vadd.f32 %v1730, %v1764
      %v1797 = vadd.f32 %v1731, %v1765
      %v1798 = vadd.f32 %v1732, %v1766
      %v1799 = vadd.f32 %v1733, %v1767
      %v1800 = vadd.f32 %v1734, %v1768
      %v1801 = vadd.f32 %v1735, %v1769
      %v1802 = vadd.f32 %v1736, %v1770
      %v1803 = vadd.f32 %v1737, %v1771
      %v1804 = vadd.f32 %v1738, %v1772
      %v1805 = vadd.f32 %v1739, %v1773
      %v1806 = vadd.f32 %v1740, %v1774
      %v1807 = vadd.f32 %v1741, %v1775
      %v1808 = vadd.f32 %v1742, %v1776
      %v1809 = vadd.f32 %v1743, %v1777
      %v1810 = vadd.f32 %v1744, %v1778
      %v1811 = vld [vmem:[%s3 + $0xb] sm:$0x1]
      %v1812 = vperm.slane %v1811, 0
      %v1813 = vmul.f32 %v1812, %v1675
      %v1814 = vmul.f32 %v1812, %v1676
      %v1815 = vmul.f32 %v1812, %v1677
      %v1816 = vmul.f32 %v1812, %v1678
      %v1817 = vmul.f32 %v1812, %v1679
      %v1818 = vmul.f32 %v1812, %v1680
      %v1819 = vmul.f32 %v1812, %v1681
      %v1820 = vmul.f32 %v1812, %v1682
      %v1821 = vmul.f32 %v1812, %v1683
      %v1822 = vmul.f32 %v1812, %v1684
      %v1823 = vmul.f32 %v1812, %v1685
      %v1824 = vmul.f32 %v1812, %v1686
      %v1825 = vmul.f32 %v1812, %v1687
      %v1826 = vmul.f32 %v1812, %v1688
      %v1827 = vmul.f32 %v1812, %v1689
      %v1828 = vmul.f32 %v1812, %v1690
      %v1829 = vmul.f32 %v1812, %v1691
      %v1830 = vmul.f32 %v1812, %v1692
      %v1831 = vmul.f32 %v1812, %v1693
      %v1832 = vmul.f32 %v1812, %v1694
      %v1833 = vmul.f32 %v1812, %v1695
      %v1834 = vmul.f32 %v1812, %v1696
      %v1835 = vmul.f32 %v1812, %v1697
      %v1836 = vmul.f32 %v1812, %v1698
      %v1837 = vmul.f32 %v1812, %v1699
      %v1838 = vmul.f32 %v1812, %v1700
      %v1839 = vmul.f32 %v1812, %v1701
      %v1840 = vmul.f32 %v1812, %v1702
      %v1841 = vmul.f32 %v1812, %v1703
      %v1842 = vmul.f32 %v1812, %v1704
      %v1843 = vmul.f32 %v1812, %v1705
      %v1844 = vmul.f32 %v1812, %v1706
      %v1845 = vadd.f32 %v1779, %v1813
      %v1846 = vadd.f32 %v1780, %v1814
      %v1847 = vadd.f32 %v1781, %v1815
      %v1848 = vadd.f32 %v1782, %v1816
      %v1849 = vadd.f32 %v1783, %v1817
      %v1850 = vadd.f32 %v1784, %v1818
      %v1851 = vadd.f32 %v1785, %v1819
      %v1852 = vadd.f32 %v1786, %v1820
      %v1853 = vadd.f32 %v1787, %v1821
      %v1854 = vadd.f32 %v1788, %v1822
      %v1855 = vadd.f32 %v1789, %v1823
      %v1856 = vadd.f32 %v1790, %v1824
      %v1857 = vadd.f32 %v1791, %v1825
      %v1858 = vadd.f32 %v1792, %v1826
      %v1859 = vadd.f32 %v1793, %v1827
      %v1860 = vadd.f32 %v1794, %v1828
      %v1861 = vadd.f32 %v1795, %v1829
      %v1862 = vadd.f32 %v1796, %v1830
      %v1863 = vadd.f32 %v1797, %v1831
      %v1864 = vadd.f32 %v1798, %v1832
      %v1865 = vadd.f32 %v1799, %v1833
      %v1866 = vadd.f32 %v1800, %v1834
      %v1867 = vadd.f32 %v1801, %v1835
      %v1868 = vadd.f32 %v1802, %v1836
      %v1869 = vadd.f32 %v1803, %v1837
      %v1870 = vadd.f32 %v1804, %v1838
      %v1871 = vadd.f32 %v1805, %v1839
      %v1872 = vadd.f32 %v1806, %v1840
      %v1873 = vadd.f32 %v1807, %v1841
      %v1874 = vadd.f32 %v1808, %v1842
      %v1875 = vadd.f32 %v1809, %v1843
      %v1876 = vadd.f32 %v1810, %v1844
      %v1877 = vld [vmem:[%s3 + $0x10] sm:$0x1]
      %v1878 = vperm.slane %v1877, 0
      %v1879 = vmul.f32 %v1878, %v1677
      %v1880 = vmul.f32 %v1878, %v1678
      %v1881 = vmul.f32 %v1878, %v1679
      %v1882 = vmul.f32 %v1878, %v1680
      %v1883 = vmul.f32 %v1878, %v1681
      %v1884 = vmul.f32 %v1878, %v1682
      %v1885 = vmul.f32 %v1878, %v1683
      %v1886 = vmul.f32 %v1878, %v1684
      %v1887 = vmul.f32 %v1878, %v1685
      %v1888 = vmul.f32 %v1878, %v1686
      %v1889 = vmul.f32 %v1878, %v1687
      %v1890 = vmul.f32 %v1878, %v1688
      %v1891 = vmul.f32 %v1878, %v1689
      %v1892 = vmul.f32 %v1878, %v1690
      %v1893 = vmul.f32 %v1878, %v1691
      %v1894 = vmul.f32 %v1878, %v1692
      %v1895 = vmul.f32 %v1878, %v1693
      %v1896 = vmul.f32 %v1878, %v1694
      %v1897 = vmul.f32 %v1878, %v1695
      %v1898 = vmul.f32 %v1878, %v1696
      %v1899 = vmul.f32 %v1878, %v1697
      %v1900 = vmul.f32 %v1878, %v1698
      %v1901 = vmul.f32 %v1878, %v1699
      %v1902 = vmul.f32 %v1878, %v1700
      %v1903 = vmul.f32 %v1878, %v1701
      %v1904 = vmul.f32 %v1878, %v1702
      %v1905 = vmul.f32 %v1878, %v1703
      %v1906 = vmul.f32 %v1878, %v1704
      %v1907 = vmul.f32 %v1878, %v1705
      %v1908 = vmul.f32 %v1878, %v1706
      %v1909 = vmul.f32 %v1878, %v1707
      %v1910 = vmul.f32 %v1878, %v1708
      %v1911 = vadd.f32 %v1845, %v1879
      %v1912 = vadd.f32 %v1846, %v1880
      %v1913 = vadd.f32 %v1847, %v1881
      %v1914 = vadd.f32 %v1848, %v1882
      %v1915 = vadd.f32 %v1849, %v1883
      %v1916 = vadd.f32 %v1850, %v1884
      %v1917 = vadd.f32 %v1851, %v1885
      %v1918 = vadd.f32 %v1852, %v1886
      %v1919 = vadd.f32 %v1853, %v1887
      %v1920 = vadd.f32 %v1854, %v1888
      %v1921 = vadd.f32 %v1855, %v1889
      %v1922 = vadd.f32 %v1856, %v1890
      %v1923 = vadd.f32 %v1857, %v1891
      %v1924 = vadd.f32 %v1858, %v1892
      %v1925 = vadd.f32 %v1859, %v1893
      %v1926 = vadd.f32 %v1860, %v1894
      %v1927 = vadd.f32 %v1861, %v1895
      %v1928 = vadd.f32 %v1862, %v1896
      %v1929 = vadd.f32 %v1863, %v1897
      %v1930 = vadd.f32 %v1864, %v1898
      %v1931 = vadd.f32 %v1865, %v1899
      %v1932 = vadd.f32 %v1866, %v1900
      %v1933 = vadd.f32 %v1867, %v1901
      %v1934 = vadd.f32 %v1868, %v1902
      %v1935 = vadd.f32 %v1869, %v1903
      %v1936 = vadd.f32 %v1870, %v1904
      %v1937 = vadd.f32 %v1871, %v1905
      %v1938 = vadd.f32 %v1872, %v1906
      %v1939 = vadd.f32 %v1873, %v1907
      %v1940 = vadd.f32 %v1874, %v1908
      %v1941 = vadd.f32 %v1875, %v1909
      %v1942 = vadd.f32 %v1876, %v1910
      %v1943 = vld [vmem:[%s3 + $0x15] sm:$0x1]
      %v1944 = vperm.slane %v1943, 0
      %v1945 = vmul.f32 %v1944, %v1679
      %v1946 = vmul.f32 %v1944, %v1680
      %v1947 = vmul.f32 %v1944, %v1681
      %v1948 = vmul.f32 %v1944, %v1682
      %v1949 = vmul.f32 %v1944, %v1683
      %v1950 = vmul.f32 %v1944, %v1684
      %v1951 = vmul.f32 %v1944, %v1685
      %v1952 = vmul.f32 %v1944, %v1686
      %v1953 = vmul.f32 %v1944, %v1687
      %v1954 = vmul.f32 %v1944, %v1688
      %v1955 = vmul.f32 %v1944, %v1689
      %v1956 = vmul.f32 %v1944, %v1690
      %v1957 = vmul.f32 %v1944, %v1691
      %v1958 = vmul.f32 %v1944, %v1692
      %v1959 = vmul.f32 %v1944, %v1693
      %v1960 = vmul.f32 %v1944, %v1694
      %v1961 = vmul.f32 %v1944, %v1695
      %v1962 = vmul.f32 %v1944, %v1696
      %v1963 = vmul.f32 %v1944, %v1697
      %v1964 = vmul.f32 %v1944, %v1698
      %v1965 = vmul.f32 %v1944, %v1699
      %v1966 = vmul.f32 %v1944, %v1700
      %v1967 = vmul.f32 %v1944, %v1701
      %v1968 = vmul.f32 %v1944, %v1702
      %v1969 = vmul.f32 %v1944, %v1703
      %v1970 = vmul.f32 %v1944, %v1704
      %v1971 = vmul.f32 %v1944, %v1705
      %v1972 = vmul.f32 %v1944, %v1706
      %v1973 = vmul.f32 %v1944, %v1707
      %v1974 = vmul.f32 %v1944, %v1708
      %v1975 = vmul.f32 %v1944, %v1709
      %v1976 = vmul.f32 %v1944, %v1710
      %v1977 = vadd.f32 %v1911, %v1945
      %v1978 = vadd.f32 %v1912, %v1946
      %v1979 = vadd.f32 %v1913, %v1947
      %v1980 = vadd.f32 %v1914, %v1948
      %v1981 = vadd.f32 %v1915, %v1949
      %v1982 = vadd.f32 %v1916, %v1950
      %v1983 = vadd.f32 %v1917, %v1951
      %v1984 = vadd.f32 %v1918, %v1952
      %v1985 = vadd.f32 %v1919, %v1953
      %v1986 = vadd.f32 %v1920, %v1954
      %v1987 = vadd.f32 %v1921, %v1955
      %v1988 = vadd.f32 %v1922, %v1956
      %v1989 = vadd.f32 %v1923, %v1957
      %v1990 = vadd.f32 %v1924, %v1958
      %v1991 = vadd.f32 %v1925, %v1959
      %v1992 = vadd.f32 %v1926, %v1960
      %v1993 = vadd.f32 %v1927, %v1961
      %v1994 = vadd.f32 %v1928, %v1962
      %v1995 = vadd.f32 %v1929, %v1963
      %v1996 = vadd.f32 %v1930, %v1964
      %v1997 = vadd.f32 %v1931, %v1965
      %v1998 = vadd.f32 %v1932, %v1966
      %v1999 = vadd.f32 %v1933, %v1967
      %v2000 = vadd.f32 %v1934, %v1968
      %v2001 = vadd.f32 %v1935, %v1969
      %v2002 = vadd.f32 %v1936, %v1970
      %v2003 = vadd.f32 %v1937, %v1971
      %v2004 = vadd.f32 %v1938, %v1972
      %v2005 = vadd.f32 %v1939, %v1973
      %v2006 = vadd.f32 %v1940, %v1974
      %v2007 = vadd.f32 %v1941, %v1975
      %v2008 = vadd.f32 %v1942, %v1976
      %v2009 = vld [vmem:[#allocation2 + $0x2] sm:$0xff]
      %v2010 = vld [vmem:[#allocation2 + $0xa] sm:$0xff]
      %v2011 = vld [vmem:[#allocation2 + $0x1a] sm:$0xff]
      %v2012 = vld [vmem:[#allocation2 + $0x22] sm:$0xff]
      %v2013 = vld [vmem:[#allocation2 + $0x32] sm:$0xff]
      %v2014 = vld [vmem:[#allocation2 + $0x3a] sm:$0xff]
      %v2015 = vld [vmem:[#allocation2 + $0x4a] sm:$0xff]
      %v2016 = vld [vmem:[#allocation2 + $0x52] sm:$0xff]
      %v2017 = vld [vmem:[#allocation2 + $0x62] sm:$0xff]
      %v2018 = vld [vmem:[#allocation2 + $0x6a] sm:$0xff]
      %v2019 = vld [vmem:[#allocation2 + $0x7a] sm:$0xff]
      %v2020 = vld [vmem:[#allocation2 + $0x82] sm:$0xff]
      %v2021 = vld [vmem:[#allocation2 + $0x92] sm:$0xff]
      %v2022 = vld [vmem:[#allocation2 + $0x9a] sm:$0xff]
      %v2023 = vld [vmem:[#allocation2 + $0xaa] sm:$0xff]
      %v2024 = vld [vmem:[#allocation2 + $0xb2] sm:$0xff]
      %v2025 = vld [vmem:[#allocation2 + $0xc2] sm:$0xff]
      %v2026 = vld [vmem:[#allocation2 + $0xca] sm:$0xff]
      %v2027 = vld [vmem:[#allocation2 + $0xda] sm:$0xff]
      %v2028 = vld [vmem:[#allocation2 + $0xe2] sm:$0xff]
      %v2029 = vld [vmem:[#allocation2 + $0xf2] sm:$0xff]
      %v2030 = vld [vmem:[#allocation2 + $0xfa] sm:$0xff]
      %v2031 = vld [vmem:[#allocation2 + $0x10a] sm:$0xff]
      %v2032 = vld [vmem:[#allocation2 + $0x112] sm:$0xff]
      %v2033 = vld [vmem:[#allocation2 + $0x122] sm:$0xff]
      %v2034 = vld [vmem:[#allocation2 + $0x12a] sm:$0xff]
      %v2035 = vld [vmem:[#allocation2 + $0x13a] sm:$0xff]
      %v2036 = vld [vmem:[#allocation2 + $0x142] sm:$0xff]
      %v2037 = vld [vmem:[#allocation2 + $0x152] sm:$0xff]
      %v2038 = vld [vmem:[#allocation2 + $0x15a] sm:$0xff]
      %v2039 = vld [vmem:[#allocation2 + $0x16a] sm:$0xff]
      %v2040 = vld [vmem:[#allocation2 + $0x172] sm:$0xff]
      %v2041 = vld [vmem:[#allocation2 + $0x182] sm:$0xff]
      %v2042 = vld [vmem:[#allocation2 + $0x18a] sm:$0xff]
      %v2043 = vld [vmem:[#allocation2 + $0x19a] sm:$0xff]
      %v2044 = vld [vmem:[#allocation2 + $0x1a2] sm:$0xff]
      %v2045 = vld [vmem:[#allocation2 + $0x1b2] sm:$0xff]
      %v2046 = vld [vmem:[#allocation2 + $0x1ba] sm:$0xff]
      %v2047 = vld [vmem:[#allocation2 + $0x1ca] sm:$0xff]
      %v2048 = vld [vmem:[#allocation2 + $0x1d2] sm:$0xff]
      %v2049 = vld [vmem:[%s3 + $0x2] sm:$0x1]
      %v2050 = vperm.slane %v2049, 0
      %v2051 = vmul.f32 %v2050, %v2009
      %v2052 = vmul.f32 %v2050, %v2010
      %v2053 = vmul.f32 %v2050, %v2011
      %v2054 = vmul.f32 %v2050, %v2012
      %v2055 = vmul.f32 %v2050, %v2013
      %v2056 = vmul.f32 %v2050, %v2014
      %v2057 = vmul.f32 %v2050, %v2015
      %v2058 = vmul.f32 %v2050, %v2016
      %v2059 = vmul.f32 %v2050, %v2017
      %v2060 = vmul.f32 %v2050, %v2018
      %v2061 = vmul.f32 %v2050, %v2019
      %v2062 = vmul.f32 %v2050, %v2020
      %v2063 = vmul.f32 %v2050, %v2021
      %v2064 = vmul.f32 %v2050, %v2022
      %v2065 = vmul.f32 %v2050, %v2023
      %v2066 = vmul.f32 %v2050, %v2024
      %v2067 = vmul.f32 %v2050, %v2025
      %v2068 = vmul.f32 %v2050, %v2026
      %v2069 = vmul.f32 %v2050, %v2027
      %v2070 = vmul.f32 %v2050, %v2028
      %v2071 = vmul.f32 %v2050, %v2029
      %v2072 = vmul.f32 %v2050, %v2030
      %v2073 = vmul.f32 %v2050, %v2031
      %v2074 = vmul.f32 %v2050, %v2032
      %v2075 = vmul.f32 %v2050, %v2033
      %v2076 = vmul.f32 %v2050, %v2034
      %v2077 = vmul.f32 %v2050, %v2035
      %v2078 = vmul.f32 %v2050, %v2036
      %v2079 = vmul.f32 %v2050, %v2037
      %v2080 = vmul.f32 %v2050, %v2038
      %v2081 = vmul.f32 %v2050, %v2039
      %v2082 = vmul.f32 %v2050, %v2040
      %v2083 = vld [vmem:[%s3 + $0x7] sm:$0x1]
      %v2084 = vperm.slane %v2083, 0
      %v2085 = vmul.f32 %v2084, %v2011
      %v2086 = vmul.f32 %v2084, %v2012
      %v2087 = vmul.f32 %v2084, %v2013
      %v2088 = vmul.f32 %v2084, %v2014
      %v2089 = vmul.f32 %v2084, %v2015
      %v2090 = vmul.f32 %v2084, %v2016
      %v2091 = vmul.f32 %v2084, %v2017
      %v2092 = vmul.f32 %v2084, %v2018
      %v2093 = vmul.f32 %v2084, %v2019
      %v2094 = vmul.f32 %v2084, %v2020
      %v2095 = vmul.f32 %v2084, %v2021
      %v2096 = vmul.f32 %v2084, %v2022
      %v2097 = vmul.f32 %v2084, %v2023
      %v2098 = vmul.f32 %v2084, %v2024
      %v2099 = vmul.f32 %v2084, %v2025
      %v2100 = vmul.f32 %v2084, %v2026
      %v2101 = vmul.f32 %v2084, %v2027
      %v2102 = vmul.f32 %v2084, %v2028
      %v2103 = vmul.f32 %v2084, %v2029
      %v2104 = vmul.f32 %v2084, %v2030
      %v2105 = vmul.f32 %v2084, %v2031
      %v2106 = vmul.f32 %v2084, %v2032
      %v2107 = vmul.f32 %v2084, %v2033
      %v2108 = vmul.f32 %v2084, %v2034
      %v2109 = vmul.f32 %v2084, %v2035
      %v2110 = vmul.f32 %v2084, %v2036
      %v2111 = vmul.f32 %v2084, %v2037
      %v2112 = vmul.f32 %v2084, %v2038
      %v2113 = vmul.f32 %v2084, %v2039
      %v2114 = vmul.f32 %v2084, %v2040
      %v2115 = vmul.f32 %v2084, %v2041
      %v2116 = vmul.f32 %v2084, %v2042
      %v2117 = vadd.f32 %v2051, %v2085
      %v2118 = vadd.f32 %v2052, %v2086
      %v2119 = vadd.f32 %v2053, %v2087
      %v2120 = vadd.f32 %v2054, %v2088
      %v2121 = vadd.f32 %v2055, %v2089
      %v2122 = vadd.f32 %v2056, %v2090
      %v2123 = vadd.f32 %v2057, %v2091
      %v2124 = vadd.f32 %v2058, %v2092
      %v2125 = vadd.f32 %v2059, %v2093
      %v2126 = vadd.f32 %v2060, %v2094
      %v2127 = vadd.f32 %v2061, %v2095
      %v2128 = vadd.f32 %v2062, %v2096
      %v2129 = vadd.f32 %v2063, %v2097
      %v2130 = vadd.f32 %v2064, %v2098
      %v2131 = vadd.f32 %v2065, %v2099
      %v2132 = vadd.f32 %v2066, %v2100
      %v2133 = vadd.f32 %v2067, %v2101
      %v2134 = vadd.f32 %v2068, %v2102
      %v2135 = vadd.f32 %v2069, %v2103
      %v2136 = vadd.f32 %v2070, %v2104
      %v2137 = vadd.f32 %v2071, %v2105
      %v2138 = vadd.f32 %v2072, %v2106
      %v2139 = vadd.f32 %v2073, %v2107
      %v2140 = vadd.f32 %v2074, %v2108
      %v2141 = vadd.f32 %v2075, %v2109
      %v2142 = vadd.f32 %v2076, %v2110
      %v2143 = vadd.f32 %v2077, %v2111
      %v2144 = vadd.f32 %v2078, %v2112
      %v2145 = vadd.f32 %v2079, %v2113
      %v2146 = vadd.f32 %v2080, %v2114
      %v2147 = vadd.f32 %v2081, %v2115
      %v2148 = vadd.f32 %v2082, %v2116
      %v2149 = vld [vmem:[%s3 + $0xc] sm:$0x1]
      %v2150 = vperm.slane %v2149, 0
      %v2151 = vmul.f32 %v2150, %v2013
      %v2152 = vmul.f32 %v2150, %v2014
      %v2153 = vmul.f32 %v2150, %v2015
      %v2154 = vmul.f32 %v2150, %v2016
      %v2155 = vmul.f32 %v2150, %v2017
      %v2156 = vmul.f32 %v2150, %v2018
      %v2157 = vmul.f32 %v2150, %v2019
      %v2158 = vmul.f32 %v2150, %v2020
      %v2159 = vmul.f32 %v2150, %v2021
      %v2160 = vmul.f32 %v2150, %v2022
      %v2161 = vmul.f32 %v2150, %v2023
      %v2162 = vmul.f32 %v2150, %v2024
      %v2163 = vmul.f32 %v2150, %v2025
      %v2164 = vmul.f32 %v2150, %v2026
      %v2165 = vmul.f32 %v2150, %v2027
      %v2166 = vmul.f32 %v2150, %v2028
      %v2167 = vmul.f32 %v2150, %v2029
      %v2168 = vmul.f32 %v2150, %v2030
      %v2169 = vmul.f32 %v2150, %v2031
      %v2170 = vmul.f32 %v2150, %v2032
      %v2171 = vmul.f32 %v2150, %v2033
      %v2172 = vmul.f32 %v2150, %v2034
      %v2173 = vmul.f32 %v2150, %v2035
      %v2174 = vmul.f32 %v2150, %v2036
      %v2175 = vmul.f32 %v2150, %v2037
      %v2176 = vmul.f32 %v2150, %v2038
      %v2177 = vmul.f32 %v2150, %v2039
      %v2178 = vmul.f32 %v2150, %v2040
      %v2179 = vmul.f32 %v2150, %v2041
      %v2180 = vmul.f32 %v2150, %v2042
      %v2181 = vmul.f32 %v2150, %v2043
      %v2182 = vmul.f32 %v2150, %v2044
      %v2183 = vadd.f32 %v2117, %v2151
      %v2184 = vadd.f32 %v2118, %v2152
      %v2185 = vadd.f32 %v2119, %v2153
      %v2186 = vadd.f32 %v2120, %v2154
      %v2187 = vadd.f32 %v2121, %v2155
      %v2188 = vadd.f32 %v2122, %v2156
      %v2189 = vadd.f32 %v2123, %v2157
      %v2190 = vadd.f32 %v2124, %v2158
      %v2191 = vadd.f32 %v2125, %v2159
      %v2192 = vadd.f32 %v2126, %v2160
      %v2193 = vadd.f32 %v2127, %v2161
      %v2194 = vadd.f32 %v2128, %v2162
      %v2195 = vadd.f32 %v2129, %v2163
      %v2196 = vadd.f32 %v2130, %v2164
      %v2197 = vadd.f32 %v2131, %v2165
      %v2198 = vadd.f32 %v2132, %v2166
      %v2199 = vadd.f32 %v2133, %v2167
      %v2200 = vadd.f32 %v2134, %v2168
      %v2201 = vadd.f32 %v2135, %v2169
      %v2202 = vadd.f32 %v2136, %v2170
      %v2203 = vadd.f32 %v2137, %v2171
      %v2204 = vadd.f32 %v2138, %v2172
      %v2205 = vadd.f32 %v2139, %v2173
      %v2206 = vadd.f32 %v2140, %v2174
      %v2207 = vadd.f32 %v2141, %v2175
      %v2208 = vadd.f32 %v2142, %v2176
      %v2209 = vadd.f32 %v2143, %v2177
      %v2210 = vadd.f32 %v2144, %v2178
      %v2211 = vadd.f32 %v2145, %v2179
      %v2212 = vadd.f32 %v2146, %v2180
      %v2213 = vadd.f32 %v2147, %v2181
      %v2214 = vadd.f32 %v2148, %v2182
      %v2215 = vld [vmem:[%s3 + $0x11] sm:$0x1]
      %v2216 = vperm.slane %v2215, 0
      %v2217 = vmul.f32 %v2216, %v2015
      %v2218 = vmul.f32 %v2216, %v2016
      %v2219 = vmul.f32 %v2216, %v2017
      %v2220 = vmul.f32 %v2216, %v2018
      %v2221 = vmul.f32 %v2216, %v2019
      %v2222 = vmul.f32 %v2216, %v2020
      %v2223 = vmul.f32 %v2216, %v2021
      %v2224 = vmul.f32 %v2216, %v2022
      %v2225 = vmul.f32 %v2216, %v2023
      %v2226 = vmul.f32 %v2216, %v2024
      %v2227 = vmul.f32 %v2216, %v2025
      %v2228 = vmul.f32 %v2216, %v2026
      %v2229 = vmul.f32 %v2216, %v2027
      %v2230 = vmul.f32 %v2216, %v2028
      %v2231 = vmul.f32 %v2216, %v2029
      %v2232 = vmul.f32 %v2216, %v2030
      %v2233 = vmul.f32 %v2216, %v2031
      %v2234 = vmul.f32 %v2216, %v2032
      %v2235 = vmul.f32 %v2216, %v2033
      %v2236 = vmul.f32 %v2216, %v2034
      %v2237 = vmul.f32 %v2216, %v2035
      %v2238 = vmul.f32 %v2216, %v2036
      %v2239 = vmul.f32 %v2216, %v2037
      %v2240 = vmul.f32 %v2216, %v2038
      %v2241 = vmul.f32 %v2216, %v2039
      %v2242 = vmul.f32 %v2216, %v2040
      %v2243 = vmul.f32 %v2216, %v2041
      %v2244 = vmul.f32 %v2216, %v2042
      %v2245 = vmul.f32 %v2216, %v2043
      %v2246 = vmul.f32 %v2216, %v2044
      %v2247 = vmul.f32 %v2216, %v2045
      %v2248 = vmul.f32 %v2216, %v2046
      %v2249 = vadd.f32 %v2183, %v2217
      %v2250 = vadd.f32 %v2184, %v2218
      %v2251 = vadd.f32 %v2185, %v2219
      %v2252 = vadd.f32 %v2186, %v2220
      %v2253 = vadd.f32 %v2187, %v2221
      %v2254 = vadd.f32 %v2188, %v2222
      %v2255 = vadd.f32 %v2189, %v2223
      %v2256 = vadd.f32 %v2190, %v2224
      %v2257 = vadd.f32 %v2191, %v2225
      %v2258 = vadd.f32 %v2192, %v2226
      %v2259 = vadd.f32 %v2193, %v2227
      %v2260 = vadd.f32 %v2194, %v2228
      %v2261 = vadd.f32 %v2195, %v2229
      %v2262 = vadd.f32 %v2196, %v2230
      %v2263 = vadd.f32 %v2197, %v2231
      %v2264 = vadd.f32 %v2198, %v2232
      %v2265 = vadd.f32 %v2199, %v2233
      %v2266 = vadd.f32 %v2200, %v2234
      %v2267 = vadd.f32 %v2201, %v2235
      %v2268 = vadd.f32 %v2202, %v2236
      %v2269 = vadd.f32 %v2203, %v2237
      %v2270 = vadd.f32 %v2204, %v2238
      %v2271 = vadd.f32 %v2205, %v2239
      %v2272 = vadd.f32 %v2206, %v2240
      %v2273 = vadd.f32 %v2207, %v2241
      %v2274 = vadd.f32 %v2208, %v2242
      %v2275 = vadd.f32 %v2209, %v2243
      %v2276 = vadd.f32 %v2210, %v2244
      %v2277 = vadd.f32 %v2211, %v2245
      %v2278 = vadd.f32 %v2212, %v2246
      %v2279 = vadd.f32 %v2213, %v2247
      %v2280 = vadd.f32 %v2214, %v2248
      %v2281 = vld [vmem:[%s3 + $0x16] sm:$0x1]
      %v2282 = vperm.slane %v2281, 0
      %v2283 = vmul.f32 %v2282, %v2017
      %v2284 = vmul.f32 %v2282, %v2018
      %v2285 = vmul.f32 %v2282, %v2019
      %v2286 = vmul.f32 %v2282, %v2020
      %v2287 = vmul.f32 %v2282, %v2021
      %v2288 = vmul.f32 %v2282, %v2022
      %v2289 = vmul.f32 %v2282, %v2023
      %v2290 = vmul.f32 %v2282, %v2024
      %v2291 = vmul.f32 %v2282, %v2025
      %v2292 = vmul.f32 %v2282, %v2026
      %v2293 = vmul.f32 %v2282, %v2027
      %v2294 = vmul.f32 %v2282, %v2028
      %v2295 = vmul.f32 %v2282, %v2029
      %v2296 = vmul.f32 %v2282, %v2030
      %v2297 = vmul.f32 %v2282, %v2031
      %v2298 = vmul.f32 %v2282, %v2032
      %v2299 = vmul.f32 %v2282, %v2033
      %v2300 = vmul.f32 %v2282, %v2034
      %v2301 = vmul.f32 %v2282, %v2035
      %v2302 = vmul.f32 %v2282, %v2036
      %v2303 = vmul.f32 %v2282, %v2037
      %v2304 = vmul.f32 %v2282, %v2038
      %v2305 = vmul.f32 %v2282, %v2039
      %v2306 = vmul.f32 %v2282, %v2040
      %v2307 = vmul.f32 %v2282, %v2041
      %v2308 = vmul.f32 %v2282, %v2042
      %v2309 = vmul.f32 %v2282, %v2043
      %v2310 = vmul.f32 %v2282, %v2044
      %v2311 = vmul.f32 %v2282, %v2045
      %v2312 = vmul.f32 %v2282, %v2046
      %v2313 = vmul.f32 %v2282, %v2047
      %v2314 = vmul.f32 %v2282, %v2048
      %v2315 = vadd.f32 %v2249, %v2283
      %v2316 = vadd.f32 %v2250, %v2284
      %v2317 = vadd.f32 %v2251, %v2285
      %v2318 = vadd.f32 %v2252, %v2286
      %v2319 = vadd.f32 %v2253, %v2287
      %v2320 = vadd.f32 %v2254, %v2288
      %v2321 = vadd.f32 %v2255, %v2289
      %v2322 = vadd.f32 %v2256, %v2290
      %v2323 = vadd.f32 %v2257, %v2291
      %v2324 = vadd.f32 %v2258, %v2292
      %v2325 = vadd.f32 %v2259, %v2293
      %v2326 = vadd.f32 %v2260, %v2294
      %v2327 = vadd.f32 %v2261, %v2295
      %v2328 = vadd.f32 %v2262, %v2296
      %v2329 = vadd.f32 %v2263, %v2297
      %v2330 = vadd.f32 %v2264, %v2298
      %v2331 = vadd.f32 %v2265, %v2299
      %v2332 = vadd.f32 %v2266, %v2300
      %v2333 = vadd.f32 %v2267, %v2301
      %v2334 = vadd.f32 %v2268, %v2302
      %v2335 = vadd.f32 %v2269, %v2303
      %v2336 = vadd.f32 %v2270, %v2304
      %v2337 = vadd.f32 %v2271, %v2305
      %v2338 = vadd.f32 %v2272, %v2306
      %v2339 = vadd.f32 %v2273, %v2307
      %v2340 = vadd.f32 %v2274, %v2308
      %v2341 = vadd.f32 %v2275, %v2309
      %v2342 = vadd.f32 %v2276, %v2310
      %v2343 = vadd.f32 %v2277, %v2311
      %v2344 = vadd.f32 %v2278, %v2312
      %v2345 = vadd.f32 %v2279, %v2313
      %v2346 = vadd.f32 %v2280, %v2314
      %v2347 = vld [vmem:[#allocation2 + $0x3] sm:$0xff]
      %v2348 = vld [vmem:[#allocation2 + $0xb] sm:$0xff]
      %v2349 = vld [vmem:[#allocation2 + $0x1b] sm:$0xff]
      %v2350 = vld [vmem:[#allocation2 + $0x23] sm:$0xff]
      %v2351 = vld [vmem:[#allocation2 + $0x33] sm:$0xff]
      %v2352 = vld [vmem:[#allocation2 + $0x3b] sm:$0xff]
      %v2353 = vld [vmem:[#allocation2 + $0x4b] sm:$0xff]
      %v2354 = vld [vmem:[#allocation2 + $0x53] sm:$0xff]
      %v2355 = vld [vmem:[#allocation2 + $0x63] sm:$0xff]
      %v2356 = vld [vmem:[#allocation2 + $0x6b] sm:$0xff]
      %v2357 = vld [vmem:[#allocation2 + $0x7b] sm:$0xff]
      %v2358 = vld [vmem:[#allocation2 + $0x83] sm:$0xff]
      %v2359 = vld [vmem:[#allocation2 + $0x93] sm:$0xff]
      %v2360 = vld [vmem:[#allocation2 + $0x9b] sm:$0xff]
      %v2361 = vld [vmem:[#allocation2 + $0xab] sm:$0xff]
      %v2362 = vld [vmem:[#allocation2 + $0xb3] sm:$0xff]
      %v2363 = vld [vmem:[#allocation2 + $0xc3] sm:$0xff]
      %v2364 = vld [vmem:[#allocation2 + $0xcb] sm:$0xff]
      %v2365 = vld [vmem:[#allocation2 + $0xdb] sm:$0xff]
      %v2366 = vld [vmem:[#allocation2 + $0xe3] sm:$0xff]
      %v2367 = vld [vmem:[#allocation2 + $0xf3] sm:$0xff]
      %v2368 = vld [vmem:[#allocation2 + $0xfb] sm:$0xff]
      %v2369 = vld [vmem:[#allocation2 + $0x10b] sm:$0xff]
      %v2370 = vld [vmem:[#allocation2 + $0x113] sm:$0xff]
      %v2371 = vld [vmem:[#allocation2 + $0x123] sm:$0xff]
      %v2372 = vld [vmem:[#allocation2 + $0x12b] sm:$0xff]
      %v2373 = vld [vmem:[#allocation2 + $0x13b] sm:$0xff]
      %v2374 = vld [vmem:[#allocation2 + $0x143] sm:$0xff]
      %v2375 = vld [vmem:[#allocation2 + $0x153] sm:$0xff]
      %v2376 = vld [vmem:[#allocation2 + $0x15b] sm:$0xff]
      %v2377 = vld [vmem:[#allocation2 + $0x16b] sm:$0xff]
      %v2378 = vld [vmem:[#allocation2 + $0x173] sm:$0xff]
      %v2379 = vld [vmem:[#allocation2 + $0x183] sm:$0xff]
      %v2380 = vld [vmem:[#allocation2 + $0x18b] sm:$0xff]
      %v2381 = vld [vmem:[#allocation2 + $0x19b] sm:$0xff]
      %v2382 = vld [vmem:[#allocation2 + $0x1a3] sm:$0xff]
      %v2383 = vld [vmem:[#allocation2 + $0x1b3] sm:$0xff]
      %v2384 = vld [vmem:[#allocation2 + $0x1bb] sm:$0xff]
      %v2385 = vld [vmem:[#allocation2 + $0x1cb] sm:$0xff]
      %v2386 = vld [vmem:[#allocation2 + $0x1d3] sm:$0xff]
      %v2387 = vld [vmem:[%s3 + $0x3] sm:$0x1]
      %v2388 = vperm.slane %v2387, 0
      %v2389 = vmul.f32 %v2388, %v2347
      %v2390 = vmul.f32 %v2388, %v2348
      %v2391 = vmul.f32 %v2388, %v2349
      %v2392 = vmul.f32 %v2388, %v2350
      %v2393 = vmul.f32 %v2388, %v2351
      %v2394 = vmul.f32 %v2388, %v2352
      %v2395 = vmul.f32 %v2388, %v2353
      %v2396 = vmul.f32 %v2388, %v2354
      %v2397 = vmul.f32 %v2388, %v2355
      %v2398 = vmul.f32 %v2388, %v2356
      %v2399 = vmul.f32 %v2388, %v2357
      %v2400 = vmul.f32 %v2388, %v2358
      %v2401 = vmul.f32 %v2388, %v2359
      %v2402 = vmul.f32 %v2388, %v2360
      %v2403 = vmul.f32 %v2388, %v2361
      %v2404 = vmul.f32 %v2388, %v2362
      %v2405 = vmul.f32 %v2388, %v2363
      %v2406 = vmul.f32 %v2388, %v2364
      %v2407 = vmul.f32 %v2388, %v2365
      %v2408 = vmul.f32 %v2388, %v2366
      %v2409 = vmul.f32 %v2388, %v2367
      %v2410 = vmul.f32 %v2388, %v2368
      %v2411 = vmul.f32 %v2388, %v2369
      %v2412 = vmul.f32 %v2388, %v2370
      %v2413 = vmul.f32 %v2388, %v2371
      %v2414 = vmul.f32 %v2388, %v2372
      %v2415 = vmul.f32 %v2388, %v2373
      %v2416 = vmul.f32 %v2388, %v2374
      %v2417 = vmul.f32 %v2388, %v2375
      %v2418 = vmul.f32 %v2388, %v2376
      %v2419 = vmul.f32 %v2388, %v2377
      %v2420 = vmul.f32 %v2388, %v2378
      %v2421 = vld [vmem:[%s3 + $0x8] sm:$0x1]
      %v2422 = vperm.slane %v2421, 0
      %v2423 = vmul.f32 %v2422, %v2349
      %v2424 = vmul.f32 %v2422, %v2350
      %v2425 = vmul.f32 %v2422, %v2351
      %v2426 = vmul.f32 %v2422, %v2352
      %v2427 = vmul.f32 %v2422, %v2353
      %v2428 = vmul.f32 %v2422, %v2354
      %v2429 = vmul.f32 %v2422, %v2355
      %v2430 = vmul.f32 %v2422, %v2356
      %v2431 = vmul.f32 %v2422, %v2357
      %v2432 = vmul.f32 %v2422, %v2358
      %v2433 = vmul.f32 %v2422, %v2359
      %v2434 = vmul.f32 %v2422, %v2360
      %v2435 = vmul.f32 %v2422, %v2361
      %v2436 = vmul.f32 %v2422, %v2362
      %v2437 = vmul.f32 %v2422, %v2363
      %v2438 = vmul.f32 %v2422, %v2364
      %v2439 = vmul.f32 %v2422, %v2365
      %v2440 = vmul.f32 %v2422, %v2366
      %v2441 = vmul.f32 %v2422, %v2367
      %v2442 = vmul.f32 %v2422, %v2368
      %v2443 = vmul.f32 %v2422, %v2369
      %v2444 = vmul.f32 %v2422, %v2370
      %v2445 = vmul.f32 %v2422, %v2371
      %v2446 = vmul.f32 %v2422, %v2372
      %v2447 = vmul.f32 %v2422, %v2373
      %v2448 = vmul.f32 %v2422, %v2374
      %v2449 = vmul.f32 %v2422, %v2375
      %v2450 = vmul.f32 %v2422, %v2376
      %v2451 = vmul.f32 %v2422, %v2377
      %v2452 = vmul.f32 %v2422, %v2378
      %v2453 = vmul.f32 %v2422, %v2379
      %v2454 = vmul.f32 %v2422, %v2380
      %v2455 = vadd.f32 %v2389, %v2423
      %v2456 = vadd.f32 %v2390, %v2424
      %v2457 = vadd.f32 %v2391, %v2425
      %v2458 = vadd.f32 %v2392, %v2426
      %v2459 = vadd.f32 %v2393, %v2427
      %v2460 = vadd.f32 %v2394, %v2428
      %v2461 = vadd.f32 %v2395, %v2429
      %v2462 = vadd.f32 %v2396, %v2430
      %v2463 = vadd.f32 %v2397, %v2431
      %v2464 = vadd.f32 %v2398, %v2432
      %v2465 = vadd.f32 %v2399, %v2433
      %v2466 = vadd.f32 %v2400, %v2434
      %v2467 = vadd.f32 %v2401, %v2435
      %v2468 = vadd.f32 %v2402, %v2436
      %v2469 = vadd.f32 %v2403, %v2437
      %v2470 = vadd.f32 %v2404, %v2438
      %v2471 = vadd.f32 %v2405, %v2439
      %v2472 = vadd.f32 %v2406, %v2440
      %v2473 = vadd.f32 %v2407, %v2441
      %v2474 = vadd.f32 %v2408, %v2442
      %v2475 = vadd.f32 %v2409, %v2443
      %v2476 = vadd.f32 %v2410, %v2444
      %v2477 = vadd.f32 %v2411, %v2445
      %v2478 = vadd.f32 %v2412, %v2446
      %v2479 = vadd.f32 %v2413, %v2447
      %v2480 = vadd.f32 %v2414, %v2448
      %v2481 = vadd.f32 %v2415, %v2449
      %v2482 = vadd.f32 %v2416, %v2450
      %v2483 = vadd.f32 %v2417, %v2451
      %v2484 = vadd.f32 %v2418, %v2452
      %v2485 = vadd.f32 %v2419, %v2453
      %v2486 = vadd.f32 %v2420, %v2454
      %v2487 = vld [vmem:[%s3 + $0xd] sm:$0x1]
      %v2488 = vperm.slane %v2487, 0
      %v2489 = vmul.f32 %v2488, %v2351
      %v2490 = vmul.f32 %v2488, %v2352
      %v2491 = vmul.f32 %v2488, %v2353
      %v2492 = vmul.f32 %v2488, %v2354
      %v2493 = vmul.f32 %v2488, %v2355
      %v2494 = vmul.f32 %v2488, %v2356
      %v2495 = vmul.f32 %v2488, %v2357
      %v2496 = vmul.f32 %v2488, %v2358
      %v2497 = vmul.f32 %v2488, %v2359
      %v2498 = vmul.f32 %v2488, %v2360
      %v2499 = vmul.f32 %v2488, %v2361
      %v2500 = vmul.f32 %v2488, %v2362
      %v2501 = vmul.f32 %v2488, %v2363
      %v2502 = vmul.f32 %v2488, %v2364
      %v2503 = vmul.f32 %v2488, %v2365
      %v2504 = vmul.f32 %v2488, %v2366
      %v2505 = vmul.f32 %v2488, %v2367
      %v2506 = vmul.f32 %v2488, %v2368
      %v2507 = vmul.f32 %v2488, %v2369
      %v2508 = vmul.f32 %v2488, %v2370
      %v2509 = vmul.f32 %v2488, %v2371
      %v2510 = vmul.f32 %v2488, %v2372
      %v2511 = vmul.f32 %v2488, %v2373
      %v2512 = vmul.f32 %v2488, %v2374
      %v2513 = vmul.f32 %v2488, %v2375
      %v2514 = vmul.f32 %v2488, %v2376
      %v2515 = vmul.f32 %v2488, %v2377
      %v2516 = vmul.f32 %v2488, %v2378
      %v2517 = vmul.f32 %v2488, %v2379
      %v2518 = vmul.f32 %v2488, %v2380
      %v2519 = vmul.f32 %v2488, %v2381
      %v2520 = vmul.f32 %v2488, %v2382
      %v2521 = vadd.f32 %v2455, %v2489
      %v2522 = vadd.f32 %v2456, %v2490
      %v2523 = vadd.f32 %v2457, %v2491
      %v2524 = vadd.f32 %v2458, %v2492
      %v2525 = vadd.f32 %v2459, %v2493
      %v2526 = vadd.f32 %v2460, %v2494
      %v2527 = vadd.f32 %v2461, %v2495
      %v2528 = vadd.f32 %v2462, %v2496
      %v2529 = vadd.f32 %v2463, %v2497
      %v2530 = vadd.f32 %v2464, %v2498
      %v2531 = vadd.f32 %v2465, %v2499
      %v2532 = vadd.f32 %v2466, %v2500
      %v2533 = vadd.f32 %v2467, %v2501
      %v2534 = vadd.f32 %v2468, %v2502
      %v2535 = vadd.f32 %v2469, %v2503
      %v2536 = vadd.f32 %v2470, %v2504
      %v2537 = vadd.f32 %v2471, %v2505
      %v2538 = vadd.f32 %v2472, %v2506
      %v2539 = vadd.f32 %v2473, %v2507
      %v2540 = vadd.f32 %v2474, %v2508
      %v2541 = vadd.f32 %v2475, %v2509
      %v2542 = vadd.f32 %v2476, %v2510
      %v2543 = vadd.f32 %v2477, %v2511
      %v2544 = vadd.f32 %v2478, %v2512
      %v2545 = vadd.f32 %v2479, %v2513
      %v2546 = vadd.f32 %v2480, %v2514
      %v2547 = vadd.f32 %v2481, %v2515
      %v2548 = vadd.f32 %v2482, %v2516
      %v2549 = vadd.f32 %v2483, %v2517
      %v2550 = vadd.f32 %v2484, %v2518
      %v2551 = vadd.f32 %v2485, %v2519
      %v2552 = vadd.f32 %v2486, %v2520
      %v2553 = vld [vmem:[%s3 + $0x12] sm:$0x1]
      %v2554 = vperm.slane %v2553, 0
      %v2555 = vmul.f32 %v2554, %v2353
      %v2556 = vmul.f32 %v2554, %v2354
      %v2557 = vmul.f32 %v2554, %v2355
      %v2558 = vmul.f32 %v2554, %v2356
      %v2559 = vmul.f32 %v2554, %v2357
      %v2560 = vmul.f32 %v2554, %v2358
      %v2561 = vmul.f32 %v2554, %v2359
      %v2562 = vmul.f32 %v2554, %v2360
      %v2563 = vmul.f32 %v2554, %v2361
      %v2564 = vmul.f32 %v2554, %v2362
      %v2565 = vmul.f32 %v2554, %v2363
      %v2566 = vmul.f32 %v2554, %v2364
      %v2567 = vmul.f32 %v2554, %v2365
      %v2568 = vmul.f32 %v2554, %v2366
      %v2569 = vmul.f32 %v2554, %v2367
      %v2570 = vmul.f32 %v2554, %v2368
      %v2571 = vmul.f32 %v2554, %v2369
      %v2572 = vmul.f32 %v2554, %v2370
      %v2573 = vmul.f32 %v2554, %v2371
      %v2574 = vmul.f32 %v2554, %v2372
      %v2575 = vmul.f32 %v2554, %v2373
      %v2576 = vmul.f32 %v2554, %v2374
      %v2577 = vmul.f32 %v2554, %v2375
      %v2578 = vmul.f32 %v2554, %v2376
      %v2579 = vmul.f32 %v2554, %v2377
      %v2580 = vmul.f32 %v2554, %v2378
      %v2581 = vmul.f32 %v2554, %v2379
      %v2582 = vmul.f32 %v2554, %v2380
      %v2583 = vmul.f32 %v2554, %v2381
      %v2584 = vmul.f32 %v2554, %v2382
      %v2585 = vmul.f32 %v2554, %v2383
      %v2586 = vmul.f32 %v2554, %v2384
      %v2587 = vadd.f32 %v2521, %v2555
      %v2588 = vadd.f32 %v2522, %v2556
      %v2589 = vadd.f32 %v2523, %v2557
      %v2590 = vadd.f32 %v2524, %v2558
      %v2591 = vadd.f32 %v2525, %v2559
      %v2592 = vadd.f32 %v2526, %v2560
      %v2593 = vadd.f32 %v2527, %v2561
      %v2594 = vadd.f32 %v2528, %v2562
      %v2595 = vadd.f32 %v2529, %v2563
      %v2596 = vadd.f32 %v2530, %v2564
      %v2597 = vadd.f32 %v2531, %v2565
      %v2598 = vadd.f32 %v2532, %v2566
      %v2599 = vadd.f32 %v2533, %v2567
      %v2600 = vadd.f32 %v2534, %v2568
      %v2601 = vadd.f32 %v2535, %v2569
      %v2602 = vadd.f32 %v2536, %v2570
      %v2603 = vadd.f32 %v2537, %v2571
      %v2604 = vadd.f32 %v2538, %v2572
      %v2605 = vadd.f32 %v2539, %v2573
      %v2606 = vadd.f32 %v2540, %v2574
      %v2607 = vadd.f32 %v2541, %v2575
      %v2608 = vadd.f32 %v2542, %v2576
      %v2609 = vadd.f32 %v2543, %v2577
      %v2610 = vadd.f32 %v2544, %v2578
      %v2611 = vadd.f32 %v2545, %v2579
      %v2612 = vadd.f32 %v2546, %v2580
      %v2613 = vadd.f32 %v2547, %v2581
      %v2614 = vadd.f32 %v2548, %v2582
      %v2615 = vadd.f32 %v2549, %v2583
      %v2616 = vadd.f32 %v2550, %v2584
      %v2617 = vadd.f32 %v2551, %v2585
      %v2618 = vadd.f32 %v2552, %v2586
      %v2619 = vld [vmem:[%s3 + $0x17] sm:$0x1]
      %v2620 = vperm.slane %v2619, 0
      %v2621 = vmul.f32 %v2620, %v2355
      %v2622 = vmul.f32 %v2620, %v2356
      %v2623 = vmul.f32 %v2620, %v2357
      %v2624 = vmul.f32 %v2620, %v2358
      %v2625 = vmul.f32 %v2620, %v2359
      %v2626 = vmul.f32 %v2620, %v2360
      %v2627 = vmul.f32 %v2620, %v2361
      %v2628 = vmul.f32 %v2620, %v2362
      %v2629 = vmul.f32 %v2620, %v2363
      %v2630 = vmul.f32 %v2620, %v2364
      %v2631 = vmul.f32 %v2620, %v2365
      %v2632 = vmul.f32 %v2620, %v2366
      %v2633 = vmul.f32 %v2620, %v2367
      %v2634 = vmul.f32 %v2620, %v2368
      %v2635 = vmul.f32 %v2620, %v2369
      %v2636 = vmul.f32 %v2620, %v2370
      %v2637 = vmul.f32 %v2620, %v2371
      %v2638 = vmul.f32 %v2620, %v2372
      %v2639 = vmul.f32 %v2620, %v2373
      %v2640 = vmul.f32 %v2620, %v2374
      %v2641 = vmul.f32 %v2620, %v2375
      %v2642 = vmul.f32 %v2620, %v2376
      %v2643 = vmul.f32 %v2620, %v2377
      %v2644 = vmul.f32 %v2620, %v2378
      %v2645 = vmul.f32 %v2620, %v2379
      %v2646 = vmul.f32 %v2620, %v2380
      %v2647 = vmul.f32 %v2620, %v2381
      %v2648 = vmul.f32 %v2620, %v2382
      %v2649 = vmul.f32 %v2620, %v2383
      %v2650 = vmul.f32 %v2620, %v2384
      %v2651 = vmul.f32 %v2620, %v2385
      %v2652 = vmul.f32 %v2620, %v2386
      %v2653 = vadd.f32 %v2587, %v2621
      %v2654 = vadd.f32 %v2588, %v2622
      %v2655 = vadd.f32 %v2589, %v2623
      %v2656 = vadd.f32 %v2590, %v2624
      %v2657 = vadd.f32 %v2591, %v2625
      %v2658 = vadd.f32 %v2592, %v2626
      %v2659 = vadd.f32 %v2593, %v2627
      %v2660 = vadd.f32 %v2594, %v2628
      %v2661 = vadd.f32 %v2595, %v2629
      %v2662 = vadd.f32 %v2596, %v2630
      %v2663 = vadd.f32 %v2597, %v2631
      %v2664 = vadd.f32 %v2598, %v2632
      %v2665 = vadd.f32 %v2599, %v2633
      %v2666 = vadd.f32 %v2600, %v2634
      %v2667 = vadd.f32 %v2601, %v2635
      %v2668 = vadd.f32 %v2602, %v2636
      %v2669 = vadd.f32 %v2603, %v2637
      %v2670 = vadd.f32 %v2604, %v2638
      %v2671 = vadd.f32 %v2605, %v2639
      %v2672 = vadd.f32 %v2606, %v2640
      %v2673 = vadd.f32 %v2607, %v2641
      %v2674 = vadd.f32 %v2608, %v2642
      %v2675 = vadd.f32 %v2609, %v2643
      %v2676 = vadd.f32 %v2610, %v2644
      %v2677 = vadd.f32 %v2611, %v2645
      %v2678 = vadd.f32 %v2612, %v2646
      %v2679 = vadd.f32 %v2613, %v2647
      %v2680 = vadd.f32 %v2614, %v2648
      %v2681 = vadd.f32 %v2615, %v2649
      %v2682 = vadd.f32 %v2616, %v2650
      %v2683 = vadd.f32 %v2617, %v2651
      %v2684 = vadd.f32 %v2618, %v2652
      %v2685 = vld [vmem:[#allocation2 + $0x4] sm:$0xff]
      %v2686 = vld [vmem:[#allocation2 + $0xc] sm:$0xff]
      %v2687 = vld [vmem:[#allocation2 + $0x1c] sm:$0xff]
      %v2688 = vld [vmem:[#allocation2 + $0x24] sm:$0xff]
      %v2689 = vld [vmem:[#allocation2 + $0x34] sm:$0xff]
      %v2690 = vld [vmem:[#allocation2 + $0x3c] sm:$0xff]
      %v2691 = vld [vmem:[#allocation2 + $0x4c] sm:$0xff]
      %v2692 = vld [vmem:[#allocation2 + $0x54] sm:$0xff]
      %v2693 = vld [vmem:[#allocation2 + $0x64] sm:$0xff]
      %v2694 = vld [vmem:[#allocation2 + $0x6c] sm:$0xff]
      %v2695 = vld [vmem:[#allocation2 + $0x7c] sm:$0xff]
      %v2696 = vld [vmem:[#allocation2 + $0x84] sm:$0xff]
      %v2697 = vld [vmem:[#allocation2 + $0x94] sm:$0xff]
      %v2698 = vld [vmem:[#allocation2 + $0x9c] sm:$0xff]
      %v2699 = vld [vmem:[#allocation2 + $0xac] sm:$0xff]
      %v2700 = vld [vmem:[#allocation2 + $0xb4] sm:$0xff]
      %v2701 = vld [vmem:[#allocation2 + $0xc4] sm:$0xff]
      %v2702 = vld [vmem:[#allocation2 + $0xcc] sm:$0xff]
      %v2703 = vld [vmem:[#allocation2 + $0xdc] sm:$0xff]
      %v2704 = vld [vmem:[#allocation2 + $0xe4] sm:$0xff]
      %v2705 = vld [vmem:[#allocation2 + $0xf4] sm:$0xff]
      %v2706 = vld [vmem:[#allocation2 + $0xfc] sm:$0xff]
      %v2707 = vld [vmem:[#allocation2 + $0x10c] sm:$0xff]
      %v2708 = vld [vmem:[#allocation2 + $0x114] sm:$0xff]
      %v2709 = vld [vmem:[#allocation2 + $0x124] sm:$0xff]
      %v2710 = vld [vmem:[#allocation2 + $0x12c] sm:$0xff]
      %v2711 = vld [vmem:[#allocation2 + $0x13c] sm:$0xff]
      %v2712 = vld [vmem:[#allocation2 + $0x144] sm:$0xff]
      %v2713 = vld [vmem:[#allocation2 + $0x154] sm:$0xff]
      %v2714 = vld [vmem:[#allocation2 + $0x15c] sm:$0xff]
      %v2715 = vld [vmem:[#allocation2 + $0x16c] sm:$0xff]
      %v2716 = vld [vmem:[#allocation2 + $0x174] sm:$0xff]
      %v2717 = vld [vmem:[#allocation2 + $0x184] sm:$0xff]
      %v2718 = vld [vmem:[#allocation2 + $0x18c] sm:$0xff]
      %v2719 = vld [vmem:[#allocation2 + $0x19c] sm:$0xff]
      %v2720 = vld [vmem:[#allocation2 + $0x1a4] sm:$0xff]
      %v2721 = vld [vmem:[#allocation2 + $0x1b4] sm:$0xff]
      %v2722 = vld [vmem:[#allocation2 + $0x1bc] sm:$0xff]
      %v2723 = vld [vmem:[#allocation2 + $0x1cc] sm:$0xff]
      %v2724 = vld [vmem:[#allocation2 + $0x1d4] sm:$0xff]
      %v2725 = vld [vmem:[%s3 + $0x4] sm:$0x1]
      %v2726 = vperm.slane %v2725, 0
      %v2727 = vmul.f32 %v2726, %v2685
      %v2728 = vmul.f32 %v2726, %v2686
      %v2729 = vmul.f32 %v2726, %v2687
      %v2730 = vmul.f32 %v2726, %v2688
      %v2731 = vmul.f32 %v2726, %v2689
      %v2732 = vmul.f32 %v2726, %v2690
      %v2733 = vmul.f32 %v2726, %v2691
      %v2734 = vmul.f32 %v2726, %v2692
      %v2735 = vmul.f32 %v2726, %v2693
      %v2736 = vmul.f32 %v2726, %v2694
      %v2737 = vmul.f32 %v2726, %v2695
      %v2738 = vmul.f32 %v2726, %v2696
      %v2739 = vmul.f32 %v2726, %v2697
      %v2740 = vmul.f32 %v2726, %v2698
      %v2741 = vmul.f32 %v2726, %v2699
      %v2742 = vmul.f32 %v2726, %v2700
      %v2743 = vmul.f32 %v2726, %v2701
      %v2744 = vmul.f32 %v2726, %v2702
      %v2745 = vmul.f32 %v2726, %v2703
      %v2746 = vmul.f32 %v2726, %v2704
      %v2747 = vmul.f32 %v2726, %v2705
      %v2748 = vmul.f32 %v2726, %v2706
      %v2749 = vmul.f32 %v2726, %v2707
      %v2750 = vmul.f32 %v2726, %v2708
      %v2751 = vmul.f32 %v2726, %v2709
      %v2752 = vmul.f32 %v2726, %v2710
      %v2753 = vmul.f32 %v2726, %v2711
      %v2754 = vmul.f32 %v2726, %v2712
      %v2755 = vmul.f32 %v2726, %v2713
      %v2756 = vmul.f32 %v2726, %v2714
      %v2757 = vmul.f32 %v2726, %v2715
      %v2758 = vmul.f32 %v2726, %v2716
      %v2759 = vld [vmem:[%s3 + $0x9] sm:$0x1]
      %v2760 = vperm.slane %v2759, 0
      %v2761 = vmul.f32 %v2760, %v2687
      %v2762 = vmul.f32 %v2760, %v2688
      %v2763 = vmul.f32 %v2760, %v2689
      %v2764 = vmul.f32 %v2760, %v2690
      %v2765 = vmul.f32 %v2760, %v2691
      %v2766 = vmul.f32 %v2760, %v2692
      %v2767 = vmul.f32 %v2760, %v2693
      %v2768 = vmul.f32 %v2760, %v2694
      %v2769 = vmul.f32 %v2760, %v2695
      %v2770 = vmul.f32 %v2760, %v2696
      %v2771 = vmul.f32 %v2760, %v2697
      %v2772 = vmul.f32 %v2760, %v2698
      %v2773 = vmul.f32 %v2760, %v2699
      %v2774 = vmul.f32 %v2760, %v2700
      %v2775 = vmul.f32 %v2760, %v2701
      %v2776 = vmul.f32 %v2760, %v2702
      %v2777 = vmul.f32 %v2760, %v2703
      %v2778 = vmul.f32 %v2760, %v2704
      %v2779 = vmul.f32 %v2760, %v2705
      %v2780 = vmul.f32 %v2760, %v2706
      %v2781 = vmul.f32 %v2760, %v2707
      %v2782 = vmul.f32 %v2760, %v2708
      %v2783 = vmul.f32 %v2760, %v2709
      %v2784 = vmul.f32 %v2760, %v2710
      %v2785 = vmul.f32 %v2760, %v2711
      %v2786 = vmul.f32 %v2760, %v2712
      %v2787 = vmul.f32 %v2760, %v2713
      %v2788 = vmul.f32 %v2760, %v2714
      %v2789 = vmul.f32 %v2760, %v2715
      %v2790 = vmul.f32 %v2760, %v2716
      %v2791 = vmul.f32 %v2760, %v2717
      %v2792 = vmul.f32 %v2760, %v2718
      %v2793 = vadd.f32 %v2727, %v2761
      %v2794 = vadd.f32 %v2728, %v2762
      %v2795 = vadd.f32 %v2729, %v2763
      %v2796 = vadd.f32 %v2730, %v2764
      %v2797 = vadd.f32 %v2731, %v2765
      %v2798 = vadd.f32 %v2732, %v2766
      %v2799 = vadd.f32 %v2733, %v2767
      %v2800 = vadd.f32 %v2734, %v2768
      %v2801 = vadd.f32 %v2735, %v2769
      %v2802 = vadd.f32 %v2736, %v2770
      %v2803 = vadd.f32 %v2737, %v2771
      %v2804 = vadd.f32 %v2738, %v2772
      %v2805 = vadd.f32 %v2739, %v2773
      %v2806 = vadd.f32 %v2740, %v2774
      %v2807 = vadd.f32 %v2741, %v2775
      %v2808 = vadd.f32 %v2742, %v2776
      %v2809 = vadd.f32 %v2743, %v2777
      %v2810 = vadd.f32 %v2744, %v2778
      %v2811 = vadd.f32 %v2745, %v2779
      %v2812 = vadd.f32 %v2746, %v2780
      %v2813 = vadd.f32 %v2747, %v2781
      %v2814 = vadd.f32 %v2748, %v2782
      %v2815 = vadd.f32 %v2749, %v2783
      %v2816 = vadd.f32 %v2750, %v2784
      %v2817 = vadd.f32 %v2751, %v2785
      %v2818 = vadd.f32 %v2752, %v2786
      %v2819 = vadd.f32 %v2753, %v2787
      %v2820 = vadd.f32 %v2754, %v2788
      %v2821 = vadd.f32 %v2755, %v2789
      %v2822 = vadd.f32 %v2756, %v2790
      %v2823 = vadd.f32 %v2757, %v2791
      %v2824 = vadd.f32 %v2758, %v2792
      %v2825 = vld [vmem:[%s3 + $0xe] sm:$0x1]
      %v2826 = vperm.slane %v2825, 0
      %v2827 = vmul.f32 %v2826, %v2689
      %v2828 = vmul.f32 %v2826, %v2690
      %v2829 = vmul.f32 %v2826, %v2691
      %v2830 = vmul.f32 %v2826, %v2692
      %v2831 = vmul.f32 %v2826, %v2693
      %v2832 = vmul.f32 %v2826, %v2694
      %v2833 = vmul.f32 %v2826, %v2695
      %v2834 = vmul.f32 %v2826, %v2696
      %v2835 = vmul.f32 %v2826, %v2697
      %v2836 = vmul.f32 %v2826, %v2698
      %v2837 = vmul.f32 %v2826, %v2699
      %v2838 = vmul.f32 %v2826, %v2700
      %v2839 = vmul.f32 %v2826, %v2701
      %v2840 = vmul.f32 %v2826, %v2702
      %v2841 = vmul.f32 %v2826, %v2703
      %v2842 = vmul.f32 %v2826, %v2704
      %v2843 = vmul.f32 %v2826, %v2705
      %v2844 = vmul.f32 %v2826, %v2706
      %v2845 = vmul.f32 %v2826, %v2707
      %v2846 = vmul.f32 %v2826, %v2708
      %v2847 = vmul.f32 %v2826, %v2709
      %v2848 = vmul.f32 %v2826, %v2710
      %v2849 = vmul.f32 %v2826, %v2711
      %v2850 = vmul.f32 %v2826, %v2712
      %v2851 = vmul.f32 %v2826, %v2713
      %v2852 = vmul.f32 %v2826, %v2714
      %v2853 = vmul.f32 %v2826, %v2715
      %v2854 = vmul.f32 %v2826, %v2716
      %v2855 = vmul.f32 %v2826, %v2717
      %v2856 = vmul.f32 %v2826, %v2718
      %v2857 = vmul.f32 %v2826, %v2719
      %v2858 = vmul.f32 %v2826, %v2720
      %v2859 = vadd.f32 %v2793, %v2827
      %v2860 = vadd.f32 %v2794, %v2828
      %v2861 = vadd.f32 %v2795, %v2829
      %v2862 = vadd.f32 %v2796, %v2830
      %v2863 = vadd.f32 %v2797, %v2831
      %v2864 = vadd.f32 %v2798, %v2832
      %v2865 = vadd.f32 %v2799, %v2833
      %v2866 = vadd.f32 %v2800, %v2834
      %v2867 = vadd.f32 %v2801, %v2835
      %v2868 = vadd.f32 %v2802, %v2836
      %v2869 = vadd.f32 %v2803, %v2837
      %v2870 = vadd.f32 %v2804, %v2838
      %v2871 = vadd.f32 %v2805, %v2839
      %v2872 = vadd.f32 %v2806, %v2840
      %v2873 = vadd.f32 %v2807, %v2841
      %v2874 = vadd.f32 %v2808, %v2842
      %v2875 = vadd.f32 %v2809, %v2843
      %v2876 = vadd.f32 %v2810, %v2844
      %v2877 = vadd.f32 %v2811, %v2845
      %v2878 = vadd.f32 %v2812, %v2846
      %v2879 = vadd.f32 %v2813, %v2847
      %v2880 = vadd.f32 %v2814, %v2848
      %v2881 = vadd.f32 %v2815, %v2849
      %v2882 = vadd.f32 %v2816, %v2850
      %v2883 = vadd.f32 %v2817, %v2851
      %v2884 = vadd.f32 %v2818, %v2852
      %v2885 = vadd.f32 %v2819, %v2853
      %v2886 = vadd.f32 %v2820, %v2854
      %v2887 = vadd.f32 %v2821, %v2855
      %v2888 = vadd.f32 %v2822, %v2856
      %v2889 = vadd.f32 %v2823, %v2857
      %v2890 = vadd.f32 %v2824, %v2858
      %v2891 = vld [vmem:[%s3 + $0x13] sm:$0x1]
      %v2892 = vperm.slane %v2891, 0
      %v2893 = vmul.f32 %v2892, %v2691
      %v2894 = vmul.f32 %v2892, %v2692
      %v2895 = vmul.f32 %v2892, %v2693
      %v2896 = vmul.f32 %v2892, %v2694
      %v2897 = vmul.f32 %v2892, %v2695
      %v2898 = vmul.f32 %v2892, %v2696
      %v2899 = vmul.f32 %v2892, %v2697
      %v2900 = vmul.f32 %v2892, %v2698
      %v2901 = vmul.f32 %v2892, %v2699
      %v2902 = vmul.f32 %v2892, %v2700
      %v2903 = vmul.f32 %v2892, %v2701
      %v2904 = vmul.f32 %v2892, %v2702
      %v2905 = vmul.f32 %v2892, %v2703
      %v2906 = vmul.f32 %v2892, %v2704
      %v2907 = vmul.f32 %v2892, %v2705
      %v2908 = vmul.f32 %v2892, %v2706
      %v2909 = vmul.f32 %v2892, %v2707
      %v2910 = vmul.f32 %v2892, %v2708
      %v2911 = vmul.f32 %v2892, %v2709
      %v2912 = vmul.f32 %v2892, %v2710
      %v2913 = vmul.f32 %v2892, %v2711
      %v2914 = vmul.f32 %v2892, %v2712
      %v2915 = vmul.f32 %v2892, %v2713
      %v2916 = vmul.f32 %v2892, %v2714
      %v2917 = vmul.f32 %v2892, %v2715
      %v2918 = vmul.f32 %v2892, %v2716
      %v2919 = vmul.f32 %v2892, %v2717
      %v2920 = vmul.f32 %v2892, %v2718
      %v2921 = vmul.f32 %v2892, %v2719
      %v2922 = vmul.f32 %v2892, %v2720
      %v2923 = vmul.f32 %v2892, %v2721
      %v2924 = vmul.f32 %v2892, %v2722
      %v2925 = vadd.f32 %v2859, %v2893
      %v2926 = vadd.f32 %v2860, %v2894
      %v2927 = vadd.f32 %v2861, %v2895
      %v2928 = vadd.f32 %v2862, %v2896
      %v2929 = vadd.f32 %v2863, %v2897
      %v2930 = vadd.f32 %v2864, %v2898
      %v2931 = vadd.f32 %v2865, %v2899
      %v2932 = vadd.f32 %v2866, %v2900
      %v2933 = vadd.f32 %v2867, %v2901
      %v2934 = vadd.f32 %v2868, %v2902
      %v2935 = vadd.f32 %v2869, %v2903
      %v2936 = vadd.f32 %v2870, %v2904
      %v2937 = vadd.f32 %v2871, %v2905
      %v2938 = vadd.f32 %v2872, %v2906
      %v2939 = vadd.f32 %v2873, %v2907
      %v2940 = vadd.f32 %v2874, %v2908
      %v2941 = vadd.f32 %v2875, %v2909
      %v2942 = vadd.f32 %v2876, %v2910
      %v2943 = vadd.f32 %v2877, %v2911
      %v2944 = vadd.f32 %v2878, %v2912
      %v2945 = vadd.f32 %v2879, %v2913
      %v2946 = vadd.f32 %v2880, %v2914
      %v2947 = vadd.f32 %v2881, %v2915
      %v2948 = vadd.f32 %v2882, %v2916
      %v2949 = vadd.f32 %v2883, %v2917
      %v2950 = vadd.f32 %v2884, %v2918
      %v2951 = vadd.f32 %v2885, %v2919
      %v2952 = vadd.f32 %v2886, %v2920
      %v2953 = vadd.f32 %v2887, %v2921
      %v2954 = vadd.f32 %v2888, %v2922
      %v2955 = vadd.f32 %v2889, %v2923
      %v2956 = vadd.f32 %v2890, %v2924
      %v2957 = vld [vmem:[%s3 + $0x18] sm:$0x1]
      %v2958 = vperm.slane %v2957, 0
      %v2959 = vmul.f32 %v2958, %v2693
      %v2960 = vmul.f32 %v2958, %v2694
      %v2961 = vmul.f32 %v2958, %v2695
      %v2962 = vmul.f32 %v2958, %v2696
      %v2963 = vmul.f32 %v2958, %v2697
      %v2964 = vmul.f32 %v2958, %v2698
      %v2965 = vmul.f32 %v2958, %v2699
      %v2966 = vmul.f32 %v2958, %v2700
      %v2967 = vmul.f32 %v2958, %v2701
      %v2968 = vmul.f32 %v2958, %v2702
      %v2969 = vmul.f32 %v2958, %v2703
      %v2970 = vmul.f32 %v2958, %v2704
      %v2971 = vmul.f32 %v2958, %v2705
      %v2972 = vmul.f32 %v2958, %v2706
      %v2973 = vmul.f32 %v2958, %v2707
      %v2974 = vmul.f32 %v2958, %v2708
      %v2975 = vmul.f32 %v2958, %v2709
      %v2976 = vmul.f32 %v2958, %v2710
      %v2977 = vmul.f32 %v2958, %v2711
      %v2978 = vmul.f32 %v2958, %v2712
      %v2979 = vmul.f32 %v2958, %v2713
      %v2980 = vmul.f32 %v2958, %v2714
      %v2981 = vmul.f32 %v2958, %v2715
      %v2982 = vmul.f32 %v2958, %v2716
      %v2983 = vmul.f32 %v2958, %v2717
      %v2984 = vmul.f32 %v2958, %v2718
      %v2985 = vmul.f32 %v2958, %v2719
      %v2986 = vmul.f32 %v2958, %v2720
      %v2987 = vmul.f32 %v2958, %v2721
      %v2988 = vmul.f32 %v2958, %v2722
      %v2989 = vmul.f32 %v2958, %v2723
      %v2990 = vmul.f32 %v2958, %v2724
      %v2991 = vadd.f32 %v2925, %v2959
      %v2992 = vadd.f32 %v2926, %v2960
      %v2993 = vadd.f32 %v2927, %v2961
      %v2994 = vadd.f32 %v2928, %v2962
      %v2995 = vadd.f32 %v2929, %v2963
      %v2996 = vadd.f32 %v2930, %v2964
      %v2997 = vadd.f32 %v2931, %v2965
      %v2998 = vadd.f32 %v2932, %v2966
      %v2999 = vadd.f32 %v2933, %v2967
      %v3000 = vadd.f32 %v2934, %v2968
      %v3001 = vadd.f32 %v2935, %v2969
      %v3002 = vadd.f32 %v2936, %v2970
      %v3003 = vadd.f32 %v2937, %v2971
      %v3004 = vadd.f32 %v2938, %v2972
      %v3005 = vadd.f32 %v2939, %v2973
      %v3006 = vadd.f32 %v2940, %v2974
      %v3007 = vadd.f32 %v2941, %v2975
      %v3008 = vadd.f32 %v2942, %v2976
      %v3009 = vadd.f32 %v2943, %v2977
      %v3010 = vadd.f32 %v2944, %v2978
      %v3011 = vadd.f32 %v2945, %v2979
      %v3012 = vadd.f32 %v2946, %v2980
      %v3013 = vadd.f32 %v2947, %v2981
      %v3014 = vadd.f32 %v2948, %v2982
      %v3015 = vadd.f32 %v2949, %v2983
      %v3016 = vadd.f32 %v2950, %v2984
      %v3017 = vadd.f32 %v2951, %v2985
      %v3018 = vadd.f32 %v2952, %v2986
      %v3019 = vadd.f32 %v2953, %v2987
      %v3020 = vadd.f32 %v2954, %v2988
      %v3021 = vadd.f32 %v2955, %v2989
      %v3022 = vadd.f32 %v2956, %v2990
      %v3023 = vadd.f32 %v1639, %v1977
      %v3024 = vadd.f32 %v1640, %v1978
      %v3025 = vadd.f32 %v1641, %v1979
      %v3026 = vadd.f32 %v1642, %v1980
      %v3027 = vadd.f32 %v1643, %v1981
      %v3028 = vadd.f32 %v1644, %v1982
      %v3029 = vadd.f32 %v1645, %v1983
      %v3030 = vadd.f32 %v1646, %v1984
      %v3031 = vadd.f32 %v1647, %v1985
      %v3032 = vadd.f32 %v1648, %v1986
      %v3033 = vadd.f32 %v1649, %v1987
      %v3034 = vadd.f32 %v1650, %v1988
      %v3035 = vadd.f32 %v1651, %v1989
      %v3036 = vadd.f32 %v1652, %v1990
      %v3037 = vadd.f32 %v1653, %v1991
      %v3038 = vadd.f32 %v1654, %v1992
      %v3039 = vadd.f32 %v1655, %v1993
      %v3040 = vadd.f32 %v1656, %v1994
      %v3041 = vadd.f32 %v1657, %v1995
      %v3042 = vadd.f32 %v1658, %v1996
      %v3043 = vadd.f32 %v1659, %v1997
      %v3044 = vadd.f32 %v1660, %v1998
      %v3045 = vadd.f32 %v1661, %v1999
      %v3046 = vadd.f32 %v1662, %v2000
      %v3047 = vadd.f32 %v1663, %v2001
      %v3048 = vadd.f32 %v1664, %v2002
      %v3049 = vadd.f32 %v1665, %v2003
      %v3050 = vadd.f32 %v1666, %v2004
      %v3051 = vadd.f32 %v1667, %v2005
      %v3052 = vadd.f32 %v1668, %v2006
      %v3053 = vadd.f32 %v1669, %v2007
      %v3054 = vadd.f32 %v1670, %v2008
      %v3055 = vadd.f32 %v2315, %v2653
      %v3056 = vadd.f32 %v2316, %v2654
      %v3057 = vadd.f32 %v2317, %v2655
      %v3058 = vadd.f32 %v2318, %v2656
      %v3059 = vadd.f32 %v2319, %v2657
      %v3060 = vadd.f32 %v2320, %v2658
      %v3061 = vadd.f32 %v2321, %v2659
      %v3062 = vadd.f32 %v2322, %v2660
      %v3063 = vadd.f32 %v2323, %v2661
      %v3064 = vadd.f32 %v2324, %v2662
      %v3065 = vadd.f32 %v2325, %v2663
      %v3066 = vadd.f32 %v2326, %v2664
      %v3067 = vadd.f32 %v2327, %v2665
      %v3068 = vadd.f32 %v2328, %v2666
      %v3069 = vadd.f32 %v2329, %v2667
      %v3070 = vadd.f32 %v2330, %v2668
      %v3071 = vadd.f32 %v2331, %v2669
      %v3072 = vadd.f32 %v2332, %v2670
      %v3073 = vadd.f32 %v2333, %v2671
      %v3074 = vadd.f32 %v2334, %v2672
      %v3075 = vadd.f32 %v2335, %v2673
      %v3076 = vadd.f32 %v2336, %v2674
      %v3077 = vadd.f32 %v2337, %v2675
      %v3078 = vadd.f32 %v2338, %v2676
      %v3079 = vadd.f32 %v2339, %v2677
      %v3080 = vadd.f32 %v2340, %v2678
      %v3081 = vadd.f32 %v2341, %v2679
      %v3082 = vadd.f32 %v2342, %v2680
      %v3083 = vadd.f32 %v2343, %v2681
      %v3084 = vadd.f32 %v2344, %v2682
      %v3085 = vadd.f32 %v2345, %v2683
      %v3086 = vadd.f32 %v2346, %v2684
      %v3087 = vadd.f32 %v3023, %v3055
      %v3088 = vadd.f32 %v3024, %v3056
      %v3089 = vadd.f32 %v3025, %v3057
      %v3090 = vadd.f32 %v3026, %v3058
      %v3091 = vadd.f32 %v3027, %v3059
      %v3092 = vadd.f32 %v3028, %v3060
      %v3093 = vadd.f32 %v3029, %v3061
      %v3094 = vadd.f32 %v3030, %v3062
      %v3095 = vadd.f32 %v3031, %v3063
      %v3096 = vadd.f32 %v3032, %v3064
      %v3097 = vadd.f32 %v3033, %v3065
      %v3098 = vadd.f32 %v3034, %v3066
      %v3099 = vadd.f32 %v3035, %v3067
      %v3100 = vadd.f32 %v3036, %v3068
      %v3101 = vadd.f32 %v3037, %v3069
      %v3102 = vadd.f32 %v3038, %v3070
      %v3103 = vadd.f32 %v3039, %v3071
      %v3104 = vadd.f32 %v3040, %v3072
      %v3105 = vadd.f32 %v3041, %v3073
      %v3106 = vadd.f32 %v3042, %v3074
      %v3107 = vadd.f32 %v3043, %v3075
      %v3108 = vadd.f32 %v3044, %v3076
      %v3109 = vadd.f32 %v3045, %v3077
      %v3110 = vadd.f32 %v3046, %v3078
      %v3111 = vadd.f32 %v3047, %v3079
      %v3112 = vadd.f32 %v3048, %v3080
      %v3113 = vadd.f32 %v3049, %v3081
      %v3114 = vadd.f32 %v3050, %v3082
      %v3115 = vadd.f32 %v3051, %v3083
      %v3116 = vadd.f32 %v3052, %v3084
      %v3117 = vadd.f32 %v3053, %v3085
      %v3118 = vadd.f32 %v3054, %v3086
      %v3119 = vadd.f32 %v3087, %v2991
      %v3120 = vadd.f32 %v3088, %v2992
      %v3121 = vadd.f32 %v3089, %v2993
      %v3122 = vadd.f32 %v3090, %v2994
      %v3123 = vadd.f32 %v3091, %v2995
      %v3124 = vadd.f32 %v3092, %v2996
      %v3125 = vadd.f32 %v3093, %v2997
      %v3126 = vadd.f32 %v3094, %v2998
      %v3127 = vadd.f32 %v3095, %v2999
      %v3128 = vadd.f32 %v3096, %v3000
      %v3129 = vadd.f32 %v3097, %v3001
      %v3130 = vadd.f32 %v3098, %v3002
      %v3131 = vadd.f32 %v3099, %v3003
      %v3132 = vadd.f32 %v3100, %v3004
      %v3133 = vadd.f32 %v3101, %v3005
      %v3134 = vadd.f32 %v3102, %v3006
      %v3135 = vadd.f32 %v3103, %v3007
      %v3136 = vadd.f32 %v3104, %v3008
      %v3137 = vadd.f32 %v3105, %v3009
      %v3138 = vadd.f32 %v3106, %v3010
      %v3139 = vadd.f32 %v3107, %v3011
      %v3140 = vadd.f32 %v3108, %v3012
      %v3141 = vadd.f32 %v3109, %v3013
      %v3142 = vadd.f32 %v3110, %v3014
      %v3143 = vadd.f32 %v3111, %v3015
      %v3144 = vadd.f32 %v3112, %v3016
      %v3145 = vadd.f32 %v3113, %v3017
      %v3146 = vadd.f32 %v3114, %v3018
      %v3147 = vadd.f32 %v3115, %v3019
      %v3148 = vadd.f32 %v3116, %v3020
      %v3149 = vadd.f32 %v3117, %v3021
      %v3150 = vadd.f32 %v3118, %v3022
      %v3151 = vld [vmem:[%s4] sm:$0x1]
      %v3153 = vperm.slane %v3151, 0
      %v3155 = vadd.f32 %v3119, %v3153
      %v3156 = vadd.f32 %v3120, %v3153
      %v3157 = vadd.f32 %v3121, %v3153
      %v3158 = vadd.f32 %v3122, %v3153
      %v3159 = vadd.f32 %v3123, %v3153
      %v3160 = vadd.f32 %v3124, %v3153
      %v3161 = vadd.f32 %v3125, %v3153
      %v3162 = vadd.f32 %v3126, %v3153
      %v3163 = vadd.f32 %v3127, %v3153
      %v3164 = vadd.f32 %v3128, %v3153
      %v3165 = vadd.f32 %v3129, %v3153
      %v3166 = vadd.f32 %v3130, %v3153
      %v3167 = vadd.f32 %v3131, %v3153
      %v3168 = vadd.f32 %v3132, %v3153
      %v3169 = vadd.f32 %v3133, %v3153
      %v3170 = vadd.f32 %v3134, %v3153
      %v3171 = vadd.f32 %v3135, %v3153
      %v3172 = vadd.f32 %v3136, %v3153
      %v3173 = vadd.f32 %v3137, %v3153
      %v3174 = vadd.f32 %v3138, %v3153
      %v3175 = vadd.f32 %v3139, %v3153
      %v3176 = vadd.f32 %v3140, %v3153
      %v3177 = vadd.f32 %v3141, %v3153
      %v3178 = vadd.f32 %v3142, %v3153
      %v3179 = vadd.f32 %v3143, %v3153
      %v3180 = vadd.f32 %v3144, %v3153
      %v3181 = vadd.f32 %v3145, %v3153
      %v3182 = vadd.f32 %v3146, %v3153
      %v3183 = vadd.f32 %v3147, %v3153
      %v3184 = vadd.f32 %v3148, %v3153
      %v3185 = vadd.f32 %v3149, %v3153
      %v3186 = vadd.f32 %v3150, %v3153
      %v3187 = vxor.u32 %v3155, 2147483648
      %v3188 = vxor.u32 %v3156, 2147483648
      %v3189 = vxor.u32 %v3157, 2147483648
      %v3190 = vxor.u32 %v3158, 2147483648
      %v3191 = vxor.u32 %v3159, 2147483648
      %v3192 = vxor.u32 %v3160, 2147483648
      %v3193 = vxor.u32 %v3161, 2147483648
      %v3194 = vxor.u32 %v3162, 2147483648
      %v3195 = vxor.u32 %v3163, 2147483648
      %v3196 = vxor.u32 %v3164, 2147483648
      %v3197 = vxor.u32 %v3165, 2147483648
      %v3198 = vxor.u32 %v3166, 2147483648
      %v3199 = vxor.u32 %v3167, 2147483648
      %v3200 = vxor.u32 %v3168, 2147483648
      %v3201 = vxor.u32 %v3169, 2147483648
      %v3202 = vxor.u32 %v3170, 2147483648
      %v3203 = vxor.u32 %v3171, 2147483648
      %v3204 = vxor.u32 %v3172, 2147483648
      %v3205 = vxor.u32 %v3173, 2147483648
      %v3206 = vxor.u32 %v3174, 2147483648
      %v3207 = vxor.u32 %v3175, 2147483648
      %v3208 = vxor.u32 %v3176, 2147483648
      %v3209 = vxor.u32 %v3177, 2147483648
      %v3210 = vxor.u32 %v3178, 2147483648
      %v3211 = vxor.u32 %v3179, 2147483648
      %v3212 = vxor.u32 %v3180, 2147483648
      %v3213 = vxor.u32 %v3181, 2147483648
      %v3214 = vxor.u32 %v3182, 2147483648
      %v3215 = vxor.u32 %v3183, 2147483648
      %v3216 = vxor.u32 %v3184, 2147483648
      %v3217 = vxor.u32 %v3185, 2147483648
      %v3218 = vxor.u32 %v3186, 2147483648
      %v3219 = vmul.f32 %v3187, 1.442695
      %v3220 = vpow.pop %v3219
      %v3221 = vmul.f32 %v3188, 1.442695
      %v3222 = vpow.pop %v3221
      %v3223 = vmul.f32 %v3189, 1.442695
      %v3224 = vpow.pop %v3223
      %v3225 = vmul.f32 %v3190, 1.442695
      %v3226 = vpow.pop %v3225
      %v3227 = vmul.f32 %v3191, 1.442695
      %v3228 = vpow.pop %v3227
      %v3229 = vmul.f32 %v3192, 1.442695
      %v3230 = vpow.pop %v3229
      %v3231 = vmul.f32 %v3193, 1.442695
      %v3232 = vpow.pop %v3231
      %v3233 = vmul.f32 %v3194, 1.442695
      %v3234 = vpow.pop %v3233
      %v3235 = vmul.f32 %v3195, 1.442695
      %v3236 = vpow.pop %v3235
      %v3237 = vmul.f32 %v3196, 1.442695
      %v3238 = vpow.pop %v3237
      %v3239 = vmul.f32 %v3197, 1.442695
      %v3240 = vpow.pop %v3239
      %v3241 = vmul.f32 %v3198, 1.442695
      %v3242 = vpow.pop %v3241
      %v3243 = vmul.f32 %v3199, 1.442695
      %v3244 = vpow.pop %v3243
      %v3245 = vmul.f32 %v3200, 1.442695
      %v3246 = vpow.pop %v3245
      %v3247 = vmul.f32 %v3201, 1.442695
      %v3248 = vpow.pop %v3247
      %v3249 = vmul.f32 %v3202, 1.442695
      %v3250 = vpow.pop %v3249
      %v3251 = vmul.f32 %v3203, 1.442695
      %v3252 = vpow.pop %v3251
      %v3253 = vmul.f32 %v3204, 1.442695
      %v3254 = vpow.pop %v3253
      %v3255 = vmul.f32 %v3205, 1.442695
      %v3256 = vpow.pop %v3255
      %v3257 = vmul.f32 %v3206, 1.442695
      %v3258 = vpow.pop %v3257
      %v3259 = vmul.f32 %v3207, 1.442695
      %v3260 = vpow.pop %v3259
      %v3261 = vmul.f32 %v3208, 1.442695
      %v3262 = vpow.pop %v3261
      %v3263 = vmul.f32 %v3209, 1.442695
      %v3264 = vpow.pop %v3263
      %v3265 = vmul.f32 %v3210, 1.442695
      %v3266 = vpow.pop %v3265
      %v3267 = vmul.f32 %v3211, 1.442695
      %v3268 = vpow.pop %v3267
      %v3269 = vmul.f32 %v3212, 1.442695
      %v3270 = vpow.pop %v3269
      %v3271 = vmul.f32 %v3213, 1.442695
      %v3272 = vpow.pop %v3271
      %v3273 = vmul.f32 %v3214, 1.442695
      %v3274 = vpow.pop %v3273
      %v3275 = vmul.f32 %v3215, 1.442695
      %v3276 = vpow.pop %v3275
      %v3277 = vmul.f32 %v3216, 1.442695
      %v3278 = vpow.pop %v3277
      %v3279 = vmul.f32 %v3217, 1.442695
      %v3280 = vpow.pop %v3279
      %v3281 = vmul.f32 %v3218, 1.442695
      %v3282 = vpow.pop %v3281
      %v3283 = vadd.f32 %v3220, 1.0
      %v3284 = vadd.f32 %v3222, 1.0
      %v3285 = vadd.f32 %v3224, 1.0
      %v3286 = vadd.f32 %v3226, 1.0
      %v3287 = vadd.f32 %v3228, 1.0
      %v3288 = vadd.f32 %v3230, 1.0
      %v3289 = vadd.f32 %v3232, 1.0
      %v3290 = vadd.f32 %v3234, 1.0
      %v3291 = vadd.f32 %v3236, 1.0
      %v3292 = vadd.f32 %v3238, 1.0
      %v3293 = vadd.f32 %v3240, 1.0
      %v3294 = vadd.f32 %v3242, 1.0
      %v3295 = vadd.f32 %v3244, 1.0
      %v3296 = vadd.f32 %v3246, 1.0
      %v3297 = vadd.f32 %v3248, 1.0
      %v3298 = vadd.f32 %v3250, 1.0
      %v3299 = vadd.f32 %v3252, 1.0
      %v3300 = vadd.f32 %v3254, 1.0
      %v3301 = vadd.f32 %v3256, 1.0
      %v3302 = vadd.f32 %v3258, 1.0
      %v3303 = vadd.f32 %v3260, 1.0
      %v3304 = vadd.f32 %v3262, 1.0
      %v3305 = vadd.f32 %v3264, 1.0
      %v3306 = vadd.f32 %v3266, 1.0
      %v3307 = vadd.f32 %v3268, 1.0
      %v3308 = vadd.f32 %v3270, 1.0
      %v3309 = vadd.f32 %v3272, 1.0
      %v3310 = vadd.f32 %v3274, 1.0
      %v3311 = vadd.f32 %v3276, 1.0
      %v3312 = vadd.f32 %v3278, 1.0
      %v3313 = vadd.f32 %v3280, 1.0
      %v3314 = vadd.f32 %v3282, 1.0
      %v3315 = vrcp.pop %v3283
      %v3316 = vmul.f32 %v3283, %v3315
      %v3317 = vsub.f32 1.0, %v3316
      %v3318 = vmul.f32 %v3315, %v3317
      %v3319 = vadd.f32 %v3315, %v3318
      %vm3320 = vweird.f32 %v3283
      %vm3321 = vweird.f32 %v3315
      %vm3322 = vmor %vm3320, %vm3321
      %v3323 = vsel %vm3322, %v3315, %v3319
      %v3324 = vand.u32 2147483647, %v3283
      %vm3325 = vcmp.eq.f32.partialorder %v3324, 8.507059e+37
      %v3326 = vand.u32 %v3283, 2147483648
      %v3327 = vor.u32 1.1754944e-38, %v3326
      %v3328 = vsel %vm3325, %v3327, %v3323
      %v3329 = vmul.f32 1.0, %v3328
      %v3330 = vrcp.pop %v3284
      %v3331 = vmul.f32 %v3284, %v3330
      %v3332 = vsub.f32 1.0, %v3331
      %v3333 = vmul.f32 %v3330, %v3332
      %v3334 = vadd.f32 %v3330, %v3333
      %vm3335 = vweird.f32 %v3284
      %vm3336 = vweird.f32 %v3330
      %vm3337 = vmor %vm3335, %vm3336
      %v3338 = vsel %vm3337, %v3330, %v3334
      %v3339 = vand.u32 2147483647, %v3284
      %vm3340 = vcmp.eq.f32.partialorder %v3339, 8.507059e+37
      %v3341 = vand.u32 %v3284, 2147483648
      %v3342 = vor.u32 1.1754944e-38, %v3341
      %v3343 = vsel %vm3340, %v3342, %v3338
      %v3344 = vmul.f32 1.0, %v3343
      %v3345 = vrcp.pop %v3285
      %v3346 = vmul.f32 %v3285, %v3345
      %v3347 = vsub.f32 1.0, %v3346
      %v3348 = vmul.f32 %v3345, %v3347
      %v3349 = vadd.f32 %v3345, %v3348
      %vm3350 = vweird.f32 %v3285
      %vm3351 = vweird.f32 %v3345
      %vm3352 = vmor %vm3350, %vm3351
      %v3353 = vsel %vm3352, %v3345, %v3349
      %v3354 = vand.u32 2147483647, %v3285
      %vm3355 = vcmp.eq.f32.partialorder %v3354, 8.507059e+37
      %v3356 = vand.u32 %v3285, 2147483648
      %v3357 = vor.u32 1.1754944e-38, %v3356
      %v3358 = vsel %vm3355, %v3357, %v3353
      %v3359 = vmul.f32 1.0, %v3358
      %v3360 = vrcp.pop %v3286
      %v3361 = vmul.f32 %v3286, %v3360
      %v3362 = vsub.f32 1.0, %v3361
      %v3363 = vmul.f32 %v3360, %v3362
      %v3364 = vadd.f32 %v3360, %v3363
      %vm3365 = vweird.f32 %v3286
      %vm3366 = vweird.f32 %v3360
      %vm3367 = vmor %vm3365, %vm3366
      %v3368 = vsel %vm3367, %v3360, %v3364
      %v3369 = vand.u32 2147483647, %v3286
      %vm3370 = vcmp.eq.f32.partialorder %v3369, 8.507059e+37
      %v3371 = vand.u32 %v3286, 2147483648
      %v3372 = vor.u32 1.1754944e-38, %v3371
      %v3373 = vsel %vm3370, %v3372, %v3368
      %v3374 = vmul.f32 1.0, %v3373
      %v3375 = vrcp.pop %v3287
      %v3376 = vmul.f32 %v3287, %v3375
      %v3377 = vsub.f32 1.0, %v3376
      %v3378 = vmul.f32 %v3375, %v3377
      %v3379 = vadd.f32 %v3375, %v3378
      %vm3380 = vweird.f32 %v3287
      %vm3381 = vweird.f32 %v3375
      %vm3382 = vmor %vm3380, %vm3381
      %v3383 = vsel %vm3382, %v3375, %v3379
      %v3384 = vand.u32 2147483647, %v3287
      %vm3385 = vcmp.eq.f32.partialorder %v3384, 8.507059e+37
      %v3386 = vand.u32 %v3287, 2147483648
      %v3387 = vor.u32 1.1754944e-38, %v3386
      %v3388 = vsel %vm3385, %v3387, %v3383
      %v3389 = vmul.f32 1.0, %v3388
      %v3390 = vrcp.pop %v3288
      %v3391 = vmul.f32 %v3288, %v3390
      %v3392 = vsub.f32 1.0, %v3391
      %v3393 = vmul.f32 %v3390, %v3392
      %v3394 = vadd.f32 %v3390, %v3393
      %vm3395 = vweird.f32 %v3288
      %vm3396 = vweird.f32 %v3390
      %vm3397 = vmor %vm3395, %vm3396
      %v3398 = vsel %vm3397, %v3390, %v3394
      %v3399 = vand.u32 2147483647, %v3288
      %vm3400 = vcmp.eq.f32.partialorder %v3399, 8.507059e+37
      %v3401 = vand.u32 %v3288, 2147483648
      %v3402 = vor.u32 1.1754944e-38, %v3401
      %v3403 = vsel %vm3400, %v3402, %v3398
      %v3404 = vmul.f32 1.0, %v3403
      %v3405 = vrcp.pop %v3289
      %v3406 = vmul.f32 %v3289, %v3405
      %v3407 = vsub.f32 1.0, %v3406
      %v3408 = vmul.f32 %v3405, %v3407
      %v3409 = vadd.f32 %v3405, %v3408
      %vm3410 = vweird.f32 %v3289
      %vm3411 = vweird.f32 %v3405
      %vm3412 = vmor %vm3410, %vm3411
      %v3413 = vsel %vm3412, %v3405, %v3409
      %v3414 = vand.u32 2147483647, %v3289
      %vm3415 = vcmp.eq.f32.partialorder %v3414, 8.507059e+37
      %v3416 = vand.u32 %v3289, 2147483648
      %v3417 = vor.u32 1.1754944e-38, %v3416
      %v3418 = vsel %vm3415, %v3417, %v3413
      %v3419 = vmul.f32 1.0, %v3418
      %v3420 = vrcp.pop %v3290
      %v3421 = vmul.f32 %v3290, %v3420
      %v3422 = vsub.f32 1.0, %v3421
      %v3423 = vmul.f32 %v3420, %v3422
      %v3424 = vadd.f32 %v3420, %v3423
      %vm3425 = vweird.f32 %v3290
      %vm3426 = vweird.f32 %v3420
      %vm3427 = vmor %vm3425, %vm3426
      %v3428 = vsel %vm3427, %v3420, %v3424
      %v3429 = vand.u32 2147483647, %v3290
      %vm3430 = vcmp.eq.f32.partialorder %v3429, 8.507059e+37
      %v3431 = vand.u32 %v3290, 2147483648
      %v3432 = vor.u32 1.1754944e-38, %v3431
      %v3433 = vsel %vm3430, %v3432, %v3428
      %v3434 = vmul.f32 1.0, %v3433
      %v3435 = vrcp.pop %v3291
      %v3436 = vmul.f32 %v3291, %v3435
      %v3437 = vsub.f32 1.0, %v3436
      %v3438 = vmul.f32 %v3435, %v3437
      %v3439 = vadd.f32 %v3435, %v3438
      %vm3440 = vweird.f32 %v3291
      %vm3441 = vweird.f32 %v3435
      %vm3442 = vmor %vm3440, %vm3441
      %v3443 = vsel %vm3442, %v3435, %v3439
      %v3444 = vand.u32 2147483647, %v3291
      %vm3445 = vcmp.eq.f32.partialorder %v3444, 8.507059e+37
      %v3446 = vand.u32 %v3291, 2147483648
      %v3447 = vor.u32 1.1754944e-38, %v3446
      %v3448 = vsel %vm3445, %v3447, %v3443
      %v3449 = vmul.f32 1.0, %v3448
      %v3450 = vrcp.pop %v3292
      %v3451 = vmul.f32 %v3292, %v3450
      %v3452 = vsub.f32 1.0, %v3451
      %v3453 = vmul.f32 %v3450, %v3452
      %v3454 = vadd.f32 %v3450, %v3453
      %vm3455 = vweird.f32 %v3292
      %vm3456 = vweird.f32 %v3450
      %vm3457 = vmor %vm3455, %vm3456
      %v3458 = vsel %vm3457, %v3450, %v3454
      %v3459 = vand.u32 2147483647, %v3292
      %vm3460 = vcmp.eq.f32.partialorder %v3459, 8.507059e+37
      %v3461 = vand.u32 %v3292, 2147483648
      %v3462 = vor.u32 1.1754944e-38, %v3461
      %v3463 = vsel %vm3460, %v3462, %v3458
      %v3464 = vmul.f32 1.0, %v3463
      %v3465 = vrcp.pop %v3293
      %v3466 = vmul.f32 %v3293, %v3465
      %v3467 = vsub.f32 1.0, %v3466
      %v3468 = vmul.f32 %v3465, %v3467
      %v3469 = vadd.f32 %v3465, %v3468
      %vm3470 = vweird.f32 %v3293
      %vm3471 = vweird.f32 %v3465
      %vm3472 = vmor %vm3470, %vm3471
      %v3473 = vsel %vm3472, %v3465, %v3469
      %v3474 = vand.u32 2147483647, %v3293
      %vm3475 = vcmp.eq.f32.partialorder %v3474, 8.507059e+37
      %v3476 = vand.u32 %v3293, 2147483648
      %v3477 = vor.u32 1.1754944e-38, %v3476
      %v3478 = vsel %vm3475, %v3477, %v3473
      %v3479 = vmul.f32 1.0, %v3478
      %v3480 = vrcp.pop %v3294
      %v3481 = vmul.f32 %v3294, %v3480
      %v3482 = vsub.f32 1.0, %v3481
      %v3483 = vmul.f32 %v3480, %v3482
      %v3484 = vadd.f32 %v3480, %v3483
      %vm3485 = vweird.f32 %v3294
      %vm3486 = vweird.f32 %v3480
      %vm3487 = vmor %vm3485, %vm3486
      %v3488 = vsel %vm3487, %v3480, %v3484
      %v3489 = vand.u32 2147483647, %v3294
      %vm3490 = vcmp.eq.f32.partialorder %v3489, 8.507059e+37
      %v3491 = vand.u32 %v3294, 2147483648
      %v3492 = vor.u32 1.1754944e-38, %v3491
      %v3493 = vsel %vm3490, %v3492, %v3488
      %v3494 = vmul.f32 1.0, %v3493
      %v3495 = vrcp.pop %v3295
      %v3496 = vmul.f32 %v3295, %v3495
      %v3497 = vsub.f32 1.0, %v3496
      %v3498 = vmul.f32 %v3495, %v3497
      %v3499 = vadd.f32 %v3495, %v3498
      %vm3500 = vweird.f32 %v3295
      %vm3501 = vweird.f32 %v3495
      %vm3502 = vmor %vm3500, %vm3501
      %v3503 = vsel %vm3502, %v3495, %v3499
      %v3504 = vand.u32 2147483647, %v3295
      %vm3505 = vcmp.eq.f32.partialorder %v3504, 8.507059e+37
      %v3506 = vand.u32 %v3295, 2147483648
      %v3507 = vor.u32 1.1754944e-38, %v3506
      %v3508 = vsel %vm3505, %v3507, %v3503
      %v3509 = vmul.f32 1.0, %v3508
      %v3510 = vrcp.pop %v3296
      %v3511 = vmul.f32 %v3296, %v3510
      %v3512 = vsub.f32 1.0, %v3511
      %v3513 = vmul.f32 %v3510, %v3512
      %v3514 = vadd.f32 %v3510, %v3513
      %vm3515 = vweird.f32 %v3296
      %vm3516 = vweird.f32 %v3510
      %vm3517 = vmor %vm3515, %vm3516
      %v3518 = vsel %vm3517, %v3510, %v3514
      %v3519 = vand.u32 2147483647, %v3296
      %vm3520 = vcmp.eq.f32.partialorder %v3519, 8.507059e+37
      %v3521 = vand.u32 %v3296, 2147483648
      %v3522 = vor.u32 1.1754944e-38, %v3521
      %v3523 = vsel %vm3520, %v3522, %v3518
      %v3524 = vmul.f32 1.0, %v3523
      %v3525 = vrcp.pop %v3297
      %v3526 = vmul.f32 %v3297, %v3525
      %v3527 = vsub.f32 1.0, %v3526
      %v3528 = vmul.f32 %v3525, %v3527
      %v3529 = vadd.f32 %v3525, %v3528
      %vm3530 = vweird.f32 %v3297
      %vm3531 = vweird.f32 %v3525
      %vm3532 = vmor %vm3530, %vm3531
      %v3533 = vsel %vm3532, %v3525, %v3529
      %v3534 = vand.u32 2147483647, %v3297
      %vm3535 = vcmp.eq.f32.partialorder %v3534, 8.507059e+37
      %v3536 = vand.u32 %v3297, 2147483648
      %v3537 = vor.u32 1.1754944e-38, %v3536
      %v3538 = vsel %vm3535, %v3537, %v3533
      %v3539 = vmul.f32 1.0, %v3538
      %v3540 = vrcp.pop %v3298
      %v3541 = vmul.f32 %v3298, %v3540
      %v3542 = vsub.f32 1.0, %v3541
      %v3543 = vmul.f32 %v3540, %v3542
      %v3544 = vadd.f32 %v3540, %v3543
      %vm3545 = vweird.f32 %v3298
      %vm3546 = vweird.f32 %v3540
      %vm3547 = vmor %vm3545, %vm3546
      %v3548 = vsel %vm3547, %v3540, %v3544
      %v3549 = vand.u32 2147483647, %v3298
      %vm3550 = vcmp.eq.f32.partialorder %v3549, 8.507059e+37
      %v3551 = vand.u32 %v3298, 2147483648
      %v3552 = vor.u32 1.1754944e-38, %v3551
      %v3553 = vsel %vm3550, %v3552, %v3548
      %v3554 = vmul.f32 1.0, %v3553
      %v3555 = vrcp.pop %v3299
      %v3556 = vmul.f32 %v3299, %v3555
      %v3557 = vsub.f32 1.0, %v3556
      %v3558 = vmul.f32 %v3555, %v3557
      %v3559 = vadd.f32 %v3555, %v3558
      %vm3560 = vweird.f32 %v3299
      %vm3561 = vweird.f32 %v3555
      %vm3562 = vmor %vm3560, %vm3561
      %v3563 = vsel %vm3562, %v3555, %v3559
      %v3564 = vand.u32 2147483647, %v3299
      %vm3565 = vcmp.eq.f32.partialorder %v3564, 8.507059e+37
      %v3566 = vand.u32 %v3299, 2147483648
      %v3567 = vor.u32 1.1754944e-38, %v3566
      %v3568 = vsel %vm3565, %v3567, %v3563
      %v3569 = vmul.f32 1.0, %v3568
      %v3570 = vrcp.pop %v3300
      %v3571 = vmul.f32 %v3300, %v3570
      %v3572 = vsub.f32 1.0, %v3571
      %v3573 = vmul.f32 %v3570, %v3572
      %v3574 = vadd.f32 %v3570, %v3573
      %vm3575 = vweird.f32 %v3300
      %vm3576 = vweird.f32 %v3570
      %vm3577 = vmor %vm3575, %vm3576
      %v3578 = vsel %vm3577, %v3570, %v3574
      %v3579 = vand.u32 2147483647, %v3300
      %vm3580 = vcmp.eq.f32.partialorder %v3579, 8.507059e+37
      %v3581 = vand.u32 %v3300, 2147483648
      %v3582 = vor.u32 1.1754944e-38, %v3581
      %v3583 = vsel %vm3580, %v3582, %v3578
      %v3584 = vmul.f32 1.0, %v3583
      %v3585 = vrcp.pop %v3301
      %v3586 = vmul.f32 %v3301, %v3585
      %v3587 = vsub.f32 1.0, %v3586
      %v3588 = vmul.f32 %v3585, %v3587
      %v3589 = vadd.f32 %v3585, %v3588
      %vm3590 = vweird.f32 %v3301
      %vm3591 = vweird.f32 %v3585
      %vm3592 = vmor %vm3590, %vm3591
      %v3593 = vsel %vm3592, %v3585, %v3589
      %v3594 = vand.u32 2147483647, %v3301
      %vm3595 = vcmp.eq.f32.partialorder %v3594, 8.507059e+37
      %v3596 = vand.u32 %v3301, 2147483648
      %v3597 = vor.u32 1.1754944e-38, %v3596
      %v3598 = vsel %vm3595, %v3597, %v3593
      %v3599 = vmul.f32 1.0, %v3598
      %v3600 = vrcp.pop %v3302
      %v3601 = vmul.f32 %v3302, %v3600
      %v3602 = vsub.f32 1.0, %v3601
      %v3603 = vmul.f32 %v3600, %v3602
      %v3604 = vadd.f32 %v3600, %v3603
      %vm3605 = vweird.f32 %v3302
      %vm3606 = vweird.f32 %v3600
      %vm3607 = vmor %vm3605, %vm3606
      %v3608 = vsel %vm3607, %v3600, %v3604
      %v3609 = vand.u32 2147483647, %v3302
      %vm3610 = vcmp.eq.f32.partialorder %v3609, 8.507059e+37
      %v3611 = vand.u32 %v3302, 2147483648
      %v3612 = vor.u32 1.1754944e-38, %v3611
      %v3613 = vsel %vm3610, %v3612, %v3608
      %v3614 = vmul.f32 1.0, %v3613
      %v3615 = vrcp.pop %v3303
      %v3616 = vmul.f32 %v3303, %v3615
      %v3617 = vsub.f32 1.0, %v3616
      %v3618 = vmul.f32 %v3615, %v3617
      %v3619 = vadd.f32 %v3615, %v3618
      %vm3620 = vweird.f32 %v3303
      %vm3621 = vweird.f32 %v3615
      %vm3622 = vmor %vm3620, %vm3621
      %v3623 = vsel %vm3622, %v3615, %v3619
      %v3624 = vand.u32 2147483647, %v3303
      %vm3625 = vcmp.eq.f32.partialorder %v3624, 8.507059e+37
      %v3626 = vand.u32 %v3303, 2147483648
      %v3627 = vor.u32 1.1754944e-38, %v3626
      %v3628 = vsel %vm3625, %v3627, %v3623
      %v3629 = vmul.f32 1.0, %v3628
      %v3630 = vrcp.pop %v3304
      %v3631 = vmul.f32 %v3304, %v3630
      %v3632 = vsub.f32 1.0, %v3631
      %v3633 = vmul.f32 %v3630, %v3632
      %v3634 = vadd.f32 %v3630, %v3633
      %vm3635 = vweird.f32 %v3304
      %vm3636 = vweird.f32 %v3630
      %vm3637 = vmor %vm3635, %vm3636
      %v3638 = vsel %vm3637, %v3630, %v3634
      %v3639 = vand.u32 2147483647, %v3304
      %vm3640 = vcmp.eq.f32.partialorder %v3639, 8.507059e+37
      %v3641 = vand.u32 %v3304, 2147483648
      %v3642 = vor.u32 1.1754944e-38, %v3641
      %v3643 = vsel %vm3640, %v3642, %v3638
      %v3644 = vmul.f32 1.0, %v3643
      %v3645 = vrcp.pop %v3305
      %v3646 = vmul.f32 %v3305, %v3645
      %v3647 = vsub.f32 1.0, %v3646
      %v3648 = vmul.f32 %v3645, %v3647
      %v3649 = vadd.f32 %v3645, %v3648
      %vm3650 = vweird.f32 %v3305
      %vm3651 = vweird.f32 %v3645
      %vm3652 = vmor %vm3650, %vm3651
      %v3653 = vsel %vm3652, %v3645, %v3649
      %v3654 = vand.u32 2147483647, %v3305
      %vm3655 = vcmp.eq.f32.partialorder %v3654, 8.507059e+37
      %v3656 = vand.u32 %v3305, 2147483648
      %v3657 = vor.u32 1.1754944e-38, %v3656
      %v3658 = vsel %vm3655, %v3657, %v3653
      %v3659 = vmul.f32 1.0, %v3658
      %v3660 = vrcp.pop %v3306
      %v3661 = vmul.f32 %v3306, %v3660
      %v3662 = vsub.f32 1.0, %v3661
      %v3663 = vmul.f32 %v3660, %v3662
      %v3664 = vadd.f32 %v3660, %v3663
      %vm3665 = vweird.f32 %v3306
      %vm3666 = vweird.f32 %v3660
      %vm3667 = vmor %vm3665, %vm3666
      %v3668 = vsel %vm3667, %v3660, %v3664
      %v3669 = vand.u32 2147483647, %v3306
      %vm3670 = vcmp.eq.f32.partialorder %v3669, 8.507059e+37
      %v3671 = vand.u32 %v3306, 2147483648
      %v3672 = vor.u32 1.1754944e-38, %v3671
      %v3673 = vsel %vm3670, %v3672, %v3668
      %v3674 = vmul.f32 1.0, %v3673
      %v3675 = vrcp.pop %v3307
      %v3676 = vmul.f32 %v3307, %v3675
      %v3677 = vsub.f32 1.0, %v3676
      %v3678 = vmul.f32 %v3675, %v3677
      %v3679 = vadd.f32 %v3675, %v3678
      %vm3680 = vweird.f32 %v3307
      %vm3681 = vweird.f32 %v3675
      %vm3682 = vmor %vm3680, %vm3681
      %v3683 = vsel %vm3682, %v3675, %v3679
      %v3684 = vand.u32 2147483647, %v3307
      %vm3685 = vcmp.eq.f32.partialorder %v3684, 8.507059e+37
      %v3686 = vand.u32 %v3307, 2147483648
      %v3687 = vor.u32 1.1754944e-38, %v3686
      %v3688 = vsel %vm3685, %v3687, %v3683
      %v3689 = vmul.f32 1.0, %v3688
      %v3690 = vrcp.pop %v3308
      %v3691 = vmul.f32 %v3308, %v3690
      %v3692 = vsub.f32 1.0, %v3691
      %v3693 = vmul.f32 %v3690, %v3692
      %v3694 = vadd.f32 %v3690, %v3693
      %vm3695 = vweird.f32 %v3308
      %vm3696 = vweird.f32 %v3690
      %vm3697 = vmor %vm3695, %vm3696
      %v3698 = vsel %vm3697, %v3690, %v3694
      %v3699 = vand.u32 2147483647, %v3308
      %vm3700 = vcmp.eq.f32.partialorder %v3699, 8.507059e+37
      %v3701 = vand.u32 %v3308, 2147483648
      %v3702 = vor.u32 1.1754944e-38, %v3701
      %v3703 = vsel %vm3700, %v3702, %v3698
      %v3704 = vmul.f32 1.0, %v3703
      %v3705 = vrcp.pop %v3309
      %v3706 = vmul.f32 %v3309, %v3705
      %v3707 = vsub.f32 1.0, %v3706
      %v3708 = vmul.f32 %v3705, %v3707
      %v3709 = vadd.f32 %v3705, %v3708
      %vm3710 = vweird.f32 %v3309
      %vm3711 = vweird.f32 %v3705
      %vm3712 = vmor %vm3710, %vm3711
      %v3713 = vsel %vm3712, %v3705, %v3709
      %v3714 = vand.u32 2147483647, %v3309
      %vm3715 = vcmp.eq.f32.partialorder %v3714, 8.507059e+37
      %v3716 = vand.u32 %v3309, 2147483648
      %v3717 = vor.u32 1.1754944e-38, %v3716
      %v3718 = vsel %vm3715, %v3717, %v3713
      %v3719 = vmul.f32 1.0, %v3718
      %v3720 = vrcp.pop %v3310
      %v3721 = vmul.f32 %v3310, %v3720
      %v3722 = vsub.f32 1.0, %v3721
      %v3723 = vmul.f32 %v3720, %v3722
      %v3724 = vadd.f32 %v3720, %v3723
      %vm3725 = vweird.f32 %v3310
      %vm3726 = vweird.f32 %v3720
      %vm3727 = vmor %vm3725, %vm3726
      %v3728 = vsel %vm3727, %v3720, %v3724
      %v3729 = vand.u32 2147483647, %v3310
      %vm3730 = vcmp.eq.f32.partialorder %v3729, 8.507059e+37
      %v3731 = vand.u32 %v3310, 2147483648
      %v3732 = vor.u32 1.1754944e-38, %v3731
      %v3733 = vsel %vm3730, %v3732, %v3728
      %v3734 = vmul.f32 1.0, %v3733
      %v3735 = vrcp.pop %v3311
      %v3736 = vmul.f32 %v3311, %v3735
      %v3737 = vsub.f32 1.0, %v3736
      %v3738 = vmul.f32 %v3735, %v3737
      %v3739 = vadd.f32 %v3735, %v3738
      %vm3740 = vweird.f32 %v3311
      %vm3741 = vweird.f32 %v3735
      %vm3742 = vmor %vm3740, %vm3741
      %v3743 = vsel %vm3742, %v3735, %v3739
      %v3744 = vand.u32 2147483647, %v3311
      %vm3745 = vcmp.eq.f32.partialorder %v3744, 8.507059e+37
      %v3746 = vand.u32 %v3311, 2147483648
      %v3747 = vor.u32 1.1754944e-38, %v3746
      %v3748 = vsel %vm3745, %v3747, %v3743
      %v3749 = vmul.f32 1.0, %v3748
      %v3750 = vrcp.pop %v3312
      %v3751 = vmul.f32 %v3312, %v3750
      %v3752 = vsub.f32 1.0, %v3751
      %v3753 = vmul.f32 %v3750, %v3752
      %v3754 = vadd.f32 %v3750, %v3753
      %vm3755 = vweird.f32 %v3312
      %vm3756 = vweird.f32 %v3750
      %vm3757 = vmor %vm3755, %vm3756
      %v3758 = vsel %vm3757, %v3750, %v3754
      %v3759 = vand.u32 2147483647, %v3312
      %vm3760 = vcmp.eq.f32.partialorder %v3759, 8.507059e+37
      %v3761 = vand.u32 %v3312, 2147483648
      %v3762 = vor.u32 1.1754944e-38, %v3761
      %v3763 = vsel %vm3760, %v3762, %v3758
      %v3764 = vmul.f32 1.0, %v3763
      %v3765 = vrcp.pop %v3313
      %v3766 = vmul.f32 %v3313, %v3765
      %v3767 = vsub.f32 1.0, %v3766
      %v3768 = vmul.f32 %v3765, %v3767
      %v3769 = vadd.f32 %v3765, %v3768
      %vm3770 = vweird.f32 %v3313
      %vm3771 = vweird.f32 %v3765
      %vm3772 = vmor %vm3770, %vm3771
      %v3773 = vsel %vm3772, %v3765, %v3769
      %v3774 = vand.u32 2147483647, %v3313
      %vm3775 = vcmp.eq.f32.partialorder %v3774, 8.507059e+37
      %v3776 = vand.u32 %v3313, 2147483648
      %v3777 = vor.u32 1.1754944e-38, %v3776
      %v3778 = vsel %vm3775, %v3777, %v3773
      %v3779 = vmul.f32 1.0, %v3778
      %v3780 = vrcp.pop %v3314
      %v3781 = vmul.f32 %v3314, %v3780
      %v3782 = vsub.f32 1.0, %v3781
      %v3783 = vmul.f32 %v3780, %v3782
      %v3784 = vadd.f32 %v3780, %v3783
      %vm3785 = vweird.f32 %v3314
      %vm3786 = vweird.f32 %v3780
      %vm3787 = vmor %vm3785, %vm3786
      %v3788 = vsel %vm3787, %v3780, %v3784
      %v3789 = vand.u32 2147483647, %v3314
      %vm3790 = vcmp.eq.f32.partialorder %v3789, 8.507059e+37
      %v3791 = vand.u32 %v3314, 2147483648
      %v3792 = vor.u32 1.1754944e-38, %v3791
      %v3793 = vsel %vm3790, %v3792, %v3788
      %v3794 = vmul.f32 1.0, %v3793
      %v3795 = vmul.f32 %v3155, %v3329
      %v3796 = vmul.f32 %v3156, %v3344
      %v3797 = vmul.f32 %v3157, %v3359
      %v3798 = vmul.f32 %v3158, %v3374
      %v3799 = vmul.f32 %v3159, %v3389
      %v3800 = vmul.f32 %v3160, %v3404
      %v3801 = vmul.f32 %v3161, %v3419
      %v3802 = vmul.f32 %v3162, %v3434
      %v3803 = vmul.f32 %v3163, %v3449
      %v3804 = vmul.f32 %v3164, %v3464
      %v3805 = vmul.f32 %v3165, %v3479
      %v3806 = vmul.f32 %v3166, %v3494
      %v3807 = vmul.f32 %v3167, %v3509
      %v3808 = vmul.f32 %v3168, %v3524
      %v3809 = vmul.f32 %v3169, %v3539
      %v3810 = vmul.f32 %v3170, %v3554
      %v3811 = vmul.f32 %v3171, %v3569
      %v3812 = vmul.f32 %v3172, %v3584
      %v3813 = vmul.f32 %v3173, %v3599
      %v3814 = vmul.f32 %v3174, %v3614
      %v3815 = vmul.f32 %v3175, %v3629
      %v3816 = vmul.f32 %v3176, %v3644
      %v3817 = vmul.f32 %v3177, %v3659
      %v3818 = vmul.f32 %v3178, %v3674
      %v3819 = vmul.f32 %v3179, %v3689
      %v3820 = vmul.f32 %v3180, %v3704
      %v3821 = vmul.f32 %v3181, %v3719
      %v3822 = vmul.f32 %v3182, %v3734
      %v3823 = vmul.f32 %v3183, %v3749
      %v3824 = vmul.f32 %v3184, %v3764
      %v3825 = vmul.f32 %v3185, %v3779
      %v3826 = vmul.f32 %v3186, %v3794
      %v3827 = vld [vmem:[%s5] sm:$0xff]
      %v3828 = vld [vmem:[%s5 + $0x8] sm:$0xff]
      %v3829 = vld [vmem:[%s5 + $0x10] sm:$0xff]
      %v3830 = vld [vmem:[%s5 + $0x18] sm:$0xff]
      %v3831 = vld [vmem:[%s5 + $0x20] sm:$0xff]
      %v3832 = vld [vmem:[%s5 + $0x28] sm:$0xff]
      %v3833 = vld [vmem:[%s5 + $0x30] sm:$0xff]
      %v3834 = vld [vmem:[%s5 + $0x38] sm:$0xff]
      %v3835 = vld [vmem:[%s5 + $0x40] sm:$0xff]
      %v3836 = vld [vmem:[%s5 + $0x48] sm:$0xff]
      %v3837 = vld [vmem:[%s5 + $0x50] sm:$0xff]
      %v3838 = vld [vmem:[%s5 + $0x58] sm:$0xff]
      %v3839 = vld [vmem:[%s5 + $0x60] sm:$0xff]
      %v3840 = vld [vmem:[%s5 + $0x68] sm:$0xff]
      %v3841 = vld [vmem:[%s5 + $0x70] sm:$0xff]
      %v3842 = vld [vmem:[%s5 + $0x78] sm:$0xff]
      %v3843 = vld [vmem:[%s6] sm:$0xff]
      %v3844 = vld [vmem:[%s6 + $0x8] sm:$0xff]
      %v3845 = vld [vmem:[%s6 + $0x10] sm:$0xff]
      %v3846 = vld [vmem:[%s6 + $0x18] sm:$0xff]
      %v3847 = vld [vmem:[%s6 + $0x20] sm:$0xff]
      %v3848 = vld [vmem:[%s6 + $0x28] sm:$0xff]
      %v3849 = vld [vmem:[%s6 + $0x30] sm:$0xff]
      %v3850 = vld [vmem:[%s6 + $0x38] sm:$0xff]
      %v3851 = vld [vmem:[%s6 + $0x40] sm:$0xff]
      %v3852 = vld [vmem:[%s6 + $0x48] sm:$0xff]
      %v3853 = vld [vmem:[%s6 + $0x50] sm:$0xff]
      %v3854 = vld [vmem:[%s6 + $0x58] sm:$0xff]
      %v3855 = vld [vmem:[%s6 + $0x60] sm:$0xff]
      %v3856 = vld [vmem:[%s6 + $0x68] sm:$0xff]
      %v3857 = vld [vmem:[%s6 + $0x70] sm:$0xff]
      %v3858 = vld [vmem:[%s6 + $0x78] sm:$0xff]
      %3859 = vmatpush.msra.mxu0 %v3858
      %3860 = vmatpush.msra.mxu0 %v3857
      %3861 = vmatpush.msra.mxu0 %v3856
      %3862 = vmatpush.msra.mxu0 %v3855
      %3863 = vmatpush.msra.mxu0 %v3854
      %3864 = vmatpush.msra.mxu0 %v3853
      %3865 = vmatpush.msra.mxu0 %v3852
      %3866 = vmatpush.msra.mxu0 %v3851
      %3867 = vmatpush.msra.mxu0 %v3850
      %3868 = vmatpush.msra.mxu0 %v3849
      %3869 = vmatpush.msra.mxu0 %v3848
      %3870 = vmatpush.msra.mxu0 %v3847
      %3871 = vmatpush.msra.mxu0 %v3846
      %3872 = vmatpush.msra.mxu0 %v3845
      %3873 = vmatpush.msra.mxu0 %v3844
      %3874 = vmatpush.msra.mxu0 %v3843
      %3875 = vmatmul.f32.gmra.mxu0 %v3795
      %v3876 = vpop.f32.mrf.mxu0
      %v3877 = vadd.f32 0.0, %v3876
      %3878 = vmatmul.f32.gmra.mxu0 %v3796
      %v3879 = vpop.f32.mrf.mxu0
      %v3880 = vadd.f32 0.0, %v3879
      %3881 = vmatmul.f32.gmra.mxu0 %v3797
      %v3882 = vpop.f32.mrf.mxu0
      %v3883 = vadd.f32 0.0, %v3882
      %3884 = vmatmul.f32.gmra.mxu0 %v3798
      %v3885 = vpop.f32.mrf.mxu0
      %v3886 = vadd.f32 0.0, %v3885
      %3887 = vmatmul.f32.gmra.mxu0 %v3799
      %v3888 = vpop.f32.mrf.mxu0
      %v3889 = vadd.f32 0.0, %v3888
      %3890 = vmatmul.f32.gmra.mxu0 %v3800
      %v3891 = vpop.f32.mrf.mxu0
      %v3892 = vadd.f32 0.0, %v3891
      %3893 = vmatmul.f32.gmra.mxu0 %v3801
      %v3894 = vpop.f32.mrf.mxu0
      %v3895 = vadd.f32 0.0, %v3894
      %3896 = vmatmul.f32.gmra.mxu0 %v3802
      %v3897 = vpop.f32.mrf.mxu0
      %v3898 = vadd.f32 0.0, %v3897
      %3899 = vmatmul.f32.gmra.mxu0 %v3803
      %v3900 = vpop.f32.mrf.mxu0
      %v3901 = vadd.f32 0.0, %v3900
      %3902 = vmatmul.f32.gmra.mxu0 %v3804
      %v3903 = vpop.f32.mrf.mxu0
      %v3904 = vadd.f32 0.0, %v3903
      %3905 = vmatmul.f32.gmra.mxu0 %v3805
      %v3906 = vpop.f32.mrf.mxu0
      %v3907 = vadd.f32 0.0, %v3906
      %3908 = vmatmul.f32.gmra.mxu0 %v3806
      %v3909 = vpop.f32.mrf.mxu0
      %v3910 = vadd.f32 0.0, %v3909
      %3911 = vmatmul.f32.gmra.mxu0 %v3807
      %v3912 = vpop.f32.mrf.mxu0
      %v3913 = vadd.f32 0.0, %v3912
      %3914 = vmatmul.f32.gmra.mxu0 %v3808
      %v3915 = vpop.f32.mrf.mxu0
      %v3916 = vadd.f32 0.0, %v3915
      %3917 = vmatmul.f32.gmra.mxu0 %v3809
      %v3918 = vpop.f32.mrf.mxu0
      %v3919 = vadd.f32 0.0, %v3918
      %3920 = vmatmul.f32.gmra.mxu0 %v3810
      %v3921 = vpop.f32.mrf.mxu0
      %v3922 = vadd.f32 0.0, %v3921
      %3923 = vmatmul.f32.gmra.mxu0 %v3811
      %v3924 = vpop.f32.mrf.mxu0
      %v3925 = vadd.f32 0.0, %v3924
      %3926 = vmatmul.f32.gmra.mxu0 %v3812
      %v3927 = vpop.f32.mrf.mxu0
      %v3928 = vadd.f32 0.0, %v3927
      %3929 = vmatmul.f32.gmra.mxu0 %v3813
      %v3930 = vpop.f32.mrf.mxu0
      %v3931 = vadd.f32 0.0, %v3930
      %3932 = vmatmul.f32.gmra.mxu0 %v3814
      %v3933 = vpop.f32.mrf.mxu0
      %v3934 = vadd.f32 0.0, %v3933
      %3935 = vmatmul.f32.gmra.mxu0 %v3815
      %v3936 = vpop.f32.mrf.mxu0
      %v3937 = vadd.f32 0.0, %v3936
      %3938 = vmatmul.f32.gmra.mxu0 %v3816
      %v3939 = vpop.f32.mrf.mxu0
      %v3940 = vadd.f32 0.0, %v3939
      %3941 = vmatmul.f32.gmra.mxu0 %v3817
      %v3942 = vpop.f32.mrf.mxu0
      %v3943 = vadd.f32 0.0, %v3942
      %3944 = vmatmul.f32.gmra.mxu0 %v3818
      %v3945 = vpop.f32.mrf.mxu0
      %v3946 = vadd.f32 0.0, %v3945
      %3947 = vmatmul.f32.gmra.mxu0 %v3819
      %v3948 = vpop.f32.mrf.mxu0
      %v3949 = vadd.f32 0.0, %v3948
      %3950 = vmatmul.f32.gmra.mxu0 %v3820
      %v3951 = vpop.f32.mrf.mxu0
      %v3952 = vadd.f32 0.0, %v3951
      %3953 = vmatmul.f32.gmra.mxu0 %v3821
      %v3954 = vpop.f32.mrf.mxu0
      %v3955 = vadd.f32 0.0, %v3954
      %3956 = vmatmul.f32.gmra.mxu0 %v3822
      %v3957 = vpop.f32.mrf.mxu0
      %v3958 = vadd.f32 0.0, %v3957
      %3959 = vmatmul.f32.gmra.mxu0 %v3823
      %v3960 = vpop.f32.mrf.mxu0
      %v3961 = vadd.f32 0.0, %v3960
      %3962 = vmatmul.f32.gmra.mxu0 %v3824
      %v3963 = vpop.f32.mrf.mxu0
      %v3964 = vadd.f32 0.0, %v3963
      %3965 = vmatmul.f32.gmra.mxu0 %v3825
      %v3966 = vpop.f32.mrf.mxu0
      %v3967 = vadd.f32 0.0, %v3966
      %3968 = vmatmul.f32.gmra.mxu0 %v3826
      %v3969 = vpop.f32.mrf.mxu0
      %v3970 = vadd.f32 0.0, %v3969
      %3971 = vdwg.mxu0
      %3972 = vmatpush.msra.mxu0 %v3842
      %3973 = vmatpush.msra.mxu0 %v3841
      %3974 = vmatpush.msra.mxu0 %v3840
      %3975 = vmatpush.msra.mxu0 %v3839
      %3976 = vmatpush.msra.mxu0 %v3838
      %3977 = vmatpush.msra.mxu0 %v3837
      %3978 = vmatpush.msra.mxu0 %v3836
      %3979 = vmatpush.msra.mxu0 %v3835
      %3980 = vmatpush.msra.mxu0 %v3834
      %3981 = vmatpush.msra.mxu0 %v3833
      %3982 = vmatpush.msra.mxu0 %v3832
      %3983 = vmatpush.msra.mxu0 %v3831
      %3984 = vmatpush.msra.mxu0 %v3830
      %3985 = vmatpush.msra.mxu0 %v3829
      %3986 = vmatpush.msra.mxu0 %v3828
      %3987 = vmatpush.msra.mxu0 %v3827
      %3988 = vmatmul.f32.gmra.mxu0 %v1215
      %v3989 = vpop.f32.mrf.mxu0
      %v3990 = vadd.f32 %v3877, %v3989
      %3991 = vmatmul.f32.gmra.mxu0 %v1216
      %v3992 = vpop.f32.mrf.mxu0
      %v3993 = vadd.f32 %v3880, %v3992
      %3994 = vmatmul.f32.gmra.mxu0 %v1217
      %v3995 = vpop.f32.mrf.mxu0
      %v3996 = vadd.f32 %v3883, %v3995
      %3997 = vmatmul.f32.gmra.mxu0 %v1218
      %v3998 = vpop.f32.mrf.mxu0
      %v3999 = vadd.f32 %v3886, %v3998
      %4000 = vmatmul.f32.gmra.mxu0 %v1219
      %v4001 = vpop.f32.mrf.mxu0
      %v4002 = vadd.f32 %v3889, %v4001
      %4003 = vmatmul.f32.gmra.mxu0 %v1220
      %v4004 = vpop.f32.mrf.mxu0
      %v4005 = vadd.f32 %v3892, %v4004
      %4006 = vmatmul.f32.gmra.mxu0 %v1221
      %v4007 = vpop.f32.mrf.mxu0
      %v4008 = vadd.f32 %v3895, %v4007
      %4009 = vmatmul.f32.gmra.mxu0 %v1222
      %v4010 = vpop.f32.mrf.mxu0
      %v4011 = vadd.f32 %v3898, %v4010
      %4012 = vmatmul.f32.gmra.mxu0 %v1223
      %v4013 = vpop.f32.mrf.mxu0
      %v4014 = vadd.f32 %v3901, %v4013
      %4015 = vmatmul.f32.gmra.mxu0 %v1224
      %v4016 = vpop.f32.mrf.mxu0
      %v4017 = vadd.f32 %v3904, %v4016
      %4018 = vmatmul.f32.gmra.mxu0 %v1225
      %v4019 = vpop.f32.mrf.mxu0
      %v4020 = vadd.f32 %v3907, %v4019
      %4021 = vmatmul.f32.gmra.mxu0 %v1226
      %v4022 = vpop.f32.mrf.mxu0
      %v4023 = vadd.f32 %v3910, %v4022
      %4024 = vmatmul.f32.gmra.mxu0 %v1227
      %v4025 = vpop.f32.mrf.mxu0
      %v4026 = vadd.f32 %v3913, %v4025
      %4027 = vmatmul.f32.gmra.mxu0 %v1228
      %v4028 = vpop.f32.mrf.mxu0
      %v4029 = vadd.f32 %v3916, %v4028
      %4030 = vmatmul.f32.gmra.mxu0 %v1229
      %v4031 = vpop.f32.mrf.mxu0
      %v4032 = vadd.f32 %v3919, %v4031
      %4033 = vmatmul.f32.gmra.mxu0 %v1230
      %v4034 = vpop.f32.mrf.mxu0
      %v4035 = vadd.f32 %v3922, %v4034
      %4036 = vmatmul.f32.gmra.mxu0 %v1231
      %v4037 = vpop.f32.mrf.mxu0
      %v4038 = vadd.f32 %v3925, %v4037
      %4039 = vmatmul.f32.gmra.mxu0 %v1232
      %v4040 = vpop.f32.mrf.mxu0
      %v4041 = vadd.f32 %v3928, %v4040
      %4042 = vmatmul.f32.gmra.mxu0 %v1233
      %v4043 = vpop.f32.mrf.mxu0
      %v4044 = vadd.f32 %v3931, %v4043
      %4045 = vmatmul.f32.gmra.mxu0 %v1234
      %v4046 = vpop.f32.mrf.mxu0
      %v4047 = vadd.f32 %v3934, %v4046
      %4048 = vmatmul.f32.gmra.mxu0 %v1235
      %v4049 = vpop.f32.mrf.mxu0
      %v4050 = vadd.f32 %v3937, %v4049
      %4051 = vmatmul.f32.gmra.mxu0 %v1236
      %v4052 = vpop.f32.mrf.mxu0
      %v4053 = vadd.f32 %v3940, %v4052
      %4054 = vmatmul.f32.gmra.mxu0 %v1237
      %v4055 = vpop.f32.mrf.mxu0
      %v4056 = vadd.f32 %v3943, %v4055
      %4057 = vmatmul.f32.gmra.mxu0 %v1238
      %v4058 = vpop.f32.mrf.mxu0
      %v4059 = vadd.f32 %v3946, %v4058
      %4060 = vmatmul.f32.gmra.mxu0 %v1239
      %v4061 = vpop.f32.mrf.mxu0
      %v4062 = vadd.f32 %v3949, %v4061
      %4063 = vmatmul.f32.gmra.mxu0 %v1240
      %v4064 = vpop.f32.mrf.mxu0
      %v4065 = vadd.f32 %v3952, %v4064
      %4066 = vmatmul.f32.gmra.mxu0 %v1241
      %v4067 = vpop.f32.mrf.mxu0
      %v4068 = vadd.f32 %v3955, %v4067
      %4069 = vmatmul.f32.gmra.mxu0 %v1242
      %v4070 = vpop.f32.mrf.mxu0
      %v4071 = vadd.f32 %v3958, %v4070
      %4072 = vmatmul.f32.gmra.mxu0 %v1243
      %v4073 = vpop.f32.mrf.mxu0
      %v4074 = vadd.f32 %v3961, %v4073
      %4075 = vmatmul.f32.gmra.mxu0 %v1244
      %v4076 = vpop.f32.mrf.mxu0
      %v4077 = vadd.f32 %v3964, %v4076
      %4078 = vmatmul.f32.gmra.mxu0 %v1245
      %v4079 = vpop.f32.mrf.mxu0
      %v4080 = vadd.f32 %v3967, %v4079
      %4081 = vmatmul.f32.gmra.mxu0 %v1246
      %v4082 = vpop.f32.mrf.mxu0
      %v4083 = vadd.f32 %v3970, %v4082
      %4084 = vdwg.mxu0
      %v4085 = vld [vmem:[%s7] sm:$0x1]
      %v4087 = vperm.slane %v4085, 0
      %v4089 = vadd.f32 %v3990, %v4087
      %v4090 = vadd.f32 %v3993, %v4087
      %v4091 = vadd.f32 %v3996, %v4087
      %v4092 = vadd.f32 %v3999, %v4087
      %v4093 = vadd.f32 %v4002, %v4087
      %v4094 = vadd.f32 %v4005, %v4087
      %v4095 = vadd.f32 %v4008, %v4087
      %v4096 = vadd.f32 %v4011, %v4087
      %v4097 = vadd.f32 %v4014, %v4087
      %v4098 = vadd.f32 %v4017, %v4087
      %v4099 = vadd.f32 %v4020, %v4087
      %v4100 = vadd.f32 %v4023, %v4087
      %v4101 = vadd.f32 %v4026, %v4087
      %v4102 = vadd.f32 %v4029, %v4087
      %v4103 = vadd.f32 %v4032, %v4087
      %v4104 = vadd.f32 %v4035, %v4087
      %v4105 = vadd.f32 %v4038, %v4087
      %v4106 = vadd.f32 %v4041, %v4087
      %v4107 = vadd.f32 %v4044, %v4087
      %v4108 = vadd.f32 %v4047, %v4087
      %v4109 = vadd.f32 %v4050, %v4087
      %v4110 = vadd.f32 %v4053, %v4087
      %v4111 = vadd.f32 %v4056, %v4087
      %v4112 = vadd.f32 %v4059, %v4087
      %v4113 = vadd.f32 %v4062, %v4087
      %v4114 = vadd.f32 %v4065, %v4087
      %v4115 = vadd.f32 %v4068, %v4087
      %v4116 = vadd.f32 %v4071, %v4087
      %v4117 = vadd.f32 %v4074, %v4087
      %v4118 = vadd.f32 %v4077, %v4087
      %v4119 = vadd.f32 %v4080, %v4087
      %v4120 = vadd.f32 %v4083, %v4087
      %4121 = vst [vmem:[%s1300 + $0x2] sm:$0xff] %v4089
      %4122 = vst [vmem:[%s1300 + $0xa] sm:$0xff] %v4090
      %4123 = vst [vmem:[%s1300 + $0x1a] sm:$0xff] %v4091
      %4124 = vst [vmem:[%s1300 + $0x22] sm:$0xff] %v4092
      %4125 = vst [vmem:[%s1300 + $0x32] sm:$0xff] %v4093
      %4126 = vst [vmem:[%s1300 + $0x3a] sm:$0xff] %v4094
      %4127 = vst [vmem:[%s1300 + $0x4a] sm:$0xff] %v4095
      %4128 = vst [vmem:[%s1300 + $0x52] sm:$0xff] %v4096
      %4129 = vst [vmem:[%s1300 + $0x62] sm:$0xff] %v4097
      %4130 = vst [vmem:[%s1300 + $0x6a] sm:$0xff] %v4098
      %4131 = vst [vmem:[%s1300 + $0x7a] sm:$0xff] %v4099
      %4132 = vst [vmem:[%s1300 + $0x82] sm:$0xff] %v4100
      %4133 = vst [vmem:[%s1300 + $0x92] sm:$0xff] %v4101
      %4134 = vst [vmem:[%s1300 + $0x9a] sm:$0xff] %v4102
      %4135 = vst [vmem:[%s1300 + $0xaa] sm:$0xff] %v4103
      %4136 = vst [vmem:[%s1300 + $0xb2] sm:$0xff] %v4104
      %4137 = vst [vmem:[%s1300 + $0xc2] sm:$0xff] %v4105
      %4138 = vst [vmem:[%s1300 + $0xca] sm:$0xff] %v4106
      %4139 = vst [vmem:[%s1300 + $0xda] sm:$0xff] %v4107
      %4140 = vst [vmem:[%s1300 + $0xe2] sm:$0xff] %v4108
      %4141 = vst [vmem:[%s1300 + $0xf2] sm:$0xff] %v4109
      %4142 = vst [vmem:[%s1300 + $0xfa] sm:$0xff] %v4110
      %4143 = vst [vmem:[%s1300 + $0x10a] sm:$0xff] %v4111
      %4144 = vst [vmem:[%s1300 + $0x112] sm:$0xff] %v4112
      %4145 = vst [vmem:[%s1300 + $0x122] sm:$0xff] %v4113
      %4146 = vst [vmem:[%s1300 + $0x12a] sm:$0xff] %v4114
      %4147 = vst [vmem:[%s1300 + $0x13a] sm:$0xff] %v4115
      %4148 = vst [vmem:[%s1300 + $0x142] sm:$0xff] %v4116
      %4149 = vst [vmem:[%s1300 + $0x152] sm:$0xff] %v4117
      %4150 = vst [vmem:[%s1300 + $0x15a] sm:$0xff] %v4118
      %4151 = vst [vmem:[%s1300 + $0x16a] sm:$0xff] %v4119
      %4152 = vst [vmem:[%s1300 + $0x172] sm:$0xff] %v4120
      %v4153 = vld [vmem:[#allocation2] sm:$0xff]
      %v4154 = vld [vmem:[#allocation2 + $0x8] sm:$0xff]
      %v4155 = vld [vmem:[#allocation2 + $0x18] sm:$0xff]
      %v4156 = vld [vmem:[#allocation2 + $0x20] sm:$0xff]
      %v4157 = vld [vmem:[#allocation2 + $0x30] sm:$0xff]
      %v4158 = vld [vmem:[#allocation2 + $0x38] sm:$0xff]
      %v4159 = vld [vmem:[#allocation2 + $0x48] sm:$0xff]
      %v4160 = vld [vmem:[#allocation2 + $0x50] sm:$0xff]
      %v4161 = vld [vmem:[#allocation2 + $0x60] sm:$0xff]
      %v4162 = vld [vmem:[#allocation2 + $0x68] sm:$0xff]
      %v4163 = vld [vmem:[#allocation2 + $0x78] sm:$0xff]
      %v4164 = vld [vmem:[#allocation2 + $0x80] sm:$0xff]
      %v4165 = vld [vmem:[#allocation2 + $0x90] sm:$0xff]
      %v4166 = vld [vmem:[#allocation2 + $0x98] sm:$0xff]
      %v4167 = vld [vmem:[#allocation2 + $0xa8] sm:$0xff]
      %v4168 = vld [vmem:[#allocation2 + $0xb0] sm:$0xff]
      %v4169 = vld [vmem:[#allocation2 + $0xc0] sm:$0xff]
      %v4170 = vld [vmem:[#allocation2 + $0xc8] sm:$0xff]
      %v4171 = vld [vmem:[#allocation2 + $0xd8] sm:$0xff]
      %v4172 = vld [vmem:[#allocation2 + $0xe0] sm:$0xff]
      %v4173 = vld [vmem:[#allocation2 + $0xf0] sm:$0xff]
      %v4174 = vld [vmem:[#allocation2 + $0xf8] sm:$0xff]
      %v4175 = vld [vmem:[#allocation2 + $0x108] sm:$0xff]
      %v4176 = vld [vmem:[#allocation2 + $0x110] sm:$0xff]
      %v4177 = vld [vmem:[#allocation2 + $0x120] sm:$0xff]
      %v4178 = vld [vmem:[#allocation2 + $0x128] sm:$0xff]
      %v4179 = vld [vmem:[#allocation2 + $0x138] sm:$0xff]
      %v4180 = vld [vmem:[#allocation2 + $0x140] sm:$0xff]
      %v4181 = vld [vmem:[#allocation2 + $0x150] sm:$0xff]
      %v4182 = vld [vmem:[#allocation2 + $0x158] sm:$0xff]
      %v4183 = vld [vmem:[#allocation2 + $0x168] sm:$0xff]
      %v4184 = vld [vmem:[#allocation2 + $0x170] sm:$0xff]
      %v4185 = vld [vmem:[#allocation2 + $0x180] sm:$0xff]
      %v4186 = vld [vmem:[#allocation2 + $0x188] sm:$0xff]
      %v4187 = vld [vmem:[#allocation2 + $0x198] sm:$0xff]
      %v4188 = vld [vmem:[#allocation2 + $0x1a0] sm:$0xff]
      %v4189 = vld [vmem:[#allocation2 + $0x1b0] sm:$0xff]
      %v4190 = vld [vmem:[#allocation2 + $0x1b8] sm:$0xff]
      %v4191 = vld [vmem:[#allocation2 + $0x1c8] sm:$0xff]
      %v4192 = vld [vmem:[#allocation2 + $0x1d0] sm:$0xff]
      %v4193 = vld [vmem:[%s8] sm:$0x1]
      %v4194 = vperm.slane %v4193, 0
      %v4195 = vmul.f32 %v4194, %v4153
      %v4196 = vmul.f32 %v4194, %v4154
      %v4197 = vmul.f32 %v4194, %v4155
      %v4198 = vmul.f32 %v4194, %v4156
      %v4199 = vmul.f32 %v4194, %v4157
      %v4200 = vmul.f32 %v4194, %v4158
      %v4201 = vmul.f32 %v4194, %v4159
      %v4202 = vmul.f32 %v4194, %v4160
      %v4203 = vmul.f32 %v4194, %v4161
      %v4204 = vmul.f32 %v4194, %v4162
      %v4205 = vmul.f32 %v4194, %v4163
      %v4206 = vmul.f32 %v4194, %v4164
      %v4207 = vmul.f32 %v4194, %v4165
      %v4208 = vmul.f32 %v4194, %v4166
      %v4209 = vmul.f32 %v4194, %v4167
      %v4210 = vmul.f32 %v4194, %v4168
      %v4211 = vmul.f32 %v4194, %v4169
      %v4212 = vmul.f32 %v4194, %v4170
      %v4213 = vmul.f32 %v4194, %v4171
      %v4214 = vmul.f32 %v4194, %v4172
      %v4215 = vmul.f32 %v4194, %v4173
      %v4216 = vmul.f32 %v4194, %v4174
      %v4217 = vmul.f32 %v4194, %v4175
      %v4218 = vmul.f32 %v4194, %v4176
      %v4219 = vmul.f32 %v4194, %v4177
      %v4220 = vmul.f32 %v4194, %v4178
      %v4221 = vmul.f32 %v4194, %v4179
      %v4222 = vmul.f32 %v4194, %v4180
      %v4223 = vmul.f32 %v4194, %v4181
      %v4224 = vmul.f32 %v4194, %v4182
      %v4225 = vmul.f32 %v4194, %v4183
      %v4226 = vmul.f32 %v4194, %v4184
      %v4227 = vld [vmem:[%s8 + $0x5] sm:$0x1]
      %v4228 = vperm.slane %v4227, 0
      %v4229 = vmul.f32 %v4228, %v4155
      %v4230 = vmul.f32 %v4228, %v4156
      %v4231 = vmul.f32 %v4228, %v4157
      %v4232 = vmul.f32 %v4228, %v4158
      %v4233 = vmul.f32 %v4228, %v4159
      %v4234 = vmul.f32 %v4228, %v4160
      %v4235 = vmul.f32 %v4228, %v4161
      %v4236 = vmul.f32 %v4228, %v4162
      %v4237 = vmul.f32 %v4228, %v4163
      %v4238 = vmul.f32 %v4228, %v4164
      %v4239 = vmul.f32 %v4228, %v4165
      %v4240 = vmul.f32 %v4228, %v4166
      %v4241 = vmul.f32 %v4228, %v4167
      %v4242 = vmul.f32 %v4228, %v4168
      %v4243 = vmul.f32 %v4228, %v4169
      %v4244 = vmul.f32 %v4228, %v4170
      %v4245 = vmul.f32 %v4228, %v4171
      %v4246 = vmul.f32 %v4228, %v4172
      %v4247 = vmul.f32 %v4228, %v4173
      %v4248 = vmul.f32 %v4228, %v4174
      %v4249 = vmul.f32 %v4228, %v4175
      %v4250 = vmul.f32 %v4228, %v4176
      %v4251 = vmul.f32 %v4228, %v4177
      %v4252 = vmul.f32 %v4228, %v4178
      %v4253 = vmul.f32 %v4228, %v4179
      %v4254 = vmul.f32 %v4228, %v4180
      %v4255 = vmul.f32 %v4228, %v4181
      %v4256 = vmul.f32 %v4228, %v4182
      %v4257 = vmul.f32 %v4228, %v4183
      %v4258 = vmul.f32 %v4228, %v4184
      %v4259 = vmul.f32 %v4228, %v4185
      %v4260 = vmul.f32 %v4228, %v4186
      %v4261 = vadd.f32 %v4195, %v4229
      %v4262 = vadd.f32 %v4196, %v4230
      %v4263 = vadd.f32 %v4197, %v4231
      %v4264 = vadd.f32 %v4198, %v4232
      %v4265 = vadd.f32 %v4199, %v4233
      %v4266 = vadd.f32 %v4200, %v4234
      %v4267 = vadd.f32 %v4201, %v4235
      %v4268 = vadd.f32 %v4202, %v4236
      %v4269 = vadd.f32 %v4203, %v4237
      %v4270 = vadd.f32 %v4204, %v4238
      %v4271 = vadd.f32 %v4205, %v4239
      %v4272 = vadd.f32 %v4206, %v4240
      %v4273 = vadd.f32 %v4207, %v4241
      %v4274 = vadd.f32 %v4208, %v4242
      %v4275 = vadd.f32 %v4209, %v4243
      %v4276 = vadd.f32 %v4210, %v4244
      %v4277 = vadd.f32 %v4211, %v4245
      %v4278 = vadd.f32 %v4212, %v4246
      %v4279 = vadd.f32 %v4213, %v4247
      %v4280 = vadd.f32 %v4214, %v4248
      %v4281 = vadd.f32 %v4215, %v4249
      %v4282 = vadd.f32 %v4216, %v4250
      %v4283 = vadd.f32 %v4217, %v4251
      %v4284 = vadd.f32 %v4218, %v4252
      %v4285 = vadd.f32 %v4219, %v4253
      %v4286 = vadd.f32 %v4220, %v4254
      %v4287 = vadd.f32 %v4221, %v4255
      %v4288 = vadd.f32 %v4222, %v4256
      %v4289 = vadd.f32 %v4223, %v4257
      %v4290 = vadd.f32 %v4224, %v4258
      %v4291 = vadd.f32 %v4225, %v4259
      %v4292 = vadd.f32 %v4226, %v4260
      %v4293 = vld [vmem:[%s8 + $0xa] sm:$0x1]
      %v4294 = vperm.slane %v4293, 0
      %v4295 = vmul.f32 %v4294, %v4157
      %v4296 = vmul.f32 %v4294, %v4158
      %v4297 = vmul.f32 %v4294, %v4159
      %v4298 = vmul.f32 %v4294, %v4160
      %v4299 = vmul.f32 %v4294, %v4161
      %v4300 = vmul.f32 %v4294, %v4162
      %v4301 = vmul.f32 %v4294, %v4163
      %v4302 = vmul.f32 %v4294, %v4164
      %v4303 = vmul.f32 %v4294, %v4165
      %v4304 = vmul.f32 %v4294, %v4166
      %v4305 = vmul.f32 %v4294, %v4167
      %v4306 = vmul.f32 %v4294, %v4168
      %v4307 = vmul.f32 %v4294, %v4169
      %v4308 = vmul.f32 %v4294, %v4170
      %v4309 = vmul.f32 %v4294, %v4171
      %v4310 = vmul.f32 %v4294, %v4172
      %v4311 = vmul.f32 %v4294, %v4173
      %v4312 = vmul.f32 %v4294, %v4174
      %v4313 = vmul.f32 %v4294, %v4175
      %v4314 = vmul.f32 %v4294, %v4176
      %v4315 = vmul.f32 %v4294, %v4177
      %v4316 = vmul.f32 %v4294, %v4178
      %v4317 = vmul.f32 %v4294, %v4179
      %v4318 = vmul.f32 %v4294, %v4180
      %v4319 = vmul.f32 %v4294, %v4181
      %v4320 = vmul.f32 %v4294, %v4182
      %v4321 = vmul.f32 %v4294, %v4183
      %v4322 = vmul.f32 %v4294, %v4184
      %v4323 = vmul.f32 %v4294, %v4185
      %v4324 = vmul.f32 %v4294, %v4186
      %v4325 = vmul.f32 %v4294, %v4187
      %v4326 = vmul.f32 %v4294, %v4188
      %v4327 = vadd.f32 %v4261, %v4295
      %v4328 = vadd.f32 %v4262, %v4296
      %v4329 = vadd.f32 %v4263, %v4297
      %v4330 = vadd.f32 %v4264, %v4298
      %v4331 = vadd.f32 %v4265, %v4299
      %v4332 = vadd.f32 %v4266, %v4300
      %v4333 = vadd.f32 %v4267, %v4301
      %v4334 = vadd.f32 %v4268, %v4302
      %v4335 = vadd.f32 %v4269, %v4303
      %v4336 = vadd.f32 %v4270, %v4304
      %v4337 = vadd.f32 %v4271, %v4305
      %v4338 = vadd.f32 %v4272, %v4306
      %v4339 = vadd.f32 %v4273, %v4307
      %v4340 = vadd.f32 %v4274, %v4308
      %v4341 = vadd.f32 %v4275, %v4309
      %v4342 = vadd.f32 %v4276, %v4310
      %v4343 = vadd.f32 %v4277, %v4311
      %v4344 = vadd.f32 %v4278, %v4312
      %v4345 = vadd.f32 %v4279, %v4313
      %v4346 = vadd.f32 %v4280, %v4314
      %v4347 = vadd.f32 %v4281, %v4315
      %v4348 = vadd.f32 %v4282, %v4316
      %v4349 = vadd.f32 %v4283, %v4317
      %v4350 = vadd.f32 %v4284, %v4318
      %v4351 = vadd.f32 %v4285, %v4319
      %v4352 = vadd.f32 %v4286, %v4320
      %v4353 = vadd.f32 %v4287, %v4321
      %v4354 = vadd.f32 %v4288, %v4322
      %v4355 = vadd.f32 %v4289, %v4323
      %v4356 = vadd.f32 %v4290, %v4324
      %v4357 = vadd.f32 %v4291, %v4325
      %v4358 = vadd.f32 %v4292, %v4326
      %v4359 = vld [vmem:[%s8 + $0xf] sm:$0x1]
      %v4360 = vperm.slane %v4359, 0
      %v4361 = vmul.f32 %v4360, %v4159
      %v4362 = vmul.f32 %v4360, %v4160
      %v4363 = vmul.f32 %v4360, %v4161
      %v4364 = vmul.f32 %v4360, %v4162
      %v4365 = vmul.f32 %v4360, %v4163
      %v4366 = vmul.f32 %v4360, %v4164
      %v4367 = vmul.f32 %v4360, %v4165
      %v4368 = vmul.f32 %v4360, %v4166
      %v4369 = vmul.f32 %v4360, %v4167
      %v4370 = vmul.f32 %v4360, %v4168
      %v4371 = vmul.f32 %v4360, %v4169
      %v4372 = vmul.f32 %v4360, %v4170
      %v4373 = vmul.f32 %v4360, %v4171
      %v4374 = vmul.f32 %v4360, %v4172
      %v4375 = vmul.f32 %v4360, %v4173
      %v4376 = vmul.f32 %v4360, %v4174
      %v4377 = vmul.f32 %v4360, %v4175
      %v4378 = vmul.f32 %v4360, %v4176
      %v4379 = vmul.f32 %v4360, %v4177
      %v4380 = vmul.f32 %v4360, %v4178
      %v4381 = vmul.f32 %v4360, %v4179
      %v4382 = vmul.f32 %v4360, %v4180
      %v4383 = vmul.f32 %v4360, %v4181
      %v4384 = vmul.f32 %v4360, %v4182
      %v4385 = vmul.f32 %v4360, %v4183
      %v4386 = vmul.f32 %v4360, %v4184
      %v4387 = vmul.f32 %v4360, %v4185
      %v4388 = vmul.f32 %v4360, %v4186
      %v4389 = vmul.f32 %v4360, %v4187
      %v4390 = vmul.f32 %v4360, %v4188
      %v4391 = vmul.f32 %v4360, %v4189
      %v4392 = vmul.f32 %v4360, %v4190
      %v4393 = vadd.f32 %v4327, %v4361
      %v4394 = vadd.f32 %v4328, %v4362
      %v4395 = vadd.f32 %v4329, %v4363
      %v4396 = vadd.f32 %v4330, %v4364
      %v4397 = vadd.f32 %v4331, %v4365
      %v4398 = vadd.f32 %v4332, %v4366
      %v4399 = vadd.f32 %v4333, %v4367
      %v4400 = vadd.f32 %v4334, %v4368
      %v4401 = vadd.f32 %v4335, %v4369
      %v4402 = vadd.f32 %v4336, %v4370
      %v4403 = vadd.f32 %v4337, %v4371
      %v4404 = vadd.f32 %v4338, %v4372
      %v4405 = vadd.f32 %v4339, %v4373
      %v4406 = vadd.f32 %v4340, %v4374
      %v4407 = vadd.f32 %v4341, %v4375
      %v4408 = vadd.f32 %v4342, %v4376
      %v4409 = vadd.f32 %v4343, %v4377
      %v4410 = vadd.f32 %v4344, %v4378
      %v4411 = vadd.f32 %v4345, %v4379
      %v4412 = vadd.f32 %v4346, %v4380
      %v4413 = vadd.f32 %v4347, %v4381
      %v4414 = vadd.f32 %v4348, %v4382
      %v4415 = vadd.f32 %v4349, %v4383
      %v4416 = vadd.f32 %v4350, %v4384
      %v4417 = vadd.f32 %v4351, %v4385
      %v4418 = vadd.f32 %v4352, %v4386
      %v4419 = vadd.f32 %v4353, %v4387
      %v4420 = vadd.f32 %v4354, %v4388
      %v4421 = vadd.f32 %v4355, %v4389
      %v4422 = vadd.f32 %v4356, %v4390
      %v4423 = vadd.f32 %v4357, %v4391
      %v4424 = vadd.f32 %v4358, %v4392
      %v4425 = vld [vmem:[%s8 + $0x14] sm:$0x1]
      %v4426 = vperm.slane %v4425, 0
      %v4427 = vmul.f32 %v4426, %v4161
      %v4428 = vmul.f32 %v4426, %v4162
      %v4429 = vmul.f32 %v4426, %v4163
      %v4430 = vmul.f32 %v4426, %v4164
      %v4431 = vmul.f32 %v4426, %v4165
      %v4432 = vmul.f32 %v4426, %v4166
      %v4433 = vmul.f32 %v4426, %v4167
      %v4434 = vmul.f32 %v4426, %v4168
      %v4435 = vmul.f32 %v4426, %v4169
      %v4436 = vmul.f32 %v4426, %v4170
      %v4437 = vmul.f32 %v4426, %v4171
      %v4438 = vmul.f32 %v4426, %v4172
      %v4439 = vmul.f32 %v4426, %v4173
      %v4440 = vmul.f32 %v4426, %v4174
      %v4441 = vmul.f32 %v4426, %v4175
      %v4442 = vmul.f32 %v4426, %v4176
      %v4443 = vmul.f32 %v4426, %v4177
      %v4444 = vmul.f32 %v4426, %v4178
      %v4445 = vmul.f32 %v4426, %v4179
      %v4446 = vmul.f32 %v4426, %v4180
      %v4447 = vmul.f32 %v4426, %v4181
      %v4448 = vmul.f32 %v4426, %v4182
      %v4449 = vmul.f32 %v4426, %v4183
      %v4450 = vmul.f32 %v4426, %v4184
      %v4451 = vmul.f32 %v4426, %v4185
      %v4452 = vmul.f32 %v4426, %v4186
      %v4453 = vmul.f32 %v4426, %v4187
      %v4454 = vmul.f32 %v4426, %v4188
      %v4455 = vmul.f32 %v4426, %v4189
      %v4456 = vmul.f32 %v4426, %v4190
      %v4457 = vmul.f32 %v4426, %v4191
      %v4458 = vmul.f32 %v4426, %v4192
      %v4459 = vadd.f32 %v4393, %v4427
      %v4460 = vadd.f32 %v4394, %v4428
      %v4461 = vadd.f32 %v4395, %v4429
      %v4462 = vadd.f32 %v4396, %v4430
      %v4463 = vadd.f32 %v4397, %v4431
      %v4464 = vadd.f32 %v4398, %v4432
      %v4465 = vadd.f32 %v4399, %v4433
      %v4466 = vadd.f32 %v4400, %v4434
      %v4467 = vadd.f32 %v4401, %v4435
      %v4468 = vadd.f32 %v4402, %v4436
      %v4469 = vadd.f32 %v4403, %v4437
      %v4470 = vadd.f32 %v4404, %v4438
      %v4471 = vadd.f32 %v4405, %v4439
      %v4472 = vadd.f32 %v4406, %v4440
      %v4473 = vadd.f32 %v4407, %v4441
      %v4474 = vadd.f32 %v4408, %v4442
      %v4475 = vadd.f32 %v4409, %v4443
      %v4476 = vadd.f32 %v4410, %v4444
      %v4477 = vadd.f32 %v4411, %v4445
      %v4478 = vadd.f32 %v4412, %v4446
      %v4479 = vadd.f32 %v4413, %v4447
      %v4480 = vadd.f32 %v4414, %v4448
      %v4481 = vadd.f32 %v4415, %v4449
      %v4482 = vadd.f32 %v4416, %v4450
      %v4483 = vadd.f32 %v4417, %v4451
      %v4484 = vadd.f32 %v4418, %v4452
      %v4485 = vadd.f32 %v4419, %v4453
      %v4486 = vadd.f32 %v4420, %v4454
      %v4487 = vadd.f32 %v4421, %v4455
      %v4488 = vadd.f32 %v4422, %v4456
      %v4489 = vadd.f32 %v4423, %v4457
      %v4490 = vadd.f32 %v4424, %v4458
      %v4491 = vld [vmem:[#allocation2 + $0x1] sm:$0xff]
      %v4492 = vld [vmem:[#allocation2 + $0x9] sm:$0xff]
      %v4493 = vld [vmem:[#allocation2 + $0x19] sm:$0xff]
      %v4494 = vld [vmem:[#allocation2 + $0x21] sm:$0xff]
      %v4495 = vld [vmem:[#allocation2 + $0x31] sm:$0xff]
      %v4496 = vld [vmem:[#allocation2 + $0x39] sm:$0xff]
      %v4497 = vld [vmem:[#allocation2 + $0x49] sm:$0xff]
      %v4498 = vld [vmem:[#allocation2 + $0x51] sm:$0xff]
      %v4499 = vld [vmem:[#allocation2 + $0x61] sm:$0xff]
      %v4500 = vld [vmem:[#allocation2 + $0x69] sm:$0xff]
      %v4501 = vld [vmem:[#allocation2 + $0x79] sm:$0xff]
      %v4502 = vld [vmem:[#allocation2 + $0x81] sm:$0xff]
      %v4503 = vld [vmem:[#allocation2 + $0x91] sm:$0xff]
      %v4504 = vld [vmem:[#allocation2 + $0x99] sm:$0xff]
      %v4505 = vld [vmem:[#allocation2 + $0xa9] sm:$0xff]
      %v4506 = vld [vmem:[#allocation2 + $0xb1] sm:$0xff]
      %v4507 = vld [vmem:[#allocation2 + $0xc1] sm:$0xff]
      %v4508 = vld [vmem:[#allocation2 + $0xc9] sm:$0xff]
      %v4509 = vld [vmem:[#allocation2 + $0xd9] sm:$0xff]
      %v4510 = vld [vmem:[#allocation2 + $0xe1] sm:$0xff]
      %v4511 = vld [vmem:[#allocation2 + $0xf1] sm:$0xff]
      %v4512 = vld [vmem:[#allocation2 + $0xf9] sm:$0xff]
      %v4513 = vld [vmem:[#allocation2 + $0x109] sm:$0xff]
      %v4514 = vld [vmem:[#allocation2 + $0x111] sm:$0xff]
      %v4515 = vld [vmem:[#allocation2 + $0x121] sm:$0xff]
      %v4516 = vld [vmem:[#allocation2 + $0x129] sm:$0xff]
      %v4517 = vld [vmem:[#allocation2 + $0x139] sm:$0xff]
      %v4518 = vld [vmem:[#allocation2 + $0x141] sm:$0xff]
      %v4519 = vld [vmem:[#allocation2 + $0x151] sm:$0xff]
      %v4520 = vld [vmem:[#allocation2 + $0x159] sm:$0xff]
      %v4521 = vld [vmem:[#allocation2 + $0x169] sm:$0xff]
      %v4522 = vld [vmem:[#allocation2 + $0x171] sm:$0xff]
      %v4523 = vld [vmem:[#allocation2 + $0x181] sm:$0xff]
      %v4524 = vld [vmem:[#allocation2 + $0x189] sm:$0xff]
      %v4525 = vld [vmem:[#allocation2 + $0x199] sm:$0xff]
      %v4526 = vld [vmem:[#allocation2 + $0x1a1] sm:$0xff]
      %v4527 = vld [vmem:[#allocation2 + $0x1b1] sm:$0xff]
      %v4528 = vld [vmem:[#allocation2 + $0x1b9] sm:$0xff]
      %v4529 = vld [vmem:[#allocation2 + $0x1c9] sm:$0xff]
      %v4530 = vld [vmem:[#allocation2 + $0x1d1] sm:$0xff]
      %v4531 = vld [vmem:[%s8 + $0x1] sm:$0x1]
      %v4532 = vperm.slane %v4531, 0
      %v4533 = vmul.f32 %v4532, %v4491
      %v4534 = vmul.f32 %v4532, %v4492
      %v4535 = vmul.f32 %v4532, %v4493
      %v4536 = vmul.f32 %v4532, %v4494
      %v4537 = vmul.f32 %v4532, %v4495
      %v4538 = vmul.f32 %v4532, %v4496
      %v4539 = vmul.f32 %v4532, %v4497
      %v4540 = vmul.f32 %v4532, %v4498
      %v4541 = vmul.f32 %v4532, %v4499
      %v4542 = vmul.f32 %v4532, %v4500
      %v4543 = vmul.f32 %v4532, %v4501
      %v4544 = vmul.f32 %v4532, %v4502
      %v4545 = vmul.f32 %v4532, %v4503
      %v4546 = vmul.f32 %v4532, %v4504
      %v4547 = vmul.f32 %v4532, %v4505
      %v4548 = vmul.f32 %v4532, %v4506
      %v4549 = vmul.f32 %v4532, %v4507
      %v4550 = vmul.f32 %v4532, %v4508
      %v4551 = vmul.f32 %v4532, %v4509
      %v4552 = vmul.f32 %v4532, %v4510
      %v4553 = vmul.f32 %v4532, %v4511
      %v4554 = vmul.f32 %v4532, %v4512
      %v4555 = vmul.f32 %v4532, %v4513
      %v4556 = vmul.f32 %v4532, %v4514
      %v4557 = vmul.f32 %v4532, %v4515
      %v4558 = vmul.f32 %v4532, %v4516
      %v4559 = vmul.f32 %v4532, %v4517
      %v4560 = vmul.f32 %v4532, %v4518
      %v4561 = vmul.f32 %v4532, %v4519
      %v4562 = vmul.f32 %v4532, %v4520
      %v4563 = vmul.f32 %v4532, %v4521
      %v4564 = vmul.f32 %v4532, %v4522
      %v4565 = vld [vmem:[%s8 + $0x6] sm:$0x1]
      %v4566 = vperm.slane %v4565, 0
      %v4567 = vmul.f32 %v4566, %v4493
      %v4568 = vmul.f32 %v4566, %v4494
      %v4569 = vmul.f32 %v4566, %v4495
      %v4570 = vmul.f32 %v4566, %v4496
      %v4571 = vmul.f32 %v4566, %v4497
      %v4572 = vmul.f32 %v4566, %v4498
      %v4573 = vmul.f32 %v4566, %v4499
      %v4574 = vmul.f32 %v4566, %v4500
      %v4575 = vmul.f32 %v4566, %v4501
      %v4576 = vmul.f32 %v4566, %v4502
      %v4577 = vmul.f32 %v4566, %v4503
      %v4578 = vmul.f32 %v4566, %v4504
      %v4579 = vmul.f32 %v4566, %v4505
      %v4580 = vmul.f32 %v4566, %v4506
      %v4581 = vmul.f32 %v4566, %v4507
      %v4582 = vmul.f32 %v4566, %v4508
      %v4583 = vmul.f32 %v4566, %v4509
      %v4584 = vmul.f32 %v4566, %v4510
      %v4585 = vmul.f32 %v4566, %v4511
      %v4586 = vmul.f32 %v4566, %v4512
      %v4587 = vmul.f32 %v4566, %v4513
      %v4588 = vmul.f32 %v4566, %v4514
      %v4589 = vmul.f32 %v4566, %v4515
      %v4590 = vmul.f32 %v4566, %v4516
      %v4591 = vmul.f32 %v4566, %v4517
      %v4592 = vmul.f32 %v4566, %v4518
      %v4593 = vmul.f32 %v4566, %v4519
      %v4594 = vmul.f32 %v4566, %v4520
      %v4595 = vmul.f32 %v4566, %v4521
      %v4596 = vmul.f32 %v4566, %v4522
      %v4597 = vmul.f32 %v4566, %v4523
      %v4598 = vmul.f32 %v4566, %v4524
      %v4599 = vadd.f32 %v4533, %v4567
      %v4600 = vadd.f32 %v4534, %v4568
      %v4601 = vadd.f32 %v4535, %v4569
      %v4602 = vadd.f32 %v4536, %v4570
      %v4603 = vadd.f32 %v4537, %v4571
      %v4604 = vadd.f32 %v4538, %v4572
      %v4605 = vadd.f32 %v4539, %v4573
      %v4606 = vadd.f32 %v4540, %v4574
      %v4607 = vadd.f32 %v4541, %v4575
      %v4608 = vadd.f32 %v4542, %v4576
      %v4609 = vadd.f32 %v4543, %v4577
      %v4610 = vadd.f32 %v4544, %v4578
      %v4611 = vadd.f32 %v4545, %v4579
      %v4612 = vadd.f32 %v4546, %v4580
      %v4613 = vadd.f32 %v4547, %v4581
      %v4614 = vadd.f32 %v4548, %v4582
      %v4615 = vadd.f32 %v4549, %v4583
      %v4616 = vadd.f32 %v4550, %v4584
      %v4617 = vadd.f32 %v4551, %v4585
      %v4618 = vadd.f32 %v4552, %v4586
      %v4619 = vadd.f32 %v4553, %v4587
      %v4620 = vadd.f32 %v4554, %v4588
      %v4621 = vadd.f32 %v4555, %v4589
      %v4622 = vadd.f32 %v4556, %v4590
      %v4623 = vadd.f32 %v4557, %v4591
      %v4624 = vadd.f32 %v4558, %v4592
      %v4625 = vadd.f32 %v4559, %v4593
      %v4626 = vadd.f32 %v4560, %v4594
      %v4627 = vadd.f32 %v4561, %v4595
      %v4628 = vadd.f32 %v4562, %v4596
      %v4629 = vadd.f32 %v4563, %v4597
      %v4630 = vadd.f32 %v4564, %v4598
      %v4631 = vld [vmem:[%s8 + $0xb] sm:$0x1]
      %v4632 = vperm.slane %v4631, 0
      %v4633 = vmul.f32 %v4632, %v4495
      %v4634 = vmul.f32 %v4632, %v4496
      %v4635 = vmul.f32 %v4632, %v4497
      %v4636 = vmul.f32 %v4632, %v4498
      %v4637 = vmul.f32 %v4632, %v4499
      %v4638 = vmul.f32 %v4632, %v4500
      %v4639 = vmul.f32 %v4632, %v4501
      %v4640 = vmul.f32 %v4632, %v4502
      %v4641 = vmul.f32 %v4632, %v4503
      %v4642 = vmul.f32 %v4632, %v4504
      %v4643 = vmul.f32 %v4632, %v4505
      %v4644 = vmul.f32 %v4632, %v4506
      %v4645 = vmul.f32 %v4632, %v4507
      %v4646 = vmul.f32 %v4632, %v4508
      %v4647 = vmul.f32 %v4632, %v4509
      %v4648 = vmul.f32 %v4632, %v4510
      %v4649 = vmul.f32 %v4632, %v4511
      %v4650 = vmul.f32 %v4632, %v4512
      %v4651 = vmul.f32 %v4632, %v4513
      %v4652 = vmul.f32 %v4632, %v4514
      %v4653 = vmul.f32 %v4632, %v4515
      %v4654 = vmul.f32 %v4632, %v4516
      %v4655 = vmul.f32 %v4632, %v4517
      %v4656 = vmul.f32 %v4632, %v4518
      %v4657 = vmul.f32 %v4632, %v4519
      %v4658 = vmul.f32 %v4632, %v4520
      %v4659 = vmul.f32 %v4632, %v4521
      %v4660 = vmul.f32 %v4632, %v4522
      %v4661 = vmul.f32 %v4632, %v4523
      %v4662 = vmul.f32 %v4632, %v4524
      %v4663 = vmul.f32 %v4632, %v4525
      %v4664 = vmul.f32 %v4632, %v4526
      %v4665 = vadd.f32 %v4599, %v4633
      %v4666 = vadd.f32 %v4600, %v4634
      %v4667 = vadd.f32 %v4601, %v4635
      %v4668 = vadd.f32 %v4602, %v4636
      %v4669 = vadd.f32 %v4603, %v4637
      %v4670 = vadd.f32 %v4604, %v4638
      %v4671 = vadd.f32 %v4605, %v4639
      %v4672 = vadd.f32 %v4606, %v4640
      %v4673 = vadd.f32 %v4607, %v4641
      %v4674 = vadd.f32 %v4608, %v4642
      %v4675 = vadd.f32 %v4609, %v4643
      %v4676 = vadd.f32 %v4610, %v4644
      %v4677 = vadd.f32 %v4611, %v4645
      %v4678 = vadd.f32 %v4612, %v4646
      %v4679 = vadd.f32 %v4613, %v4647
      %v4680 = vadd.f32 %v4614, %v4648
      %v4681 = vadd.f32 %v4615, %v4649
      %v4682 = vadd.f32 %v4616, %v4650
      %v4683 = vadd.f32 %v4617, %v4651
      %v4684 = vadd.f32 %v4618, %v4652
      %v4685 = vadd.f32 %v4619, %v4653
      %v4686 = vadd.f32 %v4620, %v4654
      %v4687 = vadd.f32 %v4621, %v4655
      %v4688 = vadd.f32 %v4622, %v4656
      %v4689 = vadd.f32 %v4623, %v4657
      %v4690 = vadd.f32 %v4624, %v4658
      %v4691 = vadd.f32 %v4625, %v4659
      %v4692 = vadd.f32 %v4626, %v4660
      %v4693 = vadd.f32 %v4627, %v4661
      %v4694 = vadd.f32 %v4628, %v4662
      %v4695 = vadd.f32 %v4629, %v4663
      %v4696 = vadd.f32 %v4630, %v4664
      %v4697 = vld [vmem:[%s8 + $0x10] sm:$0x1]
      %v4698 = vperm.slane %v4697, 0
      %v4699 = vmul.f32 %v4698, %v4497
      %v4700 = vmul.f32 %v4698, %v4498
      %v4701 = vmul.f32 %v4698, %v4499
      %v4702 = vmul.f32 %v4698, %v4500
      %v4703 = vmul.f32 %v4698, %v4501
      %v4704 = vmul.f32 %v4698, %v4502
      %v4705 = vmul.f32 %v4698, %v4503
      %v4706 = vmul.f32 %v4698, %v4504
      %v4707 = vmul.f32 %v4698, %v4505
      %v4708 = vmul.f32 %v4698, %v4506
      %v4709 = vmul.f32 %v4698, %v4507
      %v4710 = vmul.f32 %v4698, %v4508
      %v4711 = vmul.f32 %v4698, %v4509
      %v4712 = vmul.f32 %v4698, %v4510
      %v4713 = vmul.f32 %v4698, %v4511
      %v4714 = vmul.f32 %v4698, %v4512
      %v4715 = vmul.f32 %v4698, %v4513
      %v4716 = vmul.f32 %v4698, %v4514
      %v4717 = vmul.f32 %v4698, %v4515
      %v4718 = vmul.f32 %v4698, %v4516
      %v4719 = vmul.f32 %v4698, %v4517
      %v4720 = vmul.f32 %v4698, %v4518
      %v4721 = vmul.f32 %v4698, %v4519
      %v4722 = vmul.f32 %v4698, %v4520
      %v4723 = vmul.f32 %v4698, %v4521
      %v4724 = vmul.f32 %v4698, %v4522
      %v4725 = vmul.f32 %v4698, %v4523
      %v4726 = vmul.f32 %v4698, %v4524
      %v4727 = vmul.f32 %v4698, %v4525
      %v4728 = vmul.f32 %v4698, %v4526
      %v4729 = vmul.f32 %v4698, %v4527
      %v4730 = vmul.f32 %v4698, %v4528
      %v4731 = vadd.f32 %v4665, %v4699
      %v4732 = vadd.f32 %v4666, %v4700
      %v4733 = vadd.f32 %v4667, %v4701
      %v4734 = vadd.f32 %v4668, %v4702
      %v4735 = vadd.f32 %v4669, %v4703
      %v4736 = vadd.f32 %v4670, %v4704
      %v4737 = vadd.f32 %v4671, %v4705
      %v4738 = vadd.f32 %v4672, %v4706
      %v4739 = vadd.f32 %v4673, %v4707
      %v4740 = vadd.f32 %v4674, %v4708
      %v4741 = vadd.f32 %v4675, %v4709
      %v4742 = vadd.f32 %v4676, %v4710
      %v4743 = vadd.f32 %v4677, %v4711
      %v4744 = vadd.f32 %v4678, %v4712
      %v4745 = vadd.f32 %v4679, %v4713
      %v4746 = vadd.f32 %v4680, %v4714
      %v4747 = vadd.f32 %v4681, %v4715
      %v4748 = vadd.f32 %v4682, %v4716
      %v4749 = vadd.f32 %v4683, %v4717
      %v4750 = vadd.f32 %v4684, %v4718
      %v4751 = vadd.f32 %v4685, %v4719
      %v4752 = vadd.f32 %v4686, %v4720
      %v4753 = vadd.f32 %v4687, %v4721
      %v4754 = vadd.f32 %v4688, %v4722
      %v4755 = vadd.f32 %v4689, %v4723
      %v4756 = vadd.f32 %v4690, %v4724
      %v4757 = vadd.f32 %v4691, %v4725
      %v4758 = vadd.f32 %v4692, %v4726
      %v4759 = vadd.f32 %v4693, %v4727
      %v4760 = vadd.f32 %v4694, %v4728
      %v4761 = vadd.f32 %v4695, %v4729
      %v4762 = vadd.f32 %v4696, %v4730
      %v4763 = vld [vmem:[%s8 + $0x15] sm:$0x1]
      %v4764 = vperm.slane %v4763, 0
      %v4765 = vmul.f32 %v4764, %v4499
      %v4766 = vmul.f32 %v4764, %v4500
      %v4767 = vmul.f32 %v4764, %v4501
      %v4768 = vmul.f32 %v4764, %v4502
      %v4769 = vmul.f32 %v4764, %v4503
      %v4770 = vmul.f32 %v4764, %v4504
      %v4771 = vmul.f32 %v4764, %v4505
      %v4772 = vmul.f32 %v4764, %v4506
      %v4773 = vmul.f32 %v4764, %v4507
      %v4774 = vmul.f32 %v4764, %v4508
      %v4775 = vmul.f32 %v4764, %v4509
      %v4776 = vmul.f32 %v4764, %v4510
      %v4777 = vmul.f32 %v4764, %v4511
      %v4778 = vmul.f32 %v4764, %v4512
      %v4779 = vmul.f32 %v4764, %v4513
      %v4780 = vmul.f32 %v4764, %v4514
      %v4781 = vmul.f32 %v4764, %v4515
      %v4782 = vmul.f32 %v4764, %v4516
      %v4783 = vmul.f32 %v4764, %v4517
      %v4784 = vmul.f32 %v4764, %v4518
      %v4785 = vmul.f32 %v4764, %v4519
      %v4786 = vmul.f32 %v4764, %v4520
      %v4787 = vmul.f32 %v4764, %v4521
      %v4788 = vmul.f32 %v4764, %v4522
      %v4789 = vmul.f32 %v4764, %v4523
      %v4790 = vmul.f32 %v4764, %v4524
      %v4791 = vmul.f32 %v4764, %v4525
      %v4792 = vmul.f32 %v4764, %v4526
      %v4793 = vmul.f32 %v4764, %v4527
      %v4794 = vmul.f32 %v4764, %v4528
      %v4795 = vmul.f32 %v4764, %v4529
      %v4796 = vmul.f32 %v4764, %v4530
      %v4797 = vadd.f32 %v4731, %v4765
      %v4798 = vadd.f32 %v4732, %v4766
      %v4799 = vadd.f32 %v4733, %v4767
      %v4800 = vadd.f32 %v4734, %v4768
      %v4801 = vadd.f32 %v4735, %v4769
      %v4802 = vadd.f32 %v4736, %v4770
      %v4803 = vadd.f32 %v4737, %v4771
      %v4804 = vadd.f32 %v4738, %v4772
      %v4805 = vadd.f32 %v4739, %v4773
      %v4806 = vadd.f32 %v4740, %v4774
      %v4807 = vadd.f32 %v4741, %v4775
      %v4808 = vadd.f32 %v4742, %v4776
      %v4809 = vadd.f32 %v4743, %v4777
      %v4810 = vadd.f32 %v4744, %v4778
      %v4811 = vadd.f32 %v4745, %v4779
      %v4812 = vadd.f32 %v4746, %v4780
      %v4813 = vadd.f32 %v4747, %v4781
      %v4814 = vadd.f32 %v4748, %v4782
      %v4815 = vadd.f32 %v4749, %v4783
      %v4816 = vadd.f32 %v4750, %v4784
      %v4817 = vadd.f32 %v4751, %v4785
      %v4818 = vadd.f32 %v4752, %v4786
      %v4819 = vadd.f32 %v4753, %v4787
      %v4820 = vadd.f32 %v4754, %v4788
      %v4821 = vadd.f32 %v4755, %v4789
      %v4822 = vadd.f32 %v4756, %v4790
      %v4823 = vadd.f32 %v4757, %v4791
      %v4824 = vadd.f32 %v4758, %v4792
      %v4825 = vadd.f32 %v4759, %v4793
      %v4826 = vadd.f32 %v4760, %v4794
      %v4827 = vadd.f32 %v4761, %v4795
      %v4828 = vadd.f32 %v4762, %v4796
      %v4829 = vld [vmem:[#allocation2 + $0x2] sm:$0xff]
      %v4830 = vld [vmem:[#allocation2 + $0xa] sm:$0xff]
      %v4831 = vld [vmem:[#allocation2 + $0x1a] sm:$0xff]
      %v4832 = vld [vmem:[#allocation2 + $0x22] sm:$0xff]
      %v4833 = vld [vmem:[#allocation2 + $0x32] sm:$0xff]
      %v4834 = vld [vmem:[#allocation2 + $0x3a] sm:$0xff]
      %v4835 = vld [vmem:[#allocation2 + $0x4a] sm:$0xff]
      %v4836 = vld [vmem:[#allocation2 + $0x52] sm:$0xff]
      %v4837 = vld [vmem:[#allocation2 + $0x62] sm:$0xff]
      %v4838 = vld [vmem:[#allocation2 + $0x6a] sm:$0xff]
      %v4839 = vld [vmem:[#allocation2 + $0x7a] sm:$0xff]
      %v4840 = vld [vmem:[#allocation2 + $0x82] sm:$0xff]
      %v4841 = vld [vmem:[#allocation2 + $0x92] sm:$0xff]
      %v4842 = vld [vmem:[#allocation2 + $0x9a] sm:$0xff]
      %v4843 = vld [vmem:[#allocation2 + $0xaa] sm:$0xff]
      %v4844 = vld [vmem:[#allocation2 + $0xb2] sm:$0xff]
      %v4845 = vld [vmem:[#allocation2 + $0xc2] sm:$0xff]
      %v4846 = vld [vmem:[#allocation2 + $0xca] sm:$0xff]
      %v4847 = vld [vmem:[#allocation2 + $0xda] sm:$0xff]
      %v4848 = vld [vmem:[#allocation2 + $0xe2] sm:$0xff]
      %v4849 = vld [vmem:[#allocation2 + $0xf2] sm:$0xff]
      %v4850 = vld [vmem:[#allocation2 + $0xfa] sm:$0xff]
      %v4851 = vld [vmem:[#allocation2 + $0x10a] sm:$0xff]
      %v4852 = vld [vmem:[#allocation2 + $0x112] sm:$0xff]
      %v4853 = vld [vmem:[#allocation2 + $0x122] sm:$0xff]
      %v4854 = vld [vmem:[#allocation2 + $0x12a] sm:$0xff]
      %v4855 = vld [vmem:[#allocation2 + $0x13a] sm:$0xff]
      %v4856 = vld [vmem:[#allocation2 + $0x142] sm:$0xff]
      %v4857 = vld [vmem:[#allocation2 + $0x152] sm:$0xff]
      %v4858 = vld [vmem:[#allocation2 + $0x15a] sm:$0xff]
      %v4859 = vld [vmem:[#allocation2 + $0x16a] sm:$0xff]
      %v4860 = vld [vmem:[#allocation2 + $0x172] sm:$0xff]
      %v4861 = vld [vmem:[#allocation2 + $0x182] sm:$0xff]
      %v4862 = vld [vmem:[#allocation2 + $0x18a] sm:$0xff]
      %v4863 = vld [vmem:[#allocation2 + $0x19a] sm:$0xff]
      %v4864 = vld [vmem:[#allocation2 + $0x1a2] sm:$0xff]
      %v4865 = vld [vmem:[#allocation2 + $0x1b2] sm:$0xff]
      %v4866 = vld [vmem:[#allocation2 + $0x1ba] sm:$0xff]
      %v4867 = vld [vmem:[#allocation2 + $0x1ca] sm:$0xff]
      %v4868 = vld [vmem:[#allocation2 + $0x1d2] sm:$0xff]
      %v4869 = vld [vmem:[%s8 + $0x2] sm:$0x1]
      %v4870 = vperm.slane %v4869, 0
      %v4871 = vmul.f32 %v4870, %v4829
      %v4872 = vmul.f32 %v4870, %v4830
      %v4873 = vmul.f32 %v4870, %v4831
      %v4874 = vmul.f32 %v4870, %v4832
      %v4875 = vmul.f32 %v4870, %v4833
      %v4876 = vmul.f32 %v4870, %v4834
      %v4877 = vmul.f32 %v4870, %v4835
      %v4878 = vmul.f32 %v4870, %v4836
      %v4879 = vmul.f32 %v4870, %v4837
      %v4880 = vmul.f32 %v4870, %v4838
      %v4881 = vmul.f32 %v4870, %v4839
      %v4882 = vmul.f32 %v4870, %v4840
      %v4883 = vmul.f32 %v4870, %v4841
      %v4884 = vmul.f32 %v4870, %v4842
      %v4885 = vmul.f32 %v4870, %v4843
      %v4886 = vmul.f32 %v4870, %v4844
      %v4887 = vmul.f32 %v4870, %v4845
      %v4888 = vmul.f32 %v4870, %v4846
      %v4889 = vmul.f32 %v4870, %v4847
      %v4890 = vmul.f32 %v4870, %v4848
      %v4891 = vmul.f32 %v4870, %v4849
      %v4892 = vmul.f32 %v4870, %v4850
      %v4893 = vmul.f32 %v4870, %v4851
      %v4894 = vmul.f32 %v4870, %v4852
      %v4895 = vmul.f32 %v4870, %v4853
      %v4896 = vmul.f32 %v4870, %v4854
      %v4897 = vmul.f32 %v4870, %v4855
      %v4898 = vmul.f32 %v4870, %v4856
      %v4899 = vmul.f32 %v4870, %v4857
      %v4900 = vmul.f32 %v4870, %v4858
      %v4901 = vmul.f32 %v4870, %v4859
      %v4902 = vmul.f32 %v4870, %v4860
      %v4903 = vld [vmem:[%s8 + $0x7] sm:$0x1]
      %v4904 = vperm.slane %v4903, 0
      %v4905 = vmul.f32 %v4904, %v4831
      %v4906 = vmul.f32 %v4904, %v4832
      %v4907 = vmul.f32 %v4904, %v4833
      %v4908 = vmul.f32 %v4904, %v4834
      %v4909 = vmul.f32 %v4904, %v4835
      %v4910 = vmul.f32 %v4904, %v4836
      %v4911 = vmul.f32 %v4904, %v4837
      %v4912 = vmul.f32 %v4904, %v4838
      %v4913 = vmul.f32 %v4904, %v4839
      %v4914 = vmul.f32 %v4904, %v4840
      %v4915 = vmul.f32 %v4904, %v4841
      %v4916 = vmul.f32 %v4904, %v4842
      %v4917 = vmul.f32 %v4904, %v4843
      %v4918 = vmul.f32 %v4904, %v4844
      %v4919 = vmul.f32 %v4904, %v4845
      %v4920 = vmul.f32 %v4904, %v4846
      %v4921 = vmul.f32 %v4904, %v4847
      %v4922 = vmul.f32 %v4904, %v4848
      %v4923 = vmul.f32 %v4904, %v4849
      %v4924 = vmul.f32 %v4904, %v4850
      %v4925 = vmul.f32 %v4904, %v4851
      %v4926 = vmul.f32 %v4904, %v4852
      %v4927 = vmul.f32 %v4904, %v4853
      %v4928 = vmul.f32 %v4904, %v4854
      %v4929 = vmul.f32 %v4904, %v4855
      %v4930 = vmul.f32 %v4904, %v4856
      %v4931 = vmul.f32 %v4904, %v4857
      %v4932 = vmul.f32 %v4904, %v4858
      %v4933 = vmul.f32 %v4904, %v4859
      %v4934 = vmul.f32 %v4904, %v4860
      %v4935 = vmul.f32 %v4904, %v4861
      %v4936 = vmul.f32 %v4904, %v4862
      %v4937 = vadd.f32 %v4871, %v4905
      %v4938 = vadd.f32 %v4872, %v4906
      %v4939 = vadd.f32 %v4873, %v4907
      %v4940 = vadd.f32 %v4874, %v4908
      %v4941 = vadd.f32 %v4875, %v4909
      %v4942 = vadd.f32 %v4876, %v4910
      %v4943 = vadd.f32 %v4877, %v4911
      %v4944 = vadd.f32 %v4878, %v4912
      %v4945 = vadd.f32 %v4879, %v4913
      %v4946 = vadd.f32 %v4880, %v4914
      %v4947 = vadd.f32 %v4881, %v4915
      %v4948 = vadd.f32 %v4882, %v4916
      %v4949 = vadd.f32 %v4883, %v4917
      %v4950 = vadd.f32 %v4884, %v4918
      %v4951 = vadd.f32 %v4885, %v4919
      %v4952 = vadd.f32 %v4886, %v4920
      %v4953 = vadd.f32 %v4887, %v4921
      %v4954 = vadd.f32 %v4888, %v4922
      %v4955 = vadd.f32 %v4889, %v4923
      %v4956 = vadd.f32 %v4890, %v4924
      %v4957 = vadd.f32 %v4891, %v4925
      %v4958 = vadd.f32 %v4892, %v4926
      %v4959 = vadd.f32 %v4893, %v4927
      %v4960 = vadd.f32 %v4894, %v4928
      %v4961 = vadd.f32 %v4895, %v4929
      %v4962 = vadd.f32 %v4896, %v4930
      %v4963 = vadd.f32 %v4897, %v4931
      %v4964 = vadd.f32 %v4898, %v4932
      %v4965 = vadd.f32 %v4899, %v4933
      %v4966 = vadd.f32 %v4900, %v4934
      %v4967 = vadd.f32 %v4901, %v4935
      %v4968 = vadd.f32 %v4902, %v4936
      %v4969 = vld [vmem:[%s8 + $0xc] sm:$0x1]
      %v4970 = vperm.slane %v4969, 0
      %v4971 = vmul.f32 %v4970, %v4833
      %v4972 = vmul.f32 %v4970, %v4834
      %v4973 = vmul.f32 %v4970, %v4835
      %v4974 = vmul.f32 %v4970, %v4836
      %v4975 = vmul.f32 %v4970, %v4837
      %v4976 = vmul.f32 %v4970, %v4838
      %v4977 = vmul.f32 %v4970, %v4839
      %v4978 = vmul.f32 %v4970, %v4840
      %v4979 = vmul.f32 %v4970, %v4841
      %v4980 = vmul.f32 %v4970, %v4842
      %v4981 = vmul.f32 %v4970, %v4843
      %v4982 = vmul.f32 %v4970, %v4844
      %v4983 = vmul.f32 %v4970, %v4845
      %v4984 = vmul.f32 %v4970, %v4846
      %v4985 = vmul.f32 %v4970, %v4847
      %v4986 = vmul.f32 %v4970, %v4848
      %v4987 = vmul.f32 %v4970, %v4849
      %v4988 = vmul.f32 %v4970, %v4850
      %v4989 = vmul.f32 %v4970, %v4851
      %v4990 = vmul.f32 %v4970, %v4852
      %v4991 = vmul.f32 %v4970, %v4853
      %v4992 = vmul.f32 %v4970, %v4854
      %v4993 = vmul.f32 %v4970, %v4855
      %v4994 = vmul.f32 %v4970, %v4856
      %v4995 = vmul.f32 %v4970, %v4857
      %v4996 = vmul.f32 %v4970, %v4858
      %v4997 = vmul.f32 %v4970, %v4859
      %v4998 = vmul.f32 %v4970, %v4860
      %v4999 = vmul.f32 %v4970, %v4861
      %v5000 = vmul.f32 %v4970, %v4862
      %v5001 = vmul.f32 %v4970, %v4863
      %v5002 = vmul.f32 %v4970, %v4864
      %v5003 = vadd.f32 %v4937, %v4971
      %v5004 = vadd.f32 %v4938, %v4972
      %v5005 = vadd.f32 %v4939, %v4973
      %v5006 = vadd.f32 %v4940, %v4974
      %v5007 = vadd.f32 %v4941, %v4975
      %v5008 = vadd.f32 %v4942, %v4976
      %v5009 = vadd.f32 %v4943, %v4977
      %v5010 = vadd.f32 %v4944, %v4978
      %v5011 = vadd.f32 %v4945, %v4979
      %v5012 = vadd.f32 %v4946, %v4980
      %v5013 = vadd.f32 %v4947, %v4981
      %v5014 = vadd.f32 %v4948, %v4982
      %v5015 = vadd.f32 %v4949, %v4983
      %v5016 = vadd.f32 %v4950, %v4984
      %v5017 = vadd.f32 %v4951, %v4985
      %v5018 = vadd.f32 %v4952, %v4986
      %v5019 = vadd.f32 %v4953, %v4987
      %v5020 = vadd.f32 %v4954, %v4988
      %v5021 = vadd.f32 %v4955, %v4989
      %v5022 = vadd.f32 %v4956, %v4990
      %v5023 = vadd.f32 %v4957, %v4991
      %v5024 = vadd.f32 %v4958, %v4992
      %v5025 = vadd.f32 %v4959, %v4993
      %v5026 = vadd.f32 %v4960, %v4994
      %v5027 = vadd.f32 %v4961, %v4995
      %v5028 = vadd.f32 %v4962, %v4996
      %v5029 = vadd.f32 %v4963, %v4997
      %v5030 = vadd.f32 %v4964, %v4998
      %v5031 = vadd.f32 %v4965, %v4999
      %v5032 = vadd.f32 %v4966, %v5000
      %v5033 = vadd.f32 %v4967, %v5001
      %v5034 = vadd.f32 %v4968, %v5002
      %v5035 = vld [vmem:[%s8 + $0x11] sm:$0x1]
      %v5036 = vperm.slane %v5035, 0
      %v5037 = vmul.f32 %v5036, %v4835
      %v5038 = vmul.f32 %v5036, %v4836
      %v5039 = vmul.f32 %v5036, %v4837
      %v5040 = vmul.f32 %v5036, %v4838
      %v5041 = vmul.f32 %v5036, %v4839
      %v5042 = vmul.f32 %v5036, %v4840
      %v5043 = vmul.f32 %v5036, %v4841
      %v5044 = vmul.f32 %v5036, %v4842
      %v5045 = vmul.f32 %v5036, %v4843
      %v5046 = vmul.f32 %v5036, %v4844
      %v5047 = vmul.f32 %v5036, %v4845
      %v5048 = vmul.f32 %v5036, %v4846
      %v5049 = vmul.f32 %v5036, %v4847
      %v5050 = vmul.f32 %v5036, %v4848
      %v5051 = vmul.f32 %v5036, %v4849
      %v5052 = vmul.f32 %v5036, %v4850
      %v5053 = vmul.f32 %v5036, %v4851
      %v5054 = vmul.f32 %v5036, %v4852
      %v5055 = vmul.f32 %v5036, %v4853
      %v5056 = vmul.f32 %v5036, %v4854
      %v5057 = vmul.f32 %v5036, %v4855
      %v5058 = vmul.f32 %v5036, %v4856
      %v5059 = vmul.f32 %v5036, %v4857
      %v5060 = vmul.f32 %v5036, %v4858
      %v5061 = vmul.f32 %v5036, %v4859
      %v5062 = vmul.f32 %v5036, %v4860
      %v5063 = vmul.f32 %v5036, %v4861
      %v5064 = vmul.f32 %v5036, %v4862
      %v5065 = vmul.f32 %v5036, %v4863
      %v5066 = vmul.f32 %v5036, %v4864
      %v5067 = vmul.f32 %v5036, %v4865
      %v5068 = vmul.f32 %v5036, %v4866
      %v5069 = vadd.f32 %v5003, %v5037
      %v5070 = vadd.f32 %v5004, %v5038
      %v5071 = vadd.f32 %v5005, %v5039
      %v5072 = vadd.f32 %v5006, %v5040
      %v5073 = vadd.f32 %v5007, %v5041
      %v5074 = vadd.f32 %v5008, %v5042
      %v5075 = vadd.f32 %v5009, %v5043
      %v5076 = vadd.f32 %v5010, %v5044
      %v5077 = vadd.f32 %v5011, %v5045
      %v5078 = vadd.f32 %v5012, %v5046
      %v5079 = vadd.f32 %v5013, %v5047
      %v5080 = vadd.f32 %v5014, %v5048
      %v5081 = vadd.f32 %v5015, %v5049
      %v5082 = vadd.f32 %v5016, %v5050
      %v5083 = vadd.f32 %v5017, %v5051
      %v5084 = vadd.f32 %v5018, %v5052
      %v5085 = vadd.f32 %v5019, %v5053
      %v5086 = vadd.f32 %v5020, %v5054
      %v5087 = vadd.f32 %v5021, %v5055
      %v5088 = vadd.f32 %v5022, %v5056
      %v5089 = vadd.f32 %v5023, %v5057
      %v5090 = vadd.f32 %v5024, %v5058
      %v5091 = vadd.f32 %v5025, %v5059
      %v5092 = vadd.f32 %v5026, %v5060
      %v5093 = vadd.f32 %v5027, %v5061
      %v5094 = vadd.f32 %v5028, %v5062
      %v5095 = vadd.f32 %v5029, %v5063
      %v5096 = vadd.f32 %v5030, %v5064
      %v5097 = vadd.f32 %v5031, %v5065
      %v5098 = vadd.f32 %v5032, %v5066
      %v5099 = vadd.f32 %v5033, %v5067
      %v5100 = vadd.f32 %v5034, %v5068
      %v5101 = vld [vmem:[%s8 + $0x16] sm:$0x1]
      %v5102 = vperm.slane %v5101, 0
      %v5103 = vmul.f32 %v5102, %v4837
      %v5104 = vmul.f32 %v5102, %v4838
      %v5105 = vmul.f32 %v5102, %v4839
      %v5106 = vmul.f32 %v5102, %v4840
      %v5107 = vmul.f32 %v5102, %v4841
      %v5108 = vmul.f32 %v5102, %v4842
      %v5109 = vmul.f32 %v5102, %v4843
      %v5110 = vmul.f32 %v5102, %v4844
      %v5111 = vmul.f32 %v5102, %v4845
      %v5112 = vmul.f32 %v5102, %v4846
      %v5113 = vmul.f32 %v5102, %v4847
      %v5114 = vmul.f32 %v5102, %v4848
      %v5115 = vmul.f32 %v5102, %v4849
      %v5116 = vmul.f32 %v5102, %v4850
      %v5117 = vmul.f32 %v5102, %v4851
      %v5118 = vmul.f32 %v5102, %v4852
      %v5119 = vmul.f32 %v5102, %v4853
      %v5120 = vmul.f32 %v5102, %v4854
      %v5121 = vmul.f32 %v5102, %v4855
      %v5122 = vmul.f32 %v5102, %v4856
      %v5123 = vmul.f32 %v5102, %v4857
      %v5124 = vmul.f32 %v5102, %v4858
      %v5125 = vmul.f32 %v5102, %v4859
      %v5126 = vmul.f32 %v5102, %v4860
      %v5127 = vmul.f32 %v5102, %v4861
      %v5128 = vmul.f32 %v5102, %v4862
      %v5129 = vmul.f32 %v5102, %v4863
      %v5130 = vmul.f32 %v5102, %v4864
      %v5131 = vmul.f32 %v5102, %v4865
      %v5132 = vmul.f32 %v5102, %v4866
      %v5133 = vmul.f32 %v5102, %v4867
      %v5134 = vmul.f32 %v5102, %v4868
      %v5135 = vadd.f32 %v5069, %v5103
      %v5136 = vadd.f32 %v5070, %v5104
      %v5137 = vadd.f32 %v5071, %v5105
      %v5138 = vadd.f32 %v5072, %v5106
      %v5139 = vadd.f32 %v5073, %v5107
      %v5140 = vadd.f32 %v5074, %v5108
      %v5141 = vadd.f32 %v5075, %v5109
      %v5142 = vadd.f32 %v5076, %v5110
      %v5143 = vadd.f32 %v5077, %v5111
      %v5144 = vadd.f32 %v5078, %v5112
      %v5145 = vadd.f32 %v5079, %v5113
      %v5146 = vadd.f32 %v5080, %v5114
      %v5147 = vadd.f32 %v5081, %v5115
      %v5148 = vadd.f32 %v5082, %v5116
      %v5149 = vadd.f32 %v5083, %v5117
      %v5150 = vadd.f32 %v5084, %v5118
      %v5151 = vadd.f32 %v5085, %v5119
      %v5152 = vadd.f32 %v5086, %v5120
      %v5153 = vadd.f32 %v5087, %v5121
      %v5154 = vadd.f32 %v5088, %v5122
      %v5155 = vadd.f32 %v5089, %v5123
      %v5156 = vadd.f32 %v5090, %v5124
      %v5157 = vadd.f32 %v5091, %v5125
      %v5158 = vadd.f32 %v5092, %v5126
      %v5159 = vadd.f32 %v5093, %v5127
      %v5160 = vadd.f32 %v5094, %v5128
      %v5161 = vadd.f32 %v5095, %v5129
      %v5162 = vadd.f32 %v5096, %v5130
      %v5163 = vadd.f32 %v5097, %v5131
      %v5164 = vadd.f32 %v5098, %v5132
      %v5165 = vadd.f32 %v5099, %v5133
      %v5166 = vadd.f32 %v5100, %v5134
      %v5167 = vld [vmem:[#allocation2 + $0x3] sm:$0xff]
      %v5168 = vld [vmem:[#allocation2 + $0xb] sm:$0xff]
      %v5169 = vld [vmem:[#allocation2 + $0x1b] sm:$0xff]
      %v5170 = vld [vmem:[#allocation2 + $0x23] sm:$0xff]
      %v5171 = vld [vmem:[#allocation2 + $0x33] sm:$0xff]
      %v5172 = vld [vmem:[#allocation2 + $0x3b] sm:$0xff]
      %v5173 = vld [vmem:[#allocation2 + $0x4b] sm:$0xff]
      %v5174 = vld [vmem:[#allocation2 + $0x53] sm:$0xff]
      %v5175 = vld [vmem:[#allocation2 + $0x63] sm:$0xff]
      %v5176 = vld [vmem:[#allocation2 + $0x6b] sm:$0xff]
      %v5177 = vld [vmem:[#allocation2 + $0x7b] sm:$0xff]
      %v5178 = vld [vmem:[#allocation2 + $0x83] sm:$0xff]
      %v5179 = vld [vmem:[#allocation2 + $0x93] sm:$0xff]
      %v5180 = vld [vmem:[#allocation2 + $0x9b] sm:$0xff]
      %v5181 = vld [vmem:[#allocation2 + $0xab] sm:$0xff]
      %v5182 = vld [vmem:[#allocation2 + $0xb3] sm:$0xff]
      %v5183 = vld [vmem:[#allocation2 + $0xc3] sm:$0xff]
      %v5184 = vld [vmem:[#allocation2 + $0xcb] sm:$0xff]
      %v5185 = vld [vmem:[#allocation2 + $0xdb] sm:$0xff]
      %v5186 = vld [vmem:[#allocation2 + $0xe3] sm:$0xff]
      %v5187 = vld [vmem:[#allocation2 + $0xf3] sm:$0xff]
      %v5188 = vld [vmem:[#allocation2 + $0xfb] sm:$0xff]
      %v5189 = vld [vmem:[#allocation2 + $0x10b] sm:$0xff]
      %v5190 = vld [vmem:[#allocation2 + $0x113] sm:$0xff]
      %v5191 = vld [vmem:[#allocation2 + $0x123] sm:$0xff]
      %v5192 = vld [vmem:[#allocation2 + $0x12b] sm:$0xff]
      %v5193 = vld [vmem:[#allocation2 + $0x13b] sm:$0xff]
      %v5194 = vld [vmem:[#allocation2 + $0x143] sm:$0xff]
      %v5195 = vld [vmem:[#allocation2 + $0x153] sm:$0xff]
      %v5196 = vld [vmem:[#allocation2 + $0x15b] sm:$0xff]
      %v5197 = vld [vmem:[#allocation2 + $0x16b] sm:$0xff]
      %v5198 = vld [vmem:[#allocation2 + $0x173] sm:$0xff]
      %v5199 = vld [vmem:[#allocation2 + $0x183] sm:$0xff]
      %v5200 = vld [vmem:[#allocation2 + $0x18b] sm:$0xff]
      %v5201 = vld [vmem:[#allocation2 + $0x19b] sm:$0xff]
      %v5202 = vld [vmem:[#allocation2 + $0x1a3] sm:$0xff]
      %v5203 = vld [vmem:[#allocation2 + $0x1b3] sm:$0xff]
      %v5204 = vld [vmem:[#allocation2 + $0x1bb] sm:$0xff]
      %v5205 = vld [vmem:[#allocation2 + $0x1cb] sm:$0xff]
      %v5206 = vld [vmem:[#allocation2 + $0x1d3] sm:$0xff]
      %v5207 = vld [vmem:[%s8 + $0x3] sm:$0x1]
      %v5208 = vperm.slane %v5207, 0
      %v5209 = vmul.f32 %v5208, %v5167
      %v5210 = vmul.f32 %v5208, %v5168
      %v5211 = vmul.f32 %v5208, %v5169
      %v5212 = vmul.f32 %v5208, %v5170
      %v5213 = vmul.f32 %v5208, %v5171
      %v5214 = vmul.f32 %v5208, %v5172
      %v5215 = vmul.f32 %v5208, %v5173
      %v5216 = vmul.f32 %v5208, %v5174
      %v5217 = vmul.f32 %v5208, %v5175
      %v5218 = vmul.f32 %v5208, %v5176
      %v5219 = vmul.f32 %v5208, %v5177
      %v5220 = vmul.f32 %v5208, %v5178
      %v5221 = vmul.f32 %v5208, %v5179
      %v5222 = vmul.f32 %v5208, %v5180
      %v5223 = vmul.f32 %v5208, %v5181
      %v5224 = vmul.f32 %v5208, %v5182
      %v5225 = vmul.f32 %v5208, %v5183
      %v5226 = vmul.f32 %v5208, %v5184
      %v5227 = vmul.f32 %v5208, %v5185
      %v5228 = vmul.f32 %v5208, %v5186
      %v5229 = vmul.f32 %v5208, %v5187
      %v5230 = vmul.f32 %v5208, %v5188
      %v5231 = vmul.f32 %v5208, %v5189
      %v5232 = vmul.f32 %v5208, %v5190
      %v5233 = vmul.f32 %v5208, %v5191
      %v5234 = vmul.f32 %v5208, %v5192
      %v5235 = vmul.f32 %v5208, %v5193
      %v5236 = vmul.f32 %v5208, %v5194
      %v5237 = vmul.f32 %v5208, %v5195
      %v5238 = vmul.f32 %v5208, %v5196
      %v5239 = vmul.f32 %v5208, %v5197
      %v5240 = vmul.f32 %v5208, %v5198
      %v5241 = vld [vmem:[%s8 + $0x8] sm:$0x1]
      %v5242 = vperm.slane %v5241, 0
      %v5243 = vmul.f32 %v5242, %v5169
      %v5244 = vmul.f32 %v5242, %v5170
      %v5245 = vmul.f32 %v5242, %v5171
      %v5246 = vmul.f32 %v5242, %v5172
      %v5247 = vmul.f32 %v5242, %v5173
      %v5248 = vmul.f32 %v5242, %v5174
      %v5249 = vmul.f32 %v5242, %v5175
      %v5250 = vmul.f32 %v5242, %v5176
      %v5251 = vmul.f32 %v5242, %v5177
      %v5252 = vmul.f32 %v5242, %v5178
      %v5253 = vmul.f32 %v5242, %v5179
      %v5254 = vmul.f32 %v5242, %v5180
      %v5255 = vmul.f32 %v5242, %v5181
      %v5256 = vmul.f32 %v5242, %v5182
      %v5257 = vmul.f32 %v5242, %v5183
      %v5258 = vmul.f32 %v5242, %v5184
      %v5259 = vmul.f32 %v5242, %v5185
      %v5260 = vmul.f32 %v5242, %v5186
      %v5261 = vmul.f32 %v5242, %v5187
      %v5262 = vmul.f32 %v5242, %v5188
      %v5263 = vmul.f32 %v5242, %v5189
      %v5264 = vmul.f32 %v5242, %v5190
      %v5265 = vmul.f32 %v5242, %v5191
      %v5266 = vmul.f32 %v5242, %v5192
      %v5267 = vmul.f32 %v5242, %v5193
      %v5268 = vmul.f32 %v5242, %v5194
      %v5269 = vmul.f32 %v5242, %v5195
      %v5270 = vmul.f32 %v5242, %v5196
      %v5271 = vmul.f32 %v5242, %v5197
      %v5272 = vmul.f32 %v5242, %v5198
      %v5273 = vmul.f32 %v5242, %v5199
      %v5274 = vmul.f32 %v5242, %v5200
      %v5275 = vadd.f32 %v5209, %v5243
      %v5276 = vadd.f32 %v5210, %v5244
      %v5277 = vadd.f32 %v5211, %v5245
      %v5278 = vadd.f32 %v5212, %v5246
      %v5279 = vadd.f32 %v5213, %v5247
      %v5280 = vadd.f32 %v5214, %v5248
      %v5281 = vadd.f32 %v5215, %v5249
      %v5282 = vadd.f32 %v5216, %v5250
      %v5283 = vadd.f32 %v5217, %v5251
      %v5284 = vadd.f32 %v5218, %v5252
      %v5285 = vadd.f32 %v5219, %v5253
      %v5286 = vadd.f32 %v5220, %v5254
      %v5287 = vadd.f32 %v5221, %v5255
      %v5288 = vadd.f32 %v5222, %v5256
      %v5289 = vadd.f32 %v5223, %v5257
      %v5290 = vadd.f32 %v5224, %v5258
      %v5291 = vadd.f32 %v5225, %v5259
      %v5292 = vadd.f32 %v5226, %v5260
      %v5293 = vadd.f32 %v5227, %v5261
      %v5294 = vadd.f32 %v5228, %v5262
      %v5295 = vadd.f32 %v5229, %v5263
      %v5296 = vadd.f32 %v5230, %v5264
      %v5297 = vadd.f32 %v5231, %v5265
      %v5298 = vadd.f32 %v5232, %v5266
      %v5299 = vadd.f32 %v5233, %v5267
      %v5300 = vadd.f32 %v5234, %v5268
      %v5301 = vadd.f32 %v5235, %v5269
      %v5302 = vadd.f32 %v5236, %v5270
      %v5303 = vadd.f32 %v5237, %v5271
      %v5304 = vadd.f32 %v5238, %v5272
      %v5305 = vadd.f32 %v5239, %v5273
      %v5306 = vadd.f32 %v5240, %v5274
      %v5307 = vld [vmem:[%s8 + $0xd] sm:$0x1]
      %v5308 = vperm.slane %v5307, 0
      %v5309 = vmul.f32 %v5308, %v5171
      %v5310 = vmul.f32 %v5308, %v5172
      %v5311 = vmul.f32 %v5308, %v5173
      %v5312 = vmul.f32 %v5308, %v5174
      %v5313 = vmul.f32 %v5308, %v5175
      %v5314 = vmul.f32 %v5308, %v5176
      %v5315 = vmul.f32 %v5308, %v5177
      %v5316 = vmul.f32 %v5308, %v5178
      %v5317 = vmul.f32 %v5308, %v5179
      %v5318 = vmul.f32 %v5308, %v5180
      %v5319 = vmul.f32 %v5308, %v5181
      %v5320 = vmul.f32 %v5308, %v5182
      %v5321 = vmul.f32 %v5308, %v5183
      %v5322 = vmul.f32 %v5308, %v5184
      %v5323 = vmul.f32 %v5308, %v5185
      %v5324 = vmul.f32 %v5308, %v5186
      %v5325 = vmul.f32 %v5308, %v5187
      %v5326 = vmul.f32 %v5308, %v5188
      %v5327 = vmul.f32 %v5308, %v5189
      %v5328 = vmul.f32 %v5308, %v5190
      %v5329 = vmul.f32 %v5308, %v5191
      %v5330 = vmul.f32 %v5308, %v5192
      %v5331 = vmul.f32 %v5308, %v5193
      %v5332 = vmul.f32 %v5308, %v5194
      %v5333 = vmul.f32 %v5308, %v5195
      %v5334 = vmul.f32 %v5308, %v5196
      %v5335 = vmul.f32 %v5308, %v5197
      %v5336 = vmul.f32 %v5308, %v5198
      %v5337 = vmul.f32 %v5308, %v5199
      %v5338 = vmul.f32 %v5308, %v5200
      %v5339 = vmul.f32 %v5308, %v5201
      %v5340 = vmul.f32 %v5308, %v5202
      %v5341 = vadd.f32 %v5275, %v5309
      %v5342 = vadd.f32 %v5276, %v5310
      %v5343 = vadd.f32 %v5277, %v5311
      %v5344 = vadd.f32 %v5278, %v5312
      %v5345 = vadd.f32 %v5279, %v5313
      %v5346 = vadd.f32 %v5280, %v5314
      %v5347 = vadd.f32 %v5281, %v5315
      %v5348 = vadd.f32 %v5282, %v5316
      %v5349 = vadd.f32 %v5283, %v5317
      %v5350 = vadd.f32 %v5284, %v5318
      %v5351 = vadd.f32 %v5285, %v5319
      %v5352 = vadd.f32 %v5286, %v5320
      %v5353 = vadd.f32 %v5287, %v5321
      %v5354 = vadd.f32 %v5288, %v5322
      %v5355 = vadd.f32 %v5289, %v5323
      %v5356 = vadd.f32 %v5290, %v5324
      %v5357 = vadd.f32 %v5291, %v5325
      %v5358 = vadd.f32 %v5292, %v5326
      %v5359 = vadd.f32 %v5293, %v5327
      %v5360 = vadd.f32 %v5294, %v5328
      %v5361 = vadd.f32 %v5295, %v5329
      %v5362 = vadd.f32 %v5296, %v5330
      %v5363 = vadd.f32 %v5297, %v5331
      %v5364 = vadd.f32 %v5298, %v5332
      %v5365 = vadd.f32 %v5299, %v5333
      %v5366 = vadd.f32 %v5300, %v5334
      %v5367 = vadd.f32 %v5301, %v5335
      %v5368 = vadd.f32 %v5302, %v5336
      %v5369 = vadd.f32 %v5303, %v5337
      %v5370 = vadd.f32 %v5304, %v5338
      %v5371 = vadd.f32 %v5305, %v5339
      %v5372 = vadd.f32 %v5306, %v5340
      %v5373 = vld [vmem:[%s8 + $0x12] sm:$0x1]
      %v5374 = vperm.slane %v5373, 0
      %v5375 = vmul.f32 %v5374, %v5173
      %v5376 = vmul.f32 %v5374, %v5174
      %v5377 = vmul.f32 %v5374, %v5175
      %v5378 = vmul.f32 %v5374, %v5176
      %v5379 = vmul.f32 %v5374, %v5177
      %v5380 = vmul.f32 %v5374, %v5178
      %v5381 = vmul.f32 %v5374, %v5179
      %v5382 = vmul.f32 %v5374, %v5180
      %v5383 = vmul.f32 %v5374, %v5181
      %v5384 = vmul.f32 %v5374, %v5182
      %v5385 = vmul.f32 %v5374, %v5183
      %v5386 = vmul.f32 %v5374, %v5184
      %v5387 = vmul.f32 %v5374, %v5185
      %v5388 = vmul.f32 %v5374, %v5186
      %v5389 = vmul.f32 %v5374, %v5187
      %v5390 = vmul.f32 %v5374, %v5188
      %v5391 = vmul.f32 %v5374, %v5189
      %v5392 = vmul.f32 %v5374, %v5190
      %v5393 = vmul.f32 %v5374, %v5191
      %v5394 = vmul.f32 %v5374, %v5192
      %v5395 = vmul.f32 %v5374, %v5193
      %v5396 = vmul.f32 %v5374, %v5194
      %v5397 = vmul.f32 %v5374, %v5195
      %v5398 = vmul.f32 %v5374, %v5196
      %v5399 = vmul.f32 %v5374, %v5197
      %v5400 = vmul.f32 %v5374, %v5198
      %v5401 = vmul.f32 %v5374, %v5199
      %v5402 = vmul.f32 %v5374, %v5200
      %v5403 = vmul.f32 %v5374, %v5201
      %v5404 = vmul.f32 %v5374, %v5202
      %v5405 = vmul.f32 %v5374, %v5203
      %v5406 = vmul.f32 %v5374, %v5204
      %v5407 = vadd.f32 %v5341, %v5375
      %v5408 = vadd.f32 %v5342, %v5376
      %v5409 = vadd.f32 %v5343, %v5377
      %v5410 = vadd.f32 %v5344, %v5378
      %v5411 = vadd.f32 %v5345, %v5379
      %v5412 = vadd.f32 %v5346, %v5380
      %v5413 = vadd.f32 %v5347, %v5381
      %v5414 = vadd.f32 %v5348, %v5382
      %v5415 = vadd.f32 %v5349, %v5383
      %v5416 = vadd.f32 %v5350, %v5384
      %v5417 = vadd.f32 %v5351, %v5385
      %v5418 = vadd.f32 %v5352, %v5386
      %v5419 = vadd.f32 %v5353, %v5387
      %v5420 = vadd.f32 %v5354, %v5388
      %v5421 = vadd.f32 %v5355, %v5389
      %v5422 = vadd.f32 %v5356, %v5390
      %v5423 = vadd.f32 %v5357, %v5391
      %v5424 = vadd.f32 %v5358, %v5392
      %v5425 = vadd.f32 %v5359, %v5393
      %v5426 = vadd.f32 %v5360, %v5394
      %v5427 = vadd.f32 %v5361, %v5395
      %v5428 = vadd.f32 %v5362, %v5396
      %v5429 = vadd.f32 %v5363, %v5397
      %v5430 = vadd.f32 %v5364, %v5398
      %v5431 = vadd.f32 %v5365, %v5399
      %v5432 = vadd.f32 %v5366, %v5400
      %v5433 = vadd.f32 %v5367, %v5401
      %v5434 = vadd.f32 %v5368, %v5402
      %v5435 = vadd.f32 %v5369, %v5403
      %v5436 = vadd.f32 %v5370, %v5404
      %v5437 = vadd.f32 %v5371, %v5405
      %v5438 = vadd.f32 %v5372, %v5406
      %v5439 = vld [vmem:[%s8 + $0x17] sm:$0x1]
      %v5440 = vperm.slane %v5439, 0
      %v5441 = vmul.f32 %v5440, %v5175
      %v5442 = vmul.f32 %v5440, %v5176
      %v5443 = vmul.f32 %v5440, %v5177
      %v5444 = vmul.f32 %v5440, %v5178
      %v5445 = vmul.f32 %v5440, %v5179
      %v5446 = vmul.f32 %v5440, %v5180
      %v5447 = vmul.f32 %v5440, %v5181
      %v5448 = vmul.f32 %v5440, %v5182
      %v5449 = vmul.f32 %v5440, %v5183
      %v5450 = vmul.f32 %v5440, %v5184
      %v5451 = vmul.f32 %v5440, %v5185
      %v5452 = vmul.f32 %v5440, %v5186
      %v5453 = vmul.f32 %v5440, %v5187
      %v5454 = vmul.f32 %v5440, %v5188
      %v5455 = vmul.f32 %v5440, %v5189
      %v5456 = vmul.f32 %v5440, %v5190
      %v5457 = vmul.f32 %v5440, %v5191
      %v5458 = vmul.f32 %v5440, %v5192
      %v5459 = vmul.f32 %v5440, %v5193
      %v5460 = vmul.f32 %v5440, %v5194
      %v5461 = vmul.f32 %v5440, %v5195
      %v5462 = vmul.f32 %v5440, %v5196
      %v5463 = vmul.f32 %v5440, %v5197
      %v5464 = vmul.f32 %v5440, %v5198
      %v5465 = vmul.f32 %v5440, %v5199
      %v5466 = vmul.f32 %v5440, %v5200
      %v5467 = vmul.f32 %v5440, %v5201
      %v5468 = vmul.f32 %v5440, %v5202
      %v5469 = vmul.f32 %v5440, %v5203
      %v5470 = vmul.f32 %v5440, %v5204
      %v5471 = vmul.f32 %v5440, %v5205
      %v5472 = vmul.f32 %v5440, %v5206
      %v5473 = vadd.f32 %v5407, %v5441
      %v5474 = vadd.f32 %v5408, %v5442
      %v5475 = vadd.f32 %v5409, %v5443
      %v5476 = vadd.f32 %v5410, %v5444
      %v5477 = vadd.f32 %v5411, %v5445
      %v5478 = vadd.f32 %v5412, %v5446
      %v5479 = vadd.f32 %v5413, %v5447
      %v5480 = vadd.f32 %v5414, %v5448
      %v5481 = vadd.f32 %v5415, %v5449
      %v5482 = vadd.f32 %v5416, %v5450
      %v5483 = vadd.f32 %v5417, %v5451
      %v5484 = vadd.f32 %v5418, %v5452
      %v5485 = vadd.f32 %v5419, %v5453
      %v5486 = vadd.f32 %v5420, %v5454
      %v5487 = vadd.f32 %v5421, %v5455
      %v5488 = vadd.f32 %v5422, %v5456
      %v5489 = vadd.f32 %v5423, %v5457
      %v5490 = vadd.f32 %v5424, %v5458
      %v5491 = vadd.f32 %v5425, %v5459
      %v5492 = vadd.f32 %v5426, %v5460
      %v5493 = vadd.f32 %v5427, %v5461
      %v5494 = vadd.f32 %v5428, %v5462
      %v5495 = vadd.f32 %v5429, %v5463
      %v5496 = vadd.f32 %v5430, %v5464
      %v5497 = vadd.f32 %v5431, %v5465
      %v5498 = vadd.f32 %v5432, %v5466
      %v5499 = vadd.f32 %v5433, %v5467
      %v5500 = vadd.f32 %v5434, %v5468
      %v5501 = vadd.f32 %v5435, %v5469
      %v5502 = vadd.f32 %v5436, %v5470
      %v5503 = vadd.f32 %v5437, %v5471
      %v5504 = vadd.f32 %v5438, %v5472
      %v5505 = vld [vmem:[#allocation2 + $0x4] sm:$0xff]
      %v5506 = vld [vmem:[#allocation2 + $0xc] sm:$0xff]
      %v5507 = vld [vmem:[#allocation2 + $0x1c] sm:$0xff]
      %v5508 = vld [vmem:[#allocation2 + $0x24] sm:$0xff]
      %v5509 = vld [vmem:[#allocation2 + $0x34] sm:$0xff]
      %v5510 = vld [vmem:[#allocation2 + $0x3c] sm:$0xff]
      %v5511 = vld [vmem:[#allocation2 + $0x4c] sm:$0xff]
      %v5512 = vld [vmem:[#allocation2 + $0x54] sm:$0xff]
      %v5513 = vld [vmem:[#allocation2 + $0x64] sm:$0xff]
      %v5514 = vld [vmem:[#allocation2 + $0x6c] sm:$0xff]
      %v5515 = vld [vmem:[#allocation2 + $0x7c] sm:$0xff]
      %v5516 = vld [vmem:[#allocation2 + $0x84] sm:$0xff]
      %v5517 = vld [vmem:[#allocation2 + $0x94] sm:$0xff]
      %v5518 = vld [vmem:[#allocation2 + $0x9c] sm:$0xff]
      %v5519 = vld [vmem:[#allocation2 + $0xac] sm:$0xff]
      %v5520 = vld [vmem:[#allocation2 + $0xb4] sm:$0xff]
      %v5521 = vld [vmem:[#allocation2 + $0xc4] sm:$0xff]
      %v5522 = vld [vmem:[#allocation2 + $0xcc] sm:$0xff]
      %v5523 = vld [vmem:[#allocation2 + $0xdc] sm:$0xff]
      %v5524 = vld [vmem:[#allocation2 + $0xe4] sm:$0xff]
      %v5525 = vld [vmem:[#allocation2 + $0xf4] sm:$0xff]
      %v5526 = vld [vmem:[#allocation2 + $0xfc] sm:$0xff]
      %v5527 = vld [vmem:[#allocation2 + $0x10c] sm:$0xff]
      %v5528 = vld [vmem:[#allocation2 + $0x114] sm:$0xff]
      %v5529 = vld [vmem:[#allocation2 + $0x124] sm:$0xff]
      %v5530 = vld [vmem:[#allocation2 + $0x12c] sm:$0xff]
      %v5531 = vld [vmem:[#allocation2 + $0x13c] sm:$0xff]
      %v5532 = vld [vmem:[#allocation2 + $0x144] sm:$0xff]
      %v5533 = vld [vmem:[#allocation2 + $0x154] sm:$0xff]
      %v5534 = vld [vmem:[#allocation2 + $0x15c] sm:$0xff]
      %v5535 = vld [vmem:[#allocation2 + $0x16c] sm:$0xff]
      %v5536 = vld [vmem:[#allocation2 + $0x174] sm:$0xff]
      %v5537 = vld [vmem:[#allocation2 + $0x184] sm:$0xff]
      %v5538 = vld [vmem:[#allocation2 + $0x18c] sm:$0xff]
      %v5539 = vld [vmem:[#allocation2 + $0x19c] sm:$0xff]
      %v5540 = vld [vmem:[#allocation2 + $0x1a4] sm:$0xff]
      %v5541 = vld [vmem:[#allocation2 + $0x1b4] sm:$0xff]
      %v5542 = vld [vmem:[#allocation2 + $0x1bc] sm:$0xff]
      %v5543 = vld [vmem:[#allocation2 + $0x1cc] sm:$0xff]
      %v5544 = vld [vmem:[#allocation2 + $0x1d4] sm:$0xff]
      %v5545 = vld [vmem:[%s8 + $0x4] sm:$0x1]
      %v5546 = vperm.slane %v5545, 0
      %v5547 = vmul.f32 %v5546, %v5505
      %v5548 = vmul.f32 %v5546, %v5506
      %v5549 = vmul.f32 %v5546, %v5507
      %v5550 = vmul.f32 %v5546, %v5508
      %v5551 = vmul.f32 %v5546, %v5509
      %v5552 = vmul.f32 %v5546, %v5510
      %v5553 = vmul.f32 %v5546, %v5511
      %v5554 = vmul.f32 %v5546, %v5512
      %v5555 = vmul.f32 %v5546, %v5513
      %v5556 = vmul.f32 %v5546, %v5514
      %v5557 = vmul.f32 %v5546, %v5515
      %v5558 = vmul.f32 %v5546, %v5516
      %v5559 = vmul.f32 %v5546, %v5517
      %v5560 = vmul.f32 %v5546, %v5518
      %v5561 = vmul.f32 %v5546, %v5519
      %v5562 = vmul.f32 %v5546, %v5520
      %v5563 = vmul.f32 %v5546, %v5521
      %v5564 = vmul.f32 %v5546, %v5522
      %v5565 = vmul.f32 %v5546, %v5523
      %v5566 = vmul.f32 %v5546, %v5524
      %v5567 = vmul.f32 %v5546, %v5525
      %v5568 = vmul.f32 %v5546, %v5526
      %v5569 = vmul.f32 %v5546, %v5527
      %v5570 = vmul.f32 %v5546, %v5528
      %v5571 = vmul.f32 %v5546, %v5529
      %v5572 = vmul.f32 %v5546, %v5530
      %v5573 = vmul.f32 %v5546, %v5531
      %v5574 = vmul.f32 %v5546, %v5532
      %v5575 = vmul.f32 %v5546, %v5533
      %v5576 = vmul.f32 %v5546, %v5534
      %v5577 = vmul.f32 %v5546, %v5535
      %v5578 = vmul.f32 %v5546, %v5536
      %v5579 = vld [vmem:[%s8 + $0x9] sm:$0x1]
      %v5580 = vperm.slane %v5579, 0
      %v5581 = vmul.f32 %v5580, %v5507
      %v5582 = vmul.f32 %v5580, %v5508
      %v5583 = vmul.f32 %v5580, %v5509
      %v5584 = vmul.f32 %v5580, %v5510
      %v5585 = vmul.f32 %v5580, %v5511
      %v5586 = vmul.f32 %v5580, %v5512
      %v5587 = vmul.f32 %v5580, %v5513
      %v5588 = vmul.f32 %v5580, %v5514
      %v5589 = vmul.f32 %v5580, %v5515
      %v5590 = vmul.f32 %v5580, %v5516
      %v5591 = vmul.f32 %v5580, %v5517
      %v5592 = vmul.f32 %v5580, %v5518
      %v5593 = vmul.f32 %v5580, %v5519
      %v5594 = vmul.f32 %v5580, %v5520
      %v5595 = vmul.f32 %v5580, %v5521
      %v5596 = vmul.f32 %v5580, %v5522
      %v5597 = vmul.f32 %v5580, %v5523
      %v5598 = vmul.f32 %v5580, %v5524
      %v5599 = vmul.f32 %v5580, %v5525
      %v5600 = vmul.f32 %v5580, %v5526
      %v5601 = vmul.f32 %v5580, %v5527
      %v5602 = vmul.f32 %v5580, %v5528
      %v5603 = vmul.f32 %v5580, %v5529
      %v5604 = vmul.f32 %v5580, %v5530
      %v5605 = vmul.f32 %v5580, %v5531
      %v5606 = vmul.f32 %v5580, %v5532
      %v5607 = vmul.f32 %v5580, %v5533
      %v5608 = vmul.f32 %v5580, %v5534
      %v5609 = vmul.f32 %v5580, %v5535
      %v5610 = vmul.f32 %v5580, %v5536
      %v5611 = vmul.f32 %v5580, %v5537
      %v5612 = vmul.f32 %v5580, %v5538
      %v5613 = vadd.f32 %v5547, %v5581
      %v5614 = vadd.f32 %v5548, %v5582
      %v5615 = vadd.f32 %v5549, %v5583
      %v5616 = vadd.f32 %v5550, %v5584
      %v5617 = vadd.f32 %v5551, %v5585
      %v5618 = vadd.f32 %v5552, %v5586
      %v5619 = vadd.f32 %v5553, %v5587
      %v5620 = vadd.f32 %v5554, %v5588
      %v5621 = vadd.f32 %v5555, %v5589
      %v5622 = vadd.f32 %v5556, %v5590
      %v5623 = vadd.f32 %v5557, %v5591
      %v5624 = vadd.f32 %v5558, %v5592
      %v5625 = vadd.f32 %v5559, %v5593
      %v5626 = vadd.f32 %v5560, %v5594
      %v5627 = vadd.f32 %v5561, %v5595
      %v5628 = vadd.f32 %v5562, %v5596
      %v5629 = vadd.f32 %v5563, %v5597
      %v5630 = vadd.f32 %v5564, %v5598
      %v5631 = vadd.f32 %v5565, %v5599
      %v5632 = vadd.f32 %v5566, %v5600
      %v5633 = vadd.f32 %v5567, %v5601
      %v5634 = vadd.f32 %v5568, %v5602
      %v5635 = vadd.f32 %v5569, %v5603
      %v5636 = vadd.f32 %v5570, %v5604
      %v5637 = vadd.f32 %v5571, %v5605
      %v5638 = vadd.f32 %v5572, %v5606
      %v5639 = vadd.f32 %v5573, %v5607
      %v5640 = vadd.f32 %v5574, %v5608
      %v5641 = vadd.f32 %v5575, %v5609
      %v5642 = vadd.f32 %v5576, %v5610
      %v5643 = vadd.f32 %v5577, %v5611
      %v5644 = vadd.f32 %v5578, %v5612
      %v5645 = vld [vmem:[%s8 + $0xe] sm:$0x1]
      %v5646 = vperm.slane %v5645, 0
      %v5647 = vmul.f32 %v5646, %v5509
      %v5648 = vmul.f32 %v5646, %v5510
      %v5649 = vmul.f32 %v5646, %v5511
      %v5650 = vmul.f32 %v5646, %v5512
      %v5651 = vmul.f32 %v5646, %v5513
      %v5652 = vmul.f32 %v5646, %v5514
      %v5653 = vmul.f32 %v5646, %v5515
      %v5654 = vmul.f32 %v5646, %v5516
      %v5655 = vmul.f32 %v5646, %v5517
      %v5656 = vmul.f32 %v5646, %v5518
      %v5657 = vmul.f32 %v5646, %v5519
      %v5658 = vmul.f32 %v5646, %v5520
      %v5659 = vmul.f32 %v5646, %v5521
      %v5660 = vmul.f32 %v5646, %v5522
      %v5661 = vmul.f32 %v5646, %v5523
      %v5662 = vmul.f32 %v5646, %v5524
      %v5663 = vmul.f32 %v5646, %v5525
      %v5664 = vmul.f32 %v5646, %v5526
      %v5665 = vmul.f32 %v5646, %v5527
      %v5666 = vmul.f32 %v5646, %v5528
      %v5667 = vmul.f32 %v5646, %v5529
      %v5668 = vmul.f32 %v5646, %v5530
      %v5669 = vmul.f32 %v5646, %v5531
      %v5670 = vmul.f32 %v5646, %v5532
      %v5671 = vmul.f32 %v5646, %v5533
      %v5672 = vmul.f32 %v5646, %v5534
      %v5673 = vmul.f32 %v5646, %v5535
      %v5674 = vmul.f32 %v5646, %v5536
      %v5675 = vmul.f32 %v5646, %v5537
      %v5676 = vmul.f32 %v5646, %v5538
      %v5677 = vmul.f32 %v5646, %v5539
      %v5678 = vmul.f32 %v5646, %v5540
      %v5679 = vadd.f32 %v5613, %v5647
      %v5680 = vadd.f32 %v5614, %v5648
      %v5681 = vadd.f32 %v5615, %v5649
      %v5682 = vadd.f32 %v5616, %v5650
      %v5683 = vadd.f32 %v5617, %v5651
      %v5684 = vadd.f32 %v5618, %v5652
      %v5685 = vadd.f32 %v5619, %v5653
      %v5686 = vadd.f32 %v5620, %v5654
      %v5687 = vadd.f32 %v5621, %v5655
      %v5688 = vadd.f32 %v5622, %v5656
      %v5689 = vadd.f32 %v5623, %v5657
      %v5690 = vadd.f32 %v5624, %v5658
      %v5691 = vadd.f32 %v5625, %v5659
      %v5692 = vadd.f32 %v5626, %v5660
      %v5693 = vadd.f32 %v5627, %v5661
      %v5694 = vadd.f32 %v5628, %v5662
      %v5695 = vadd.f32 %v5629, %v5663
      %v5696 = vadd.f32 %v5630, %v5664
      %v5697 = vadd.f32 %v5631, %v5665
      %v5698 = vadd.f32 %v5632, %v5666
      %v5699 = vadd.f32 %v5633, %v5667
      %v5700 = vadd.f32 %v5634, %v5668
      %v5701 = vadd.f32 %v5635, %v5669
      %v5702 = vadd.f32 %v5636, %v5670
      %v5703 = vadd.f32 %v5637, %v5671
      %v5704 = vadd.f32 %v5638, %v5672
      %v5705 = vadd.f32 %v5639, %v5673
      %v5706 = vadd.f32 %v5640, %v5674
      %v5707 = vadd.f32 %v5641, %v5675
      %v5708 = vadd.f32 %v5642, %v5676
      %v5709 = vadd.f32 %v5643, %v5677
      %v5710 = vadd.f32 %v5644, %v5678
      %v5711 = vld [vmem:[%s8 + $0x13] sm:$0x1]
      %v5712 = vperm.slane %v5711, 0
      %v5713 = vmul.f32 %v5712, %v5511
      %v5714 = vmul.f32 %v5712, %v5512
      %v5715 = vmul.f32 %v5712, %v5513
      %v5716 = vmul.f32 %v5712, %v5514
      %v5717 = vmul.f32 %v5712, %v5515
      %v5718 = vmul.f32 %v5712, %v5516
      %v5719 = vmul.f32 %v5712, %v5517
      %v5720 = vmul.f32 %v5712, %v5518
      %v5721 = vmul.f32 %v5712, %v5519
      %v5722 = vmul.f32 %v5712, %v5520
      %v5723 = vmul.f32 %v5712, %v5521
      %v5724 = vmul.f32 %v5712, %v5522
      %v5725 = vmul.f32 %v5712, %v5523
      %v5726 = vmul.f32 %v5712, %v5524
      %v5727 = vmul.f32 %v5712, %v5525
      %v5728 = vmul.f32 %v5712, %v5526
      %v5729 = vmul.f32 %v5712, %v5527
      %v5730 = vmul.f32 %v5712, %v5528
      %v5731 = vmul.f32 %v5712, %v5529
      %v5732 = vmul.f32 %v5712, %v5530
      %v5733 = vmul.f32 %v5712, %v5531
      %v5734 = vmul.f32 %v5712, %v5532
      %v5735 = vmul.f32 %v5712, %v5533
      %v5736 = vmul.f32 %v5712, %v5534
      %v5737 = vmul.f32 %v5712, %v5535
      %v5738 = vmul.f32 %v5712, %v5536
      %v5739 = vmul.f32 %v5712, %v5537
      %v5740 = vmul.f32 %v5712, %v5538
      %v5741 = vmul.f32 %v5712, %v5539
      %v5742 = vmul.f32 %v5712, %v5540
      %v5743 = vmul.f32 %v5712, %v5541
      %v5744 = vmul.f32 %v5712, %v5542
      %v5745 = vadd.f32 %v5679, %v5713
      %v5746 = vadd.f32 %v5680, %v5714
      %v5747 = vadd.f32 %v5681, %v5715
      %v5748 = vadd.f32 %v5682, %v5716
      %v5749 = vadd.f32 %v5683, %v5717
      %v5750 = vadd.f32 %v5684, %v5718
      %v5751 = vadd.f32 %v5685, %v5719
      %v5752 = vadd.f32 %v5686, %v5720
      %v5753 = vadd.f32 %v5687, %v5721
      %v5754 = vadd.f32 %v5688, %v5722
      %v5755 = vadd.f32 %v5689, %v5723
      %v5756 = vadd.f32 %v5690, %v5724
      %v5757 = vadd.f32 %v5691, %v5725
      %v5758 = vadd.f32 %v5692, %v5726
      %v5759 = vadd.f32 %v5693, %v5727
      %v5760 = vadd.f32 %v5694, %v5728
      %v5761 = vadd.f32 %v5695, %v5729
      %v5762 = vadd.f32 %v5696, %v5730
      %v5763 = vadd.f32 %v5697, %v5731
      %v5764 = vadd.f32 %v5698, %v5732
      %v5765 = vadd.f32 %v5699, %v5733
      %v5766 = vadd.f32 %v5700, %v5734
      %v5767 = vadd.f32 %v5701, %v5735
      %v5768 = vadd.f32 %v5702, %v5736
      %v5769 = vadd.f32 %v5703, %v5737
      %v5770 = vadd.f32 %v5704, %v5738
      %v5771 = vadd.f32 %v5705, %v5739
      %v5772 = vadd.f32 %v5706, %v5740
      %v5773 = vadd.f32 %v5707, %v5741
      %v5774 = vadd.f32 %v5708, %v5742
      %v5775 = vadd.f32 %v5709, %v5743
      %v5776 = vadd.f32 %v5710, %v5744
      %v5777 = vld [vmem:[%s8 + $0x18] sm:$0x1]
      %v5778 = vperm.slane %v5777, 0
      %v5779 = vmul.f32 %v5778, %v5513
      %v5780 = vmul.f32 %v5778, %v5514
      %v5781 = vmul.f32 %v5778, %v5515
      %v5782 = vmul.f32 %v5778, %v5516
      %v5783 = vmul.f32 %v5778, %v5517
      %v5784 = vmul.f32 %v5778, %v5518
      %v5785 = vmul.f32 %v5778, %v5519
      %v5786 = vmul.f32 %v5778, %v5520
      %v5787 = vmul.f32 %v5778, %v5521
      %v5788 = vmul.f32 %v5778, %v5522
      %v5789 = vmul.f32 %v5778, %v5523
      %v5790 = vmul.f32 %v5778, %v5524
      %v5791 = vmul.f32 %v5778, %v5525
      %v5792 = vmul.f32 %v5778, %v5526
      %v5793 = vmul.f32 %v5778, %v5527
      %v5794 = vmul.f32 %v5778, %v5528
      %v5795 = vmul.f32 %v5778, %v5529
      %v5796 = vmul.f32 %v5778, %v5530
      %v5797 = vmul.f32 %v5778, %v5531
      %v5798 = vmul.f32 %v5778, %v5532
      %v5799 = vmul.f32 %v5778, %v5533
      %v5800 = vmul.f32 %v5778, %v5534
      %v5801 = vmul.f32 %v5778, %v5535
      %v5802 = vmul.f32 %v5778, %v5536
      %v5803 = vmul.f32 %v5778, %v5537
      %v5804 = vmul.f32 %v5778, %v5538
      %v5805 = vmul.f32 %v5778, %v5539
      %v5806 = vmul.f32 %v5778, %v5540
      %v5807 = vmul.f32 %v5778, %v5541
      %v5808 = vmul.f32 %v5778, %v5542
      %v5809 = vmul.f32 %v5778, %v5543
      %v5810 = vmul.f32 %v5778, %v5544
      %v5811 = vadd.f32 %v5745, %v5779
      %v5812 = vadd.f32 %v5746, %v5780
      %v5813 = vadd.f32 %v5747, %v5781
      %v5814 = vadd.f32 %v5748, %v5782
      %v5815 = vadd.f32 %v5749, %v5783
      %v5816 = vadd.f32 %v5750, %v5784
      %v5817 = vadd.f32 %v5751, %v5785
      %v5818 = vadd.f32 %v5752, %v5786
      %v5819 = vadd.f32 %v5753, %v5787
      %v5820 = vadd.f32 %v5754, %v5788
      %v5821 = vadd.f32 %v5755, %v5789
      %v5822 = vadd.f32 %v5756, %v5790
      %v5823 = vadd.f32 %v5757, %v5791
      %v5824 = vadd.f32 %v5758, %v5792
      %v5825 = vadd.f32 %v5759, %v5793
      %v5826 = vadd.f32 %v5760, %v5794
      %v5827 = vadd.f32 %v5761, %v5795
      %v5828 = vadd.f32 %v5762, %v5796
      %v5829 = vadd.f32 %v5763, %v5797
      %v5830 = vadd.f32 %v5764, %v5798
      %v5831 = vadd.f32 %v5765, %v5799
      %v5832 = vadd.f32 %v5766, %v5800
      %v5833 = vadd.f32 %v5767, %v5801
      %v5834 = vadd.f32 %v5768, %v5802
      %v5835 = vadd.f32 %v5769, %v5803
      %v5836 = vadd.f32 %v5770, %v5804
      %v5837 = vadd.f32 %v5771, %v5805
      %v5838 = vadd.f32 %v5772, %v5806
      %v5839 = vadd.f32 %v5773, %v5807
      %v5840 = vadd.f32 %v5774, %v5808
      %v5841 = vadd.f32 %v5775, %v5809
      %v5842 = vadd.f32 %v5776, %v5810
      %v5843 = vadd.f32 %v4459, %v4797
      %v5844 = vadd.f32 %v4460, %v4798
      %v5845 = vadd.f32 %v4461, %v4799
      %v5846 = vadd.f32 %v4462, %v4800
      %v5847 = vadd.f32 %v4463, %v4801
      %v5848 = vadd.f32 %v4464, %v4802
      %v5849 = vadd.f32 %v4465, %v4803
      %v5850 = vadd.f32 %v4466, %v4804
      %v5851 = vadd.f32 %v4467, %v4805
      %v5852 = vadd.f32 %v4468, %v4806
      %v5853 = vadd.f32 %v4469, %v4807
      %v5854 = vadd.f32 %v4470, %v4808
      %v5855 = vadd.f32 %v4471, %v4809
      %v5856 = vadd.f32 %v4472, %v4810
      %v5857 = vadd.f32 %v4473, %v4811
      %v5858 = vadd.f32 %v4474, %v4812
      %v5859 = vadd.f32 %v4475, %v4813
      %v5860 = vadd.f32 %v4476, %v4814
      %v5861 = vadd.f32 %v4477, %v4815
      %v5862 = vadd.f32 %v4478, %v4816
      %v5863 = vadd.f32 %v4479, %v4817
      %v5864 = vadd.f32 %v4480, %v4818
      %v5865 = vadd.f32 %v4481, %v4819
      %v5866 = vadd.f32 %v4482, %v4820
      %v5867 = vadd.f32 %v4483, %v4821
      %v5868 = vadd.f32 %v4484, %v4822
      %v5869 = vadd.f32 %v4485, %v4823
      %v5870 = vadd.f32 %v4486, %v4824
      %v5871 = vadd.f32 %v4487, %v4825
      %v5872 = vadd.f32 %v4488, %v4826
      %v5873 = vadd.f32 %v4489, %v4827
      %v5874 = vadd.f32 %v4490, %v4828
      %v5875 = vadd.f32 %v5135, %v5473
      %v5876 = vadd.f32 %v5136, %v5474
      %v5877 = vadd.f32 %v5137, %v5475
      %v5878 = vadd.f32 %v5138, %v5476
      %v5879 = vadd.f32 %v5139, %v5477
      %v5880 = vadd.f32 %v5140, %v5478
      %v5881 = vadd.f32 %v5141, %v5479
      %v5882 = vadd.f32 %v5142, %v5480
      %v5883 = vadd.f32 %v5143, %v5481
      %v5884 = vadd.f32 %v5144, %v5482
      %v5885 = vadd.f32 %v5145, %v5483
      %v5886 = vadd.f32 %v5146, %v5484
      %v5887 = vadd.f32 %v5147, %v5485
      %v5888 = vadd.f32 %v5148, %v5486
      %v5889 = vadd.f32 %v5149, %v5487
      %v5890 = vadd.f32 %v5150, %v5488
      %v5891 = vadd.f32 %v5151, %v5489
      %v5892 = vadd.f32 %v5152, %v5490
      %v5893 = vadd.f32 %v5153, %v5491
      %v5894 = vadd.f32 %v5154, %v5492
      %v5895 = vadd.f32 %v5155, %v5493
      %v5896 = vadd.f32 %v5156, %v5494
      %v5897 = vadd.f32 %v5157, %v5495
      %v5898 = vadd.f32 %v5158, %v5496
      %v5899 = vadd.f32 %v5159, %v5497
      %v5900 = vadd.f32 %v5160, %v5498
      %v5901 = vadd.f32 %v5161, %v5499
      %v5902 = vadd.f32 %v5162, %v5500
      %v5903 = vadd.f32 %v5163, %v5501
      %v5904 = vadd.f32 %v5164, %v5502
      %v5905 = vadd.f32 %v5165, %v5503
      %v5906 = vadd.f32 %v5166, %v5504
      %v5907 = vadd.f32 %v5843, %v5875
      %v5908 = vadd.f32 %v5844, %v5876
      %v5909 = vadd.f32 %v5845, %v5877
      %v5910 = vadd.f32 %v5846, %v5878
      %v5911 = vadd.f32 %v5847, %v5879
      %v5912 = vadd.f32 %v5848, %v5880
      %v5913 = vadd.f32 %v5849, %v5881
      %v5914 = vadd.f32 %v5850, %v5882
      %v5915 = vadd.f32 %v5851, %v5883
      %v5916 = vadd.f32 %v5852, %v5884
      %v5917 = vadd.f32 %v5853, %v5885
      %v5918 = vadd.f32 %v5854, %v5886
      %v5919 = vadd.f32 %v5855, %v5887
      %v5920 = vadd.f32 %v5856, %v5888
      %v5921 = vadd.f32 %v5857, %v5889
      %v5922 = vadd.f32 %v5858, %v5890
      %v5923 = vadd.f32 %v5859, %v5891
      %v5924 = vadd.f32 %v5860, %v5892
      %v5925 = vadd.f32 %v5861, %v5893
      %v5926 = vadd.f32 %v5862, %v5894
      %v5927 = vadd.f32 %v5863, %v5895
      %v5928 = vadd.f32 %v5864, %v5896
      %v5929 = vadd.f32 %v5865, %v5897
      %v5930 = vadd.f32 %v5866, %v5898
      %v5931 = vadd.f32 %v5867, %v5899
      %v5932 = vadd.f32 %v5868, %v5900
      %v5933 = vadd.f32 %v5869, %v5901
      %v5934 = vadd.f32 %v5870, %v5902
      %v5935 = vadd.f32 %v5871, %v5903
      %v5936 = vadd.f32 %v5872, %v5904
      %v5937 = vadd.f32 %v5873, %v5905
      %v5938 = vadd.f32 %v5874, %v5906
      %v5939 = vadd.f32 %v5907, %v5811
      %v5940 = vadd.f32 %v5908, %v5812
      %v5941 = vadd.f32 %v5909, %v5813
      %v5942 = vadd.f32 %v5910, %v5814
      %v5943 = vadd.f32 %v5911, %v5815
      %v5944 = vadd.f32 %v5912, %v5816
      %v5945 = vadd.f32 %v5913, %v5817
      %v5946 = vadd.f32 %v5914, %v5818
      %v5947 = vadd.f32 %v5915, %v5819
      %v5948 = vadd.f32 %v5916, %v5820
      %v5949 = vadd.f32 %v5917, %v5821
      %v5950 = vadd.f32 %v5918, %v5822
      %v5951 = vadd.f32 %v5919, %v5823
      %v5952 = vadd.f32 %v5920, %v5824
      %v5953 = vadd.f32 %v5921, %v5825
      %v5954 = vadd.f32 %v5922, %v5826
      %v5955 = vadd.f32 %v5923, %v5827
      %v5956 = vadd.f32 %v5924, %v5828
      %v5957 = vadd.f32 %v5925, %v5829
      %v5958 = vadd.f32 %v5926, %v5830
      %v5959 = vadd.f32 %v5927, %v5831
      %v5960 = vadd.f32 %v5928, %v5832
      %v5961 = vadd.f32 %v5929, %v5833
      %v5962 = vadd.f32 %v5930, %v5834
      %v5963 = vadd.f32 %v5931, %v5835
      %v5964 = vadd.f32 %v5932, %v5836
      %v5965 = vadd.f32 %v5933, %v5837
      %v5966 = vadd.f32 %v5934, %v5838
      %v5967 = vadd.f32 %v5935, %v5839
      %v5968 = vadd.f32 %v5936, %v5840
      %v5969 = vadd.f32 %v5937, %v5841
      %v5970 = vadd.f32 %v5938, %v5842
      %v5971 = vld [vmem:[%s9] sm:$0x1]
      %v5973 = vperm.slane %v5971, 0
      %v5975 = vadd.f32 %v5939, %v5973
      %v5976 = vadd.f32 %v5940, %v5973
      %v5977 = vadd.f32 %v5941, %v5973
      %v5978 = vadd.f32 %v5942, %v5973
      %v5979 = vadd.f32 %v5943, %v5973
      %v5980 = vadd.f32 %v5944, %v5973
      %v5981 = vadd.f32 %v5945, %v5973
      %v5982 = vadd.f32 %v5946, %v5973
      %v5983 = vadd.f32 %v5947, %v5973
      %v5984 = vadd.f32 %v5948, %v5973
      %v5985 = vadd.f32 %v5949, %v5973
      %v5986 = vadd.f32 %v5950, %v5973
      %v5987 = vadd.f32 %v5951, %v5973
      %v5988 = vadd.f32 %v5952, %v5973
      %v5989 = vadd.f32 %v5953, %v5973
      %v5990 = vadd.f32 %v5954, %v5973
      %v5991 = vadd.f32 %v5955, %v5973
      %v5992 = vadd.f32 %v5956, %v5973
      %v5993 = vadd.f32 %v5957, %v5973
      %v5994 = vadd.f32 %v5958, %v5973
      %v5995 = vadd.f32 %v5959, %v5973
      %v5996 = vadd.f32 %v5960, %v5973
      %v5997 = vadd.f32 %v5961, %v5973
      %v5998 = vadd.f32 %v5962, %v5973
      %v5999 = vadd.f32 %v5963, %v5973
      %v6000 = vadd.f32 %v5964, %v5973
      %v6001 = vadd.f32 %v5965, %v5973
      %v6002 = vadd.f32 %v5966, %v5973
      %v6003 = vadd.f32 %v5967, %v5973
      %v6004 = vadd.f32 %v5968, %v5973
      %v6005 = vadd.f32 %v5969, %v5973
      %v6006 = vadd.f32 %v5970, %v5973
      %v6007 = vlaneseq
      %v6008 = vand.u32 %v6007, 127
      %vm6009 = vcmp.lt.s32.totalorder %v6008, 2
      %v6010 = vsel %vm6009, %v4089, 0.0
      %v6011 = vsel %vm6009, %v4090, 0.0
      %v6012 = vsel %vm6009, %v4091, 0.0
      %v6013 = vsel %vm6009, %v4092, 0.0
      %v6014 = vsel %vm6009, %v4093, 0.0
      %v6015 = vsel %vm6009, %v4094, 0.0
      %v6016 = vsel %vm6009, %v4095, 0.0
      %v6017 = vsel %vm6009, %v4096, 0.0
      %v6018 = vsel %vm6009, %v4097, 0.0
      %v6019 = vsel %vm6009, %v4098, 0.0
      %v6020 = vsel %vm6009, %v4099, 0.0
      %v6021 = vsel %vm6009, %v4100, 0.0
      %v6022 = vsel %vm6009, %v4101, 0.0
      %v6023 = vsel %vm6009, %v4102, 0.0
      %v6024 = vsel %vm6009, %v4103, 0.0
      %v6025 = vsel %vm6009, %v4104, 0.0
      %v6026 = vsel %vm6009, %v4105, 0.0
      %v6027 = vsel %vm6009, %v4106, 0.0
      %v6028 = vsel %vm6009, %v4107, 0.0
      %v6029 = vsel %vm6009, %v4108, 0.0
      %v6030 = vsel %vm6009, %v4109, 0.0
      %v6031 = vsel %vm6009, %v4110, 0.0
      %v6032 = vsel %vm6009, %v4111, 0.0
      %v6033 = vsel %vm6009, %v4112, 0.0
      %v6034 = vsel %vm6009, %v4113, 0.0
      %v6035 = vsel %vm6009, %v4114, 0.0
      %v6036 = vsel %vm6009, %v4115, 0.0
      %v6037 = vsel %vm6009, %v4116, 0.0
      %v6038 = vsel %vm6009, %v4117, 0.0
      %v6039 = vsel %vm6009, %v4118, 0.0
      %v6040 = vsel %vm6009, %v4119, 0.0
      %v6041 = vsel %vm6009, %v4120, 0.0
      %v6042 = vsel %vm397, %v360, 0.0
      %v6043 = vsel %vm397, %v361, 0.0
      %v6044 = vsel %vm397, %v362, 0.0
      %v6045 = vsel %vm397, %v363, 0.0
      %v6046 = vsel %vm397, %v364, 0.0
      %v6047 = vsel %vm397, %v365, 0.0
      %v6048 = vsel %vm397, %v366, 0.0
      %v6049 = vsel %vm397, %v367, 0.0
      %v6050 = vsel %vm397, %v368, 0.0
      %v6051 = vsel %vm397, %v369, 0.0
      %v6052 = vsel %vm397, %v370, 0.0
      %v6053 = vsel %vm397, %v371, 0.0
      %v6054 = vsel %vm397, %v372, 0.0
      %v6055 = vsel %vm397, %v373, 0.0
      %v6056 = vsel %vm397, %v374, 0.0
      %v6057 = vsel %vm397, %v375, 0.0
      %v6058 = vsel %vm397, %v376, 0.0
      %v6059 = vsel %vm397, %v377, 0.0
      %v6060 = vsel %vm397, %v378, 0.0
      %v6061 = vsel %vm397, %v379, 0.0
      %v6062 = vsel %vm397, %v380, 0.0
      %v6063 = vsel %vm397, %v381, 0.0
      %v6064 = vsel %vm397, %v382, 0.0
      %v6065 = vsel %vm397, %v383, 0.0
      %v6066 = vsel %vm397, %v384, 0.0
      %v6067 = vsel %vm397, %v385, 0.0
      %v6068 = vsel %vm397, %v386, 0.0
      %v6069 = vsel %vm397, %v387, 0.0
      %v6070 = vsel %vm397, %v388, 0.0
      %v6071 = vsel %vm397, %v389, 0.0
      %v6072 = vsel %vm397, %v390, 0.0
      %v6073 = vsel %vm397, %v391, 0.0
      %v6074 = vadd.f32 %v6010, %v5975
      %v6075 = vadd.f32 %v6011, %v5976
      %v6076 = vadd.f32 %v6012, %v5977
      %v6077 = vadd.f32 %v6013, %v5978
      %v6078 = vadd.f32 %v6014, %v5979
      %v6079 = vadd.f32 %v6015, %v5980
      %v6080 = vadd.f32 %v6016, %v5981
      %v6081 = vadd.f32 %v6017, %v5982
      %v6082 = vadd.f32 %v6018, %v5983
      %v6083 = vadd.f32 %v6019, %v5984
      %v6084 = vadd.f32 %v6020, %v5985
      %v6085 = vadd.f32 %v6021, %v5986
      %v6086 = vadd.f32 %v6022, %v5987
      %v6087 = vadd.f32 %v6023, %v5988
      %v6088 = vadd.f32 %v6024, %v5989
      %v6089 = vadd.f32 %v6025, %v5990
      %v6090 = vadd.f32 %v6026, %v5991
      %v6091 = vadd.f32 %v6027, %v5992
      %v6092 = vadd.f32 %v6028, %v5993
      %v6093 = vadd.f32 %v6029, %v5994
      %v6094 = vadd.f32 %v6030, %v5995
      %v6095 = vadd.f32 %v6031, %v5996
      %v6096 = vadd.f32 %v6032, %v5997
      %v6097 = vadd.f32 %v6033, %v5998
      %v6098 = vadd.f32 %v6034, %v5999
      %v6099 = vadd.f32 %v6035, %v6000
      %v6100 = vadd.f32 %v6036, %v6001
      %v6101 = vadd.f32 %v6037, %v6002
      %v6102 = vadd.f32 %v6038, %v6003
      %v6103 = vadd.f32 %v6039, %v6004
      %v6104 = vadd.f32 %v6040, %v6005
      %v6105 = vadd.f32 %v6041, %v6006
      %v6106 = vadd.f32 %v6074, %v6042
      %v6107 = vadd.f32 %v6075, %v6043
      %v6108 = vadd.f32 %v6076, %v6044
      %v6109 = vadd.f32 %v6077, %v6045
      %v6110 = vadd.f32 %v6078, %v6046
      %v6111 = vadd.f32 %v6079, %v6047
      %v6112 = vadd.f32 %v6080, %v6048
      %v6113 = vadd.f32 %v6081, %v6049
      %v6114 = vadd.f32 %v6082, %v6050
      %v6115 = vadd.f32 %v6083, %v6051
      %v6116 = vadd.f32 %v6084, %v6052
      %v6117 = vadd.f32 %v6085, %v6053
      %v6118 = vadd.f32 %v6086, %v6054
      %v6119 = vadd.f32 %v6087, %v6055
      %v6120 = vadd.f32 %v6088, %v6056
      %v6121 = vadd.f32 %v6089, %v6057
      %v6122 = vadd.f32 %v6090, %v6058
      %v6123 = vadd.f32 %v6091, %v6059
      %v6124 = vadd.f32 %v6092, %v6060
      %v6125 = vadd.f32 %v6093, %v6061
      %v6126 = vadd.f32 %v6094, %v6062
      %v6127 = vadd.f32 %v6095, %v6063
      %v6128 = vadd.f32 %v6096, %v6064
      %v6129 = vadd.f32 %v6097, %v6065
      %v6130 = vadd.f32 %v6098, %v6066
      %v6131 = vadd.f32 %v6099, %v6067
      %v6132 = vadd.f32 %v6100, %v6068
      %v6133 = vadd.f32 %v6101, %v6069
      %v6134 = vadd.f32 %v6102, %v6070
      %v6135 = vadd.f32 %v6103, %v6071
      %v6136 = vadd.f32 %v6104, %v6072
      %v6137 = vadd.f32 %v6105, %v6073
      %6138 = vst [vmem:[%s359] sm:$0xff] %v6106
      %6139 = vst [vmem:[%s359 + $0x8] sm:$0xff] %v6107
      %6140 = vst [vmem:[%s359 + $0x10] sm:$0xff] %v6108
      %6141 = vst [vmem:[%s359 + $0x18] sm:$0xff] %v6109
      %6142 = vst [vmem:[%s359 + $0x20] sm:$0xff] %v6110
      %6143 = vst [vmem:[%s359 + $0x28] sm:$0xff] %v6111
      %6144 = vst [vmem:[%s359 + $0x30] sm:$0xff] %v6112
      %6145 = vst [vmem:[%s359 + $0x38] sm:$0xff] %v6113
      %6146 = vst [vmem:[%s359 + $0x40] sm:$0xff] %v6114
      %6147 = vst [vmem:[%s359 + $0x48] sm:$0xff] %v6115
      %6148 = vst [vmem:[%s359 + $0x50] sm:$0xff] %v6116
      %6149 = vst [vmem:[%s359 + $0x58] sm:$0xff] %v6117
      %6150 = vst [vmem:[%s359 + $0x60] sm:$0xff] %v6118
      %6151 = vst [vmem:[%s359 + $0x68] sm:$0xff] %v6119
      %6152 = vst [vmem:[%s359 + $0x70] sm:$0xff] %v6120
      %6153 = vst [vmem:[%s359 + $0x78] sm:$0xff] %v6121
      %6154 = vst [vmem:[%s359 + $0x80] sm:$0xff] %v6122
      %6155 = vst [vmem:[%s359 + $0x88] sm:$0xff] %v6123
      %6156 = vst [vmem:[%s359 + $0x90] sm:$0xff] %v6124
      %6157 = vst [vmem:[%s359 + $0x98] sm:$0xff] %v6125
      %6158 = vst [vmem:[%s359 + $0xa0] sm:$0xff] %v6126
      %6159 = vst [vmem:[%s359 + $0xa8] sm:$0xff] %v6127
      %6160 = vst [vmem:[%s359 + $0xb0] sm:$0xff] %v6128
      %6161 = vst [vmem:[%s359 + $0xb8] sm:$0xff] %v6129
      %6162 = vst [vmem:[%s359 + $0xc0] sm:$0xff] %v6130
      %6163 = vst [vmem:[%s359 + $0xc8] sm:$0xff] %v6131
      %6164 = vst [vmem:[%s359 + $0xd0] sm:$0xff] %v6132
      %6165 = vst [vmem:[%s359 + $0xd8] sm:$0xff] %v6133
      %6166 = vst [vmem:[%s359 + $0xe0] sm:$0xff] %v6134
      %6167 = vst [vmem:[%s359 + $0xe8] sm:$0xff] %v6135
      %6168 = vst [vmem:[%s359 + $0xf0] sm:$0xff] %v6136
      %6169 = vst [vmem:[%s359 + $0xf8] sm:$0xff] %v6137
      %p6170 = scmp.lt.s32.totalorder %s21, 1
      %s6171 = scalar_select %p6170, %s21, 1
      %s6172 = smul.addr %s6171, 32
      %s6173 = smul.addr %s6172, 8
      %s6174 = scalar_lea.vmem %s10, %s6173
      // Predicated region
      $region61: #{ghost_bottleneck_forward.1} parent=59 // pred_check
        %p6175 = pneg %p254
      $region62: #{ghost_bottleneck_forward.1} parent=59 // pred_check_branch
        %6177 = sbr.rel (%p6175) target = $region64
      $region63: #{ghost_bottleneck_forward.1} parent=59 // pred_region
        _
      $region64: #{ghost_bottleneck_forward.1} parent=59 // pred_fallthru
        _
    $region60: #{ghost_bottleneck_forward.1} parent=5 // pred_fallthru
      _
    %p6178 = scmp.le.s32.totalorder 2, %s16
    // Predicated region
    $region65: #{ghost_bottleneck_forward.1} parent=5 // pred_check
      %p6179 = pneg %p6178
    $region66: #{ghost_bottleneck_forward.1} parent=5 // pred_check_branch
      %6181 = sbr.rel (%p6179) target = $region68
    $region67: #{ghost_bottleneck_forward.1} parent=5 // pred_region
      %s6182 = ssub.s32 %s16, 2
      // Predicated region
      $region69: #{ghost_bottleneck_forward.1} parent=67 // pred_check
        %p6183 = pneg %p260
      $region70: #{ghost_bottleneck_forward.1} parent=67 // pred_check_branch
        %6185 = sbr.rel (%p6183) target = $region72
      $region71: #{ghost_bottleneck_forward.1} parent=67 // pred_region
        %p6186 = scmp.lt.s32.totalorder %s22, 1
        %s6187 = scalar_select %p6186, %s22, 1
        %s6188 = smul.addr %s6187, 32
        %s6189 = smul.addr %s6188, 8
        %s6190 = scalar_lea.vmem %s10, %s6189
      $region72: #{ghost_bottleneck_forward.1} parent=67 // pred_fallthru
        _
    $region68: #{ghost_bottleneck_forward.1} parent=5 // pred_fallthru
      _
  $region6: #{ghost_bottleneck_forward.1} parent=0 // loop_footer
    %s20 = sadd.s32 1, %s16
  $region7: #{ghost_bottleneck_forward.1} parent=0 // loop_footer_branch
    %15 = sbr.rel target = $region3
  $region8: #{ghost_bottleneck_forward.1} parent=0 // loop_exit
    _

</llo_original>
